<compile_context>
chip_gen: v5e
topology: v5e:2x2
jax: 0.10.0
libtpu: 0.0.40
codegen_flags: <defaults>
</compile_context>

<pallas_src>
import functools

import jax
import jax.numpy as jnp
from jax import lax
from jax.experimental import pallas as pl
from jax.experimental.pallas import tpu as pltpu


# ----------------------------- Pallas kernel ------------------------------ #

def _inc_res_a_kernel(x_ref,
                      w0_ref, b0_ref,
                      w11_ref, b11_ref, w12_ref, b12_ref,
                      w21_ref, b21_ref, w22_ref, b22_ref, w23_ref, b23_ref,
                      wc0_ref, wc1_ref, wc2_ref,
                      o_ref, pad_ref, *, H, W, pad_rows):
    HW = H * W
    x2d = x_ref[0]                                   # (HW, Cin)

    # Zero the halo buffer once; only the interior is rewritten per 3x3 conv.
    # The zero borders provide the 'same' padding in the H direction.
    pad_ref[...] = jnp.zeros_like(pad_ref)

    # Column masks for the W-direction +-1 shifts (zero at image borders).
    col = lax.broadcasted_iota(jnp.int32, (HW, 1), 0) % W
    not_left = (col != 0).astype(jnp.float32)        # valid when reading w-1
    not_right = (col != W - 1).astype(jnp.float32)   # valid when reading w+1

    def conv1x1_bn_relu(act, w_ref_, b_ref_):
        y = jnp.dot(act, w_ref_[...], preferred_element_type=jnp.float32)
        return jnp.maximum(y + b_ref_[...], 0.0)

    def conv3x3_bn_relu(act, w_ref_, b_ref_):
        # act: (HW, C).  'same' 3x3 conv = 9 shifted matmuls accumulated.
        c_out = w_ref_.shape[2]
        pad_ref[pad_rows:pad_rows + HW, :] = act     # 8-aligned interior store
        acc = jnp.zeros((HW, c_out), jnp.float32)
        for dh in (-1, 0, 1):
            for dw in (-1, 0, 1):
                t = (dh + 1) * 3 + (dw + 1)          # tap index (kh*3 + kw)
                off = pad_rows + dh * W + dw
                shifted = pad_ref[off:off + HW, :]
                if dw == -1:
                    shifted = shifted * not_left
                elif dw == 1:
                    shifted = shifted * not_right
                acc = acc + jnp.dot(shifted, w_ref_[t],
                                    preferred_element_type=jnp.float32)
        return jnp.maximum(acc + b_ref_[...], 0.0)

    # Branch 0
    t0 = conv1x1_bn_relu(x2d, w0_ref, b0_ref)
    # Branch 1
    t1 = conv1x1_bn_relu(x2d, w11_ref, b11_ref)
    t1 = conv3x3_bn_relu(t1, w12_ref, b12_ref)
    # Branch 2
    t2 = conv1x1_bn_relu(x2d, w21_ref, b21_ref)
    t2 = conv3x3_bn_relu(t2, w22_ref, b22_ref)
    t2 = conv3x3_bn_relu(t2, w23_ref, b23_ref)

    # Final 1x1 'concat' conv (no BN / bias / activation).  The channel concat
    # is expressed as the sum of three matmuls against the split weight.
    mixed = jnp.dot(t0, wc0_ref[...], preferred_element_type=jnp.float32)
    mixed = mixed + jnp.dot(t1, wc1_ref[...], preferred_element_type=jnp.float32)
    mixed = mixed + jnp.dot(t2, wc2_ref[...], preferred_element_type=jnp.float32)
    o_ref[0] = mixed.astype(o_ref.dtype)


# ------------------------------- JAX glue --------------------------------- #

def _const_spec(arr):
    nd = arr.ndim
    return pl.BlockSpec(arr.shape, lambda n, _nd=nd: (0,) * _nd)


def _fold_1x1(p):
    # OIHW (O, I, 1, 1) -> (I, O) matmul weight with BN scale folded in.
    o, i = p["w"].shape[0], p["w"].shape[1]
    w = jnp.transpose(p["w"], (2, 3, 1, 0)).reshape(i, o)
    return w * p["scale"][None, :], p["bias"].reshape(1, -1)


def _fold_3x3(p):
    # OIHW (O, I, 3, 3) -> (9, I, O) tap-major weight with BN scale folded in.
    o, i = p["w"].shape[0], p["w"].shape[1]
    w = jnp.transpose(p["w"], (2, 3, 1, 0)).reshape(9, i, o)
    return w * p["scale"][None, None, :], p["bias"].reshape(1, -1)


def inc_res_a_forward(x_nchw, params):
    N, Cin, H, W = x_nchw.shape
    HW = H * W
    x3d = jnp.transpose(x_nchw, (0, 2, 3, 1)).reshape(N, HW, Cin)

    w0, b0 = _fold_1x1(params["b0"])
    w11, b11 = _fold_1x1(params["b1_1"])
    w12, b12 = _fold_3x3(params["b1_2"])
    w21, b21 = _fold_1x1(params["b2_1"])
    w22, b22 = _fold_3x3(params["b2_2"])
    w23, b23 = _fold_3x3(params["b2_3"])

    mid = w12.shape[1]                        # 32
    ccat = params["concat"]["w"].shape[0]     # 128
    wc = jnp.transpose(params["concat"]["w"], (2, 3, 1, 0)).reshape(3 * mid, ccat)
    wc0, wc1, wc2 = wc[0:mid], wc[mid:2 * mid], wc[2 * mid:3 * mid]

    # Halo rows above/below the flattened (HW, C) image: >= W+1 and 8-aligned
    # so the interior store is sublane-aligned.
    pad_rows = ((W + 1 + 7) // 8) * 8

    weights = [w0, b0, w11, b11, w12, b12, w21, b21, w22, b22, w23, b23,
               wc0, wc1, wc2]

    kern = functools.partial(_inc_res_a_kernel, H=H, W=W, pad_rows=pad_rows)

    out2d = pl.pallas_call(
        kern,
        out_shape=jax.ShapeDtypeStruct((N, HW, ccat), jnp.float32),
        grid_spec=pltpu.PrefetchScalarGridSpec(
            num_scalar_prefetch=0,
            grid=(N,),
            in_specs=[pl.BlockSpec((1, HW, Cin), lambda n: (n, 0, 0))]
                     + [_const_spec(w) for w in weights],
            out_specs=pl.BlockSpec((1, HW, ccat), lambda n: (n, 0, 0)),
            scratch_shapes=[pltpu.VMEM((HW + 2 * pad_rows, mid), jnp.float32)],
        ),
        compiler_params=pltpu.CompilerParams(
            dimension_semantics=("parallel",)),
    )(x3d, *weights)

    return jnp.transpose(out2d.reshape(N, H, W, ccat), (0, 3, 1, 2))


# ----------------------- parameter construction --------------------------- #

def conv_block_params(key, cin, cout, ksz):
    """Conv2dBlock params: conv weight (no bias) + BatchNorm2d (eval mode)."""
    kw, kg, kb, km, kv = jax.random.split(key, 5)
    w = jax.random.normal(kw, (cout, cin, ksz, ksz), jnp.float32) * 0.1
    gamma = 1.0 + 0.1 * jax.random.normal(kg, (cout,), jnp.float32)
    beta = 0.1 * jax.random.normal(kb, (cout,), jnp.float32)
    mean = 0.1 * jax.random.normal(km, (cout,), jnp.float32)
    var = 0.5 + jnp.abs(jax.random.normal(kv, (cout,), jnp.float32))
    eps = 1e-5
    scale = gamma / jnp.sqrt(var + eps)      # BN folded (inference mode)
    bias = beta - mean * scale
    return {"w": w, "scale": scale, "bias": bias}


# --------------------------- pure-JAX reference ---------------------------- #

def _conv2d_ref(x_nhwc, w_oihw):
    w_hwio = jnp.transpose(w_oihw, (2, 3, 1, 0))
    return lax.conv_general_dilated(x_nhwc, w_hwio, (1, 1), "SAME",
                                    dimension_numbers=("NHWC", "HWIO", "NHWC"))


def _block_ref(x_nhwc, p):
    y = _conv2d_ref(x_nhwc, p["w"]) * p["scale"] + p["bias"]
    return jnp.maximum(y, 0.0)


def inc_res_a_ref(x_nchw, params):
    x = jnp.transpose(x_nchw, (0, 2, 3, 1))
    b0 = _block_ref(x, params["b0"])
    b1 = _block_ref(_block_ref(x, params["b1_1"]), params["b1_2"])
    b2 = _block_ref(_block_ref(_block_ref(x, params["b2_1"]), params["b2_2"]),
                    params["b2_3"])
    branches = jnp.concatenate([b0, b1, b2], axis=-1)
    mixed = _conv2d_ref(branches, params["concat"]["w"])
    return jnp.transpose(mixed, (0, 3, 1, 2))


# ---------------------------------- main ----------------------------------- #

if __name__ == "__main__":
    key = jax.random.PRNGKey(0)
    kx, kp = jax.random.split(key)
    in_channels = 4
    # NCHW input, matching the PyTorch module's convention.
    x = jax.random.normal(kx, (2, in_channels, 16, 16), jnp.float32)

    ks = jax.random.split(kp, 7)
    params = {
        "b0":     conv_block_params(ks[0], in_channels, 32, 1),
        "b1_1":   conv_block_params(ks[1], in_channels, 32, 1),
        "b1_2":   conv_block_params(ks[2], 32, 32, 3),
        "b2_1":   conv_block_params(ks[3], in_channels, 32, 1),
        "b2_2":   conv_block_params(ks[4], 32, 32, 3),
        "b2_3":   conv_block_params(ks[5], 32, 32, 3),
        # nn.Conv2d(96, 128, 1, bias=False) -> OIHW weight (128, 96, 1, 1)
        "concat": {"w": jax.random.normal(ks[6], (128, 96, 1, 1),
                                          jnp.float32) * 0.1},
    }

    out = jax.block_until_ready(inc_res_a_forward(x, params))
    ref = jax.block_until_ready(inc_res_a_ref(x, params))

    assert out.shape == (2, 128, 16, 16), out.shape
    assert jnp.allclose(out, ref, atol=1e-3, rtol=1e-3), \
        float(jnp.max(jnp.abs(out - ref)))
    print("KERNEL_OK")
</pallas_src>

<mosaic_0001>
module attributes {stable_mosaic.version = 11 : i64} {
  func.func @_inc_res_a_kernel(%arg0: i32, %arg1: memref<1x256x4xf32, #tpu.memory_space<vmem>>, %arg2: memref<4x32xf32, #tpu.memory_space<vmem>>, %arg3: memref<1x32xf32, #tpu.memory_space<vmem>>, %arg4: memref<4x32xf32, #tpu.memory_space<vmem>>, %arg5: memref<1x32xf32, #tpu.memory_space<vmem>>, %arg6: memref<9x32x32xf32, #tpu.memory_space<vmem>>, %arg7: memref<1x32xf32, #tpu.memory_space<vmem>>, %arg8: memref<4x32xf32, #tpu.memory_space<vmem>>, %arg9: memref<1x32xf32, #tpu.memory_space<vmem>>, %arg10: memref<9x32x32xf32, #tpu.memory_space<vmem>>, %arg11: memref<1x32xf32, #tpu.memory_space<vmem>>, %arg12: memref<9x32x32xf32, #tpu.memory_space<vmem>>, %arg13: memref<1x32xf32, #tpu.memory_space<vmem>>, %arg14: memref<32x128xf32, #tpu.memory_space<vmem>>, %arg15: memref<32x128xf32, #tpu.memory_space<vmem>>, %arg16: memref<32x128xf32, #tpu.memory_space<vmem>>, %arg17: memref<1x256x128xf32, #tpu.memory_space<vmem>>, %arg18: memref<304x32xf32, #tpu.memory_space<vmem>>) attributes {dimension_semantics = [#tpu.dimension_semantics<parallel>], iteration_bounds = array<i64: 2>, scalar_prefetch = 0 : i64, scratch_operands = 1 : i64, tpu.core_type = #tpu.core_type<tc>, window_params = [{transform_indices = @transform_0, window_bounds = array<i64: 1, 256, 4>}, {pipeline_mode = #tpu.pipeline_mode<synchronous>, transform_indices = @transform_1, window_bounds = array<i64: 4, 32>}, {pipeline_mode = #tpu.pipeline_mode<synchronous>, transform_indices = @transform_2, window_bounds = array<i64: 1, 32>}, {pipeline_mode = #tpu.pipeline_mode<synchronous>, transform_indices = @transform_3, window_bounds = array<i64: 4, 32>}, {pipeline_mode = #tpu.pipeline_mode<synchronous>, transform_indices = @transform_4, window_bounds = array<i64: 1, 32>}, {pipeline_mode = #tpu.pipeline_mode<synchronous>, transform_indices = @transform_5, window_bounds = array<i64: 9, 32, 32>}, {pipeline_mode = #tpu.pipeline_mode<synchronous>, transform_indices = @transform_6, window_bounds = array<i64: 1, 32>}, {pipeline_mode = #tpu.pipeline_mode<synchronous>, transform_indices = @transform_7, window_bounds = array<i64: 4, 32>}, {pipeline_mode = #tpu.pipeline_mode<synchronous>, transform_indices = @transform_8, window_bounds = array<i64: 1, 32>}, {pipeline_mode = #tpu.pipeline_mode<synchronous>, transform_indices = @transform_9, window_bounds = array<i64: 9, 32, 32>}, {pipeline_mode = #tpu.pipeline_mode<synchronous>, transform_indices = @transform_10, window_bounds = array<i64: 1, 32>}, {pipeline_mode = #tpu.pipeline_mode<synchronous>, transform_indices = @transform_11, window_bounds = array<i64: 9, 32, 32>}, {pipeline_mode = #tpu.pipeline_mode<synchronous>, transform_indices = @transform_12, window_bounds = array<i64: 1, 32>}, {pipeline_mode = #tpu.pipeline_mode<synchronous>, transform_indices = @transform_13, window_bounds = array<i64: 32, 128>}, {pipeline_mode = #tpu.pipeline_mode<synchronous>, transform_indices = @transform_14, window_bounds = array<i64: 32, 128>}, {pipeline_mode = #tpu.pipeline_mode<synchronous>, transform_indices = @transform_15, window_bounds = array<i64: 32, 128>}, {transform_indices = @transform_16, window_bounds = array<i64: 1, 256, 128>}]} {
    %c0 = arith.constant 0 : index
    %c0_0 = arith.constant 0 : index
    %c0_1 = arith.constant 0 : index
    %0 = vector.load %arg1[%c0, %c0_0, %c0_1] : memref<1x256x4xf32, #tpu.memory_space<vmem>>, vector<1x256x4xf32>
    %1 = vector.shape_cast %0 : vector<1x256x4xf32> to vector<256x4xf32>
    %cst = arith.constant 0.000000e+00 : f32
    %2 = vector.broadcast %cst : f32 to vector<304x32xf32>
    %c0_2 = arith.constant 0 : index
    %c0_3 = arith.constant 0 : index
    %3 = vector.load %arg18[%c0_2, %c0_3] : memref<304x32xf32, #tpu.memory_space<vmem>>, vector<304x32xf32>
    tpu.vector_store %arg18[%c0_2, %c0_3], %2 {strides = array<i32>} : memref<304x32xf32, #tpu.memory_space<vmem>>, vector<304x32xf32>,
    %4 = tpu.iota {dimensions = array<i32: 0>} : vector<256x1xi32>
    %c16_i32 = arith.constant 16 : i32
    %c0_i32 = arith.constant 0 : i32
    %5 = arith.cmpi eq, %c16_i32, %c0_i32 : i32
    %c1_i32 = arith.constant 1 : i32
    %6 = arith.select %5, %c1_i32, %c16_i32 : i32
    %7 = vector.broadcast %6 : i32 to vector<256x1xi32>
    %8 = arith.remsi %4, %7 : vector<256x1xi32>
    %c0_i32_4 = arith.constant 0 : i32
    %9 = vector.broadcast %c0_i32_4 : i32 to vector<256x1xi32>
    %10 = arith.cmpi ne, %8, %9 : vector<256x1xi32>
    %c0_i32_5 = arith.constant 0 : i32
    %11 = vector.broadcast %c0_i32_5 : i32 to vector<256x1xi32>
    %12 = arith.cmpi slt, %8, %11 : vector<256x1xi32>
    %c0_i32_6 = arith.constant 0 : i32
    %13 = arith.cmpi slt, %6, %c0_i32_6 : i32
    %14 = vector.broadcast %13 : i1 to vector<256x1xi1>
    %15 = vector.broadcast %14 : vector<256x1xi1> to vector<256x1xi1>
    %16 = arith.xori %12, %15 : vector<256x1xi1>
    %17 = arith.andi %16, %10 : vector<256x1xi1>
    %18 = vector.broadcast %6 : i32 to vector<256x1xi32>
    %19 = arith.addi %8, %18 : vector<256x1xi32>
    %20 = arith.select %17, %19, %8 : vector<256x1xi1>, vector<256x1xi32>
    %c0_i32_7 = arith.constant 0 : i32
    %21 = vector.broadcast %c0_i32_7 : i32 to vector<256x1xi32>
    %22 = arith.cmpi ne, %20, %21 : vector<256x1xi32>
    %23 = arith.extui %22 : vector<256x1xi1> to vector<256x1xi32>
    %24 = arith.sitofp %23 : vector<256x1xi32> to vector<256x1xf32>
    %c15_i32 = arith.constant 15 : i32
    %25 = vector.broadcast %c15_i32 : i32 to vector<256x1xi32>
    %26 = arith.cmpi ne, %20, %25 : vector<256x1xi32>
    %27 = arith.extui %26 : vector<256x1xi1> to vector<256x1xi32>
    %28 = arith.sitofp %27 : vector<256x1xi32> to vector<256x1xf32>
    %c0_8 = arith.constant 0 : index
    %c0_9 = arith.constant 0 : index
    %29 = vector.load %arg2[%c0_8, %c0_9] : memref<4x32xf32, #tpu.memory_space<vmem>>, vector<4x32xf32>
    %cst_10 = arith.constant dense<0.000000e+00> : vector<256x32xf32>
    %30 = tpu.matmul %1, %29, %cst_10 {dimension_numbers = #tpu.dot_dimension_numbers<[1], [0], [0], [1], [0, 0, 1, 1], [], []>} : vector<256x4xf32>, vector<4x32xf32>, vector<256x32xf32> -> vector<256x32xf32>
    %c0_11 = arith.constant 0 : index
    %c0_12 = arith.constant 0 : index
    %31 = vector.load %arg3[%c0_11, %c0_12] : memref<1x32xf32, #tpu.memory_space<vmem>>, vector<1x32xf32>
    %32 = vector.broadcast %31 : vector<1x32xf32> to vector<256x32xf32>
    %33 = arith.addf %30, %32 : vector<256x32xf32>
    %cst_13 = arith.constant 0.000000e+00 : f32
    %34 = vector.broadcast %cst_13 : f32 to vector<256x32xf32>
    %35 = arith.maximumf %33, %34 : vector<256x32xf32>
    %c0_14 = arith.constant 0 : index
    %c0_15 = arith.constant 0 : index
    %36 = vector.load %arg4[%c0_14, %c0_15] : memref<4x32xf32, #tpu.memory_space<vmem>>, vector<4x32xf32>
    %cst_16 = arith.constant dense<0.000000e+00> : vector<256x32xf32>
    %37 = tpu.matmul %1, %36, %cst_16 {dimension_numbers = #tpu.dot_dimension_numbers<[1], [0], [0], [1], [0, 0, 1, 1], [], []>} : vector<256x4xf32>, vector<4x32xf32>, vector<256x32xf32> -> vector<256x32xf32>
    %c0_17 = arith.constant 0 : index
    %c0_18 = arith.constant 0 : index
    %38 = vector.load %arg5[%c0_17, %c0_18] : memref<1x32xf32, #tpu.memory_space<vmem>>, vector<1x32xf32>
    %39 = vector.broadcast %38 : vector<1x32xf32> to vector<256x32xf32>
    %40 = arith.addf %37, %39 : vector<256x32xf32>
    %cst_19 = arith.constant 0.000000e+00 : f32
    %41 = vector.broadcast %cst_19 : f32 to vector<256x32xf32>
    %42 = arith.maximumf %40, %41 : vector<256x32xf32>
    %c24 = arith.constant 24 : index
    %c0_20 = arith.constant 0 : index
    %43 = vector.load %arg18[%c24, %c0_20] : memref<304x32xf32, #tpu.memory_space<vmem>>, vector<256x32xf32>
    tpu.vector_store %arg18[%c24, %c0_20], %42 {strides = array<i32>} : memref<304x32xf32, #tpu.memory_space<vmem>>, vector<256x32xf32>,
    %cst_21 = arith.constant 0.000000e+00 : f32
    %44 = vector.broadcast %cst_21 : f32 to vector<256x32xf32>
    %c7 = arith.constant 7 : index
    %c0_22 = arith.constant 0 : index
    %45 = vector.load %arg18[%c7, %c0_22] : memref<304x32xf32, #tpu.memory_space<vmem>>, vector<256x32xf32>
    %46 = vector.broadcast %24 : vector<256x1xf32> to vector<256x32xf32>
    %47 = arith.mulf %45, %46 : vector<256x32xf32>
    %c0_23 = arith.constant 0 : index
    %c0_24 = arith.constant 0 : index
    %c0_25 = arith.constant 0 : index
    %48 = vector.load %arg6[%c0_23, %c0_24, %c0_25] : memref<9x32x32xf32, #tpu.memory_space<vmem>>, vector<1x32x32xf32>
    %49 = vector.shape_cast %48 : vector<1x32x32xf32> to vector<32x32xf32>
    %cst_26 = arith.constant dense<0.000000e+00> : vector<256x32xf32>
    %50 = tpu.matmul %47, %49, %cst_26 {dimension_numbers = #tpu.dot_dimension_numbers<[1], [0], [0], [1], [0, 0, 1, 1], [], []>} : vector<256x32xf32>, vector<32x32xf32>, vector<256x32xf32> -> vector<256x32xf32>
    %51 = arith.addf %44, %50 : vector<256x32xf32>
    %c8 = arith.constant 8 : index
    %c0_27 = arith.constant 0 : index
    %52 = vector.load %arg18[%c8, %c0_27] : memref<304x32xf32, #tpu.memory_space<vmem>>, vector<256x32xf32>
    %c1 = arith.constant 1 : index
    %c0_28 = arith.constant 0 : index
    %c0_29 = arith.constant 0 : index
    %53 = vector.load %arg6[%c1, %c0_28, %c0_29] : memref<9x32x32xf32, #tpu.memory_space<vmem>>, vector<1x32x32xf32>
    %54 = vector.shape_cast %53 : vector<1x32x32xf32> to vector<32x32xf32>
    %cst_30 = arith.constant dense<0.000000e+00> : vector<256x32xf32>
    %55 = tpu.matmul %52, %54, %cst_30 {dimension_numbers = #tpu.dot_dimension_numbers<[1], [0], [0], [1], [0, 0, 1, 1], [], []>} : vector<256x32xf32>, vector<32x32xf32>, vector<256x32xf32> -> vector<256x32xf32>
    %56 = arith.addf %51, %55 : vector<256x32xf32>
    %c9 = arith.constant 9 : index
    %c0_31 = arith.constant 0 : index
    %57 = vector.load %arg18[%c9, %c0_31] : memref<304x32xf32, #tpu.memory_space<vmem>>, vector<256x32xf32>
    %58 = vector.broadcast %28 : vector<256x1xf32> to vector<256x32xf32>
    %59 = arith.mulf %57, %58 : vector<256x32xf32>
    %c2 = arith.constant 2 : index
    %c0_32 = arith.constant 0 : index
    %c0_33 = arith.constant 0 : index
    %60 = vector.load %arg6[%c2, %c0_32, %c0_33] : memref<9x32x32xf32, #tpu.memory_space<vmem>>, vector<1x32x32xf32>
    %61 = vector.shape_cast %60 : vector<1x32x32xf32> to vector<32x32xf32>
    %cst_34 = arith.constant dense<0.000000e+00> : vector<256x32xf32>
    %62 = tpu.matmul %59, %61, %cst_34 {dimension_numbers = #tpu.dot_dimension_numbers<[1], [0], [0], [1], [0, 0, 1, 1], [], []>} : vector<256x32xf32>, vector<32x32xf32>, vector<256x32xf32> -> vector<256x32xf32>
    %63 = arith.addf %56, %62 : vector<256x32xf32>
    %c23 = arith.constant 23 : index
    %c0_35 = arith.constant 0 : index
    %64 = vector.load %arg18[%c23, %c0_35] : memref<304x32xf32, #tpu.memory_space<vmem>>, vector<256x32xf32>
    %65 = vector.broadcast %24 : vector<256x1xf32> to vector<256x32xf32>
    %66 = arith.mulf %64, %65 : vector<256x32xf32>
    %c3 = arith.constant 3 : index
    %c0_36 = arith.constant 0 : index
    %c0_37 = arith.constant 0 : index
    %67 = vector.load %arg6[%c3, %c0_36, %c0_37] : memref<9x32x32xf32, #tpu.memory_space<vmem>>, vector<1x32x32xf32>
    %68 = vector.shape_cast %67 : vector<1x32x32xf32> to vector<32x32xf32>
    %cst_38 = arith.constant dense<0.000000e+00> : vector<256x32xf32>
    %69 = tpu.matmul %66, %68, %cst_38 {dimension_numbers = #tpu.dot_dimension_numbers<[1], [0], [0], [1], [0, 0, 1, 1], [], []>} : vector<256x32xf32>, vector<32x32xf32>, vector<256x32xf32> -> vector<256x32xf32>
    %70 = arith.addf %63, %69 : vector<256x32xf32>
    %c24_39 = arith.constant 24 : index
    %c0_40 = arith.constant 0 : index
    %71 = vector.load %arg18[%c24_39, %c0_40] : memref<304x32xf32, #tpu.memory_space<vmem>>, vector<256x32xf32>
    %c4 = arith.constant 4 : index
    %c0_41 = arith.constant 0 : index
    %c0_42 = arith.constant 0 : index
    %72 = vector.load %arg6[%c4, %c0_41, %c0_42] : memref<9x32x32xf32, #tpu.memory_space<vmem>>, vector<1x32x32xf32>
    %73 = vector.shape_cast %72 : vector<1x32x32xf32> to vector<32x32xf32>
    %cst_43 = arith.constant dense<0.000000e+00> : vector<256x32xf32>
    %74 = tpu.matmul %71, %73, %cst_43 {dimension_numbers = #tpu.dot_dimension_numbers<[1], [0], [0], [1], [0, 0, 1, 1], [], []>} : vector<256x32xf32>, vector<32x32xf32>, vector<256x32xf32> -> vector<256x32xf32>
    %75 = arith.addf %70, %74 : vector<256x32xf32>
    %c25 = arith.constant 25 : index
    %c0_44 = arith.constant 0 : index
    %76 = vector.load %arg18[%c25, %c0_44] : memref<304x32xf32, #tpu.memory_space<vmem>>, vector<256x32xf32>
    %77 = vector.broadcast %28 : vector<256x1xf32> to vector<256x32xf32>
    %78 = arith.mulf %76, %77 : vector<256x32xf32>
    %c5 = arith.constant 5 : index
    %c0_45 = arith.constant 0 : index
    %c0_46 = arith.constant 0 : index
    %79 = vector.load %arg6[%c5, %c0_45, %c0_46] : memref<9x32x32xf32, #tpu.memory_space<vmem>>, vector<1x32x32xf32>
    %80 = vector.shape_cast %79 : vector<1x32x32xf32> to vector<32x32xf32>
    %cst_47 = arith.constant dense<0.000000e+00> : vector<256x32xf32>
    %81 = tpu.matmul %78, %80, %cst_47 {dimension_numbers = #tpu.dot_dimension_numbers<[1], [0], [0], [1], [0, 0, 1, 1], [], []>} : vector<256x32xf32>, vector<32x32xf32>, vector<256x32xf32> -> vector<256x32xf32>
    %82 = arith.addf %75, %81 : vector<256x32xf32>
    %c39 = arith.constant 39 : index
    %c0_48 = arith.constant 0 : index
    %83 = vector.load %arg18[%c39, %c0_48] : memref<304x32xf32, #tpu.memory_space<vmem>>, vector<256x32xf32>
    %84 = vector.broadcast %24 : vector<256x1xf32> to vector<256x32xf32>
    %85 = arith.mulf %83, %84 : vector<256x32xf32>
    %c6 = arith.constant 6 : index
    %c0_49 = arith.constant 0 : index
    %c0_50 = arith.constant 0 : index
    %86 = vector.load %arg6[%c6, %c0_49, %c0_50] : memref<9x32x32xf32, #tpu.memory_space<vmem>>, vector<1x32x32xf32>
    %87 = vector.shape_cast %86 : vector<1x32x32xf32> to vector<32x32xf32>
    %cst_51 = arith.constant dense<0.000000e+00> : vector<256x32xf32>
    %88 = tpu.matmul %85, %87, %cst_51 {dimension_numbers = #tpu.dot_dimension_numbers<[1], [0], [0], [1], [0, 0, 1, 1], [], []>} : vector<256x32xf32>, vector<32x32xf32>, vector<256x32xf32> -> vector<256x32xf32>
    %89 = arith.addf %82, %88 : vector<256x32xf32>
    %c40 = arith.constant 40 : index
    %c0_52 = arith.constant 0 : index
    %90 = vector.load %arg18[%c40, %c0_52] : memref<304x32xf32, #tpu.memory_space<vmem>>, vector<256x32xf32>
    %c7_53 = arith.constant 7 : index
    %c0_54 = arith.constant 0 : index
    %c0_55 = arith.constant 0 : index
    %91 = vector.load %arg6[%c7_53, %c0_54, %c0_55] : memref<9x32x32xf32, #tpu.memory_space<vmem>>, vector<1x32x32xf32>
    %92 = vector.shape_cast %91 : vector<1x32x32xf32> to vector<32x32xf32>
    %cst_56 = arith.constant dense<0.000000e+00> : vector<256x32xf32>
    %93 = tpu.matmul %90, %92, %cst_56 {dimension_numbers = #tpu.dot_dimension_numbers<[1], [0], [0], [1], [0, 0, 1, 1], [], []>} : vector<256x32xf32>, vector<32x32xf32>, vector<256x32xf32> -> vector<256x32xf32>
    %94 = arith.addf %89, %93 : vector<256x32xf32>
    %c41 = arith.constant 41 : index
    %c0_57 = arith.constant 0 : index
    %95 = vector.load %arg18[%c41, %c0_57] : memref<304x32xf32, #tpu.memory_space<vmem>>, vector<256x32xf32>
    %96 = vector.broadcast %28 : vector<256x1xf32> to vector<256x32xf32>
    %97 = arith.mulf %95, %96 : vector<256x32xf32>
    %c8_58 = arith.constant 8 : index
    %c0_59 = arith.constant 0 : index
    %c0_60 = arith.constant 0 : index
    %98 = vector.load %arg6[%c8_58, %c0_59, %c0_60] : memref<9x32x32xf32, #tpu.memory_space<vmem>>, vector<1x32x32xf32>
    %99 = vector.shape_cast %98 : vector<1x32x32xf32> to vector<32x32xf32>
    %cst_61 = arith.constant dense<0.000000e+00> : vector<256x32xf32>
    %100 = tpu.matmul %97, %99, %cst_61 {dimension_numbers = #tpu.dot_dimension_numbers<[1], [0], [0], [1], [0, 0, 1, 1], [], []>} : vector<256x32xf32>, vector<32x32xf32>, vector<256x32xf32> -> vector<256x32xf32>
    %101 = arith.addf %94, %100 : vector<256x32xf32>
    %c0_62 = arith.constant 0 : index
    %c0_63 = arith.constant 0 : index
    %102 = vector.load %arg7[%c0_62, %c0_63] : memref<1x32xf32, #tpu.memory_space<vmem>>, vector<1x32xf32>
    %103 = vector.broadcast %102 : vector<1x32xf32> to vector<256x32xf32>
    %104 = arith.addf %101, %103 : vector<256x32xf32>
    %cst_64 = arith.constant 0.000000e+00 : f32
    %105 = vector.broadcast %cst_64 : f32 to vector<256x32xf32>
    %106 = arith.maximumf %104, %105 : vector<256x32xf32>
    %c0_65 = arith.constant 0 : index
    %c0_66 = arith.constant 0 : index
    %107 = vector.load %arg8[%c0_65, %c0_66] : memref<4x32xf32, #tpu.memory_space<vmem>>, vector<4x32xf32>
    %cst_67 = arith.constant dense<0.000000e+00> : vector<256x32xf32>
    %108 = tpu.matmul %1, %107, %cst_67 {dimension_numbers = #tpu.dot_dimension_numbers<[1], [0], [0], [1], [0, 0, 1, 1], [], []>} : vector<256x4xf32>, vector<4x32xf32>, vector<256x32xf32> -> vector<256x32xf32>
    %c0_68 = arith.constant 0 : index
    %c0_69 = arith.constant 0 : index
    %109 = vector.load %arg9[%c0_68, %c0_69] : memref<1x32xf32, #tpu.memory_space<vmem>>, vector<1x32xf32>
    %110 = vector.broadcast %109 : vector<1x32xf32> to vector<256x32xf32>
    %111 = arith.addf %108, %110 : vector<256x32xf32>
    %cst_70 = arith.constant 0.000000e+00 : f32
    %112 = vector.broadcast %cst_70 : f32 to vector<256x32xf32>
    %113 = arith.maximumf %111, %112 : vector<256x32xf32>
    %c24_71 = arith.constant 24 : index
    %c0_72 = arith.constant 0 : index
    %114 = vector.load %arg18[%c24_71, %c0_72] : memref<304x32xf32, #tpu.memory_space<vmem>>, vector<256x32xf32>
    tpu.vector_store %arg18[%c24_71, %c0_72], %113 {strides = array<i32>} : memref<304x32xf32, #tpu.memory_space<vmem>>, vector<256x32xf32>,
    %cst_73 = arith.constant 0.000000e+00 : f32
    %115 = vector.broadcast %cst_73 : f32 to vector<256x32xf32>
    %c7_74 = arith.constant 7 : index
    %c0_75 = arith.constant 0 : index
    %116 = vector.load %arg18[%c7_74, %c0_75] : memref<304x32xf32, #tpu.memory_space<vmem>>, vector<256x32xf32>
    %117 = vector.broadcast %24 : vector<256x1xf32> to vector<256x32xf32>
    %118 = arith.mulf %116, %117 : vector<256x32xf32>
    %c0_76 = arith.constant 0 : index
    %c0_77 = arith.constant 0 : index
    %c0_78 = arith.constant 0 : index
    %119 = vector.load %arg10[%c0_76, %c0_77, %c0_78] : memref<9x32x32xf32, #tpu.memory_space<vmem>>, vector<1x32x32xf32>
    %120 = vector.shape_cast %119 : vector<1x32x32xf32> to vector<32x32xf32>
    %cst_79 = arith.constant dense<0.000000e+00> : vector<256x32xf32>
    %121 = tpu.matmul %118, %120, %cst_79 {dimension_numbers = #tpu.dot_dimension_numbers<[1], [0], [0], [1], [0, 0, 1, 1], [], []>} : vector<256x32xf32>, vector<32x32xf32>, vector<256x32xf32> -> vector<256x32xf32>
    %122 = arith.addf %115, %121 : vector<256x32xf32>
    %c8_80 = arith.constant 8 : index
    %c0_81 = arith.constant 0 : index
    %123 = vector.load %arg18[%c8_80, %c0_81] : memref<304x32xf32, #tpu.memory_space<vmem>>, vector<256x32xf32>
    %c1_82 = arith.constant 1 : index
    %c0_83 = arith.constant 0 : index
    %c0_84 = arith.constant 0 : index
    %124 = vector.load %arg10[%c1_82, %c0_83, %c0_84] : memref<9x32x32xf32, #tpu.memory_space<vmem>>, vector<1x32x32xf32>
    %125 = vector.shape_cast %124 : vector<1x32x32xf32> to vector<32x32xf32>
    %cst_85 = arith.constant dense<0.000000e+00> : vector<256x32xf32>
    %126 = tpu.matmul %123, %125, %cst_85 {dimension_numbers = #tpu.dot_dimension_numbers<[1], [0], [0], [1], [0, 0, 1, 1], [], []>} : vector<256x32xf32>, vector<32x32xf32>, vector<256x32xf32> -> vector<256x32xf32>
    %127 = arith.addf %122, %126 : vector<256x32xf32>
    %c9_86 = arith.constant 9 : index
    %c0_87 = arith.constant 0 : index
    %128 = vector.load %arg18[%c9_86, %c0_87] : memref<304x32xf32, #tpu.memory_space<vmem>>, vector<256x32xf32>
    %129 = vector.broadcast %28 : vector<256x1xf32> to vector<256x32xf32>
    %130 = arith.mulf %128, %129 : vector<256x32xf32>
    %c2_88 = arith.constant 2 : index
    %c0_89 = arith.constant 0 : index
    %c0_90 = arith.constant 0 : index
    %131 = vector.load %arg10[%c2_88, %c0_89, %c0_90] : memref<9x32x32xf32, #tpu.memory_space<vmem>>, vector<1x32x32xf32>
    %132 = vector.shape_cast %131 : vector<1x32x32xf32> to vector<32x32xf32>
    %cst_91 = arith.constant dense<0.000000e+00> : vector<256x32xf32>
    %133 = tpu.matmul %130, %132, %cst_91 {dimension_numbers = #tpu.dot_dimension_numbers<[1], [0], [0], [1], [0, 0, 1, 1], [], []>} : vector<256x32xf32>, vector<32x32xf32>, vector<256x32xf32> -> vector<256x32xf32>
    %134 = arith.addf %127, %133 : vector<256x32xf32>
    %c23_92 = arith.constant 23 : index
    %c0_93 = arith.constant 0 : index
    %135 = vector.load %arg18[%c23_92, %c0_93] : memref<304x32xf32, #tpu.memory_space<vmem>>, vector<256x32xf32>
    %136 = vector.broadcast %24 : vector<256x1xf32> to vector<256x32xf32>
    %137 = arith.mulf %135, %136 : vector<256x32xf32>
    %c3_94 = arith.constant 3 : index
    %c0_95 = arith.constant 0 : index
    %c0_96 = arith.constant 0 : index
    %138 = vector.load %arg10[%c3_94, %c0_95, %c0_96] : memref<9x32x32xf32, #tpu.memory_space<vmem>>, vector<1x32x32xf32>
    %139 = vector.shape_cast %138 : vector<1x32x32xf32> to vector<32x32xf32>
    %cst_97 = arith.constant dense<0.000000e+00> : vector<256x32xf32>
    %140 = tpu.matmul %137, %139, %cst_97 {dimension_numbers = #tpu.dot_dimension_numbers<[1], [0], [0], [1], [0, 0, 1, 1], [], []>} : vector<256x32xf32>, vector<32x32xf32>, vector<256x32xf32> -> vector<256x32xf32>
    %141 = arith.addf %134, %140 : vector<256x32xf32>
    %c24_98 = arith.constant 24 : index
    %c0_99 = arith.constant 0 : index
    %142 = vector.load %arg18[%c24_98, %c0_99] : memref<304x32xf32, #tpu.memory_space<vmem>>, vector<256x32xf32>
    %c4_100 = arith.constant 4 : index
    %c0_101 = arith.constant 0 : index
    %c0_102 = arith.constant 0 : index
    %143 = vector.load %arg10[%c4_100, %c0_101, %c0_102] : memref<9x32x32xf32, #tpu.memory_space<vmem>>, vector<1x32x32xf32>
    %144 = vector.shape_cast %143 : vector<1x32x32xf32> to vector<32x32xf32>
    %cst_103 = arith.constant dense<0.000000e+00> : vector<256x32xf32>
    %145 = tpu.matmul %142, %144, %cst_103 {dimension_numbers = #tpu.dot_dimension_numbers<[1], [0], [0], [1], [0, 0, 1, 1], [], []>} : vector<256x32xf32>, vector<32x32xf32>, vector<256x32xf32> -> vector<256x32xf32>
    %146 = arith.addf %141, %145 : vector<256x32xf32>
    %c25_104 = arith.constant 25 : index
    %c0_105 = arith.constant 0 : index
    %147 = vector.load %arg18[%c25_104, %c0_105] : memref<304x32xf32, #tpu.memory_space<vmem>>, vector<256x32xf32>
    %148 = vector.broadcast %28 : vector<256x1xf32> to vector<256x32xf32>
    %149 = arith.mulf %147, %148 : vector<256x32xf32>
    %c5_106 = arith.constant 5 : index
    %c0_107 = arith.constant 0 : index
    %c0_108 = arith.constant 0 : index
    %150 = vector.load %arg10[%c5_106, %c0_107, %c0_108] : memref<9x32x32xf32, #tpu.memory_space<vmem>>, vector<1x32x32xf32>
    %151 = vector.shape_cast %150 : vector<1x32x32xf32> to vector<32x32xf32>
    %cst_109 = arith.constant dense<0.000000e+00> : vector<256x32xf32>
    %152 = tpu.matmul %149, %151, %cst_109 {dimension_numbers = #tpu.dot_dimension_numbers<[1], [0], [0], [1], [0, 0, 1, 1], [], []>} : vector<256x32xf32>, vector<32x32xf32>, vector<256x32xf32> -> vector<256x32xf32>
    %153 = arith.addf %146, %152 : vector<256x32xf32>
    %c39_110 = arith.constant 39 : index
    %c0_111 = arith.constant 0 : index
    %154 = vector.load %arg18[%c39_110, %c0_111] : memref<304x32xf32, #tpu.memory_space<vmem>>, vector<256x32xf32>
    %155 = vector.broadcast %24 : vector<256x1xf32> to vector<256x32xf32>
    %156 = arith.mulf %154, %155 : vector<256x32xf32>
    %c6_112 = arith.constant 6 : index
    %c0_113 = arith.constant 0 : index
    %c0_114 = arith.constant 0 : index
    %157 = vector.load %arg10[%c6_112, %c0_113, %c0_114] : memref<9x32x32xf32, #tpu.memory_space<vmem>>, vector<1x32x32xf32>
    %158 = vector.shape_cast %157 : vector<1x32x32xf32> to vector<32x32xf32>
    %cst_115 = arith.constant dense<0.000000e+00> : vector<256x32xf32>
    %159 = tpu.matmul %156, %158, %cst_115 {dimension_numbers = #tpu.dot_dimension_numbers<[1], [0], [0], [1], [0, 0, 1, 1], [], []>} : vector<256x32xf32>, vector<32x32xf32>, vector<256x32xf32> -> vector<256x32xf32>
    %160 = arith.addf %153, %159 : vector<256x32xf32>
    %c40_116 = arith.constant 40 : index
    %c0_117 = arith.constant 0 : index
    %161 = vector.load %arg18[%c40_116, %c0_117] : memref<304x32xf32, #tpu.memory_space<vmem>>, vector<256x32xf32>
    %c7_118 = arith.constant 7 : index
    %c0_119 = arith.constant 0 : index
    %c0_120 = arith.constant 0 : index
    %162 = vector.load %arg10[%c7_118, %c0_119, %c0_120] : memref<9x32x32xf32, #tpu.memory_space<vmem>>, vector<1x32x32xf32>
    %163 = vector.shape_cast %162 : vector<1x32x32xf32> to vector<32x32xf32>
    %cst_121 = arith.constant dense<0.000000e+00> : vector<256x32xf32>
    %164 = tpu.matmul %161, %163, %cst_121 {dimension_numbers = #tpu.dot_dimension_numbers<[1], [0], [0], [1], [0, 0, 1, 1], [], []>} : vector<256x32xf32>, vector<32x32xf32>, vector<256x32xf32> -> vector<256x32xf32>
    %165 = arith.addf %160, %164 : vector<256x32xf32>
    %c41_122 = arith.constant 41 : index
    %c0_123 = arith.constant 0 : index
    %166 = vector.load %arg18[%c41_122, %c0_123] : memref<304x32xf32, #tpu.memory_space<vmem>>, vector<256x32xf32>
    %167 = vector.broadcast %28 : vector<256x1xf32> to vector<256x32xf32>
    %168 = arith.mulf %166, %167 : vector<256x32xf32>
    %c8_124 = arith.constant 8 : index
    %c0_125 = arith.constant 0 : index
    %c0_126 = arith.constant 0 : index
    %169 = vector.load %arg10[%c8_124, %c0_125, %c0_126] : memref<9x32x32xf32, #tpu.memory_space<vmem>>, vector<1x32x32xf32>
    %170 = vector.shape_cast %169 : vector<1x32x32xf32> to vector<32x32xf32>
    %cst_127 = arith.constant dense<0.000000e+00> : vector<256x32xf32>
    %171 = tpu.matmul %168, %170, %cst_127 {dimension_numbers = #tpu.dot_dimension_numbers<[1], [0], [0], [1], [0, 0, 1, 1], [], []>} : vector<256x32xf32>, vector<32x32xf32>, vector<256x32xf32> -> vector<256x32xf32>
    %172 = arith.addf %165, %171 : vector<256x32xf32>
    %c0_128 = arith.constant 0 : index
    %c0_129 = arith.constant 0 : index
    %173 = vector.load %arg11[%c0_128, %c0_129] : memref<1x32xf32, #tpu.memory_space<vmem>>, vector<1x32xf32>
    %174 = vector.broadcast %173 : vector<1x32xf32> to vector<256x32xf32>
    %175 = arith.addf %172, %174 : vector<256x32xf32>
    %cst_130 = arith.constant 0.000000e+00 : f32
    %176 = vector.broadcast %cst_130 : f32 to vector<256x32xf32>
    %177 = arith.maximumf %175, %176 : vector<256x32xf32>
    %c24_131 = arith.constant 24 : index
    %c0_132 = arith.constant 0 : index
    %178 = vector.load %arg18[%c24_131, %c0_132] : memref<304x32xf32, #tpu.memory_space<vmem>>, vector<256x32xf32>
    tpu.vector_store %arg18[%c24_131, %c0_132], %177 {strides = array<i32>} : memref<304x32xf32, #tpu.memory_space<vmem>>, vector<256x32xf32>,
    %cst_133 = arith.constant 0.000000e+00 : f32
    %179 = vector.broadcast %cst_133 : f32 to vector<256x32xf32>
    %c7_134 = arith.constant 7 : index
    %c0_135 = arith.constant 0 : index
    %180 = vector.load %arg18[%c7_134, %c0_135] : memref<304x32xf32, #tpu.memory_space<vmem>>, vector<256x32xf32>
    %181 = vector.broadcast %24 : vector<256x1xf32> to vector<256x32xf32>
    %182 = arith.mulf %180, %181 : vector<256x32xf32>
    %c0_136 = arith.constant 0 : index
    %c0_137 = arith.constant 0 : index
    %c0_138 = arith.constant 0 : index
    %183 = vector.load %arg12[%c0_136, %c0_137, %c0_138] : memref<9x32x32xf32, #tpu.memory_space<vmem>>, vector<1x32x32xf32>
    %184 = vector.shape_cast %183 : vector<1x32x32xf32> to vector<32x32xf32>
    %cst_139 = arith.constant dense<0.000000e+00> : vector<256x32xf32>
    %185 = tpu.matmul %182, %184, %cst_139 {dimension_numbers = #tpu.dot_dimension_numbers<[1], [0], [0], [1], [0, 0, 1, 1], [], []>} : vector<256x32xf32>, vector<32x32xf32>, vector<256x32xf32> -> vector<256x32xf32>
    %186 = arith.addf %179, %185 : vector<256x32xf32>
    %c8_140 = arith.constant 8 : index
    %c0_141 = arith.constant 0 : index
    %187 = vector.load %arg18[%c8_140, %c0_141] : memref<304x32xf32, #tpu.memory_space<vmem>>, vector<256x32xf32>
    %c1_142 = arith.constant 1 : index
    %c0_143 = arith.constant 0 : index
    %c0_144 = arith.constant 0 : index
    %188 = vector.load %arg12[%c1_142, %c0_143, %c0_144] : memref<9x32x32xf32, #tpu.memory_space<vmem>>, vector<1x32x32xf32>
    %189 = vector.shape_cast %188 : vector<1x32x32xf32> to vector<32x32xf32>
    %cst_145 = arith.constant dense<0.000000e+00> : vector<256x32xf32>
    %190 = tpu.matmul %187, %189, %cst_145 {dimension_numbers = #tpu.dot_dimension_numbers<[1], [0], [0], [1], [0, 0, 1, 1], [], []>} : vector<256x32xf32>, vector<32x32xf32>, vector<256x32xf32> -> vector<256x32xf32>
    %191 = arith.addf %186, %190 : vector<256x32xf32>
    %c9_146 = arith.constant 9 : index
    %c0_147 = arith.constant 0 : index
    %192 = vector.load %arg18[%c9_146, %c0_147] : memref<304x32xf32, #tpu.memory_space<vmem>>, vector<256x32xf32>
    %193 = vector.broadcast %28 : vector<256x1xf32> to vector<256x32xf32>
    %194 = arith.mulf %192, %193 : vector<256x32xf32>
    %c2_148 = arith.constant 2 : index
    %c0_149 = arith.constant 0 : index
    %c0_150 = arith.constant 0 : index
    %195 = vector.load %arg12[%c2_148, %c0_149, %c0_150] : memref<9x32x32xf32, #tpu.memory_space<vmem>>, vector<1x32x32xf32>
    %196 = vector.shape_cast %195 : vector<1x32x32xf32> to vector<32x32xf32>
    %cst_151 = arith.constant dense<0.000000e+00> : vector<256x32xf32>
    %197 = tpu.matmul %194, %196, %cst_151 {dimension_numbers = #tpu.dot_dimension_numbers<[1], [0], [0], [1], [0, 0, 1, 1], [], []>} : vector<256x32xf32>, vector<32x32xf32>, vector<256x32xf32> -> vector<256x32xf32>
    %198 = arith.addf %191, %197 : vector<256x32xf32>
    %c23_152 = arith.constant 23 : index
    %c0_153 = arith.constant 0 : index
    %199 = vector.load %arg18[%c23_152, %c0_153] : memref<304x32xf32, #tpu.memory_space<vmem>>, vector<256x32xf32>
    %200 = vector.broadcast %24 : vector<256x1xf32> to vector<256x32xf32>
    %201 = arith.mulf %199, %200 : vector<256x32xf32>
    %c3_154 = arith.constant 3 : index
    %c0_155 = arith.constant 0 : index
    %c0_156 = arith.constant 0 : index
    %202 = vector.load %arg12[%c3_154, %c0_155, %c0_156] : memref<9x32x32xf32, #tpu.memory_space<vmem>>, vector<1x32x32xf32>
    %203 = vector.shape_cast %202 : vector<1x32x32xf32> to vector<32x32xf32>
    %cst_157 = arith.constant dense<0.000000e+00> : vector<256x32xf32>
    %204 = tpu.matmul %201, %203, %cst_157 {dimension_numbers = #tpu.dot_dimension_numbers<[1], [0], [0], [1], [0, 0, 1, 1], [], []>} : vector<256x32xf32>, vector<32x32xf32>, vector<256x32xf32> -> vector<256x32xf32>
    %205 = arith.addf %198, %204 : vector<256x32xf32>
    %c24_158 = arith.constant 24 : index
    %c0_159 = arith.constant 0 : index
    %206 = vector.load %arg18[%c24_158, %c0_159] : memref<304x32xf32, #tpu.memory_space<vmem>>, vector<256x32xf32>
    %c4_160 = arith.constant 4 : index
    %c0_161 = arith.constant 0 : index
    %c0_162 = arith.constant 0 : index
    %207 = vector.load %arg12[%c4_160, %c0_161, %c0_162] : memref<9x32x32xf32, #tpu.memory_space<vmem>>, vector<1x32x32xf32>
    %208 = vector.shape_cast %207 : vector<1x32x32xf32> to vector<32x32xf32>
    %cst_163 = arith.constant dense<0.000000e+00> : vector<256x32xf32>
    %209 = tpu.matmul %206, %208, %cst_163 {dimension_numbers = #tpu.dot_dimension_numbers<[1], [0], [0], [1], [0, 0, 1, 1], [], []>} : vector<256x32xf32>, vector<32x32xf32>, vector<256x32xf32> -> vector<256x32xf32>
    %210 = arith.addf %205, %209 : vector<256x32xf32>
    %c25_164 = arith.constant 25 : index
    %c0_165 = arith.constant 0 : index
    %211 = vector.load %arg18[%c25_164, %c0_165] : memref<304x32xf32, #tpu.memory_space<vmem>>, vector<256x32xf32>
    %212 = vector.broadcast %28 : vector<256x1xf32> to vector<256x32xf32>
    %213 = arith.mulf %211, %212 : vector<256x32xf32>
    %c5_166 = arith.constant 5 : index
    %c0_167 = arith.constant 0 : index
    %c0_168 = arith.constant 0 : index
    %214 = vector.load %arg12[%c5_166, %c0_167, %c0_168] : memref<9x32x32xf32, #tpu.memory_space<vmem>>, vector<1x32x32xf32>
    %215 = vector.shape_cast %214 : vector<1x32x32xf32> to vector<32x32xf32>
    %cst_169 = arith.constant dense<0.000000e+00> : vector<256x32xf32>
    %216 = tpu.matmul %213, %215, %cst_169 {dimension_numbers = #tpu.dot_dimension_numbers<[1], [0], [0], [1], [0, 0, 1, 1], [], []>} : vector<256x32xf32>, vector<32x32xf32>, vector<256x32xf32> -> vector<256x32xf32>
    %217 = arith.addf %210, %216 : vector<256x32xf32>
    %c39_170 = arith.constant 39 : index
    %c0_171 = arith.constant 0 : index
    %218 = vector.load %arg18[%c39_170, %c0_171] : memref<304x32xf32, #tpu.memory_space<vmem>>, vector<256x32xf32>
    %219 = vector.broadcast %24 : vector<256x1xf32> to vector<256x32xf32>
    %220 = arith.mulf %218, %219 : vector<256x32xf32>
    %c6_172 = arith.constant 6 : index
    %c0_173 = arith.constant 0 : index
    %c0_174 = arith.constant 0 : index
    %221 = vector.load %arg12[%c6_172, %c0_173, %c0_174] : memref<9x32x32xf32, #tpu.memory_space<vmem>>, vector<1x32x32xf32>
    %222 = vector.shape_cast %221 : vector<1x32x32xf32> to vector<32x32xf32>
    %cst_175 = arith.constant dense<0.000000e+00> : vector<256x32xf32>
    %223 = tpu.matmul %220, %222, %cst_175 {dimension_numbers = #tpu.dot_dimension_numbers<[1], [0], [0], [1], [0, 0, 1, 1], [], []>} : vector<256x32xf32>, vector<32x32xf32>, vector<256x32xf32> -> vector<256x32xf32>
    %224 = arith.addf %217, %223 : vector<256x32xf32>
    %c40_176 = arith.constant 40 : index
    %c0_177 = arith.constant 0 : index
    %225 = vector.load %arg18[%c40_176, %c0_177] : memref<304x32xf32, #tpu.memory_space<vmem>>, vector<256x32xf32>
    %c7_178 = arith.constant 7 : index
    %c0_179 = arith.constant 0 : index
    %c0_180 = arith.constant 0 : index
    %226 = vector.load %arg12[%c7_178, %c0_179, %c0_180] : memref<9x32x32xf32, #tpu.memory_space<vmem>>, vector<1x32x32xf32>
    %227 = vector.shape_cast %226 : vector<1x32x32xf32> to vector<32x32xf32>
    %cst_181 = arith.constant dense<0.000000e+00> : vector<256x32xf32>
    %228 = tpu.matmul %225, %227, %cst_181 {dimension_numbers = #tpu.dot_dimension_numbers<[1], [0], [0], [1], [0, 0, 1, 1], [], []>} : vector<256x32xf32>, vector<32x32xf32>, vector<256x32xf32> -> vector<256x32xf32>
    %229 = arith.addf %224, %228 : vector<256x32xf32>
    %c41_182 = arith.constant 41 : index
    %c0_183 = arith.constant 0 : index
    %230 = vector.load %arg18[%c41_182, %c0_183] : memref<304x32xf32, #tpu.memory_space<vmem>>, vector<256x32xf32>
    %231 = vector.broadcast %28 : vector<256x1xf32> to vector<256x32xf32>
    %232 = arith.mulf %230, %231 : vector<256x32xf32>
    %c8_184 = arith.constant 8 : index
    %c0_185 = arith.constant 0 : index
    %c0_186 = arith.constant 0 : index
    %233 = vector.load %arg12[%c8_184, %c0_185, %c0_186] : memref<9x32x32xf32, #tpu.memory_space<vmem>>, vector<1x32x32xf32>
    %234 = vector.shape_cast %233 : vector<1x32x32xf32> to vector<32x32xf32>
    %cst_187 = arith.constant dense<0.000000e+00> : vector<256x32xf32>
    %235 = tpu.matmul %232, %234, %cst_187 {dimension_numbers = #tpu.dot_dimension_numbers<[1], [0], [0], [1], [0, 0, 1, 1], [], []>} : vector<256x32xf32>, vector<32x32xf32>, vector<256x32xf32> -> vector<256x32xf32>
    %236 = arith.addf %229, %235 : vector<256x32xf32>
    %c0_188 = arith.constant 0 : index
    %c0_189 = arith.constant 0 : index
    %237 = vector.load %arg13[%c0_188, %c0_189] : memref<1x32xf32, #tpu.memory_space<vmem>>, vector<1x32xf32>
    %238 = vector.broadcast %237 : vector<1x32xf32> to vector<256x32xf32>
    %239 = arith.addf %236, %238 : vector<256x32xf32>
    %cst_190 = arith.constant 0.000000e+00 : f32
    %240 = vector.broadcast %cst_190 : f32 to vector<256x32xf32>
    %241 = arith.maximumf %239, %240 : vector<256x32xf32>
    %c0_191 = arith.constant 0 : index
    %c0_192 = arith.constant 0 : index
    %242 = vector.load %arg14[%c0_191, %c0_192] : memref<32x128xf32, #tpu.memory_space<vmem>>, vector<32x128xf32>
    %cst_193 = arith.constant dense<0.000000e+00> : vector<256x128xf32>
    %243 = tpu.matmul %35, %242, %cst_193 {dimension_numbers = #tpu.dot_dimension_numbers<[1], [0], [0], [1], [0, 0, 1, 1], [], []>} : vector<256x32xf32>, vector<32x128xf32>, vector<256x128xf32> -> vector<256x128xf32>
    %c0_194 = arith.constant 0 : index
    %c0_195 = arith.constant 0 : index
    %244 = vector.load %arg15[%c0_194, %c0_195] : memref<32x128xf32, #tpu.memory_space<vmem>>, vector<32x128xf32>
    %cst_196 = arith.constant dense<0.000000e+00> : vector<256x128xf32>
    %245 = tpu.matmul %106, %244, %cst_196 {dimension_numbers = #tpu.dot_dimension_numbers<[1], [0], [0], [1], [0, 0, 1, 1], [], []>} : vector<256x32xf32>, vector<32x128xf32>, vector<256x128xf32> -> vector<256x128xf32>
    %246 = arith.addf %243, %245 : vector<256x128xf32>
    %c0_197 = arith.constant 0 : index
    %c0_198 = arith.constant 0 : index
    %247 = vector.load %arg16[%c0_197, %c0_198] : memref<32x128xf32, #tpu.memory_space<vmem>>, vector<32x128xf32>
    %cst_199 = arith.constant dense<0.000000e+00> : vector<256x128xf32>
    %248 = tpu.matmul %241, %247, %cst_199 {dimension_numbers = #tpu.dot_dimension_numbers<[1], [0], [0], [1], [0, 0, 1, 1], [], []>} : vector<256x32xf32>, vector<32x128xf32>, vector<256x128xf32> -> vector<256x128xf32>
    %249 = arith.addf %246, %248 : vector<256x128xf32>
    %c0_200 = arith.constant 0 : index
    %c0_201 = arith.constant 0 : index
    %c0_202 = arith.constant 0 : index
    %250 = vector.load %arg17[%c0_200, %c0_201, %c0_202] : memref<1x256x128xf32, #tpu.memory_space<vmem>>, vector<1x256x128xf32>
    %251 = vector.shape_cast %250 : vector<1x256x128xf32> to vector<256x128xf32>
    %252 = vector.shape_cast %249 : vector<256x128xf32> to vector<1x256x128xf32>
    tpu.vector_store %arg17[%c0_200, %c0_201, %c0_202], %252 {strides = array<i32>} : memref<1x256x128xf32, #tpu.memory_space<vmem>>, vector<1x256x128xf32>,
    return
  }
  func.func @transform_0(%arg0: i32) -> (i32, i32, i32) {
    %c0_i32 = arith.constant 0 : i32
    %c0_i32_0 = arith.constant 0 : i32
    %c0_i32_1 = arith.constant 0 : i32
    return %arg0, %c0_i32, %c0_i32_0 : i32, i32, i32
  }
  func.func @transform_1(%arg0: i32) -> (i32, i32) {
    %c0_i32 = arith.constant 0 : i32
    %c0_i32_0 = arith.constant 0 : i32
    %c0_i32_1 = arith.constant 0 : i32
    return %c0_i32, %c0_i32_0 : i32, i32
  }
  func.func @transform_2(%arg0: i32) -> (i32, i32) {
    %c0_i32 = arith.constant 0 : i32
    %c0_i32_0 = arith.constant 0 : i32
    %c0_i32_1 = arith.constant 0 : i32
    return %c0_i32, %c0_i32_0 : i32, i32
  }
  func.func @transform_3(%arg0: i32) -> (i32, i32) {
    %c0_i32 = arith.constant 0 : i32
    %c0_i32_0 = arith.constant 0 : i32
    %c0_i32_1 = arith.constant 0 : i32
    return %c0_i32, %c0_i32_0 : i32, i32
  }
  func.func @transform_4(%arg0: i32) -> (i32, i32) {
    %c0_i32 = arith.constant 0 : i32
    %c0_i32_0 = arith.constant 0 : i32
    %c0_i32_1 = arith.constant 0 : i32
    return %c0_i32, %c0_i32_0 : i32, i32
  }
  func.func @transform_5(%arg0: i32) -> (i32, i32, i32) {
    %c0_i32 = arith.constant 0 : i32
    %c0_i32_0 = arith.constant 0 : i32
    %c0_i32_1 = arith.constant 0 : i32
    %c0_i32_2 = arith.constant 0 : i32
    return %c0_i32, %c0_i32_0, %c0_i32_1 : i32, i32, i32
  }
  func.func @transform_6(%arg0: i32) -> (i32, i32) {
    %c0_i32 = arith.constant 0 : i32
    %c0_i32_0 = arith.constant 0 : i32
    %c0_i32_1 = arith.constant 0 : i32
    return %c0_i32, %c0_i32_0 : i32, i32
  }
  func.func @transform_7(%arg0: i32) -> (i32, i32) {
    %c0_i32 = arith.constant 0 : i32
    %c0_i32_0 = arith.constant 0 : i32
    %c0_i32_1 = arith.constant 0 : i32
    return %c0_i32, %c0_i32_0 : i32, i32
  }
  func.func @transform_8(%arg0: i32) -> (i32, i32) {
    %c0_i32 = arith.constant 0 : i32
    %c0_i32_0 = arith.constant 0 : i32
    %c0_i32_1 = arith.constant 0 : i32
    return %c0_i32, %c0_i32_0 : i32, i32
  }
  func.func @transform_9(%arg0: i32) -> (i32, i32, i32) {
    %c0_i32 = arith.constant 0 : i32
    %c0_i32_0 = arith.constant 0 : i32
    %c0_i32_1 = arith.constant 0 : i32
    %c0_i32_2 = arith.constant 0 : i32
    return %c0_i32, %c0_i32_0, %c0_i32_1 : i32, i32, i32
  }
  func.func @transform_10(%arg0: i32) -> (i32, i32) {
    %c0_i32 = arith.constant 0 : i32
    %c0_i32_0 = arith.constant 0 : i32
    %c0_i32_1 = arith.constant 0 : i32
    return %c0_i32, %c0_i32_0 : i32, i32
  }
  func.func @transform_11(%arg0: i32) -> (i32, i32, i32) {
    %c0_i32 = arith.constant 0 : i32
    %c0_i32_0 = arith.constant 0 : i32
    %c0_i32_1 = arith.constant 0 : i32
    %c0_i32_2 = arith.constant 0 : i32
    return %c0_i32, %c0_i32_0, %c0_i32_1 : i32, i32, i32
  }
  func.func @transform_12(%arg0: i32) -> (i32, i32) {
    %c0_i32 = arith.constant 0 : i32
    %c0_i32_0 = arith.constant 0 : i32
    %c0_i32_1 = arith.constant 0 : i32
    return %c0_i32, %c0_i32_0 : i32, i32
  }
  func.func @transform_13(%arg0: i32) -> (i32, i32) {
    %c0_i32 = arith.constant 0 : i32
    %c0_i32_0 = arith.constant 0 : i32
    %c0_i32_1 = arith.constant 0 : i32
    return %c0_i32, %c0_i32_0 : i32, i32
  }
  func.func @transform_14(%arg0: i32) -> (i32, i32) {
    %c0_i32 = arith.constant 0 : i32
    %c0_i32_0 = arith.constant 0 : i32
    %c0_i32_1 = arith.constant 0 : i32
    return %c0_i32, %c0_i32_0 : i32, i32
  }
  func.func @transform_15(%arg0: i32) -> (i32, i32) {
    %c0_i32 = arith.constant 0 : i32
    %c0_i32_0 = arith.constant 0 : i32
    %c0_i32_1 = arith.constant 0 : i32
    return %c0_i32, %c0_i32_0 : i32, i32
  }
  func.func @transform_16(%arg0: i32) -> (i32, i32, i32) {
    %c0_i32 = arith.constant 0 : i32
    %c0_i32_0 = arith.constant 0 : i32
    %c0_i32_1 = arith.constant 0 : i32
    return %arg0, %c0_i32, %c0_i32_0 : i32, i32, i32
  }
}

</mosaic_0001>

<llo_original>
// kernel: tpu_custom_call.1
$region0: #{tpu_custom_call.1}
  #allocation0 [shape = 'u32[]', space=smem, size = 0x4, offset = 0x4, fixed_abs, tag = 'smem constant byte address 0x4 - core index']
  #allocation1 [shape = 'u32[72,128]{1,0:T(1,128)}', space=vmem, size = 0x9000, scoped, tag = 'internal scratch']
  #allocation2 [shape = 'f32[304,32]{1,0:T(8,128)}', space=vmem, size = 0x26000, scoped, tag = 'scratch operand']
  %s0 = inlined_call_operand.vmem [shape: f32[2,256,4], index: 0, kind: input, shape index: {}]
  %s1 = inlined_call_operand.vmem [shape: f32[4,32], index: 1, kind: input, shape index: {}]
  %s2 = inlined_call_operand.vmem [shape: f32[1,32], index: 2, kind: input, shape index: {}]
  %s3 = inlined_call_operand.vmem [shape: f32[4,32], index: 3, kind: input, shape index: {}]
  %s4 = inlined_call_operand.vmem [shape: f32[1,32], index: 4, kind: input, shape index: {}]
  %s5 = inlined_call_operand.vmem [shape: f32[9,32,32], index: 5, kind: input, shape index: {}]
  %s6 = inlined_call_operand.vmem [shape: f32[1,32], index: 6, kind: input, shape index: {}]
  %s7 = inlined_call_operand.vmem [shape: f32[4,32], index: 7, kind: input, shape index: {}]
  %s8 = inlined_call_operand.vmem [shape: f32[1,32], index: 8, kind: input, shape index: {}]
  %s9 = inlined_call_operand.hbm [shape: f32[9,32,32], index: 9, kind: input, shape index: {}]
  %s10 = inlined_call_operand.vmem [shape: f32[1,32], index: 10, kind: input, shape index: {}]
  %s11 = inlined_call_operand.hbm [shape: f32[9,32,32], index: 11, kind: input, shape index: {}]
  %s12 = inlined_call_operand.vmem [shape: f32[1,32], index: 12, kind: input, shape index: {}]
  %s13 = inlined_call_operand.vmem [shape: f32[32,128], index: 13, kind: input, shape index: {}]
  %s14 = inlined_call_operand.vmem [shape: f32[32,128], index: 14, kind: input, shape index: {}]
  %s15 = inlined_call_operand.vmem [shape: f32[32,128], index: 15, kind: input, shape index: {}]
  %s16 = inlined_call_operand.hbm [shape: f32[2,256,128], index: 16, kind: output, shape index: {}]
  %s17 = sld [smem:[#allocation0]]
  $region105: #{tpu_custom_call.1} parent=0
    _
  %s19 = ssub.s32 1, %s17
  %s20 = scalar_select 0, %s19, %s17
  $region1: #{tpu_custom_call.1} parent=0
    #allocation3 [shape = 'u8[147456]{0}', space=vmem, size = 0x24000, scoped, tag = 'input window, operand 9, single buffered']
    #allocation4 [shape = 's32[2]{0}', space=sflag, size = 0x8, scoped, tag = 'scoped memory for tpu_custom_call.1']
    #allocation5 [shape = 's32[2]{0}', space=sflag, size = 0x8, scoped, tag = 'scoped memory for tpu_custom_call.1']
    #allocation6 [shape = 'u8[147456]{0}', space=vmem, size = 0x24000, scoped, tag = 'input window, operand 11, single buffered']
    #allocation7 [shape = 's32[1]{0}', space=sflag, size = 0x4, scoped, tag = 'scoped memory for tpu_custom_call.1']
    #allocation8 [shape = 'u8[262144]{0}', space=vmem, size = 0x40000, scoped, tag = 'output window, operand 0']
    %21 = vsyncpa [#allocation4], 0
    %22 = vsyncpa [#allocation7], 0
    %23 = vsyncpa [#allocation5], 0
    %s24 = scalar_lea.sflag [#allocation5], 1
    %25 = vsyncpa %s24, 0
    loop: start=0, step=1, limit=4
    $region2: #{tpu_custom_call.1} parent=1 // loop_pre_header
      _
    $region3: #{tpu_custom_call.1} parent=1 // loop_header
      %s27 = sphi 0, %s31
      %p28 = scmp.ge.s32.totalorder %s27, 4
      %s37 = sphi 0, %s39
      %s40 = sphi 0, %s37
      %s41 = sphi 0, %s40
      %s57 = sphi 0, %s41
      %s61 = sphi 0, %s61
      %s63 = sphi 0, %s61
      %s64 = sphi 0, %s63
      %s78 = sphi 0, %s64
      %s82 = sphi 0, %s82
      %s84 = sphi 0, %s82
      %s85 = sphi 0, %s84
      %s99 = sphi 0, %s85
      %s103 = sphi 0, %s103
      %s105 = sphi 0, %s103
      %s106 = sphi 0, %s105
      %s120 = sphi 0, %s106
      %s124 = sphi 0, %s124
      %s126 = sphi 0, %s124
      %s127 = sphi 0, %s126
      %s141 = sphi 0, %s127
      %s145 = sphi 0, %s145
      %s147 = sphi 0, %s145
      %s148 = sphi 0, %s147
      %s162 = sphi 0, %s148
      %s166 = sphi 0, %s166
      %s168 = sphi 0, %s166
      %s169 = sphi 0, %s168
      %s183 = sphi 0, %s169
      %s187 = sphi 0, %s187
      %s189 = sphi 0, %s187
      %s190 = sphi 0, %s189
      %s204 = sphi 0, %s190
      %s208 = sphi 0, %s208
      %s210 = sphi 0, %s208
      %s211 = sphi 0, %s210
      %s225 = sphi 0, %s211
      %s229 = sphi 0, %s229
      %s231 = sphi 0, %s229
      %s232 = sphi 0, %s231
      %s246 = sphi 0, %s232
      %s250 = sphi 0, %s250
      %s252 = sphi 0, %s250
      %s253 = sphi 0, %s252
      %s267 = sphi 0, %s253
      %s271 = sphi 0, %s271
      %s273 = sphi 0, %s271
      %s274 = sphi 0, %s273
      %s288 = sphi 0, %s274
      %s292 = sphi 0, %s292
      %s294 = sphi 0, %s292
      %s295 = sphi 0, %s294
      %s309 = sphi 0, %s295
      %s313 = sphi 0, %s313
      %s315 = sphi 0, %s313
      %s316 = sphi 0, %s315
      %s330 = sphi 0, %s316
      %s334 = sphi 0, %s334
      %s336 = sphi 0, %s334
      %s337 = sphi 0, %s336
      %s351 = sphi 0, %s337
      %s355 = sphi 0, %s355
      %s357 = sphi 0, %s355
      %s358 = sphi 0, %s357
      %s372 = sphi 0, %s358
      %s378 = sphi 0, %s380
      %s381 = sphi 0, %s378
      %s382 = sphi 0, %s381
      %s398 = sphi 0, %s382
    $region4: #{tpu_custom_call.1} parent=1 // loop_header_branch
      %30 = sbr.rel (%p28) target = $region8
    $region5: #{tpu_custom_call.1} parent=1 // loop_body
      %s32 = ssub.s32 %s27, 1
      %s33 = ssub.s32 %s27, 2
      %s34 = sadd.s32 %s27, 1
      %s35 = ssub.s32 %s27, %s34
      %p36 = scmp.eq.s32.totalorder %s35, 0
      %s38 = sadd.s32 %s37, 1
      %s39 = scalar_select %p36, %s37, %s38
      %p42 = pneg %p36
      %p43 = scmp.eq.s32.totalorder %s27, 1
      %p44 = por %p42, %p43
      %p45 = scmp.ne.s32.totalorder %s37, %s40
      %p46 = scmp.eq.s32.totalorder %s27, 0
      %p47 = por %p45, %p46
      %p48 = scmp.ne.s32.totalorder %s37, %s40
      %p49 = scmp.eq.s32.totalorder %s32, 1
      %p50 = por %p48, %p49
      %p51 = scmp.ne.s32.totalorder %s40, %s41
      %p52 = scmp.eq.s32.totalorder %s32, 0
      %p53 = por %p51, %p52
      %p54 = scmp.ne.s32.totalorder %s40, %s41
      %p55 = scmp.eq.s32.totalorder %s33, 1
      %p56 = por %p54, %p55
      %p58 = scmp.ne.s32.totalorder %s41, %s57
      %p59 = scmp.eq.s32.totalorder %s33, 0
      %p60 = por %p58, %p59
      %s62 = sadd.s32 %s61, 1
      %p65 = scmp.eq.s32.totalorder %s27, 1
      %p66 = scmp.ne.s32.totalorder %s61, %s63
      %p67 = scmp.eq.s32.totalorder %s27, 0
      %p68 = por %p66, %p67
      %p69 = scmp.ne.s32.totalorder %s61, %s63
      %p70 = scmp.eq.s32.totalorder %s32, 1
      %p71 = por %p69, %p70
      %p72 = scmp.ne.s32.totalorder %s63, %s64
      %p73 = scmp.eq.s32.totalorder %s32, 0
      %p74 = por %p72, %p73
      %p75 = scmp.ne.s32.totalorder %s63, %s64
      %p76 = scmp.eq.s32.totalorder %s33, 1
      %p77 = por %p75, %p76
      %p79 = scmp.ne.s32.totalorder %s64, %s78
      %p80 = scmp.eq.s32.totalorder %s33, 0
      %p81 = por %p79, %p80
      %s83 = sadd.s32 %s82, 1
      %p86 = scmp.eq.s32.totalorder %s27, 1
      %p87 = scmp.ne.s32.totalorder %s82, %s84
      %p88 = scmp.eq.s32.totalorder %s27, 0
      %p89 = por %p87, %p88
      %p90 = scmp.ne.s32.totalorder %s82, %s84
      %p91 = scmp.eq.s32.totalorder %s32, 1
      %p92 = por %p90, %p91
      %p93 = scmp.ne.s32.totalorder %s84, %s85
      %p94 = scmp.eq.s32.totalorder %s32, 0
      %p95 = por %p93, %p94
      %p96 = scmp.ne.s32.totalorder %s84, %s85
      %p97 = scmp.eq.s32.totalorder %s33, 1
      %p98 = por %p96, %p97
      %p100 = scmp.ne.s32.totalorder %s85, %s99
      %p101 = scmp.eq.s32.totalorder %s33, 0
      %p102 = por %p100, %p101
      %s104 = sadd.s32 %s103, 1
      %p107 = scmp.eq.s32.totalorder %s27, 1
      %p108 = scmp.ne.s32.totalorder %s103, %s105
      %p109 = scmp.eq.s32.totalorder %s27, 0
      %p110 = por %p108, %p109
      %p111 = scmp.ne.s32.totalorder %s103, %s105
      %p112 = scmp.eq.s32.totalorder %s32, 1
      %p113 = por %p111, %p112
      %p114 = scmp.ne.s32.totalorder %s105, %s106
      %p115 = scmp.eq.s32.totalorder %s32, 0
      %p116 = por %p114, %p115
      %p117 = scmp.ne.s32.totalorder %s105, %s106
      %p118 = scmp.eq.s32.totalorder %s33, 1
      %p119 = por %p117, %p118
      %p121 = scmp.ne.s32.totalorder %s106, %s120
      %p122 = scmp.eq.s32.totalorder %s33, 0
      %p123 = por %p121, %p122
      %s125 = sadd.s32 %s124, 1
      %p128 = scmp.eq.s32.totalorder %s27, 1
      %p129 = scmp.ne.s32.totalorder %s124, %s126
      %p130 = scmp.eq.s32.totalorder %s27, 0
      %p131 = por %p129, %p130
      %p132 = scmp.ne.s32.totalorder %s124, %s126
      %p133 = scmp.eq.s32.totalorder %s32, 1
      %p134 = por %p132, %p133
      %p135 = scmp.ne.s32.totalorder %s126, %s127
      %p136 = scmp.eq.s32.totalorder %s32, 0
      %p137 = por %p135, %p136
      %p138 = scmp.ne.s32.totalorder %s126, %s127
      %p139 = scmp.eq.s32.totalorder %s33, 1
      %p140 = por %p138, %p139
      %p142 = scmp.ne.s32.totalorder %s127, %s141
      %p143 = scmp.eq.s32.totalorder %s33, 0
      %p144 = por %p142, %p143
      %s146 = sadd.s32 %s145, 1
      %p149 = scmp.eq.s32.totalorder %s27, 1
      %p150 = scmp.ne.s32.totalorder %s145, %s147
      %p151 = scmp.eq.s32.totalorder %s27, 0
      %p152 = por %p150, %p151
      %p153 = scmp.ne.s32.totalorder %s145, %s147
      %p154 = scmp.eq.s32.totalorder %s32, 1
      %p155 = por %p153, %p154
      %p156 = scmp.ne.s32.totalorder %s147, %s148
      %p157 = scmp.eq.s32.totalorder %s32, 0
      %p158 = por %p156, %p157
      %p159 = scmp.ne.s32.totalorder %s147, %s148
      %p160 = scmp.eq.s32.totalorder %s33, 1
      %p161 = por %p159, %p160
      %p163 = scmp.ne.s32.totalorder %s148, %s162
      %p164 = scmp.eq.s32.totalorder %s33, 0
      %p165 = por %p163, %p164
      %s167 = sadd.s32 %s166, 1
      %p170 = scmp.eq.s32.totalorder %s27, 1
      %p171 = scmp.ne.s32.totalorder %s166, %s168
      %p172 = scmp.eq.s32.totalorder %s27, 0
      %p173 = por %p171, %p172
      %p174 = scmp.ne.s32.totalorder %s166, %s168
      %p175 = scmp.eq.s32.totalorder %s32, 1
      %p176 = por %p174, %p175
      %p177 = scmp.ne.s32.totalorder %s168, %s169
      %p178 = scmp.eq.s32.totalorder %s32, 0
      %p179 = por %p177, %p178
      %p180 = scmp.ne.s32.totalorder %s168, %s169
      %p181 = scmp.eq.s32.totalorder %s33, 1
      %p182 = por %p180, %p181
      %p184 = scmp.ne.s32.totalorder %s169, %s183
      %p185 = scmp.eq.s32.totalorder %s33, 0
      %p186 = por %p184, %p185
      %s188 = sadd.s32 %s187, 1
      %p191 = scmp.eq.s32.totalorder %s27, 1
      %p192 = scmp.ne.s32.totalorder %s187, %s189
      %p193 = scmp.eq.s32.totalorder %s27, 0
      %p194 = por %p192, %p193
      %p195 = scmp.ne.s32.totalorder %s187, %s189
      %p196 = scmp.eq.s32.totalorder %s32, 1
      %p197 = por %p195, %p196
      %p198 = scmp.ne.s32.totalorder %s189, %s190
      %p199 = scmp.eq.s32.totalorder %s32, 0
      %p200 = por %p198, %p199
      %p201 = scmp.ne.s32.totalorder %s189, %s190
      %p202 = scmp.eq.s32.totalorder %s33, 1
      %p203 = por %p201, %p202
      %p205 = scmp.ne.s32.totalorder %s190, %s204
      %p206 = scmp.eq.s32.totalorder %s33, 0
      %p207 = por %p205, %p206
      %s209 = sadd.s32 %s208, 1
      %p212 = scmp.eq.s32.totalorder %s27, 1
      %p213 = scmp.ne.s32.totalorder %s208, %s210
      %p214 = scmp.eq.s32.totalorder %s27, 0
      %p215 = por %p213, %p214
      %p216 = scmp.ne.s32.totalorder %s208, %s210
      %p217 = scmp.eq.s32.totalorder %s32, 1
      %p218 = por %p216, %p217
      %p219 = scmp.ne.s32.totalorder %s210, %s211
      %p220 = scmp.eq.s32.totalorder %s32, 0
      %p221 = por %p219, %p220
      %p222 = scmp.ne.s32.totalorder %s210, %s211
      %p223 = scmp.eq.s32.totalorder %s33, 1
      %p224 = por %p222, %p223
      %p226 = scmp.ne.s32.totalorder %s211, %s225
      %p227 = scmp.eq.s32.totalorder %s33, 0
      %p228 = por %p226, %p227
      %s230 = sadd.s32 %s229, 1
      %p233 = scmp.eq.s32.totalorder %s27, 1
      %p234 = scmp.ne.s32.totalorder %s229, %s231
      %p235 = scmp.eq.s32.totalorder %s27, 0
      %p236 = por %p234, %p235
      %p237 = scmp.ne.s32.totalorder %s229, %s231
      %p238 = scmp.eq.s32.totalorder %s32, 1
      %p239 = por %p237, %p238
      %p240 = scmp.ne.s32.totalorder %s231, %s232
      %p241 = scmp.eq.s32.totalorder %s32, 0
      %p242 = por %p240, %p241
      %p243 = scmp.ne.s32.totalorder %s231, %s232
      %p244 = scmp.eq.s32.totalorder %s33, 1
      %p245 = por %p243, %p244
      %p247 = scmp.ne.s32.totalorder %s232, %s246
      %p248 = scmp.eq.s32.totalorder %s33, 0
      %p249 = por %p247, %p248
      %s251 = sadd.s32 %s250, 1
      %p254 = scmp.eq.s32.totalorder %s27, 1
      %p255 = scmp.ne.s32.totalorder %s250, %s252
      %p256 = scmp.eq.s32.totalorder %s27, 0
      %p257 = por %p255, %p256
      %p258 = scmp.ne.s32.totalorder %s250, %s252
      %p259 = scmp.eq.s32.totalorder %s32, 1
      %p260 = por %p258, %p259
      %p261 = scmp.ne.s32.totalorder %s252, %s253
      %p262 = scmp.eq.s32.totalorder %s32, 0
      %p263 = por %p261, %p262
      %p264 = scmp.ne.s32.totalorder %s252, %s253
      %p265 = scmp.eq.s32.totalorder %s33, 1
      %p266 = por %p264, %p265
      %p268 = scmp.ne.s32.totalorder %s253, %s267
      %p269 = scmp.eq.s32.totalorder %s33, 0
      %p270 = por %p268, %p269
      %s272 = sadd.s32 %s271, 1
      %p275 = scmp.eq.s32.totalorder %s27, 1
      %p276 = scmp.ne.s32.totalorder %s271, %s273
      %p277 = scmp.eq.s32.totalorder %s27, 0
      %p278 = por %p276, %p277
      %p279 = scmp.ne.s32.totalorder %s271, %s273
      %p280 = scmp.eq.s32.totalorder %s32, 1
      %p281 = por %p279, %p280
      %p282 = scmp.ne.s32.totalorder %s273, %s274
      %p283 = scmp.eq.s32.totalorder %s32, 0
      %p284 = por %p282, %p283
      %p285 = scmp.ne.s32.totalorder %s273, %s274
      %p286 = scmp.eq.s32.totalorder %s33, 1
      %p287 = por %p285, %p286
      %p289 = scmp.ne.s32.totalorder %s274, %s288
      %p290 = scmp.eq.s32.totalorder %s33, 0
      %p291 = por %p289, %p290
      %s293 = sadd.s32 %s292, 1
      %p296 = scmp.eq.s32.totalorder %s27, 1
      %p297 = scmp.ne.s32.totalorder %s292, %s294
      %p298 = scmp.eq.s32.totalorder %s27, 0
      %p299 = por %p297, %p298
      %p300 = scmp.ne.s32.totalorder %s292, %s294
      %p301 = scmp.eq.s32.totalorder %s32, 1
      %p302 = por %p300, %p301
      %p303 = scmp.ne.s32.totalorder %s294, %s295
      %p304 = scmp.eq.s32.totalorder %s32, 0
      %p305 = por %p303, %p304
      %p306 = scmp.ne.s32.totalorder %s294, %s295
      %p307 = scmp.eq.s32.totalorder %s33, 1
      %p308 = por %p306, %p307
      %p310 = scmp.ne.s32.totalorder %s295, %s309
      %p311 = scmp.eq.s32.totalorder %s33, 0
      %p312 = por %p310, %p311
      %s314 = sadd.s32 %s313, 1
      %p317 = scmp.eq.s32.totalorder %s27, 1
      %p318 = scmp.ne.s32.totalorder %s313, %s315
      %p319 = scmp.eq.s32.totalorder %s27, 0
      %p320 = por %p318, %p319
      %p321 = scmp.ne.s32.totalorder %s313, %s315
      %p322 = scmp.eq.s32.totalorder %s32, 1
      %p323 = por %p321, %p322
      %p324 = scmp.ne.s32.totalorder %s315, %s316
      %p325 = scmp.eq.s32.totalorder %s32, 0
      %p326 = por %p324, %p325
      %p327 = scmp.ne.s32.totalorder %s315, %s316
      %p328 = scmp.eq.s32.totalorder %s33, 1
      %p329 = por %p327, %p328
      %p331 = scmp.ne.s32.totalorder %s316, %s330
      %p332 = scmp.eq.s32.totalorder %s33, 0
      %p333 = por %p331, %p332
      %s335 = sadd.s32 %s334, 1
      %p338 = scmp.eq.s32.totalorder %s27, 1
      %p339 = scmp.ne.s32.totalorder %s334, %s336
      %p340 = scmp.eq.s32.totalorder %s27, 0
      %p341 = por %p339, %p340
      %p342 = scmp.ne.s32.totalorder %s334, %s336
      %p343 = scmp.eq.s32.totalorder %s32, 1
      %p344 = por %p342, %p343
      %p345 = scmp.ne.s32.totalorder %s336, %s337
      %p346 = scmp.eq.s32.totalorder %s32, 0
      %p347 = por %p345, %p346
      %p348 = scmp.ne.s32.totalorder %s336, %s337
      %p349 = scmp.eq.s32.totalorder %s33, 1
      %p350 = por %p348, %p349
      %p352 = scmp.ne.s32.totalorder %s337, %s351
      %p353 = scmp.eq.s32.totalorder %s33, 0
      %p354 = por %p352, %p353
      %s356 = sadd.s32 %s355, 1
      %p359 = scmp.eq.s32.totalorder %s27, 1
      %p360 = scmp.ne.s32.totalorder %s355, %s357
      %p361 = scmp.eq.s32.totalorder %s27, 0
      %p362 = por %p360, %p361
      %p363 = scmp.ne.s32.totalorder %s355, %s357
      %p364 = scmp.eq.s32.totalorder %s32, 1
      %p365 = por %p363, %p364
      %p366 = scmp.ne.s32.totalorder %s357, %s358
      %p367 = scmp.eq.s32.totalorder %s32, 0
      %p368 = por %p366, %p367
      %p369 = scmp.ne.s32.totalorder %s357, %s358
      %p370 = scmp.eq.s32.totalorder %s33, 1
      %p371 = por %p369, %p370
      %p373 = scmp.ne.s32.totalorder %s358, %s372
      %p374 = scmp.eq.s32.totalorder %s33, 0
      %p375 = por %p373, %p374
      %s376 = ssub.s32 %s27, %s34
      %p377 = scmp.eq.s32.totalorder %s376, 0
      %s379 = sadd.s32 %s378, 1
      %s380 = scalar_select %p377, %s378, %s379
      %p383 = pneg %p377
      %p384 = scmp.eq.s32.totalorder %s27, 1
      %p385 = por %p383, %p384
      %p386 = scmp.ne.s32.totalorder %s378, %s381
      %p387 = scmp.eq.s32.totalorder %s27, 0
      %p388 = por %p386, %p387
      %p389 = scmp.ne.s32.totalorder %s378, %s381
      %p390 = scmp.eq.s32.totalorder %s32, 1
      %p391 = por %p389, %p390
      %p392 = scmp.ne.s32.totalorder %s381, %s382
      %p393 = scmp.eq.s32.totalorder %s32, 0
      %p394 = por %p392, %p393
      %p395 = scmp.ne.s32.totalorder %s381, %s382
      %p396 = scmp.eq.s32.totalorder %s33, 1
      %p397 = por %p395, %p396
      %p399 = scmp.ne.s32.totalorder %s382, %s398
      %p400 = scmp.eq.s32.totalorder %s33, 0
      %p401 = por %p399, %p400
      %p402 = scmp.le.s32.totalorder 1, %s27
      %p403 = scmp.lt.s32.totalorder %s27, 3
      %p404 = pnand %p402, %p403
      %p405 = pneg %p404
      // Predicated region
      $region9: #{tpu_custom_call.1} parent=5 // pred_check
        _
      $region10: #{tpu_custom_call.1} parent=5 // pred_check_branch
        %407 = sbr.rel (%p404) target = $region12
      $region11: #{tpu_custom_call.1} parent=5 // pred_region
        %s408 = ssub.s32 %s27, 1
        // Predicated region
        $region13: #{tpu_custom_call.1} parent=11 // pred_check
          %p409 = pneg %p74
        $region14: #{tpu_custom_call.1} parent=11 // pred_check_branch
          %411 = sbr.rel (%p409) target = $region16
        $region15: #{tpu_custom_call.1} parent=11 // pred_region
          _
        $region16: #{tpu_custom_call.1} parent=11 // pred_fallthru
          _
        // Predicated region
        $region17: #{tpu_custom_call.1} parent=11 // pred_check
          %p412 = pneg %p95
        $region18: #{tpu_custom_call.1} parent=11 // pred_check_branch
          %414 = sbr.rel (%p412) target = $region20
        $region19: #{tpu_custom_call.1} parent=11 // pred_region
          _
        $region20: #{tpu_custom_call.1} parent=11 // pred_fallthru
          _
        // Predicated region
        $region21: #{tpu_custom_call.1} parent=11 // pred_check
          %p415 = pneg %p116
        $region22: #{tpu_custom_call.1} parent=11 // pred_check_branch
          %417 = sbr.rel (%p415) target = $region24
        $region23: #{tpu_custom_call.1} parent=11 // pred_region
          _
        $region24: #{tpu_custom_call.1} parent=11 // pred_fallthru
          _
        // Predicated region
        $region25: #{tpu_custom_call.1} parent=11 // pred_check
          %p418 = pneg %p137
        $region26: #{tpu_custom_call.1} parent=11 // pred_check_branch
          %420 = sbr.rel (%p418) target = $region28
        $region27: #{tpu_custom_call.1} parent=11 // pred_region
          _
        $region28: #{tpu_custom_call.1} parent=11 // pred_fallthru
          _
        // Predicated region
        $region29: #{tpu_custom_call.1} parent=11 // pred_check
          %p421 = pneg %p158
        $region30: #{tpu_custom_call.1} parent=11 // pred_check_branch
          %423 = sbr.rel (%p421) target = $region32
        $region31: #{tpu_custom_call.1} parent=11 // pred_region
          _
        $region32: #{tpu_custom_call.1} parent=11 // pred_fallthru
          _
        // Predicated region
        $region33: #{tpu_custom_call.1} parent=11 // pred_check
          %p424 = pneg %p179
        $region34: #{tpu_custom_call.1} parent=11 // pred_check_branch
          %426 = sbr.rel (%p424) target = $region36
        $region35: #{tpu_custom_call.1} parent=11 // pred_region
          _
        $region36: #{tpu_custom_call.1} parent=11 // pred_fallthru
          _
        // Predicated region
        $region37: #{tpu_custom_call.1} parent=11 // pred_check
          %p427 = pneg %p200
        $region38: #{tpu_custom_call.1} parent=11 // pred_check_branch
          %429 = sbr.rel (%p427) target = $region40
        $region39: #{tpu_custom_call.1} parent=11 // pred_region
          _
        $region40: #{tpu_custom_call.1} parent=11 // pred_fallthru
          _
        // Predicated region
        $region41: #{tpu_custom_call.1} parent=11 // pred_check
          %p430 = pneg %p221
        $region42: #{tpu_custom_call.1} parent=11 // pred_check_branch
          %432 = sbr.rel (%p430) target = $region44
        $region43: #{tpu_custom_call.1} parent=11 // pred_region
          _
        $region44: #{tpu_custom_call.1} parent=11 // pred_fallthru
          _
        // Predicated region
        $region45: #{tpu_custom_call.1} parent=11 // pred_check
          %p433 = pneg %p242
        $region46: #{tpu_custom_call.1} parent=11 // pred_check_branch
          %435 = sbr.rel (%p433) target = $region48
        $region47: #{tpu_custom_call.1} parent=11 // pred_region
          %437 = vsyncadd [#allocation4], 0
          %s438 = sshll.u32 %s9, 4
          %s439 = int_to_ptr.hbm [resolvable:$true] %s438
          %s440 = sshll.u32 [#allocation3], 4
          %s441 = int_to_ptr.vmem [resolvable:$true] %s440
          %446 = dma.hbm_to_vmem [thread:$0]  %s439, 4608, %s441, [#allocation4], 128, 128, 8
        $region48: #{tpu_custom_call.1} parent=11 // pred_fallthru
          _
        // Predicated region
        $region49: #{tpu_custom_call.1} parent=11 // pred_check
          %p447 = pneg %p263
        $region50: #{tpu_custom_call.1} parent=11 // pred_check_branch
          %449 = sbr.rel (%p447) target = $region52
        $region51: #{tpu_custom_call.1} parent=11 // pred_region
          _
        $region52: #{tpu_custom_call.1} parent=11 // pred_fallthru
          _
        // Predicated region
        $region53: #{tpu_custom_call.1} parent=11 // pred_check
          %p450 = pneg %p284
        $region54: #{tpu_custom_call.1} parent=11 // pred_check_branch
          %452 = sbr.rel (%p450) target = $region56
        $region55: #{tpu_custom_call.1} parent=11 // pred_region
          %454 = vsyncadd [#allocation7], 0
          %s455 = sshll.u32 %s11, 4
          %s456 = int_to_ptr.hbm [resolvable:$true] %s455
          %s457 = sshll.u32 [#allocation6], 4
          %s458 = int_to_ptr.vmem [resolvable:$true] %s457
          %463 = dma.hbm_to_vmem [thread:$0]  %s456, 4608, %s458, [#allocation7], 128, 128, 8
        $region56: #{tpu_custom_call.1} parent=11 // pred_fallthru
          _
        // Predicated region
        $region57: #{tpu_custom_call.1} parent=11 // pred_check
          %p464 = pneg %p305
        $region58: #{tpu_custom_call.1} parent=11 // pred_check_branch
          %466 = sbr.rel (%p464) target = $region60
        $region59: #{tpu_custom_call.1} parent=11 // pred_region
          _
        $region60: #{tpu_custom_call.1} parent=11 // pred_fallthru
          _
        // Predicated region
        $region61: #{tpu_custom_call.1} parent=11 // pred_check
          %p467 = pneg %p326
        $region62: #{tpu_custom_call.1} parent=11 // pred_check_branch
          %469 = sbr.rel (%p467) target = $region64
        $region63: #{tpu_custom_call.1} parent=11 // pred_region
          _
        $region64: #{tpu_custom_call.1} parent=11 // pred_fallthru
          _
        // Predicated region
        $region65: #{tpu_custom_call.1} parent=11 // pred_check
          %p470 = pneg %p347
        $region66: #{tpu_custom_call.1} parent=11 // pred_check_branch
          %472 = sbr.rel (%p470) target = $region68
        $region67: #{tpu_custom_call.1} parent=11 // pred_region
          _
        $region68: #{tpu_custom_call.1} parent=11 // pred_fallthru
          _
        // Predicated region
        $region69: #{tpu_custom_call.1} parent=11 // pred_check
          %p473 = pneg %p368
        $region70: #{tpu_custom_call.1} parent=11 // pred_check_branch
          %475 = sbr.rel (%p473) target = $region72
        $region71: #{tpu_custom_call.1} parent=11 // pred_region
          _
        $region72: #{tpu_custom_call.1} parent=11 // pred_fallthru
          _
      $region12: #{tpu_custom_call.1} parent=5 // pred_fallthru
        _
      %p476 = scmp.lt.s32.totalorder %s27, 2
      // Predicated region
      $region73: #{tpu_custom_call.1} parent=5 // pred_check
        %p477 = pneg %p476
      $region74: #{tpu_custom_call.1} parent=5 // pred_check_branch
        %479 = sbr.rel (%p477) target = $region76
      $region75: #{tpu_custom_call.1} parent=5 // pred_region
        // Predicated region
        $region77: #{tpu_custom_call.1} parent=75 // pred_check
          %p480 = pneg %p47
        $region78: #{tpu_custom_call.1} parent=75 // pred_check_branch
          %482 = sbr.rel (%p480) target = $region80
        $region79: #{tpu_custom_call.1} parent=75 // pred_region
          %p483 = scmp.lt.s32.totalorder %s27, 1
          %s484 = scalar_select %p483, %s27, 1
          %s485 = smul.addr %s484, 32
          %s486 = smul.addr %s485, 8
          %s487 = scalar_lea.vmem %s0, %s486
        $region80: #{tpu_custom_call.1} parent=75 // pred_fallthru
          _
      $region76: #{tpu_custom_call.1} parent=5 // pred_fallthru
        _
      %p488 = scmp.le.s32.totalorder 1, %s27
      %p489 = scmp.lt.s32.totalorder %s27, 3
      %p490 = pnand %p488, %p489
      %p491 = pneg %p490
      // Predicated region
      $region81: #{tpu_custom_call.1} parent=5 // pred_check
        _
      $region82: #{tpu_custom_call.1} parent=5 // pred_check_branch
        %493 = sbr.rel (%p490) target = $region84
      $region83: #{tpu_custom_call.1} parent=5 // pred_region
        %s494 = ssub.s32 %s27, 1
        // Predicated region
        $region85: #{tpu_custom_call.1} parent=83 // pred_check
          %p495 = pneg %p242
        $region86: #{tpu_custom_call.1} parent=83 // pred_check_branch
          %497 = sbr.rel (%p495) target = $region88
        $region87: #{tpu_custom_call.1} parent=83 // pred_region
          %499 = dma.done [#allocation4], 4608
        $region88: #{tpu_custom_call.1} parent=83 // pred_fallthru
          _
        // Predicated region
        $region89: #{tpu_custom_call.1} parent=83 // pred_check
          %p500 = pneg %p284
        $region90: #{tpu_custom_call.1} parent=83 // pred_check_branch
          %502 = sbr.rel (%p500) target = $region92
        $region91: #{tpu_custom_call.1} parent=83 // pred_region
          %504 = dma.done [#allocation7], 4608
        $region92: #{tpu_custom_call.1} parent=83 // pred_fallthru
          _
        %p505 = scmp.lt.s32.totalorder %s32, 1
        %s506 = scalar_select %p505, %s32, 1
        %s507 = smul.addr %s506, 32
        %s508 = smul.addr %s507, 8
        %s509 = scalar_lea.vmem %s0, %s508
        %p510 = pneg %p53
        %p511 = pneg %p50
        %p512 = pneg %p74
        %p513 = pneg %p71
        %p514 = pneg %p95
        %p515 = pneg %p92
        %p516 = pneg %p116
        %p517 = pneg %p113
        %p518 = pneg %p137
        %p519 = pneg %p134
        %p520 = pneg %p158
        %p521 = pneg %p155
        %p522 = pneg %p179
        %p523 = pneg %p176
        %p524 = pneg %p200
        %p525 = pneg %p197
        %p526 = pneg %p221
        %p527 = pneg %p218
        %p528 = pneg %p242
        %p529 = pneg %p239
        %p530 = pneg %p263
        %p531 = pneg %p260
        %p532 = pneg %p284
        %p533 = pneg %p281
        %p534 = pneg %p305
        %p535 = pneg %p302
        %p536 = pneg %p326
        %p537 = pneg %p323
        %p538 = pneg %p347
        %p539 = pneg %p344
        %p540 = pneg %p368
        %p541 = pneg %p365
        %p542 = pneg %p394
        %p543 = pneg %p391
        %s544 = sand.u32 %s381, 1
        %s545 = scalar_lea.sflag [#allocation5], %s544
        %s546 = sand.u32 %s381, 1
        %s547 = smul.addr %s546, 256
        %s548 = scalar_lea.vmem [#allocation8], %s547
        %p549 = scmp.lt.s32.totalorder %s32, 1
        %s550 = scalar_select %p549, %s32, 1
        %s551 = smul.addr %s550, 32
        %s552 = smul.addr %s551, 8
        %s553 = scalar_lea.vmem %s0, %s552
        %v554 = vld [vmem:[%s553] sm:$0xff]
        %v555 = vld [vmem:[%s553 + $0x8] sm:$0xff]
        %v556 = vld [vmem:[%s553 + $0x10] sm:$0xff]
        %v557 = vld [vmem:[%s553 + $0x18] sm:$0xff]
        %v558 = vld [vmem:[%s553 + $0x20] sm:$0xff]
        %v559 = vld [vmem:[%s553 + $0x28] sm:$0xff]
        %v560 = vld [vmem:[%s553 + $0x30] sm:$0xff]
        %v561 = vld [vmem:[%s553 + $0x38] sm:$0xff]
        %v562 = vld [vmem:[%s553 + $0x40] sm:$0xff]
        %v563 = vld [vmem:[%s553 + $0x48] sm:$0xff]
        %v564 = vld [vmem:[%s553 + $0x50] sm:$0xff]
        %v565 = vld [vmem:[%s553 + $0x58] sm:$0xff]
        %v566 = vld [vmem:[%s553 + $0x60] sm:$0xff]
        %v567 = vld [vmem:[%s553 + $0x68] sm:$0xff]
        %v568 = vld [vmem:[%s553 + $0x70] sm:$0xff]
        %v569 = vld [vmem:[%s553 + $0x78] sm:$0xff]
        %v570 = vld [vmem:[%s553 + $0x80] sm:$0xff]
        %v571 = vld [vmem:[%s553 + $0x88] sm:$0xff]
        %v572 = vld [vmem:[%s553 + $0x90] sm:$0xff]
        %v573 = vld [vmem:[%s553 + $0x98] sm:$0xff]
        %v574 = vld [vmem:[%s553 + $0xa0] sm:$0xff]
        %v575 = vld [vmem:[%s553 + $0xa8] sm:$0xff]
        %v576 = vld [vmem:[%s553 + $0xb0] sm:$0xff]
        %v577 = vld [vmem:[%s553 + $0xb8] sm:$0xff]
        %v578 = vld [vmem:[%s553 + $0xc0] sm:$0xff]
        %v579 = vld [vmem:[%s553 + $0xc8] sm:$0xff]
        %v580 = vld [vmem:[%s553 + $0xd0] sm:$0xff]
        %v581 = vld [vmem:[%s553 + $0xd8] sm:$0xff]
        %v582 = vld [vmem:[%s553 + $0xe0] sm:$0xff]
        %v583 = vld [vmem:[%s553 + $0xe8] sm:$0xff]
        %v584 = vld [vmem:[%s553 + $0xf0] sm:$0xff]
        %v585 = vld [vmem:[%s553 + $0xf8] sm:$0xff]
        %vm586 = vcmask 261120
        %587 = vst.msk [vmem:[#allocation2] sm:$0xff] %vm586, 0.0
        %588 = vst.msk [vmem:[#allocation2 + $0x8] sm:$0xff] %vm586, 0.0
        %589 = vst.msk [vmem:[#allocation2 + $0x10] sm:$0xff] %vm586, 0.0
        %590 = vst.msk [vmem:[#allocation2 + $0x18] sm:$0xff] %vm586, 0.0
        %591 = vst.msk [vmem:[#allocation2 + $0x20] sm:$0xff] %vm586, 0.0
        %592 = vst.msk [vmem:[#allocation2 + $0x28] sm:$0xff] %vm586, 0.0
        %593 = vst.msk [vmem:[#allocation2 + $0x30] sm:$0xff] %vm586, 0.0
        %594 = vst.msk [vmem:[#allocation2 + $0x38] sm:$0xff] %vm586, 0.0
        %595 = vst.msk [vmem:[#allocation2 + $0x40] sm:$0xff] %vm586, 0.0
        %596 = vst.msk [vmem:[#allocation2 + $0x48] sm:$0xff] %vm586, 0.0
        %597 = vst.msk [vmem:[#allocation2 + $0x50] sm:$0xff] %vm586, 0.0
        %598 = vst.msk [vmem:[#allocation2 + $0x58] sm:$0xff] %vm586, 0.0
        %599 = vst.msk [vmem:[#allocation2 + $0x60] sm:$0xff] %vm586, 0.0
        %600 = vst.msk [vmem:[#allocation2 + $0x68] sm:$0xff] %vm586, 0.0
        %601 = vst.msk [vmem:[#allocation2 + $0x70] sm:$0xff] %vm586, 0.0
        %602 = vst.msk [vmem:[#allocation2 + $0x78] sm:$0xff] %vm586, 0.0
        %603 = vst.msk [vmem:[#allocation2 + $0x80] sm:$0xff] %vm586, 0.0
        %604 = vst.msk [vmem:[#allocation2 + $0x88] sm:$0xff] %vm586, 0.0
        %605 = vst.msk [vmem:[#allocation2 + $0x90] sm:$0xff] %vm586, 0.0
        %606 = vst.msk [vmem:[#allocation2 + $0x98] sm:$0xff] %vm586, 0.0
        %607 = vst.msk [vmem:[#allocation2 + $0xa0] sm:$0xff] %vm586, 0.0
        %608 = vst.msk [vmem:[#allocation2 + $0xa8] sm:$0xff] %vm586, 0.0
        %609 = vst.msk [vmem:[#allocation2 + $0xb0] sm:$0xff] %vm586, 0.0
        %610 = vst.msk [vmem:[#allocation2 + $0xb8] sm:$0xff] %vm586, 0.0
        %611 = vst.msk [vmem:[#allocation2 + $0xc0] sm:$0xff] %vm586, 0.0
        %612 = vst.msk [vmem:[#allocation2 + $0xc8] sm:$0xff] %vm586, 0.0
        %613 = vst.msk [vmem:[#allocation2 + $0xd0] sm:$0xff] %vm586, 0.0
        %614 = vst.msk [vmem:[#allocation2 + $0xd8] sm:$0xff] %vm586, 0.0
        %615 = vst.msk [vmem:[#allocation2 + $0xe0] sm:$0xff] %vm586, 0.0
        %616 = vst.msk [vmem:[#allocation2 + $0xe8] sm:$0xff] %vm586, 0.0
        %617 = vst.msk [vmem:[#allocation2 + $0xf0] sm:$0xff] %vm586, 0.0
        %618 = vst.msk [vmem:[#allocation2 + $0xf8] sm:$0xff] %vm586, 0.0
        %619 = vst.msk [vmem:[#allocation2 + $0x100] sm:$0xff] %vm586, 0.0
        %620 = vst.msk [vmem:[#allocation2 + $0x108] sm:$0xff] %vm586, 0.0
        %621 = vst.msk [vmem:[#allocation2 + $0x110] sm:$0xff] %vm586, 0.0
        %622 = vst.msk [vmem:[#allocation2 + $0x118] sm:$0xff] %vm586, 0.0
        %623 = vst.msk [vmem:[#allocation2 + $0x120] sm:$0xff] %vm586, 0.0
        %624 = vst.msk [vmem:[#allocation2 + $0x128] sm:$0xff] %vm586, 0.0
        %v625 = vlaneseq
        %v626 = vshrl.u32 %v625, 7
        %v627 = vadd.s32 %v626, 8
        %v628 = vadd.s32 %v626, 16
        %v629 = vadd.s32 %v626, 24
        %v630 = vadd.s32 %v626, 32
        %v631 = vadd.s32 %v626, 40
        %v632 = vadd.s32 %v626, 48
        %v633 = vadd.s32 %v626, 56
        %v634 = vadd.s32 %v626, 64
        %v635 = vadd.s32 %v626, 72
        %v636 = vadd.s32 %v626, 80
        %v637 = vadd.s32 %v626, 88
        %v638 = vadd.s32 %v626, 96
        %v639 = vadd.s32 %v626, 104
        %v640 = vadd.s32 %v626, 112
        %v641 = vadd.s32 %v626, 120
        %v642 = vadd.s32 %v626, 128
        %v643 = vadd.s32 %v626, 136
        %v644 = vadd.s32 %v626, 144
        %v645 = vadd.s32 %v626, 152
        %v646 = vadd.s32 %v626, 160
        %v647 = vadd.s32 %v626, 168
        %v648 = vadd.s32 %v626, 176
        %v649 = vadd.s32 %v626, 184
        %v650 = vadd.s32 %v626, 192
        %v651 = vadd.s32 %v626, 200
        %v652 = vadd.s32 %v626, 208
        %v653 = vadd.s32 %v626, 216
        %v654 = vadd.s32 %v626, 224
        %v655 = vadd.s32 %v626, 232
        %v656 = vadd.s32 %v626, 240
        %v657 = vadd.s32 %v626, 248
        %vm658 = vcmp.lt.s32.totalorder %v626, 0
        %v659 = vsub.s32 0, %v626
        %v660 = vsel %vm658, %v659, %v626
        %v661 = vshrl.u32 %v660, 4
        %v662 = vand.u32 %v660, 15
        %v663 = vsub.s32 0, %v662
        %v664 = vsel %vm658, %v663, %v662
        %vm665 = vcmp.lt.s32.totalorder %v627, 0
        %v666 = vsub.s32 0, %v627
        %v667 = vsel %vm665, %v666, %v627
        %v668 = vshrl.u32 %v667, 4
        %v669 = vand.u32 %v667, 15
        %v670 = vsub.s32 0, %v669
        %v671 = vsel %vm665, %v670, %v669
        %vm672 = vcmp.lt.s32.totalorder %v628, 0
        %v673 = vsub.s32 0, %v628
        %v674 = vsel %vm672, %v673, %v628
        %v675 = vshrl.u32 %v674, 4
        %v676 = vand.u32 %v674, 15
        %v677 = vsub.s32 0, %v676
        %v678 = vsel %vm672, %v677, %v676
        %vm679 = vcmp.lt.s32.totalorder %v629, 0
        %v680 = vsub.s32 0, %v629
        %v681 = vsel %vm679, %v680, %v629
        %v682 = vshrl.u32 %v681, 4
        %v683 = vand.u32 %v681, 15
        %v684 = vsub.s32 0, %v683
        %v685 = vsel %vm679, %v684, %v683
        %vm686 = vcmp.lt.s32.totalorder %v630, 0
        %v687 = vsub.s32 0, %v630
        %v688 = vsel %vm686, %v687, %v630
        %v689 = vshrl.u32 %v688, 4
        %v690 = vand.u32 %v688, 15
        %v691 = vsub.s32 0, %v690
        %v692 = vsel %vm686, %v691, %v690
        %vm693 = vcmp.lt.s32.totalorder %v631, 0
        %v694 = vsub.s32 0, %v631
        %v695 = vsel %vm693, %v694, %v631
        %v696 = vshrl.u32 %v695, 4
        %v697 = vand.u32 %v695, 15
        %v698 = vsub.s32 0, %v697
        %v699 = vsel %vm693, %v698, %v697
        %vm700 = vcmp.lt.s32.totalorder %v632, 0
        %v701 = vsub.s32 0, %v632
        %v702 = vsel %vm700, %v701, %v632
        %v703 = vshrl.u32 %v702, 4
        %v704 = vand.u32 %v702, 15
        %v705 = vsub.s32 0, %v704
        %v706 = vsel %vm700, %v705, %v704
        %vm707 = vcmp.lt.s32.totalorder %v633, 0
        %v708 = vsub.s32 0, %v633
        %v709 = vsel %vm707, %v708, %v633
        %v710 = vshrl.u32 %v709, 4
        %v711 = vand.u32 %v709, 15
        %v712 = vsub.s32 0, %v711
        %v713 = vsel %vm707, %v712, %v711
        %vm714 = vcmp.lt.s32.totalorder %v634, 0
        %v715 = vsub.s32 0, %v634
        %v716 = vsel %vm714, %v715, %v634
        %v717 = vshrl.u32 %v716, 4
        %v718 = vand.u32 %v716, 15
        %v719 = vsub.s32 0, %v718
        %v720 = vsel %vm714, %v719, %v718
        %vm721 = vcmp.lt.s32.totalorder %v635, 0
        %v722 = vsub.s32 0, %v635
        %v723 = vsel %vm721, %v722, %v635
        %v724 = vshrl.u32 %v723, 4
        %v725 = vand.u32 %v723, 15
        %v726 = vsub.s32 0, %v725
        %v727 = vsel %vm721, %v726, %v725
        %vm728 = vcmp.lt.s32.totalorder %v636, 0
        %v729 = vsub.s32 0, %v636
        %v730 = vsel %vm728, %v729, %v636
        %v731 = vshrl.u32 %v730, 4
        %v732 = vand.u32 %v730, 15
        %v733 = vsub.s32 0, %v732
        %v734 = vsel %vm728, %v733, %v732
        %vm735 = vcmp.lt.s32.totalorder %v637, 0
        %v736 = vsub.s32 0, %v637
        %v737 = vsel %vm735, %v736, %v637
        %v738 = vshrl.u32 %v737, 4
        %v739 = vand.u32 %v737, 15
        %v740 = vsub.s32 0, %v739
        %v741 = vsel %vm735, %v740, %v739
        %vm742 = vcmp.lt.s32.totalorder %v638, 0
        %v743 = vsub.s32 0, %v638
        %v744 = vsel %vm742, %v743, %v638
        %v745 = vshrl.u32 %v744, 4
        %v746 = vand.u32 %v744, 15
        %v747 = vsub.s32 0, %v746
        %v748 = vsel %vm742, %v747, %v746
        %vm749 = vcmp.lt.s32.totalorder %v639, 0
        %v750 = vsub.s32 0, %v639
        %v751 = vsel %vm749, %v750, %v639
        %v752 = vshrl.u32 %v751, 4
        %v753 = vand.u32 %v751, 15
        %v754 = vsub.s32 0, %v753
        %v755 = vsel %vm749, %v754, %v753
        %vm756 = vcmp.lt.s32.totalorder %v640, 0
        %v757 = vsub.s32 0, %v640
        %v758 = vsel %vm756, %v757, %v640
        %v759 = vshrl.u32 %v758, 4
        %v760 = vand.u32 %v758, 15
        %v761 = vsub.s32 0, %v760
        %v762 = vsel %vm756, %v761, %v760
        %vm763 = vcmp.lt.s32.totalorder %v641, 0
        %v764 = vsub.s32 0, %v641
        %v765 = vsel %vm763, %v764, %v641
        %v766 = vshrl.u32 %v765, 4
        %v767 = vand.u32 %v765, 15
        %v768 = vsub.s32 0, %v767
        %v769 = vsel %vm763, %v768, %v767
        %vm770 = vcmp.lt.s32.totalorder %v642, 0
        %v771 = vsub.s32 0, %v642
        %v772 = vsel %vm770, %v771, %v642
        %v773 = vshrl.u32 %v772, 4
        %v774 = vand.u32 %v772, 15
        %v775 = vsub.s32 0, %v774
        %v776 = vsel %vm770, %v775, %v774
        %vm777 = vcmp.lt.s32.totalorder %v643, 0
        %v778 = vsub.s32 0, %v643
        %v779 = vsel %vm777, %v778, %v643
        %v780 = vshrl.u32 %v779, 4
        %v781 = vand.u32 %v779, 15
        %v782 = vsub.s32 0, %v781
        %v783 = vsel %vm777, %v782, %v781
        %vm784 = vcmp.lt.s32.totalorder %v644, 0
        %v785 = vsub.s32 0, %v644
        %v786 = vsel %vm784, %v785, %v644
        %v787 = vshrl.u32 %v786, 4
        %v788 = vand.u32 %v786, 15
        %v789 = vsub.s32 0, %v788
        %v790 = vsel %vm784, %v789, %v788
        %vm791 = vcmp.lt.s32.totalorder %v645, 0
        %v792 = vsub.s32 0, %v645
        %v793 = vsel %vm791, %v792, %v645
        %v794 = vshrl.u32 %v793, 4
        %v795 = vand.u32 %v793, 15
        %v796 = vsub.s32 0, %v795
        %v797 = vsel %vm791, %v796, %v795
        %vm798 = vcmp.lt.s32.totalorder %v646, 0
        %v799 = vsub.s32 0, %v646
        %v800 = vsel %vm798, %v799, %v646
        %v801 = vshrl.u32 %v800, 4
        %v802 = vand.u32 %v800, 15
        %v803 = vsub.s32 0, %v802
        %v804 = vsel %vm798, %v803, %v802
        %vm805 = vcmp.lt.s32.totalorder %v647, 0
        %v806 = vsub.s32 0, %v647
        %v807 = vsel %vm805, %v806, %v647
        %v808 = vshrl.u32 %v807, 4
        %v809 = vand.u32 %v807, 15
        %v810 = vsub.s32 0, %v809
        %v811 = vsel %vm805, %v810, %v809
        %vm812 = vcmp.lt.s32.totalorder %v648, 0
        %v813 = vsub.s32 0, %v648
        %v814 = vsel %vm812, %v813, %v648
        %v815 = vshrl.u32 %v814, 4
        %v816 = vand.u32 %v814, 15
        %v817 = vsub.s32 0, %v816
        %v818 = vsel %vm812, %v817, %v816
        %vm819 = vcmp.lt.s32.totalorder %v649, 0
        %v820 = vsub.s32 0, %v649
        %v821 = vsel %vm819, %v820, %v649
        %v822 = vshrl.u32 %v821, 4
        %v823 = vand.u32 %v821, 15
        %v824 = vsub.s32 0, %v823
        %v825 = vsel %vm819, %v824, %v823
        %vm826 = vcmp.lt.s32.totalorder %v650, 0
        %v827 = vsub.s32 0, %v650
        %v828 = vsel %vm826, %v827, %v650
        %v829 = vshrl.u32 %v828, 4
        %v830 = vand.u32 %v828, 15
        %v831 = vsub.s32 0, %v830
        %v832 = vsel %vm826, %v831, %v830
        %vm833 = vcmp.lt.s32.totalorder %v651, 0
        %v834 = vsub.s32 0, %v651
        %v835 = vsel %vm833, %v834, %v651
        %v836 = vshrl.u32 %v835, 4
        %v837 = vand.u32 %v835, 15
        %v838 = vsub.s32 0, %v837
        %v839 = vsel %vm833, %v838, %v837
        %vm840 = vcmp.lt.s32.totalorder %v652, 0
        %v841 = vsub.s32 0, %v652
        %v842 = vsel %vm840, %v841, %v652
        %v843 = vshrl.u32 %v842, 4
        %v844 = vand.u32 %v842, 15
        %v845 = vsub.s32 0, %v844
        %v846 = vsel %vm840, %v845, %v844
        %vm847 = vcmp.lt.s32.totalorder %v653, 0
        %v848 = vsub.s32 0, %v653
        %v849 = vsel %vm847, %v848, %v653
        %v850 = vshrl.u32 %v849, 4
        %v851 = vand.u32 %v849, 15
        %v852 = vsub.s32 0, %v851
        %v853 = vsel %vm847, %v852, %v851
        %vm854 = vcmp.lt.s32.totalorder %v654, 0
        %v855 = vsub.s32 0, %v654
        %v856 = vsel %vm854, %v855, %v654
        %v857 = vshrl.u32 %v856, 4
        %v858 = vand.u32 %v856, 15
        %v859 = vsub.s32 0, %v858
        %v860 = vsel %vm854, %v859, %v858
        %vm861 = vcmp.lt.s32.totalorder %v655, 0
        %v862 = vsub.s32 0, %v655
        %v863 = vsel %vm861, %v862, %v655
        %v864 = vshrl.u32 %v863, 4
        %v865 = vand.u32 %v863, 15
        %v866 = vsub.s32 0, %v865
        %v867 = vsel %vm861, %v866, %v865
        %vm868 = vcmp.lt.s32.totalorder %v656, 0
        %v869 = vsub.s32 0, %v656
        %v870 = vsel %vm868, %v869, %v656
        %v871 = vshrl.u32 %v870, 4
        %v872 = vand.u32 %v870, 15
        %v873 = vsub.s32 0, %v872
        %v874 = vsel %vm868, %v873, %v872
        %vm875 = vcmp.lt.s32.totalorder %v657, 0
        %v876 = vsub.s32 0, %v657
        %v877 = vsel %vm875, %v876, %v657
        %v878 = vshrl.u32 %v877, 4
        %v879 = vand.u32 %v877, 15
        %v880 = vsub.s32 0, %v879
        %v881 = vsel %vm875, %v880, %v879
        %vm882 = vcmp.ne.s32.totalorder %v664, 0
        %vm883 = vcmp.ne.s32.totalorder %v671, 0
        %vm884 = vcmp.ne.s32.totalorder %v678, 0
        %vm885 = vcmp.ne.s32.totalorder %v685, 0
        %vm886 = vcmp.ne.s32.totalorder %v692, 0
        %vm887 = vcmp.ne.s32.totalorder %v699, 0
        %vm888 = vcmp.ne.s32.totalorder %v706, 0
        %vm889 = vcmp.ne.s32.totalorder %v713, 0
        %vm890 = vcmp.ne.s32.totalorder %v720, 0
        %vm891 = vcmp.ne.s32.totalorder %v727, 0
        %vm892 = vcmp.ne.s32.totalorder %v734, 0
        %vm893 = vcmp.ne.s32.totalorder %v741, 0
        %vm894 = vcmp.ne.s32.totalorder %v748, 0
        %vm895 = vcmp.ne.s32.totalorder %v755, 0
        %vm896 = vcmp.ne.s32.totalorder %v762, 0
        %vm897 = vcmp.ne.s32.totalorder %v769, 0
        %vm898 = vcmp.ne.s32.totalorder %v776, 0
        %vm899 = vcmp.ne.s32.totalorder %v783, 0
        %vm900 = vcmp.ne.s32.totalorder %v790, 0
        %vm901 = vcmp.ne.s32.totalorder %v797, 0
        %vm902 = vcmp.ne.s32.totalorder %v804, 0
        %vm903 = vcmp.ne.s32.totalorder %v811, 0
        %vm904 = vcmp.ne.s32.totalorder %v818, 0
        %vm905 = vcmp.ne.s32.totalorder %v825, 0
        %vm906 = vcmp.ne.s32.totalorder %v832, 0
        %vm907 = vcmp.ne.s32.totalorder %v839, 0
        %vm908 = vcmp.ne.s32.totalorder %v846, 0
        %vm909 = vcmp.ne.s32.totalorder %v853, 0
        %vm910 = vcmp.ne.s32.totalorder %v860, 0
        %vm911 = vcmp.ne.s32.totalorder %v867, 0
        %vm912 = vcmp.ne.s32.totalorder %v874, 0
        %vm913 = vcmp.ne.s32.totalorder %v881, 0
        %vm914 = vcmp.lt.s32.totalorder %v664, 0
        %vm915 = vcmp.lt.s32.totalorder %v671, 0
        %vm916 = vcmp.lt.s32.totalorder %v678, 0
        %vm917 = vcmp.lt.s32.totalorder %v685, 0
        %vm918 = vcmp.lt.s32.totalorder %v692, 0
        %vm919 = vcmp.lt.s32.totalorder %v699, 0
        %vm920 = vcmp.lt.s32.totalorder %v706, 0
        %vm921 = vcmp.lt.s32.totalorder %v713, 0
        %vm922 = vcmp.lt.s32.totalorder %v720, 0
        %vm923 = vcmp.lt.s32.totalorder %v727, 0
        %vm924 = vcmp.lt.s32.totalorder %v734, 0
        %vm925 = vcmp.lt.s32.totalorder %v741, 0
        %vm926 = vcmp.lt.s32.totalorder %v748, 0
        %vm927 = vcmp.lt.s32.totalorder %v755, 0
        %vm928 = vcmp.lt.s32.totalorder %v762, 0
        %vm929 = vcmp.lt.s32.totalorder %v769, 0
        %vm930 = vcmp.lt.s32.totalorder %v776, 0
        %vm931 = vcmp.lt.s32.totalorder %v783, 0
        %vm932 = vcmp.lt.s32.totalorder %v790, 0
        %vm933 = vcmp.lt.s32.totalorder %v797, 0
        %vm934 = vcmp.lt.s32.totalorder %v804, 0
        %vm935 = vcmp.lt.s32.totalorder %v811, 0
        %vm936 = vcmp.lt.s32.totalorder %v818, 0
        %vm937 = vcmp.lt.s32.totalorder %v825, 0
        %vm938 = vcmp.lt.s32.totalorder %v832, 0
        %vm939 = vcmp.lt.s32.totalorder %v839, 0
        %vm940 = vcmp.lt.s32.totalorder %v846, 0
        %vm941 = vcmp.lt.s32.totalorder %v853, 0
        %vm942 = vcmp.lt.s32.totalorder %v860, 0
        %vm943 = vcmp.lt.s32.totalorder %v867, 0
        %vm944 = vcmp.lt.s32.totalorder %v874, 0
        %vm945 = vcmp.lt.s32.totalorder %v881, 0
        %vm946 = vmand %vm914, %vm882
        %vm947 = vmand %vm915, %vm883
        %vm948 = vmand %vm916, %vm884
        %vm949 = vmand %vm917, %vm885
        %vm950 = vmand %vm918, %vm886
        %vm951 = vmand %vm919, %vm887
        %vm952 = vmand %vm920, %vm888
        %vm953 = vmand %vm921, %vm889
        %vm954 = vmand %vm922, %vm890
        %vm955 = vmand %vm923, %vm891
        %vm956 = vmand %vm924, %vm892
        %vm957 = vmand %vm925, %vm893
        %vm958 = vmand %vm926, %vm894
        %vm959 = vmand %vm927, %vm895
        %vm960 = vmand %vm928, %vm896
        %vm961 = vmand %vm929, %vm897
        %vm962 = vmand %vm930, %vm898
        %vm963 = vmand %vm931, %vm899
        %vm964 = vmand %vm932, %vm900
        %vm965 = vmand %vm933, %vm901
        %vm966 = vmand %vm934, %vm902
        %vm967 = vmand %vm935, %vm903
        %vm968 = vmand %vm936, %vm904
        %vm969 = vmand %vm937, %vm905
        %vm970 = vmand %vm938, %vm906
        %vm971 = vmand %vm939, %vm907
        %vm972 = vmand %vm940, %vm908
        %vm973 = vmand %vm941, %vm909
        %vm974 = vmand %vm942, %vm910
        %vm975 = vmand %vm943, %vm911
        %vm976 = vmand %vm944, %vm912
        %vm977 = vmand %vm945, %vm913
        %v978 = vadd.s32 %v664, 16
        %v979 = vadd.s32 %v671, 16
        %v980 = vadd.s32 %v678, 16
        %v981 = vadd.s32 %v685, 16
        %v982 = vadd.s32 %v692, 16
        %v983 = vadd.s32 %v699, 16
        %v984 = vadd.s32 %v706, 16
        %v985 = vadd.s32 %v713, 16
        %v986 = vadd.s32 %v720, 16
        %v987 = vadd.s32 %v727, 16
        %v988 = vadd.s32 %v734, 16
        %v989 = vadd.s32 %v741, 16
        %v990 = vadd.s32 %v748, 16
        %v991 = vadd.s32 %v755, 16
        %v992 = vadd.s32 %v762, 16
        %v993 = vadd.s32 %v769, 16
        %v994 = vadd.s32 %v776, 16
        %v995 = vadd.s32 %v783, 16
        %v996 = vadd.s32 %v790, 16
        %v997 = vadd.s32 %v797, 16
        %v998 = vadd.s32 %v804, 16
        %v999 = vadd.s32 %v811, 16
        %v1000 = vadd.s32 %v818, 16
        %v1001 = vadd.s32 %v825, 16
        %v1002 = vadd.s32 %v832, 16
        %v1003 = vadd.s32 %v839, 16
        %v1004 = vadd.s32 %v846, 16
        %v1005 = vadd.s32 %v853, 16
        %v1006 = vadd.s32 %v860, 16
        %v1007 = vadd.s32 %v867, 16
        %v1008 = vadd.s32 %v874, 16
        %v1009 = vadd.s32 %v881, 16
        %v1010 = vsel %vm946, %v978, %v664
        %v1011 = vsel %vm947, %v979, %v671
        %v1012 = vsel %vm948, %v980, %v678
        %v1013 = vsel %vm949, %v981, %v685
        %v1014 = vsel %vm950, %v982, %v692
        %v1015 = vsel %vm951, %v983, %v699
        %v1016 = vsel %vm952, %v984, %v706
        %v1017 = vsel %vm953, %v985, %v713
        %v1018 = vsel %vm954, %v986, %v720
        %v1019 = vsel %vm955, %v987, %v727
        %v1020 = vsel %vm956, %v988, %v734
        %v1021 = vsel %vm957, %v989, %v741
        %v1022 = vsel %vm958, %v990, %v748
        %v1023 = vsel %vm959, %v991, %v755
        %v1024 = vsel %vm960, %v992, %v762
        %v1025 = vsel %vm961, %v993, %v769
        %v1026 = vsel %vm962, %v994, %v776
        %v1027 = vsel %vm963, %v995, %v783
        %v1028 = vsel %vm964, %v996, %v790
        %v1029 = vsel %vm965, %v997, %v797
        %v1030 = vsel %vm966, %v998, %v804
        %v1031 = vsel %vm967, %v999, %v811
        %v1032 = vsel %vm968, %v1000, %v818
        %v1033 = vsel %vm969, %v1001, %v825
        %v1034 = vsel %vm970, %v1002, %v832
        %v1035 = vsel %vm971, %v1003, %v839
        %v1036 = vsel %vm972, %v1004, %v846
        %v1037 = vsel %vm973, %v1005, %v853
        %v1038 = vsel %vm974, %v1006, %v860
        %v1039 = vsel %vm975, %v1007, %v867
        %v1040 = vsel %vm976, %v1008, %v874
        %v1041 = vsel %vm977, %v1009, %v881
        %vm1042 = vcmp.ne.s32.totalorder %v1010, 0
        %vm1043 = vcmp.ne.s32.totalorder %v1011, 0
        %vm1044 = vcmp.ne.s32.totalorder %v1012, 0
        %vm1045 = vcmp.ne.s32.totalorder %v1013, 0
        %vm1046 = vcmp.ne.s32.totalorder %v1014, 0
        %vm1047 = vcmp.ne.s32.totalorder %v1015, 0
        %vm1048 = vcmp.ne.s32.totalorder %v1016, 0
        %vm1049 = vcmp.ne.s32.totalorder %v1017, 0
        %vm1050 = vcmp.ne.s32.totalorder %v1018, 0
        %vm1051 = vcmp.ne.s32.totalorder %v1019, 0
        %vm1052 = vcmp.ne.s32.totalorder %v1020, 0
        %vm1053 = vcmp.ne.s32.totalorder %v1021, 0
        %vm1054 = vcmp.ne.s32.totalorder %v1022, 0
        %vm1055 = vcmp.ne.s32.totalorder %v1023, 0
        %vm1056 = vcmp.ne.s32.totalorder %v1024, 0
        %vm1057 = vcmp.ne.s32.totalorder %v1025, 0
        %vm1058 = vcmp.ne.s32.totalorder %v1026, 0
        %vm1059 = vcmp.ne.s32.totalorder %v1027, 0
        %vm1060 = vcmp.ne.s32.totalorder %v1028, 0
        %vm1061 = vcmp.ne.s32.totalorder %v1029, 0
        %vm1062 = vcmp.ne.s32.totalorder %v1030, 0
        %vm1063 = vcmp.ne.s32.totalorder %v1031, 0
        %vm1064 = vcmp.ne.s32.totalorder %v1032, 0
        %vm1065 = vcmp.ne.s32.totalorder %v1033, 0
        %vm1066 = vcmp.ne.s32.totalorder %v1034, 0
        %vm1067 = vcmp.ne.s32.totalorder %v1035, 0
        %vm1068 = vcmp.ne.s32.totalorder %v1036, 0
        %vm1069 = vcmp.ne.s32.totalorder %v1037, 0
        %vm1070 = vcmp.ne.s32.totalorder %v1038, 0
        %vm1071 = vcmp.ne.s32.totalorder %v1039, 0
        %vm1072 = vcmp.ne.s32.totalorder %v1040, 0
        %vm1073 = vcmp.ne.s32.totalorder %v1041, 0
        %v1074 = vsel %vm1042, 1, 0
        %v1075 = vsel %vm1043, 1, 0
        %v1076 = vsel %vm1044, 1, 0
        %v1077 = vsel %vm1045, 1, 0
        %v1078 = vsel %vm1046, 1, 0
        %v1079 = vsel %vm1047, 1, 0
        %v1080 = vsel %vm1048, 1, 0
        %v1081 = vsel %vm1049, 1, 0
        %v1082 = vsel %vm1050, 1, 0
        %v1083 = vsel %vm1051, 1, 0
        %v1084 = vsel %vm1052, 1, 0
        %v1085 = vsel %vm1053, 1, 0
        %v1086 = vsel %vm1054, 1, 0
        %v1087 = vsel %vm1055, 1, 0
        %v1088 = vsel %vm1056, 1, 0
        %v1089 = vsel %vm1057, 1, 0
        %v1090 = vsel %vm1058, 1, 0
        %v1091 = vsel %vm1059, 1, 0
        %v1092 = vsel %vm1060, 1, 0
        %v1093 = vsel %vm1061, 1, 0
        %v1094 = vsel %vm1062, 1, 0
        %v1095 = vsel %vm1063, 1, 0
        %v1096 = vsel %vm1064, 1, 0
        %v1097 = vsel %vm1065, 1, 0
        %v1098 = vsel %vm1066, 1, 0
        %v1099 = vsel %vm1067, 1, 0
        %v1100 = vsel %vm1068, 1, 0
        %v1101 = vsel %vm1069, 1, 0
        %v1102 = vsel %vm1070, 1, 0
        %v1103 = vsel %vm1071, 1, 0
        %v1104 = vsel %vm1072, 1, 0
        %v1105 = vsel %vm1073, 1, 0
        %v1106 = vcvt.s32.f32 %v1074
        %v1107 = vcvt.s32.f32 %v1075
        %v1108 = vcvt.s32.f32 %v1076
        %v1109 = vcvt.s32.f32 %v1077
        %v1110 = vcvt.s32.f32 %v1078
        %v1111 = vcvt.s32.f32 %v1079
        %v1112 = vcvt.s32.f32 %v1080
        %v1113 = vcvt.s32.f32 %v1081
        %v1114 = vcvt.s32.f32 %v1082
        %v1115 = vcvt.s32.f32 %v1083
        %v1116 = vcvt.s32.f32 %v1084
        %v1117 = vcvt.s32.f32 %v1085
        %v1118 = vcvt.s32.f32 %v1086
        %v1119 = vcvt.s32.f32 %v1087
        %v1120 = vcvt.s32.f32 %v1088
        %v1121 = vcvt.s32.f32 %v1089
        %v1122 = vcvt.s32.f32 %v1090
        %v1123 = vcvt.s32.f32 %v1091
        %v1124 = vcvt.s32.f32 %v1092
        %v1125 = vcvt.s32.f32 %v1093
        %v1126 = vcvt.s32.f32 %v1094
        %v1127 = vcvt.s32.f32 %v1095
        %v1128 = vcvt.s32.f32 %v1096
        %v1129 = vcvt.s32.f32 %v1097
        %v1130 = vcvt.s32.f32 %v1098
        %v1131 = vcvt.s32.f32 %v1099
        %v1132 = vcvt.s32.f32 %v1100
        %v1133 = vcvt.s32.f32 %v1101
        %v1134 = vcvt.s32.f32 %v1102
        %v1135 = vcvt.s32.f32 %v1103
        %v1136 = vcvt.s32.f32 %v1104
        %v1137 = vcvt.s32.f32 %v1105
        %vm1138 = vcmp.ne.s32.totalorder %v1010, 15
        %vm1139 = vcmp.ne.s32.totalorder %v1011, 15
        %vm1140 = vcmp.ne.s32.totalorder %v1012, 15
        %vm1141 = vcmp.ne.s32.totalorder %v1013, 15
        %vm1142 = vcmp.ne.s32.totalorder %v1014, 15
        %vm1143 = vcmp.ne.s32.totalorder %v1015, 15
        %vm1144 = vcmp.ne.s32.totalorder %v1016, 15
        %vm1145 = vcmp.ne.s32.totalorder %v1017, 15
        %vm1146 = vcmp.ne.s32.totalorder %v1018, 15
        %vm1147 = vcmp.ne.s32.totalorder %v1019, 15
        %vm1148 = vcmp.ne.s32.totalorder %v1020, 15
        %vm1149 = vcmp.ne.s32.totalorder %v1021, 15
        %vm1150 = vcmp.ne.s32.totalorder %v1022, 15
        %vm1151 = vcmp.ne.s32.totalorder %v1023, 15
        %vm1152 = vcmp.ne.s32.totalorder %v1024, 15
        %vm1153 = vcmp.ne.s32.totalorder %v1025, 15
        %vm1154 = vcmp.ne.s32.totalorder %v1026, 15
        %vm1155 = vcmp.ne.s32.totalorder %v1027, 15
        %vm1156 = vcmp.ne.s32.totalorder %v1028, 15
        %vm1157 = vcmp.ne.s32.totalorder %v1029, 15
        %vm1158 = vcmp.ne.s32.totalorder %v1030, 15
        %vm1159 = vcmp.ne.s32.totalorder %v1031, 15
        %vm1160 = vcmp.ne.s32.totalorder %v1032, 15
        %vm1161 = vcmp.ne.s32.totalorder %v1033, 15
        %vm1162 = vcmp.ne.s32.totalorder %v1034, 15
        %vm1163 = vcmp.ne.s32.totalorder %v1035, 15
        %vm1164 = vcmp.ne.s32.totalorder %v1036, 15
        %vm1165 = vcmp.ne.s32.totalorder %v1037, 15
        %vm1166 = vcmp.ne.s32.totalorder %v1038, 15
        %vm1167 = vcmp.ne.s32.totalorder %v1039, 15
        %vm1168 = vcmp.ne.s32.totalorder %v1040, 15
        %vm1169 = vcmp.ne.s32.totalorder %v1041, 15
        %v1170 = vsel %vm1138, 1, 0
        %v1171 = vsel %vm1139, 1, 0
        %v1172 = vsel %vm1140, 1, 0
        %v1173 = vsel %vm1141, 1, 0
        %v1174 = vsel %vm1142, 1, 0
        %v1175 = vsel %vm1143, 1, 0
        %v1176 = vsel %vm1144, 1, 0
        %v1177 = vsel %vm1145, 1, 0
        %v1178 = vsel %vm1146, 1, 0
        %v1179 = vsel %vm1147, 1, 0
        %v1180 = vsel %vm1148, 1, 0
        %v1181 = vsel %vm1149, 1, 0
        %v1182 = vsel %vm1150, 1, 0
        %v1183 = vsel %vm1151, 1, 0
        %v1184 = vsel %vm1152, 1, 0
        %v1185 = vsel %vm1153, 1, 0
        %v1186 = vsel %vm1154, 1, 0
        %v1187 = vsel %vm1155, 1, 0
        %v1188 = vsel %vm1156, 1, 0
        %v1189 = vsel %vm1157, 1, 0
        %v1190 = vsel %vm1158, 1, 0
        %v1191 = vsel %vm1159, 1, 0
        %v1192 = vsel %vm1160, 1, 0
        %v1193 = vsel %vm1161, 1, 0
        %v1194 = vsel %vm1162, 1, 0
        %v1195 = vsel %vm1163, 1, 0
        %v1196 = vsel %vm1164, 1, 0
        %v1197 = vsel %vm1165, 1, 0
        %v1198 = vsel %vm1166, 1, 0
        %v1199 = vsel %vm1167, 1, 0
        %v1200 = vsel %vm1168, 1, 0
        %v1201 = vsel %vm1169, 1, 0
        %v1202 = vcvt.s32.f32 %v1170
        %v1203 = vcvt.s32.f32 %v1171
        %v1204 = vcvt.s32.f32 %v1172
        %v1205 = vcvt.s32.f32 %v1173
        %v1206 = vcvt.s32.f32 %v1174
        %v1207 = vcvt.s32.f32 %v1175
        %v1208 = vcvt.s32.f32 %v1176
        %v1209 = vcvt.s32.f32 %v1177
        %v1210 = vcvt.s32.f32 %v1178
        %v1211 = vcvt.s32.f32 %v1179
        %v1212 = vcvt.s32.f32 %v1180
        %v1213 = vcvt.s32.f32 %v1181
        %v1214 = vcvt.s32.f32 %v1182
        %v1215 = vcvt.s32.f32 %v1183
        %v1216 = vcvt.s32.f32 %v1184
        %v1217 = vcvt.s32.f32 %v1185
        %v1218 = vcvt.s32.f32 %v1186
        %v1219 = vcvt.s32.f32 %v1187
        %v1220 = vcvt.s32.f32 %v1188
        %v1221 = vcvt.s32.f32 %v1189
        %v1222 = vcvt.s32.f32 %v1190
        %v1223 = vcvt.s32.f32 %v1191
        %v1224 = vcvt.s32.f32 %v1192
        %v1225 = vcvt.s32.f32 %v1193
        %v1226 = vcvt.s32.f32 %v1194
        %v1227 = vcvt.s32.f32 %v1195
        %v1228 = vcvt.s32.f32 %v1196
        %v1229 = vcvt.s32.f32 %v1197
        %v1230 = vcvt.s32.f32 %v1198
        %v1231 = vcvt.s32.f32 %v1199
        %v1232 = vcvt.s32.f32 %v1200
        %v1233 = vcvt.s32.f32 %v1201
        %v1234 = vld [vmem:[%s1] sm:$0xf]
        %v1235 = vld [vmem:[%s2] sm:$0x1]
        %v1237 = vperm.slane %v1235, 0
        %vm1239 = vcmask 31744
        %v1241 = vsel %vm1239, %v554, 0
        %v1244 = vsel %vm1239, %v555, 0
        %v1247 = vsel %vm1239, %v556, 0
        %v1250 = vsel %vm1239, %v557, 0
        %v1253 = vsel %vm1239, %v558, 0
        %v1256 = vsel %vm1239, %v559, 0
        %v1259 = vsel %vm1239, %v560, 0
        %v1262 = vsel %vm1239, %v561, 0
        %v1265 = vsel %vm1239, %v562, 0
        %v1268 = vsel %vm1239, %v563, 0
        %v1271 = vsel %vm1239, %v564, 0
        %v1274 = vsel %vm1239, %v565, 0
        %v1277 = vsel %vm1239, %v566, 0
        %v1280 = vsel %vm1239, %v567, 0
        %v1283 = vsel %vm1239, %v568, 0
        %v1286 = vsel %vm1239, %v569, 0
        %v1289 = vsel %vm1239, %v570, 0
        %v1292 = vsel %vm1239, %v571, 0
        %v1295 = vsel %vm1239, %v572, 0
        %v1298 = vsel %vm1239, %v573, 0
        %v1301 = vsel %vm1239, %v574, 0
        %v1304 = vsel %vm1239, %v575, 0
        %v1307 = vsel %vm1239, %v576, 0
        %v1310 = vsel %vm1239, %v577, 0
        %v1313 = vsel %vm1239, %v578, 0
        %v1316 = vsel %vm1239, %v579, 0
        %v1319 = vsel %vm1239, %v580, 0
        %v1322 = vsel %vm1239, %v581, 0
        %v1325 = vsel %vm1239, %v582, 0
        %v1328 = vsel %vm1239, %v583, 0
        %v1331 = vsel %vm1239, %v584, 0
        %v1334 = vsel %vm1239, %v585, 0
        %vm1336 = vcmask 1043456
        %v1338 = vsel %vm1336, %v1234, 0
        %1340 = vmatpush.msra.mxu0 0.0
        %1341 = vmatpush.msra.mxu0 0.0
        %1342 = vmatpush.msra.mxu0 0.0
        %1343 = vmatpush.msra.mxu0 0.0
        %1344 = vmatpush.msra.mxu0 0.0
        %1345 = vmatpush.msra.mxu0 0.0
        %1346 = vmatpush.msra.mxu0 0.0
        %1347 = vmatpush.msra.mxu0 0.0
        %1348 = vmatpush.msra.mxu0 0.0
        %1349 = vmatpush.msra.mxu0 0.0
        %1350 = vmatpush.msra.mxu0 0.0
        %1351 = vmatpush.msra.mxu0 0.0
        %1352 = vmatpush.msra.mxu0 0.0
        %1353 = vmatpush.msra.mxu0 0.0
        %1354 = vmatpush.msra.mxu0 0.0
        %1355 = vmatpush.msra.mxu0 %v1338
        %1356 = vmatmul.f32.gmra.mxu0 %v1241
        %v1357 = vpop.f32.mrf.mxu0
        %v1358 = vadd.f32 %v1237, %v1357
        %1359 = vmatmul.f32.gmra.mxu0 %v1244
        %v1360 = vpop.f32.mrf.mxu0
        %v1361 = vadd.f32 %v1237, %v1360
        %1362 = vmatmul.f32.gmra.mxu0 %v1247
        %v1363 = vpop.f32.mrf.mxu0
        %v1364 = vadd.f32 %v1237, %v1363
        %1365 = vmatmul.f32.gmra.mxu0 %v1250
        %v1366 = vpop.f32.mrf.mxu0
        %v1367 = vadd.f32 %v1237, %v1366
        %1368 = vmatmul.f32.gmra.mxu0 %v1253
        %v1369 = vpop.f32.mrf.mxu0
        %v1370 = vadd.f32 %v1237, %v1369
        %1371 = vmatmul.f32.gmra.mxu0 %v1256
        %v1372 = vpop.f32.mrf.mxu0
        %v1373 = vadd.f32 %v1237, %v1372
        %1374 = vmatmul.f32.gmra.mxu0 %v1259
        %v1375 = vpop.f32.mrf.mxu0
        %v1376 = vadd.f32 %v1237, %v1375
        %1377 = vmatmul.f32.gmra.mxu0 %v1262
        %v1378 = vpop.f32.mrf.mxu0
        %v1379 = vadd.f32 %v1237, %v1378
        %1380 = vmatmul.f32.gmra.mxu0 %v1265
        %v1381 = vpop.f32.mrf.mxu0
        %v1382 = vadd.f32 %v1237, %v1381
        %1383 = vmatmul.f32.gmra.mxu0 %v1268
        %v1384 = vpop.f32.mrf.mxu0
        %v1385 = vadd.f32 %v1237, %v1384
        %1386 = vmatmul.f32.gmra.mxu0 %v1271
        %v1387 = vpop.f32.mrf.mxu0
        %v1388 = vadd.f32 %v1237, %v1387
        %1389 = vmatmul.f32.gmra.mxu0 %v1274
        %v1390 = vpop.f32.mrf.mxu0
        %v1391 = vadd.f32 %v1237, %v1390
        %1392 = vmatmul.f32.gmra.mxu0 %v1277
        %v1393 = vpop.f32.mrf.mxu0
        %v1394 = vadd.f32 %v1237, %v1393
        %1395 = vmatmul.f32.gmra.mxu0 %v1280
        %v1396 = vpop.f32.mrf.mxu0
        %v1397 = vadd.f32 %v1237, %v1396
        %1398 = vmatmul.f32.gmra.mxu0 %v1283
        %v1399 = vpop.f32.mrf.mxu0
        %v1400 = vadd.f32 %v1237, %v1399
        %1401 = vmatmul.f32.gmra.mxu0 %v1286
        %v1402 = vpop.f32.mrf.mxu0
        %v1403 = vadd.f32 %v1237, %v1402
        %1404 = vmatmul.f32.gmra.mxu0 %v1289
        %v1405 = vpop.f32.mrf.mxu0
        %v1406 = vadd.f32 %v1237, %v1405
        %1407 = vmatmul.f32.gmra.mxu0 %v1292
        %v1408 = vpop.f32.mrf.mxu0
        %v1409 = vadd.f32 %v1237, %v1408
        %1410 = vmatmul.f32.gmra.mxu0 %v1295
        %v1411 = vpop.f32.mrf.mxu0
        %v1412 = vadd.f32 %v1237, %v1411
        %1413 = vmatmul.f32.gmra.mxu0 %v1298
        %v1414 = vpop.f32.mrf.mxu0
        %v1415 = vadd.f32 %v1237, %v1414
        %1416 = vmatmul.f32.gmra.mxu0 %v1301
        %v1417 = vpop.f32.mrf.mxu0
        %v1418 = vadd.f32 %v1237, %v1417
        %1419 = vmatmul.f32.gmra.mxu0 %v1304
        %v1420 = vpop.f32.mrf.mxu0
        %v1421 = vadd.f32 %v1237, %v1420
        %1422 = vmatmul.f32.gmra.mxu0 %v1307
        %v1423 = vpop.f32.mrf.mxu0
        %v1424 = vadd.f32 %v1237, %v1423
        %1425 = vmatmul.f32.gmra.mxu0 %v1310
        %v1426 = vpop.f32.mrf.mxu0
        %v1427 = vadd.f32 %v1237, %v1426
        %1428 = vmatmul.f32.gmra.mxu0 %v1313
        %v1429 = vpop.f32.mrf.mxu0
        %v1430 = vadd.f32 %v1237, %v1429
        %1431 = vmatmul.f32.gmra.mxu0 %v1316
        %v1432 = vpop.f32.mrf.mxu0
        %v1433 = vadd.f32 %v1237, %v1432
        %1434 = vmatmul.f32.gmra.mxu0 %v1319
        %v1435 = vpop.f32.mrf.mxu0
        %v1436 = vadd.f32 %v1237, %v1435
        %1437 = vmatmul.f32.gmra.mxu0 %v1322
        %v1438 = vpop.f32.mrf.mxu0
        %v1439 = vadd.f32 %v1237, %v1438
        %1440 = vmatmul.f32.gmra.mxu0 %v1325
        %v1441 = vpop.f32.mrf.mxu0
        %v1442 = vadd.f32 %v1237, %v1441
        %1443 = vmatmul.f32.gmra.mxu0 %v1328
        %v1444 = vpop.f32.mrf.mxu0
        %v1445 = vadd.f32 %v1237, %v1444
        %1446 = vmatmul.f32.gmra.mxu0 %v1331
        %v1447 = vpop.f32.mrf.mxu0
        %v1448 = vadd.f32 %v1237, %v1447
        %1449 = vmatmul.f32.gmra.mxu0 %v1334
        %v1450 = vpop.f32.mrf.mxu0
        %v1451 = vadd.f32 %v1237, %v1450
        %1452 = vdwg.mxu0
        %v1453 = vmax.f32 %v1358, 0.0
        %v1454 = vmax.f32 %v1361, 0.0
        %v1455 = vmax.f32 %v1364, 0.0
        %v1456 = vmax.f32 %v1367, 0.0
        %v1457 = vmax.f32 %v1370, 0.0
        %v1458 = vmax.f32 %v1373, 0.0
        %v1459 = vmax.f32 %v1376, 0.0
        %v1460 = vmax.f32 %v1379, 0.0
        %v1461 = vmax.f32 %v1382, 0.0
        %v1462 = vmax.f32 %v1385, 0.0
        %v1463 = vmax.f32 %v1388, 0.0
        %v1464 = vmax.f32 %v1391, 0.0
        %v1465 = vmax.f32 %v1394, 0.0
        %v1466 = vmax.f32 %v1397, 0.0
        %v1467 = vmax.f32 %v1400, 0.0
        %v1468 = vmax.f32 %v1403, 0.0
        %v1469 = vmax.f32 %v1406, 0.0
        %v1470 = vmax.f32 %v1409, 0.0
        %v1471 = vmax.f32 %v1412, 0.0
        %v1472 = vmax.f32 %v1415, 0.0
        %v1473 = vmax.f32 %v1418, 0.0
        %v1474 = vmax.f32 %v1421, 0.0
        %v1475 = vmax.f32 %v1424, 0.0
        %v1476 = vmax.f32 %v1427, 0.0
        %v1477 = vmax.f32 %v1430, 0.0
        %v1478 = vmax.f32 %v1433, 0.0
        %v1479 = vmax.f32 %v1436, 0.0
        %v1480 = vmax.f32 %v1439, 0.0
        %v1481 = vmax.f32 %v1442, 0.0
        %v1482 = vmax.f32 %v1445, 0.0
        %v1483 = vmax.f32 %v1448, 0.0
        %v1484 = vmax.f32 %v1451, 0.0
        %v1485 = vld [vmem:[%s3] sm:$0xf]
        %v1486 = vld [vmem:[%s4] sm:$0x1]
        %v1488 = vperm.slane %v1486, 0
        %v1491 = vsel %vm1336, %v1485, 0
        %1493 = vmatpush.msra.mxu0 0.0
        %1494 = vmatpush.msra.mxu0 0.0
        %1495 = vmatpush.msra.mxu0 0.0
        %1496 = vmatpush.msra.mxu0 0.0
        %1497 = vmatpush.msra.mxu0 0.0
        %1498 = vmatpush.msra.mxu0 0.0
        %1499 = vmatpush.msra.mxu0 0.0
        %1500 = vmatpush.msra.mxu0 0.0
        %1501 = vmatpush.msra.mxu0 0.0
        %1502 = vmatpush.msra.mxu0 0.0
        %1503 = vmatpush.msra.mxu0 0.0
        %1504 = vmatpush.msra.mxu0 0.0
        %1505 = vmatpush.msra.mxu0 0.0
        %1506 = vmatpush.msra.mxu0 0.0
        %1507 = vmatpush.msra.mxu0 0.0
        %1508 = vmatpush.msra.mxu0 %v1491
        %1509 = vmatmul.f32.gmra.mxu0 %v1241
        %v1510 = vpop.f32.mrf.mxu0
        %v1511 = vadd.f32 %v1488, %v1510
        %1512 = vmatmul.f32.gmra.mxu0 %v1244
        %v1513 = vpop.f32.mrf.mxu0
        %v1514 = vadd.f32 %v1488, %v1513
        %1515 = vmatmul.f32.gmra.mxu0 %v1247
        %v1516 = vpop.f32.mrf.mxu0
        %v1517 = vadd.f32 %v1488, %v1516
        %1518 = vmatmul.f32.gmra.mxu0 %v1250
        %v1519 = vpop.f32.mrf.mxu0
        %v1520 = vadd.f32 %v1488, %v1519
        %1521 = vmatmul.f32.gmra.mxu0 %v1253
        %v1522 = vpop.f32.mrf.mxu0
        %v1523 = vadd.f32 %v1488, %v1522
        %1524 = vmatmul.f32.gmra.mxu0 %v1256
        %v1525 = vpop.f32.mrf.mxu0
        %v1526 = vadd.f32 %v1488, %v1525
        %1527 = vmatmul.f32.gmra.mxu0 %v1259
        %v1528 = vpop.f32.mrf.mxu0
        %v1529 = vadd.f32 %v1488, %v1528
        %1530 = vmatmul.f32.gmra.mxu0 %v1262
        %v1531 = vpop.f32.mrf.mxu0
        %v1532 = vadd.f32 %v1488, %v1531
        %1533 = vmatmul.f32.gmra.mxu0 %v1265
        %v1534 = vpop.f32.mrf.mxu0
        %v1535 = vadd.f32 %v1488, %v1534
        %1536 = vmatmul.f32.gmra.mxu0 %v1268
        %v1537 = vpop.f32.mrf.mxu0
        %v1538 = vadd.f32 %v1488, %v1537
        %1539 = vmatmul.f32.gmra.mxu0 %v1271
        %v1540 = vpop.f32.mrf.mxu0
        %v1541 = vadd.f32 %v1488, %v1540
        %1542 = vmatmul.f32.gmra.mxu0 %v1274
        %v1543 = vpop.f32.mrf.mxu0
        %v1544 = vadd.f32 %v1488, %v1543
        %1545 = vmatmul.f32.gmra.mxu0 %v1277
        %v1546 = vpop.f32.mrf.mxu0
        %v1547 = vadd.f32 %v1488, %v1546
        %1548 = vmatmul.f32.gmra.mxu0 %v1280
        %v1549 = vpop.f32.mrf.mxu0
        %v1550 = vadd.f32 %v1488, %v1549
        %1551 = vmatmul.f32.gmra.mxu0 %v1283
        %v1552 = vpop.f32.mrf.mxu0
        %v1553 = vadd.f32 %v1488, %v1552
        %1554 = vmatmul.f32.gmra.mxu0 %v1286
        %v1555 = vpop.f32.mrf.mxu0
        %v1556 = vadd.f32 %v1488, %v1555
        %1557 = vmatmul.f32.gmra.mxu0 %v1289
        %v1558 = vpop.f32.mrf.mxu0
        %v1559 = vadd.f32 %v1488, %v1558
        %1560 = vmatmul.f32.gmra.mxu0 %v1292
        %v1561 = vpop.f32.mrf.mxu0
        %v1562 = vadd.f32 %v1488, %v1561
        %1563 = vmatmul.f32.gmra.mxu0 %v1295
        %v1564 = vpop.f32.mrf.mxu0
        %v1565 = vadd.f32 %v1488, %v1564
        %1566 = vmatmul.f32.gmra.mxu0 %v1298
        %v1567 = vpop.f32.mrf.mxu0
        %v1568 = vadd.f32 %v1488, %v1567
        %1569 = vmatmul.f32.gmra.mxu0 %v1301
        %v1570 = vpop.f32.mrf.mxu0
        %v1571 = vadd.f32 %v1488, %v1570
        %1572 = vmatmul.f32.gmra.mxu0 %v1304
        %v1573 = vpop.f32.mrf.mxu0
        %v1574 = vadd.f32 %v1488, %v1573
        %1575 = vmatmul.f32.gmra.mxu0 %v1307
        %v1576 = vpop.f32.mrf.mxu0
        %v1577 = vadd.f32 %v1488, %v1576
        %1578 = vmatmul.f32.gmra.mxu0 %v1310
        %v1579 = vpop.f32.mrf.mxu0
        %v1580 = vadd.f32 %v1488, %v1579
        %1581 = vmatmul.f32.gmra.mxu0 %v1313
        %v1582 = vpop.f32.mrf.mxu0
        %v1583 = vadd.f32 %v1488, %v1582
        %1584 = vmatmul.f32.gmra.mxu0 %v1316
        %v1585 = vpop.f32.mrf.mxu0
        %v1586 = vadd.f32 %v1488, %v1585
        %1587 = vmatmul.f32.gmra.mxu0 %v1319
        %v1588 = vpop.f32.mrf.mxu0
        %v1589 = vadd.f32 %v1488, %v1588
        %1590 = vmatmul.f32.gmra.mxu0 %v1322
        %v1591 = vpop.f32.mrf.mxu0
        %v1592 = vadd.f32 %v1488, %v1591
        %1593 = vmatmul.f32.gmra.mxu0 %v1325
        %v1594 = vpop.f32.mrf.mxu0
        %v1595 = vadd.f32 %v1488, %v1594
        %1596 = vmatmul.f32.gmra.mxu0 %v1328
        %v1597 = vpop.f32.mrf.mxu0
        %v1598 = vadd.f32 %v1488, %v1597
        %1599 = vmatmul.f32.gmra.mxu0 %v1331
        %v1600 = vpop.f32.mrf.mxu0
        %v1601 = vadd.f32 %v1488, %v1600
        %1602 = vmatmul.f32.gmra.mxu0 %v1334
        %v1603 = vpop.f32.mrf.mxu0
        %v1604 = vadd.f32 %v1488, %v1603
        %1605 = vdwg.mxu0
        %v1606 = vmax.f32 %v1511, 0.0
        %v1607 = vmax.f32 %v1514, 0.0
        %v1608 = vmax.f32 %v1517, 0.0
        %v1609 = vmax.f32 %v1520, 0.0
        %v1610 = vmax.f32 %v1523, 0.0
        %v1611 = vmax.f32 %v1526, 0.0
        %v1612 = vmax.f32 %v1529, 0.0
        %v1613 = vmax.f32 %v1532, 0.0
        %v1614 = vmax.f32 %v1535, 0.0
        %v1615 = vmax.f32 %v1538, 0.0
        %v1616 = vmax.f32 %v1541, 0.0
        %v1617 = vmax.f32 %v1544, 0.0
        %v1618 = vmax.f32 %v1547, 0.0
        %v1619 = vmax.f32 %v1550, 0.0
        %v1620 = vmax.f32 %v1553, 0.0
        %v1621 = vmax.f32 %v1556, 0.0
        %v1622 = vmax.f32 %v1559, 0.0
        %v1623 = vmax.f32 %v1562, 0.0
        %v1624 = vmax.f32 %v1565, 0.0
        %v1625 = vmax.f32 %v1568, 0.0
        %v1626 = vmax.f32 %v1571, 0.0
        %v1627 = vmax.f32 %v1574, 0.0
        %v1628 = vmax.f32 %v1577, 0.0
        %v1629 = vmax.f32 %v1580, 0.0
        %v1630 = vmax.f32 %v1583, 0.0
        %v1631 = vmax.f32 %v1586, 0.0
        %v1632 = vmax.f32 %v1589, 0.0
        %v1633 = vmax.f32 %v1592, 0.0
        %v1634 = vmax.f32 %v1595, 0.0
        %v1635 = vmax.f32 %v1598, 0.0
        %v1636 = vmax.f32 %v1601, 0.0
        %v1637 = vmax.f32 %v1604, 0.0
        %1638 = vst.msk [vmem:[#allocation2 + $0x18] sm:$0xff] %vm586, %v1606
        %1639 = vst.msk [vmem:[#allocation2 + $0x20] sm:$0xff] %vm586, %v1607
        %1640 = vst.msk [vmem:[#allocation2 + $0x28] sm:$0xff] %vm586, %v1608
        %1641 = vst.msk [vmem:[#allocation2 + $0x30] sm:$0xff] %vm586, %v1609
        %1642 = vst.msk [vmem:[#allocation2 + $0x38] sm:$0xff] %vm586, %v1610
        %1643 = vst.msk [vmem:[#allocation2 + $0x40] sm:$0xff] %vm586, %v1611
        %1644 = vst.msk [vmem:[#allocation2 + $0x48] sm:$0xff] %vm586, %v1612
        %1645 = vst.msk [vmem:[#allocation2 + $0x50] sm:$0xff] %vm586, %v1613
        %1646 = vst.msk [vmem:[#allocation2 + $0x58] sm:$0xff] %vm586, %v1614
        %1647 = vst.msk [vmem:[#allocation2 + $0x60] sm:$0xff] %vm586, %v1615
        %1648 = vst.msk [vmem:[#allocation2 + $0x68] sm:$0xff] %vm586, %v1616
        %1649 = vst.msk [vmem:[#allocation2 + $0x70] sm:$0xff] %vm586, %v1617
        %1650 = vst.msk [vmem:[#allocation2 + $0x78] sm:$0xff] %vm586, %v1618
        %1651 = vst.msk [vmem:[#allocation2 + $0x80] sm:$0xff] %vm586, %v1619
        %1652 = vst.msk [vmem:[#allocation2 + $0x88] sm:$0xff] %vm586, %v1620
        %1653 = vst.msk [vmem:[#allocation2 + $0x90] sm:$0xff] %vm586, %v1621
        %1654 = vst.msk [vmem:[#allocation2 + $0x98] sm:$0xff] %vm586, %v1622
        %1655 = vst.msk [vmem:[#allocation2 + $0xa0] sm:$0xff] %vm586, %v1623
        %1656 = vst.msk [vmem:[#allocation2 + $0xa8] sm:$0xff] %vm586, %v1624
        %1657 = vst.msk [vmem:[#allocation2 + $0xb0] sm:$0xff] %vm586, %v1625
        %1658 = vst.msk [vmem:[#allocation2 + $0xb8] sm:$0xff] %vm586, %v1626
        %1659 = vst.msk [vmem:[#allocation2 + $0xc0] sm:$0xff] %vm586, %v1627
        %1660 = vst.msk [vmem:[#allocation2 + $0xc8] sm:$0xff] %vm586, %v1628
        %1661 = vst.msk [vmem:[#allocation2 + $0xd0] sm:$0xff] %vm586, %v1629
        %1662 = vst.msk [vmem:[#allocation2 + $0xd8] sm:$0xff] %vm586, %v1630
        %1663 = vst.msk [vmem:[#allocation2 + $0xe0] sm:$0xff] %vm586, %v1631
        %1664 = vst.msk [vmem:[#allocation2 + $0xe8] sm:$0xff] %vm586, %v1632
        %1665 = vst.msk [vmem:[#allocation2 + $0xf0] sm:$0xff] %vm586, %v1633
        %1666 = vst.msk [vmem:[#allocation2 + $0xf8] sm:$0xff] %vm586, %v1634
        %1667 = vst.msk [vmem:[#allocation2 + $0x100] sm:$0xff] %vm586, %v1635
        %1668 = vst.msk [vmem:[#allocation2 + $0x108] sm:$0xff] %vm586, %v1636
        %1669 = vst.msk [vmem:[#allocation2 + $0x110] sm:$0xff] %vm586, %v1637
        %v1670 = vld [vmem:[#allocation2 + $0x7] sm:$0xff]
        %v1671 = vld [vmem:[#allocation2 + $0xf] sm:$0xff]
        %v1672 = vld [vmem:[#allocation2 + $0x17] sm:$0xff]
        %v1673 = vld [vmem:[#allocation2 + $0x1f] sm:$0xff]
        %v1674 = vld [vmem:[#allocation2 + $0x27] sm:$0xff]
        %v1675 = vld [vmem:[#allocation2 + $0x2f] sm:$0xff]
        %v1676 = vld [vmem:[#allocation2 + $0x37] sm:$0xff]
        %v1677 = vld [vmem:[#allocation2 + $0x3f] sm:$0xff]
        %v1678 = vld [vmem:[#allocation2 + $0x47] sm:$0xff]
        %v1679 = vld [vmem:[#allocation2 + $0x4f] sm:$0xff]
        %v1680 = vld [vmem:[#allocation2 + $0x57] sm:$0xff]
        %v1681 = vld [vmem:[#allocation2 + $0x5f] sm:$0xff]
        %v1682 = vld [vmem:[#allocation2 + $0x67] sm:$0xff]
        %v1683 = vld [vmem:[#allocation2 + $0x6f] sm:$0xff]
        %v1684 = vld [vmem:[#allocation2 + $0x77] sm:$0xff]
        %v1685 = vld [vmem:[#allocation2 + $0x7f] sm:$0xff]
        %v1686 = vld [vmem:[#allocation2 + $0x87] sm:$0xff]
        %v1687 = vld [vmem:[#allocation2 + $0x8f] sm:$0xff]
        %v1688 = vld [vmem:[#allocation2 + $0x97] sm:$0xff]
        %v1689 = vld [vmem:[#allocation2 + $0x9f] sm:$0xff]
        %v1690 = vld [vmem:[#allocation2 + $0xa7] sm:$0xff]
        %v1691 = vld [vmem:[#allocation2 + $0xaf] sm:$0xff]
        %v1692 = vld [vmem:[#allocation2 + $0xb7] sm:$0xff]
        %v1693 = vld [vmem:[#allocation2 + $0xbf] sm:$0xff]
        %v1694 = vld [vmem:[#allocation2 + $0xc7] sm:$0xff]
        %v1695 = vld [vmem:[#allocation2 + $0xcf] sm:$0xff]
        %v1696 = vld [vmem:[#allocation2 + $0xd7] sm:$0xff]
        %v1697 = vld [vmem:[#allocation2 + $0xdf] sm:$0xff]
        %v1698 = vld [vmem:[#allocation2 + $0xe7] sm:$0xff]
        %v1699 = vld [vmem:[#allocation2 + $0xef] sm:$0xff]
        %v1700 = vld [vmem:[#allocation2 + $0xf7] sm:$0xff]
        %v1701 = vld [vmem:[#allocation2 + $0xff] sm:$0xff]
        %v1702 = vmul.f32 %v1670, %v1106
        %v1703 = vmul.f32 %v1671, %v1107
        %v1704 = vmul.f32 %v1672, %v1108
        %v1705 = vmul.f32 %v1673, %v1109
        %v1706 = vmul.f32 %v1674, %v1110
        %v1707 = vmul.f32 %v1675, %v1111
        %v1708 = vmul.f32 %v1676, %v1112
        %v1709 = vmul.f32 %v1677, %v1113
        %v1710 = vmul.f32 %v1678, %v1114
        %v1711 = vmul.f32 %v1679, %v1115
        %v1712 = vmul.f32 %v1680, %v1116
        %v1713 = vmul.f32 %v1681, %v1117
        %v1714 = vmul.f32 %v1682, %v1118
        %v1715 = vmul.f32 %v1683, %v1119
        %v1716 = vmul.f32 %v1684, %v1120
        %v1717 = vmul.f32 %v1685, %v1121
        %v1718 = vmul.f32 %v1686, %v1122
        %v1719 = vmul.f32 %v1687, %v1123
        %v1720 = vmul.f32 %v1688, %v1124
        %v1721 = vmul.f32 %v1689, %v1125
        %v1722 = vmul.f32 %v1690, %v1126
        %v1723 = vmul.f32 %v1691, %v1127
        %v1724 = vmul.f32 %v1692, %v1128
        %v1725 = vmul.f32 %v1693, %v1129
        %v1726 = vmul.f32 %v1694, %v1130
        %v1727 = vmul.f32 %v1695, %v1131
        %v1728 = vmul.f32 %v1696, %v1132
        %v1729 = vmul.f32 %v1697, %v1133
        %v1730 = vmul.f32 %v1698, %v1134
        %v1731 = vmul.f32 %v1699, %v1135
        %v1732 = vmul.f32 %v1700, %v1136
        %v1733 = vmul.f32 %v1701, %v1137
        %v1734 = vld [vmem:[%s5] sm:$0xff]
        %v1735 = vld [vmem:[%s5 + $0x8] sm:$0xff]
        %v1736 = vld [vmem:[%s5 + $0x10] sm:$0xff]
        %v1737 = vld [vmem:[%s5 + $0x18] sm:$0xff]
        %v1738 = vld [vmem:[#allocation2 + $0x8] sm:$0xff]
        %v1739 = vld [vmem:[#allocation2 + $0x10] sm:$0xff]
        %v1740 = vld [vmem:[#allocation2 + $0x18] sm:$0xff]
        %v1741 = vld [vmem:[#allocation2 + $0x20] sm:$0xff]
        %v1742 = vld [vmem:[#allocation2 + $0x28] sm:$0xff]
        %v1743 = vld [vmem:[#allocation2 + $0x30] sm:$0xff]
        %v1744 = vld [vmem:[#allocation2 + $0x38] sm:$0xff]
        %v1745 = vld [vmem:[#allocation2 + $0x40] sm:$0xff]
        %v1746 = vld [vmem:[#allocation2 + $0x48] sm:$0xff]
        %v1747 = vld [vmem:[#allocation2 + $0x50] sm:$0xff]
        %v1748 = vld [vmem:[#allocation2 + $0x58] sm:$0xff]
        %v1749 = vld [vmem:[#allocation2 + $0x60] sm:$0xff]
        %v1750 = vld [vmem:[#allocation2 + $0x68] sm:$0xff]
        %v1751 = vld [vmem:[#allocation2 + $0x70] sm:$0xff]
        %v1752 = vld [vmem:[#allocation2 + $0x78] sm:$0xff]
        %v1753 = vld [vmem:[#allocation2 + $0x80] sm:$0xff]
        %v1754 = vld [vmem:[#allocation2 + $0x88] sm:$0xff]
        %v1755 = vld [vmem:[#allocation2 + $0x90] sm:$0xff]
        %v1756 = vld [vmem:[#allocation2 + $0x98] sm:$0xff]
        %v1757 = vld [vmem:[#allocation2 + $0xa0] sm:$0xff]
        %v1758 = vld [vmem:[#allocation2 + $0xa8] sm:$0xff]
        %v1759 = vld [vmem:[#allocation2 + $0xb0] sm:$0xff]
        %v1760 = vld [vmem:[#allocation2 + $0xb8] sm:$0xff]
        %v1761 = vld [vmem:[#allocation2 + $0xc0] sm:$0xff]
        %v1762 = vld [vmem:[#allocation2 + $0xc8] sm:$0xff]
        %v1763 = vld [vmem:[#allocation2 + $0xd0] sm:$0xff]
        %v1764 = vld [vmem:[#allocation2 + $0xd8] sm:$0xff]
        %v1765 = vld [vmem:[#allocation2 + $0xe0] sm:$0xff]
        %v1766 = vld [vmem:[#allocation2 + $0xe8] sm:$0xff]
        %v1767 = vld [vmem:[#allocation2 + $0xf0] sm:$0xff]
        %v1768 = vld [vmem:[#allocation2 + $0xf8] sm:$0xff]
        %v1769 = vld [vmem:[#allocation2 + $0x100] sm:$0xff]
        %s1770 = scalar_lea.vmem %s5, 32
        %v1771 = vld [vmem:[%s1770] sm:$0xff]
        %v1772 = vld [vmem:[%s1770 + $0x8] sm:$0xff]
        %v1773 = vld [vmem:[%s1770 + $0x10] sm:$0xff]
        %v1774 = vld [vmem:[%s1770 + $0x18] sm:$0xff]
        %v1776 = vsel %vm586, %v1738, 0
        %v1779 = vsel %vm586, %v1739, 0
        %v1782 = vsel %vm586, %v1740, 0
        %v1785 = vsel %vm586, %v1741, 0
        %v1788 = vsel %vm586, %v1742, 0
        %v1791 = vsel %vm586, %v1743, 0
        %v1794 = vsel %vm586, %v1744, 0
        %v1797 = vsel %vm586, %v1745, 0
        %v1800 = vsel %vm586, %v1746, 0
        %v1803 = vsel %vm586, %v1747, 0
        %v1806 = vsel %vm586, %v1748, 0
        %v1809 = vsel %vm586, %v1749, 0
        %v1812 = vsel %vm586, %v1750, 0
        %v1815 = vsel %vm586, %v1751, 0
        %v1818 = vsel %vm586, %v1752, 0
        %v1821 = vsel %vm586, %v1753, 0
        %v1824 = vsel %vm586, %v1754, 0
        %v1827 = vsel %vm586, %v1755, 0
        %v1830 = vsel %vm586, %v1756, 0
        %v1833 = vsel %vm586, %v1757, 0
        %v1836 = vsel %vm586, %v1758, 0
        %v1839 = vsel %vm586, %v1759, 0
        %v1842 = vsel %vm586, %v1760, 0
        %v1845 = vsel %vm586, %v1761, 0
        %v1848 = vsel %vm586, %v1762, 0
        %v1851 = vsel %vm586, %v1763, 0
        %v1854 = vsel %vm586, %v1764, 0
        %v1857 = vsel %vm586, %v1765, 0
        %v1860 = vsel %vm586, %v1766, 0
        %v1863 = vsel %vm586, %v1767, 0
        %v1866 = vsel %vm586, %v1768, 0
        %v1869 = vsel %vm586, %v1769, 0
        %1871 = vmatpush.msra.mxu0 0.0
        %1872 = vmatpush.msra.mxu0 0.0
        %1873 = vmatpush.msra.mxu0 0.0
        %1874 = vmatpush.msra.mxu0 0.0
        %1875 = vmatpush.msra.mxu0 0.0
        %1876 = vmatpush.msra.mxu0 0.0
        %1877 = vmatpush.msra.mxu0 0.0
        %1878 = vmatpush.msra.mxu0 0.0
        %1879 = vmatpush.msra.mxu0 0.0
        %1880 = vmatpush.msra.mxu0 0.0
        %1881 = vmatpush.msra.mxu0 0.0
        %1882 = vmatpush.msra.mxu0 0.0
        %1883 = vmatpush.msra.mxu0 %v1774
        %1884 = vmatpush.msra.mxu0 %v1773
        %1885 = vmatpush.msra.mxu0 %v1772
        %1886 = vmatpush.msra.mxu0 %v1771
        %1887 = vmatmul.f32.gmra.mxu0 %v1776
        %v1888 = vpop.f32.mrf.mxu0
        %v1889 = vadd.f32 0.0, %v1888
        %1890 = vmatmul.f32.gmra.mxu0 %v1779
        %v1891 = vpop.f32.mrf.mxu0
        %v1892 = vadd.f32 0.0, %v1891
        %1893 = vmatmul.f32.gmra.mxu0 %v1782
        %v1894 = vpop.f32.mrf.mxu0
        %v1895 = vadd.f32 0.0, %v1894
        %1896 = vmatmul.f32.gmra.mxu0 %v1785
        %v1897 = vpop.f32.mrf.mxu0
        %v1898 = vadd.f32 0.0, %v1897
        %1899 = vmatmul.f32.gmra.mxu0 %v1788
        %v1900 = vpop.f32.mrf.mxu0
        %v1901 = vadd.f32 0.0, %v1900
        %1902 = vmatmul.f32.gmra.mxu0 %v1791
        %v1903 = vpop.f32.mrf.mxu0
        %v1904 = vadd.f32 0.0, %v1903
        %1905 = vmatmul.f32.gmra.mxu0 %v1794
        %v1906 = vpop.f32.mrf.mxu0
        %v1907 = vadd.f32 0.0, %v1906
        %1908 = vmatmul.f32.gmra.mxu0 %v1797
        %v1909 = vpop.f32.mrf.mxu0
        %v1910 = vadd.f32 0.0, %v1909
        %1911 = vmatmul.f32.gmra.mxu0 %v1800
        %v1912 = vpop.f32.mrf.mxu0
        %v1913 = vadd.f32 0.0, %v1912
        %1914 = vmatmul.f32.gmra.mxu0 %v1803
        %v1915 = vpop.f32.mrf.mxu0
        %v1916 = vadd.f32 0.0, %v1915
        %1917 = vmatmul.f32.gmra.mxu0 %v1806
        %v1918 = vpop.f32.mrf.mxu0
        %v1919 = vadd.f32 0.0, %v1918
        %1920 = vmatmul.f32.gmra.mxu0 %v1809
        %v1921 = vpop.f32.mrf.mxu0
        %v1922 = vadd.f32 0.0, %v1921
        %1923 = vmatmul.f32.gmra.mxu0 %v1812
        %v1924 = vpop.f32.mrf.mxu0
        %v1925 = vadd.f32 0.0, %v1924
        %1926 = vmatmul.f32.gmra.mxu0 %v1815
        %v1927 = vpop.f32.mrf.mxu0
        %v1928 = vadd.f32 0.0, %v1927
        %1929 = vmatmul.f32.gmra.mxu0 %v1818
        %v1930 = vpop.f32.mrf.mxu0
        %v1931 = vadd.f32 0.0, %v1930
        %1932 = vmatmul.f32.gmra.mxu0 %v1821
        %v1933 = vpop.f32.mrf.mxu0
        %v1934 = vadd.f32 0.0, %v1933
        %1935 = vmatmul.f32.gmra.mxu0 %v1824
        %v1936 = vpop.f32.mrf.mxu0
        %v1937 = vadd.f32 0.0, %v1936
        %1938 = vmatmul.f32.gmra.mxu0 %v1827
        %v1939 = vpop.f32.mrf.mxu0
        %v1940 = vadd.f32 0.0, %v1939
        %1941 = vmatmul.f32.gmra.mxu0 %v1830
        %v1942 = vpop.f32.mrf.mxu0
        %v1943 = vadd.f32 0.0, %v1942
        %1944 = vmatmul.f32.gmra.mxu0 %v1833
        %v1945 = vpop.f32.mrf.mxu0
        %v1946 = vadd.f32 0.0, %v1945
        %1947 = vmatmul.f32.gmra.mxu0 %v1836
        %v1948 = vpop.f32.mrf.mxu0
        %v1949 = vadd.f32 0.0, %v1948
        %1950 = vmatmul.f32.gmra.mxu0 %v1839
        %v1951 = vpop.f32.mrf.mxu0
        %v1952 = vadd.f32 0.0, %v1951
        %1953 = vmatmul.f32.gmra.mxu0 %v1842
        %v1954 = vpop.f32.mrf.mxu0
        %v1955 = vadd.f32 0.0, %v1954
        %1956 = vmatmul.f32.gmra.mxu0 %v1845
        %v1957 = vpop.f32.mrf.mxu0
        %v1958 = vadd.f32 0.0, %v1957
        %1959 = vmatmul.f32.gmra.mxu0 %v1848
        %v1960 = vpop.f32.mrf.mxu0
        %v1961 = vadd.f32 0.0, %v1960
        %1962 = vmatmul.f32.gmra.mxu0 %v1851
        %v1963 = vpop.f32.mrf.mxu0
        %v1964 = vadd.f32 0.0, %v1963
        %1965 = vmatmul.f32.gmra.mxu0 %v1854
        %v1966 = vpop.f32.mrf.mxu0
        %v1967 = vadd.f32 0.0, %v1966
        %1968 = vmatmul.f32.gmra.mxu0 %v1857
        %v1969 = vpop.f32.mrf.mxu0
        %v1970 = vadd.f32 0.0, %v1969
        %1971 = vmatmul.f32.gmra.mxu0 %v1860
        %v1972 = vpop.f32.mrf.mxu0
        %v1973 = vadd.f32 0.0, %v1972
        %1974 = vmatmul.f32.gmra.mxu0 %v1863
        %v1975 = vpop.f32.mrf.mxu0
        %v1976 = vadd.f32 0.0, %v1975
        %1977 = vmatmul.f32.gmra.mxu0 %v1866
        %v1978 = vpop.f32.mrf.mxu0
        %v1979 = vadd.f32 0.0, %v1978
        %1980 = vmatmul.f32.gmra.mxu0 %v1869
        %v1981 = vpop.f32.mrf.mxu0
        %v1982 = vadd.f32 0.0, %v1981
        %1983 = vdwg.mxu0
        %v1985 = vsel %vm586, %v1702, 0
        %v1988 = vsel %vm586, %v1703, 0
        %v1991 = vsel %vm586, %v1704, 0
        %v1994 = vsel %vm586, %v1705, 0
        %v1997 = vsel %vm586, %v1706, 0
        %v2000 = vsel %vm586, %v1707, 0
        %v2003 = vsel %vm586, %v1708, 0
        %v2006 = vsel %vm586, %v1709, 0
        %v2009 = vsel %vm586, %v1710, 0
        %v2012 = vsel %vm586, %v1711, 0
        %v2015 = vsel %vm586, %v1712, 0
        %v2018 = vsel %vm586, %v1713, 0
        %v2021 = vsel %vm586, %v1714, 0
        %v2024 = vsel %vm586, %v1715, 0
        %v2027 = vsel %vm586, %v1716, 0
        %v2030 = vsel %vm586, %v1717, 0
        %v2033 = vsel %vm586, %v1718, 0
        %v2036 = vsel %vm586, %v1719, 0
        %v2039 = vsel %vm586, %v1720, 0
        %v2042 = vsel %vm586, %v1721, 0
        %v2045 = vsel %vm586, %v1722, 0
        %v2048 = vsel %vm586, %v1723, 0
        %v2051 = vsel %vm586, %v1724, 0
        %v2054 = vsel %vm586, %v1725, 0
        %v2057 = vsel %vm586, %v1726, 0
        %v2060 = vsel %vm586, %v1727, 0
        %v2063 = vsel %vm586, %v1728, 0
        %v2066 = vsel %vm586, %v1729, 0
        %v2069 = vsel %vm586, %v1730, 0
        %v2072 = vsel %vm586, %v1731, 0
        %v2075 = vsel %vm586, %v1732, 0
        %v2078 = vsel %vm586, %v1733, 0
        %2080 = vmatpush.msra.mxu0 0.0
        %2081 = vmatpush.msra.mxu0 0.0
        %2082 = vmatpush.msra.mxu0 0.0
        %2083 = vmatpush.msra.mxu0 0.0
        %2084 = vmatpush.msra.mxu0 0.0
        %2085 = vmatpush.msra.mxu0 0.0
        %2086 = vmatpush.msra.mxu0 0.0
        %2087 = vmatpush.msra.mxu0 0.0
        %2088 = vmatpush.msra.mxu0 0.0
        %2089 = vmatpush.msra.mxu0 0.0
        %2090 = vmatpush.msra.mxu0 0.0
        %2091 = vmatpush.msra.mxu0 0.0
        %2092 = vmatpush.msra.mxu0 %v1737
        %2093 = vmatpush.msra.mxu0 %v1736
        %2094 = vmatpush.msra.mxu0 %v1735
        %2095 = vmatpush.msra.mxu0 %v1734
        %2096 = vmatmul.f32.gmra.mxu0 %v1985
        %v2097 = vpop.f32.mrf.mxu0
        %v2098 = vadd.f32 %v1889, %v2097
        %2099 = vmatmul.f32.gmra.mxu0 %v1988
        %v2100 = vpop.f32.mrf.mxu0
        %v2101 = vadd.f32 %v1892, %v2100
        %2102 = vmatmul.f32.gmra.mxu0 %v1991
        %v2103 = vpop.f32.mrf.mxu0
        %v2104 = vadd.f32 %v1895, %v2103
        %2105 = vmatmul.f32.gmra.mxu0 %v1994
        %v2106 = vpop.f32.mrf.mxu0
        %v2107 = vadd.f32 %v1898, %v2106
        %2108 = vmatmul.f32.gmra.mxu0 %v1997
        %v2109 = vpop.f32.mrf.mxu0
        %v2110 = vadd.f32 %v1901, %v2109
        %2111 = vmatmul.f32.gmra.mxu0 %v2000
        %v2112 = vpop.f32.mrf.mxu0
        %v2113 = vadd.f32 %v1904, %v2112
        %2114 = vmatmul.f32.gmra.mxu0 %v2003
        %v2115 = vpop.f32.mrf.mxu0
        %v2116 = vadd.f32 %v1907, %v2115
        %2117 = vmatmul.f32.gmra.mxu0 %v2006
        %v2118 = vpop.f32.mrf.mxu0
        %v2119 = vadd.f32 %v1910, %v2118
        %2120 = vmatmul.f32.gmra.mxu0 %v2009
        %v2121 = vpop.f32.mrf.mxu0
        %v2122 = vadd.f32 %v1913, %v2121
        %2123 = vmatmul.f32.gmra.mxu0 %v2012
        %v2124 = vpop.f32.mrf.mxu0
        %v2125 = vadd.f32 %v1916, %v2124
        %2126 = vmatmul.f32.gmra.mxu0 %v2015
        %v2127 = vpop.f32.mrf.mxu0
        %v2128 = vadd.f32 %v1919, %v2127
        %2129 = vmatmul.f32.gmra.mxu0 %v2018
        %v2130 = vpop.f32.mrf.mxu0
        %v2131 = vadd.f32 %v1922, %v2130
        %2132 = vmatmul.f32.gmra.mxu0 %v2021
        %v2133 = vpop.f32.mrf.mxu0
        %v2134 = vadd.f32 %v1925, %v2133
        %2135 = vmatmul.f32.gmra.mxu0 %v2024
        %v2136 = vpop.f32.mrf.mxu0
        %v2137 = vadd.f32 %v1928, %v2136
        %2138 = vmatmul.f32.gmra.mxu0 %v2027
        %v2139 = vpop.f32.mrf.mxu0
        %v2140 = vadd.f32 %v1931, %v2139
        %2141 = vmatmul.f32.gmra.mxu0 %v2030
        %v2142 = vpop.f32.mrf.mxu0
        %v2143 = vadd.f32 %v1934, %v2142
        %2144 = vmatmul.f32.gmra.mxu0 %v2033
        %v2145 = vpop.f32.mrf.mxu0
        %v2146 = vadd.f32 %v1937, %v2145
        %2147 = vmatmul.f32.gmra.mxu0 %v2036
        %v2148 = vpop.f32.mrf.mxu0
        %v2149 = vadd.f32 %v1940, %v2148
        %2150 = vmatmul.f32.gmra.mxu0 %v2039
        %v2151 = vpop.f32.mrf.mxu0
        %v2152 = vadd.f32 %v1943, %v2151
        %2153 = vmatmul.f32.gmra.mxu0 %v2042
        %v2154 = vpop.f32.mrf.mxu0
        %v2155 = vadd.f32 %v1946, %v2154
        %2156 = vmatmul.f32.gmra.mxu0 %v2045
        %v2157 = vpop.f32.mrf.mxu0
        %v2158 = vadd.f32 %v1949, %v2157
        %2159 = vmatmul.f32.gmra.mxu0 %v2048
        %v2160 = vpop.f32.mrf.mxu0
        %v2161 = vadd.f32 %v1952, %v2160
        %2162 = vmatmul.f32.gmra.mxu0 %v2051
        %v2163 = vpop.f32.mrf.mxu0
        %v2164 = vadd.f32 %v1955, %v2163
        %2165 = vmatmul.f32.gmra.mxu0 %v2054
        %v2166 = vpop.f32.mrf.mxu0
        %v2167 = vadd.f32 %v1958, %v2166
        %2168 = vmatmul.f32.gmra.mxu0 %v2057
        %v2169 = vpop.f32.mrf.mxu0
        %v2170 = vadd.f32 %v1961, %v2169
        %2171 = vmatmul.f32.gmra.mxu0 %v2060
        %v2172 = vpop.f32.mrf.mxu0
        %v2173 = vadd.f32 %v1964, %v2172
        %2174 = vmatmul.f32.gmra.mxu0 %v2063
        %v2175 = vpop.f32.mrf.mxu0
        %v2176 = vadd.f32 %v1967, %v2175
        %2177 = vmatmul.f32.gmra.mxu0 %v2066
        %v2178 = vpop.f32.mrf.mxu0
        %v2179 = vadd.f32 %v1970, %v2178
        %2180 = vmatmul.f32.gmra.mxu0 %v2069
        %v2181 = vpop.f32.mrf.mxu0
        %v2182 = vadd.f32 %v1973, %v2181
        %2183 = vmatmul.f32.gmra.mxu0 %v2072
        %v2184 = vpop.f32.mrf.mxu0
        %v2185 = vadd.f32 %v1976, %v2184
        %2186 = vmatmul.f32.gmra.mxu0 %v2075
        %v2187 = vpop.f32.mrf.mxu0
        %v2188 = vadd.f32 %v1979, %v2187
        %2189 = vmatmul.f32.gmra.mxu0 %v2078
        %v2190 = vpop.f32.mrf.mxu0
        %v2191 = vadd.f32 %v1982, %v2190
        %2192 = vdwg.mxu0
        %v2193 = vld [vmem:[#allocation2 + $0x9] sm:$0xff]
        %v2194 = vld [vmem:[#allocation2 + $0x11] sm:$0xff]
        %v2195 = vld [vmem:[#allocation2 + $0x19] sm:$0xff]
        %v2196 = vld [vmem:[#allocation2 + $0x21] sm:$0xff]
        %v2197 = vld [vmem:[#allocation2 + $0x29] sm:$0xff]
        %v2198 = vld [vmem:[#allocation2 + $0x31] sm:$0xff]
        %v2199 = vld [vmem:[#allocation2 + $0x39] sm:$0xff]
        %v2200 = vld [vmem:[#allocation2 + $0x41] sm:$0xff]
        %v2201 = vld [vmem:[#allocation2 + $0x49] sm:$0xff]
        %v2202 = vld [vmem:[#allocation2 + $0x51] sm:$0xff]
        %v2203 = vld [vmem:[#allocation2 + $0x59] sm:$0xff]
        %v2204 = vld [vmem:[#allocation2 + $0x61] sm:$0xff]
        %v2205 = vld [vmem:[#allocation2 + $0x69] sm:$0xff]
        %v2206 = vld [vmem:[#allocation2 + $0x71] sm:$0xff]
        %v2207 = vld [vmem:[#allocation2 + $0x79] sm:$0xff]
        %v2208 = vld [vmem:[#allocation2 + $0x81] sm:$0xff]
        %v2209 = vld [vmem:[#allocation2 + $0x89] sm:$0xff]
        %v2210 = vld [vmem:[#allocation2 + $0x91] sm:$0xff]
        %v2211 = vld [vmem:[#allocation2 + $0x99] sm:$0xff]
        %v2212 = vld [vmem:[#allocation2 + $0xa1] sm:$0xff]
        %v2213 = vld [vmem:[#allocation2 + $0xa9] sm:$0xff]
        %v2214 = vld [vmem:[#allocation2 + $0xb1] sm:$0xff]
        %v2215 = vld [vmem:[#allocation2 + $0xb9] sm:$0xff]
        %v2216 = vld [vmem:[#allocation2 + $0xc1] sm:$0xff]
        %v2217 = vld [vmem:[#allocation2 + $0xc9] sm:$0xff]
        %v2218 = vld [vmem:[#allocation2 + $0xd1] sm:$0xff]
        %v2219 = vld [vmem:[#allocation2 + $0xd9] sm:$0xff]
        %v2220 = vld [vmem:[#allocation2 + $0xe1] sm:$0xff]
        %v2221 = vld [vmem:[#allocation2 + $0xe9] sm:$0xff]
        %v2222 = vld [vmem:[#allocation2 + $0xf1] sm:$0xff]
        %v2223 = vld [vmem:[#allocation2 + $0xf9] sm:$0xff]
        %v2224 = vld [vmem:[#allocation2 + $0x101] sm:$0xff]
        %v2225 = vmul.f32 %v2193, %v1202
        %v2226 = vmul.f32 %v2194, %v1203
        %v2227 = vmul.f32 %v2195, %v1204
        %v2228 = vmul.f32 %v2196, %v1205
        %v2229 = vmul.f32 %v2197, %v1206
        %v2230 = vmul.f32 %v2198, %v1207
        %v2231 = vmul.f32 %v2199, %v1208
        %v2232 = vmul.f32 %v2200, %v1209
        %v2233 = vmul.f32 %v2201, %v1210
        %v2234 = vmul.f32 %v2202, %v1211
        %v2235 = vmul.f32 %v2203, %v1212
        %v2236 = vmul.f32 %v2204, %v1213
        %v2237 = vmul.f32 %v2205, %v1214
        %v2238 = vmul.f32 %v2206, %v1215
        %v2239 = vmul.f32 %v2207, %v1216
        %v2240 = vmul.f32 %v2208, %v1217
        %v2241 = vmul.f32 %v2209, %v1218
        %v2242 = vmul.f32 %v2210, %v1219
        %v2243 = vmul.f32 %v2211, %v1220
        %v2244 = vmul.f32 %v2212, %v1221
        %v2245 = vmul.f32 %v2213, %v1222
        %v2246 = vmul.f32 %v2214, %v1223
        %v2247 = vmul.f32 %v2215, %v1224
        %v2248 = vmul.f32 %v2216, %v1225
        %v2249 = vmul.f32 %v2217, %v1226
        %v2250 = vmul.f32 %v2218, %v1227
        %v2251 = vmul.f32 %v2219, %v1228
        %v2252 = vmul.f32 %v2220, %v1229
        %v2253 = vmul.f32 %v2221, %v1230
        %v2254 = vmul.f32 %v2222, %v1231
        %v2255 = vmul.f32 %v2223, %v1232
        %v2256 = vmul.f32 %v2224, %v1233
        %s2257 = scalar_lea.vmem %s5, 64
        %v2258 = vld [vmem:[%s2257] sm:$0xff]
        %v2259 = vld [vmem:[%s2257 + $0x8] sm:$0xff]
        %v2260 = vld [vmem:[%s2257 + $0x10] sm:$0xff]
        %v2261 = vld [vmem:[%s2257 + $0x18] sm:$0xff]
        %v2263 = vsel %vm586, %v2225, 0
        %v2266 = vsel %vm586, %v2226, 0
        %v2269 = vsel %vm586, %v2227, 0
        %v2272 = vsel %vm586, %v2228, 0
        %v2275 = vsel %vm586, %v2229, 0
        %v2278 = vsel %vm586, %v2230, 0
        %v2281 = vsel %vm586, %v2231, 0
        %v2284 = vsel %vm586, %v2232, 0
        %v2287 = vsel %vm586, %v2233, 0
        %v2290 = vsel %vm586, %v2234, 0
        %v2293 = vsel %vm586, %v2235, 0
        %v2296 = vsel %vm586, %v2236, 0
        %v2299 = vsel %vm586, %v2237, 0
        %v2302 = vsel %vm586, %v2238, 0
        %v2305 = vsel %vm586, %v2239, 0
        %v2308 = vsel %vm586, %v2240, 0
        %v2311 = vsel %vm586, %v2241, 0
        %v2314 = vsel %vm586, %v2242, 0
        %v2317 = vsel %vm586, %v2243, 0
        %v2320 = vsel %vm586, %v2244, 0
        %v2323 = vsel %vm586, %v2245, 0
        %v2326 = vsel %vm586, %v2246, 0
        %v2329 = vsel %vm586, %v2247, 0
        %v2332 = vsel %vm586, %v2248, 0
        %v2335 = vsel %vm586, %v2249, 0
        %v2338 = vsel %vm586, %v2250, 0
        %v2341 = vsel %vm586, %v2251, 0
        %v2344 = vsel %vm586, %v2252, 0
        %v2347 = vsel %vm586, %v2253, 0
        %v2350 = vsel %vm586, %v2254, 0
        %v2353 = vsel %vm586, %v2255, 0
        %v2356 = vsel %vm586, %v2256, 0
        %2358 = vmatpush.msra.mxu0 0.0
        %2359 = vmatpush.msra.mxu0 0.0
        %2360 = vmatpush.msra.mxu0 0.0
        %2361 = vmatpush.msra.mxu0 0.0
        %2362 = vmatpush.msra.mxu0 0.0
        %2363 = vmatpush.msra.mxu0 0.0
        %2364 = vmatpush.msra.mxu0 0.0
        %2365 = vmatpush.msra.mxu0 0.0
        %2366 = vmatpush.msra.mxu0 0.0
        %2367 = vmatpush.msra.mxu0 0.0
        %2368 = vmatpush.msra.mxu0 0.0
        %2369 = vmatpush.msra.mxu0 0.0
        %2370 = vmatpush.msra.mxu0 %v2261
        %2371 = vmatpush.msra.mxu0 %v2260
        %2372 = vmatpush.msra.mxu0 %v2259
        %2373 = vmatpush.msra.mxu0 %v2258
        %2374 = vmatmul.f32.gmra.mxu0 %v2263
        %v2375 = vpop.f32.mrf.mxu0
        %v2376 = vadd.f32 0.0, %v2375
        %2377 = vmatmul.f32.gmra.mxu0 %v2266
        %v2378 = vpop.f32.mrf.mxu0
        %v2379 = vadd.f32 0.0, %v2378
        %2380 = vmatmul.f32.gmra.mxu0 %v2269
        %v2381 = vpop.f32.mrf.mxu0
        %v2382 = vadd.f32 0.0, %v2381
        %2383 = vmatmul.f32.gmra.mxu0 %v2272
        %v2384 = vpop.f32.mrf.mxu0
        %v2385 = vadd.f32 0.0, %v2384
        %2386 = vmatmul.f32.gmra.mxu0 %v2275
        %v2387 = vpop.f32.mrf.mxu0
        %v2388 = vadd.f32 0.0, %v2387
        %2389 = vmatmul.f32.gmra.mxu0 %v2278
        %v2390 = vpop.f32.mrf.mxu0
        %v2391 = vadd.f32 0.0, %v2390
        %2392 = vmatmul.f32.gmra.mxu0 %v2281
        %v2393 = vpop.f32.mrf.mxu0
        %v2394 = vadd.f32 0.0, %v2393
        %2395 = vmatmul.f32.gmra.mxu0 %v2284
        %v2396 = vpop.f32.mrf.mxu0
        %v2397 = vadd.f32 0.0, %v2396
        %2398 = vmatmul.f32.gmra.mxu0 %v2287
        %v2399 = vpop.f32.mrf.mxu0
        %v2400 = vadd.f32 0.0, %v2399
        %2401 = vmatmul.f32.gmra.mxu0 %v2290
        %v2402 = vpop.f32.mrf.mxu0
        %v2403 = vadd.f32 0.0, %v2402
        %2404 = vmatmul.f32.gmra.mxu0 %v2293
        %v2405 = vpop.f32.mrf.mxu0
        %v2406 = vadd.f32 0.0, %v2405
        %2407 = vmatmul.f32.gmra.mxu0 %v2296
        %v2408 = vpop.f32.mrf.mxu0
        %v2409 = vadd.f32 0.0, %v2408
        %2410 = vmatmul.f32.gmra.mxu0 %v2299
        %v2411 = vpop.f32.mrf.mxu0
        %v2412 = vadd.f32 0.0, %v2411
        %2413 = vmatmul.f32.gmra.mxu0 %v2302
        %v2414 = vpop.f32.mrf.mxu0
        %v2415 = vadd.f32 0.0, %v2414
        %2416 = vmatmul.f32.gmra.mxu0 %v2305
        %v2417 = vpop.f32.mrf.mxu0
        %v2418 = vadd.f32 0.0, %v2417
        %2419 = vmatmul.f32.gmra.mxu0 %v2308
        %v2420 = vpop.f32.mrf.mxu0
        %v2421 = vadd.f32 0.0, %v2420
        %2422 = vmatmul.f32.gmra.mxu0 %v2311
        %v2423 = vpop.f32.mrf.mxu0
        %v2424 = vadd.f32 0.0, %v2423
        %2425 = vmatmul.f32.gmra.mxu0 %v2314
        %v2426 = vpop.f32.mrf.mxu0
        %v2427 = vadd.f32 0.0, %v2426
        %2428 = vmatmul.f32.gmra.mxu0 %v2317
        %v2429 = vpop.f32.mrf.mxu0
        %v2430 = vadd.f32 0.0, %v2429
        %2431 = vmatmul.f32.gmra.mxu0 %v2320
        %v2432 = vpop.f32.mrf.mxu0
        %v2433 = vadd.f32 0.0, %v2432
        %2434 = vmatmul.f32.gmra.mxu0 %v2323
        %v2435 = vpop.f32.mrf.mxu0
        %v2436 = vadd.f32 0.0, %v2435
        %2437 = vmatmul.f32.gmra.mxu0 %v2326
        %v2438 = vpop.f32.mrf.mxu0
        %v2439 = vadd.f32 0.0, %v2438
        %2440 = vmatmul.f32.gmra.mxu0 %v2329
        %v2441 = vpop.f32.mrf.mxu0
        %v2442 = vadd.f32 0.0, %v2441
        %2443 = vmatmul.f32.gmra.mxu0 %v2332
        %v2444 = vpop.f32.mrf.mxu0
        %v2445 = vadd.f32 0.0, %v2444
        %2446 = vmatmul.f32.gmra.mxu0 %v2335
        %v2447 = vpop.f32.mrf.mxu0
        %v2448 = vadd.f32 0.0, %v2447
        %2449 = vmatmul.f32.gmra.mxu0 %v2338
        %v2450 = vpop.f32.mrf.mxu0
        %v2451 = vadd.f32 0.0, %v2450
        %2452 = vmatmul.f32.gmra.mxu0 %v2341
        %v2453 = vpop.f32.mrf.mxu0
        %v2454 = vadd.f32 0.0, %v2453
        %2455 = vmatmul.f32.gmra.mxu0 %v2344
        %v2456 = vpop.f32.mrf.mxu0
        %v2457 = vadd.f32 0.0, %v2456
        %2458 = vmatmul.f32.gmra.mxu0 %v2347
        %v2459 = vpop.f32.mrf.mxu0
        %v2460 = vadd.f32 0.0, %v2459
        %2461 = vmatmul.f32.gmra.mxu0 %v2350
        %v2462 = vpop.f32.mrf.mxu0
        %v2463 = vadd.f32 0.0, %v2462
        %2464 = vmatmul.f32.gmra.mxu0 %v2353
        %v2465 = vpop.f32.mrf.mxu0
        %v2466 = vadd.f32 0.0, %v2465
        %2467 = vmatmul.f32.gmra.mxu0 %v2356
        %v2468 = vpop.f32.mrf.mxu0
        %v2469 = vadd.f32 0.0, %v2468
        %2470 = vdwg.mxu0
        %v2471 = vadd.f32 %v2098, %v2376
        %v2472 = vadd.f32 %v2101, %v2379
        %v2473 = vadd.f32 %v2104, %v2382
        %v2474 = vadd.f32 %v2107, %v2385
        %v2475 = vadd.f32 %v2110, %v2388
        %v2476 = vadd.f32 %v2113, %v2391
        %v2477 = vadd.f32 %v2116, %v2394
        %v2478 = vadd.f32 %v2119, %v2397
        %v2479 = vadd.f32 %v2122, %v2400
        %v2480 = vadd.f32 %v2125, %v2403
        %v2481 = vadd.f32 %v2128, %v2406
        %v2482 = vadd.f32 %v2131, %v2409
        %v2483 = vadd.f32 %v2134, %v2412
        %v2484 = vadd.f32 %v2137, %v2415
        %v2485 = vadd.f32 %v2140, %v2418
        %v2486 = vadd.f32 %v2143, %v2421
        %v2487 = vadd.f32 %v2146, %v2424
        %v2488 = vadd.f32 %v2149, %v2427
        %v2489 = vadd.f32 %v2152, %v2430
        %v2490 = vadd.f32 %v2155, %v2433
        %v2491 = vadd.f32 %v2158, %v2436
        %v2492 = vadd.f32 %v2161, %v2439
        %v2493 = vadd.f32 %v2164, %v2442
        %v2494 = vadd.f32 %v2167, %v2445
        %v2495 = vadd.f32 %v2170, %v2448
        %v2496 = vadd.f32 %v2173, %v2451
        %v2497 = vadd.f32 %v2176, %v2454
        %v2498 = vadd.f32 %v2179, %v2457
        %v2499 = vadd.f32 %v2182, %v2460
        %v2500 = vadd.f32 %v2185, %v2463
        %v2501 = vadd.f32 %v2188, %v2466
        %v2502 = vadd.f32 %v2191, %v2469
        %v2503 = vld [vmem:[#allocation2 + $0x17] sm:$0xff]
        %v2504 = vld [vmem:[#allocation2 + $0x1f] sm:$0xff]
        %v2505 = vld [vmem:[#allocation2 + $0x27] sm:$0xff]
        %v2506 = vld [vmem:[#allocation2 + $0x2f] sm:$0xff]
        %v2507 = vld [vmem:[#allocation2 + $0x37] sm:$0xff]
        %v2508 = vld [vmem:[#allocation2 + $0x3f] sm:$0xff]
        %v2509 = vld [vmem:[#allocation2 + $0x47] sm:$0xff]
        %v2510 = vld [vmem:[#allocation2 + $0x4f] sm:$0xff]
        %v2511 = vld [vmem:[#allocation2 + $0x57] sm:$0xff]
        %v2512 = vld [vmem:[#allocation2 + $0x5f] sm:$0xff]
        %v2513 = vld [vmem:[#allocation2 + $0x67] sm:$0xff]
        %v2514 = vld [vmem:[#allocation2 + $0x6f] sm:$0xff]
        %v2515 = vld [vmem:[#allocation2 + $0x77] sm:$0xff]
        %v2516 = vld [vmem:[#allocation2 + $0x7f] sm:$0xff]
        %v2517 = vld [vmem:[#allocation2 + $0x87] sm:$0xff]
        %v2518 = vld [vmem:[#allocation2 + $0x8f] sm:$0xff]
        %v2519 = vld [vmem:[#allocation2 + $0x97] sm:$0xff]
        %v2520 = vld [vmem:[#allocation2 + $0x9f] sm:$0xff]
        %v2521 = vld [vmem:[#allocation2 + $0xa7] sm:$0xff]
        %v2522 = vld [vmem:[#allocation2 + $0xaf] sm:$0xff]
        %v2523 = vld [vmem:[#allocation2 + $0xb7] sm:$0xff]
        %v2524 = vld [vmem:[#allocation2 + $0xbf] sm:$0xff]
        %v2525 = vld [vmem:[#allocation2 + $0xc7] sm:$0xff]
        %v2526 = vld [vmem:[#allocation2 + $0xcf] sm:$0xff]
        %v2527 = vld [vmem:[#allocation2 + $0xd7] sm:$0xff]
        %v2528 = vld [vmem:[#allocation2 + $0xdf] sm:$0xff]
        %v2529 = vld [vmem:[#allocation2 + $0xe7] sm:$0xff]
        %v2530 = vld [vmem:[#allocation2 + $0xef] sm:$0xff]
        %v2531 = vld [vmem:[#allocation2 + $0xf7] sm:$0xff]
        %v2532 = vld [vmem:[#allocation2 + $0xff] sm:$0xff]
        %v2533 = vld [vmem:[#allocation2 + $0x107] sm:$0xff]
        %v2534 = vld [vmem:[#allocation2 + $0x10f] sm:$0xff]
        %v2535 = vmul.f32 %v2503, %v1106
        %v2536 = vmul.f32 %v2504, %v1107
        %v2537 = vmul.f32 %v2505, %v1108
        %v2538 = vmul.f32 %v2506, %v1109
        %v2539 = vmul.f32 %v2507, %v1110
        %v2540 = vmul.f32 %v2508, %v1111
        %v2541 = vmul.f32 %v2509, %v1112
        %v2542 = vmul.f32 %v2510, %v1113
        %v2543 = vmul.f32 %v2511, %v1114
        %v2544 = vmul.f32 %v2512, %v1115
        %v2545 = vmul.f32 %v2513, %v1116
        %v2546 = vmul.f32 %v2514, %v1117
        %v2547 = vmul.f32 %v2515, %v1118
        %v2548 = vmul.f32 %v2516, %v1119
        %v2549 = vmul.f32 %v2517, %v1120
        %v2550 = vmul.f32 %v2518, %v1121
        %v2551 = vmul.f32 %v2519, %v1122
        %v2552 = vmul.f32 %v2520, %v1123
        %v2553 = vmul.f32 %v2521, %v1124
        %v2554 = vmul.f32 %v2522, %v1125
        %v2555 = vmul.f32 %v2523, %v1126
        %v2556 = vmul.f32 %v2524, %v1127
        %v2557 = vmul.f32 %v2525, %v1128
        %v2558 = vmul.f32 %v2526, %v1129
        %v2559 = vmul.f32 %v2527, %v1130
        %v2560 = vmul.f32 %v2528, %v1131
        %v2561 = vmul.f32 %v2529, %v1132
        %v2562 = vmul.f32 %v2530, %v1133
        %v2563 = vmul.f32 %v2531, %v1134
        %v2564 = vmul.f32 %v2532, %v1135
        %v2565 = vmul.f32 %v2533, %v1136
        %v2566 = vmul.f32 %v2534, %v1137
        %s2567 = scalar_lea.vmem %s5, 96
        %v2568 = vld [vmem:[%s2567] sm:$0xff]
        %v2569 = vld [vmem:[%s2567 + $0x8] sm:$0xff]
        %v2570 = vld [vmem:[%s2567 + $0x10] sm:$0xff]
        %v2571 = vld [vmem:[%s2567 + $0x18] sm:$0xff]
        %v2573 = vsel %vm586, %v2535, 0
        %v2576 = vsel %vm586, %v2536, 0
        %v2579 = vsel %vm586, %v2537, 0
        %v2582 = vsel %vm586, %v2538, 0
        %v2585 = vsel %vm586, %v2539, 0
        %v2588 = vsel %vm586, %v2540, 0
        %v2591 = vsel %vm586, %v2541, 0
        %v2594 = vsel %vm586, %v2542, 0
        %v2597 = vsel %vm586, %v2543, 0
        %v2600 = vsel %vm586, %v2544, 0
        %v2603 = vsel %vm586, %v2545, 0
        %v2606 = vsel %vm586, %v2546, 0
        %v2609 = vsel %vm586, %v2547, 0
        %v2612 = vsel %vm586, %v2548, 0
        %v2615 = vsel %vm586, %v2549, 0
        %v2618 = vsel %vm586, %v2550, 0
        %v2621 = vsel %vm586, %v2551, 0
        %v2624 = vsel %vm586, %v2552, 0
        %v2627 = vsel %vm586, %v2553, 0
        %v2630 = vsel %vm586, %v2554, 0
        %v2633 = vsel %vm586, %v2555, 0
        %v2636 = vsel %vm586, %v2556, 0
        %v2639 = vsel %vm586, %v2557, 0
        %v2642 = vsel %vm586, %v2558, 0
        %v2645 = vsel %vm586, %v2559, 0
        %v2648 = vsel %vm586, %v2560, 0
        %v2651 = vsel %vm586, %v2561, 0
        %v2654 = vsel %vm586, %v2562, 0
        %v2657 = vsel %vm586, %v2563, 0
        %v2660 = vsel %vm586, %v2564, 0
        %v2663 = vsel %vm586, %v2565, 0
        %v2666 = vsel %vm586, %v2566, 0
        %2668 = vmatpush.msra.mxu0 0.0
        %2669 = vmatpush.msra.mxu0 0.0
        %2670 = vmatpush.msra.mxu0 0.0
        %2671 = vmatpush.msra.mxu0 0.0
        %2672 = vmatpush.msra.mxu0 0.0
        %2673 = vmatpush.msra.mxu0 0.0
        %2674 = vmatpush.msra.mxu0 0.0
        %2675 = vmatpush.msra.mxu0 0.0
        %2676 = vmatpush.msra.mxu0 0.0
        %2677 = vmatpush.msra.mxu0 0.0
        %2678 = vmatpush.msra.mxu0 0.0
        %2679 = vmatpush.msra.mxu0 0.0
        %2680 = vmatpush.msra.mxu0 %v2571
        %2681 = vmatpush.msra.mxu0 %v2570
        %2682 = vmatpush.msra.mxu0 %v2569
        %2683 = vmatpush.msra.mxu0 %v2568
        %2684 = vmatmul.f32.gmra.mxu0 %v2573
        %v2685 = vpop.f32.mrf.mxu0
        %v2686 = vadd.f32 0.0, %v2685
        %2687 = vmatmul.f32.gmra.mxu0 %v2576
        %v2688 = vpop.f32.mrf.mxu0
        %v2689 = vadd.f32 0.0, %v2688
        %2690 = vmatmul.f32.gmra.mxu0 %v2579
        %v2691 = vpop.f32.mrf.mxu0
        %v2692 = vadd.f32 0.0, %v2691
        %2693 = vmatmul.f32.gmra.mxu0 %v2582
        %v2694 = vpop.f32.mrf.mxu0
        %v2695 = vadd.f32 0.0, %v2694
        %2696 = vmatmul.f32.gmra.mxu0 %v2585
        %v2697 = vpop.f32.mrf.mxu0
        %v2698 = vadd.f32 0.0, %v2697
        %2699 = vmatmul.f32.gmra.mxu0 %v2588
        %v2700 = vpop.f32.mrf.mxu0
        %v2701 = vadd.f32 0.0, %v2700
        %2702 = vmatmul.f32.gmra.mxu0 %v2591
        %v2703 = vpop.f32.mrf.mxu0
        %v2704 = vadd.f32 0.0, %v2703
        %2705 = vmatmul.f32.gmra.mxu0 %v2594
        %v2706 = vpop.f32.mrf.mxu0
        %v2707 = vadd.f32 0.0, %v2706
        %2708 = vmatmul.f32.gmra.mxu0 %v2597
        %v2709 = vpop.f32.mrf.mxu0
        %v2710 = vadd.f32 0.0, %v2709
        %2711 = vmatmul.f32.gmra.mxu0 %v2600
        %v2712 = vpop.f32.mrf.mxu0
        %v2713 = vadd.f32 0.0, %v2712
        %2714 = vmatmul.f32.gmra.mxu0 %v2603
        %v2715 = vpop.f32.mrf.mxu0
        %v2716 = vadd.f32 0.0, %v2715
        %2717 = vmatmul.f32.gmra.mxu0 %v2606
        %v2718 = vpop.f32.mrf.mxu0
        %v2719 = vadd.f32 0.0, %v2718
        %2720 = vmatmul.f32.gmra.mxu0 %v2609
        %v2721 = vpop.f32.mrf.mxu0
        %v2722 = vadd.f32 0.0, %v2721
        %2723 = vmatmul.f32.gmra.mxu0 %v2612
        %v2724 = vpop.f32.mrf.mxu0
        %v2725 = vadd.f32 0.0, %v2724
        %2726 = vmatmul.f32.gmra.mxu0 %v2615
        %v2727 = vpop.f32.mrf.mxu0
        %v2728 = vadd.f32 0.0, %v2727
        %2729 = vmatmul.f32.gmra.mxu0 %v2618
        %v2730 = vpop.f32.mrf.mxu0
        %v2731 = vadd.f32 0.0, %v2730
        %2732 = vmatmul.f32.gmra.mxu0 %v2621
        %v2733 = vpop.f32.mrf.mxu0
        %v2734 = vadd.f32 0.0, %v2733
        %2735 = vmatmul.f32.gmra.mxu0 %v2624
        %v2736 = vpop.f32.mrf.mxu0
        %v2737 = vadd.f32 0.0, %v2736
        %2738 = vmatmul.f32.gmra.mxu0 %v2627
        %v2739 = vpop.f32.mrf.mxu0
        %v2740 = vadd.f32 0.0, %v2739
        %2741 = vmatmul.f32.gmra.mxu0 %v2630
        %v2742 = vpop.f32.mrf.mxu0
        %v2743 = vadd.f32 0.0, %v2742
        %2744 = vmatmul.f32.gmra.mxu0 %v2633
        %v2745 = vpop.f32.mrf.mxu0
        %v2746 = vadd.f32 0.0, %v2745
        %2747 = vmatmul.f32.gmra.mxu0 %v2636
        %v2748 = vpop.f32.mrf.mxu0
        %v2749 = vadd.f32 0.0, %v2748
        %2750 = vmatmul.f32.gmra.mxu0 %v2639
        %v2751 = vpop.f32.mrf.mxu0
        %v2752 = vadd.f32 0.0, %v2751
        %2753 = vmatmul.f32.gmra.mxu0 %v2642
        %v2754 = vpop.f32.mrf.mxu0
        %v2755 = vadd.f32 0.0, %v2754
        %2756 = vmatmul.f32.gmra.mxu0 %v2645
        %v2757 = vpop.f32.mrf.mxu0
        %v2758 = vadd.f32 0.0, %v2757
        %2759 = vmatmul.f32.gmra.mxu0 %v2648
        %v2760 = vpop.f32.mrf.mxu0
        %v2761 = vadd.f32 0.0, %v2760
        %2762 = vmatmul.f32.gmra.mxu0 %v2651
        %v2763 = vpop.f32.mrf.mxu0
        %v2764 = vadd.f32 0.0, %v2763
        %2765 = vmatmul.f32.gmra.mxu0 %v2654
        %v2766 = vpop.f32.mrf.mxu0
        %v2767 = vadd.f32 0.0, %v2766
        %2768 = vmatmul.f32.gmra.mxu0 %v2657
        %v2769 = vpop.f32.mrf.mxu0
        %v2770 = vadd.f32 0.0, %v2769
        %2771 = vmatmul.f32.gmra.mxu0 %v2660
        %v2772 = vpop.f32.mrf.mxu0
        %v2773 = vadd.f32 0.0, %v2772
        %2774 = vmatmul.f32.gmra.mxu0 %v2663
        %v2775 = vpop.f32.mrf.mxu0
        %v2776 = vadd.f32 0.0, %v2775
        %2777 = vmatmul.f32.gmra.mxu0 %v2666
        %v2778 = vpop.f32.mrf.mxu0
        %v2779 = vadd.f32 0.0, %v2778
        %2780 = vdwg.mxu0
        %v2781 = vadd.f32 %v2471, %v2686
        %v2782 = vadd.f32 %v2472, %v2689
        %v2783 = vadd.f32 %v2473, %v2692
        %v2784 = vadd.f32 %v2474, %v2695
        %v2785 = vadd.f32 %v2475, %v2698
        %v2786 = vadd.f32 %v2476, %v2701
        %v2787 = vadd.f32 %v2477, %v2704
        %v2788 = vadd.f32 %v2478, %v2707
        %v2789 = vadd.f32 %v2479, %v2710
        %v2790 = vadd.f32 %v2480, %v2713
        %v2791 = vadd.f32 %v2481, %v2716
        %v2792 = vadd.f32 %v2482, %v2719
        %v2793 = vadd.f32 %v2483, %v2722
        %v2794 = vadd.f32 %v2484, %v2725
        %v2795 = vadd.f32 %v2485, %v2728
        %v2796 = vadd.f32 %v2486, %v2731
        %v2797 = vadd.f32 %v2487, %v2734
        %v2798 = vadd.f32 %v2488, %v2737
        %v2799 = vadd.f32 %v2489, %v2740
        %v2800 = vadd.f32 %v2490, %v2743
        %v2801 = vadd.f32 %v2491, %v2746
        %v2802 = vadd.f32 %v2492, %v2749
        %v2803 = vadd.f32 %v2493, %v2752
        %v2804 = vadd.f32 %v2494, %v2755
        %v2805 = vadd.f32 %v2495, %v2758
        %v2806 = vadd.f32 %v2496, %v2761
        %v2807 = vadd.f32 %v2497, %v2764
        %v2808 = vadd.f32 %v2498, %v2767
        %v2809 = vadd.f32 %v2499, %v2770
        %v2810 = vadd.f32 %v2500, %v2773
        %v2811 = vadd.f32 %v2501, %v2776
        %v2812 = vadd.f32 %v2502, %v2779
        %v2813 = vld [vmem:[#allocation2 + $0x18] sm:$0xff]
        %v2814 = vld [vmem:[#allocation2 + $0x20] sm:$0xff]
        %v2815 = vld [vmem:[#allocation2 + $0x28] sm:$0xff]
        %v2816 = vld [vmem:[#allocation2 + $0x30] sm:$0xff]
        %v2817 = vld [vmem:[#allocation2 + $0x38] sm:$0xff]
        %v2818 = vld [vmem:[#allocation2 + $0x40] sm:$0xff]
        %v2819 = vld [vmem:[#allocation2 + $0x48] sm:$0xff]
        %v2820 = vld [vmem:[#allocation2 + $0x50] sm:$0xff]
        %v2821 = vld [vmem:[#allocation2 + $0x58] sm:$0xff]
        %v2822 = vld [vmem:[#allocation2 + $0x60] sm:$0xff]
        %v2823 = vld [vmem:[#allocation2 + $0x68] sm:$0xff]
        %v2824 = vld [vmem:[#allocation2 + $0x70] sm:$0xff]
        %v2825 = vld [vmem:[#allocation2 + $0x78] sm:$0xff]
        %v2826 = vld [vmem:[#allocation2 + $0x80] sm:$0xff]
        %v2827 = vld [vmem:[#allocation2 + $0x88] sm:$0xff]
        %v2828 = vld [vmem:[#allocation2 + $0x90] sm:$0xff]
        %v2829 = vld [vmem:[#allocation2 + $0x98] sm:$0xff]
        %v2830 = vld [vmem:[#allocation2 + $0xa0] sm:$0xff]
        %v2831 = vld [vmem:[#allocation2 + $0xa8] sm:$0xff]
        %v2832 = vld [vmem:[#allocation2 + $0xb0] sm:$0xff]
        %v2833 = vld [vmem:[#allocation2 + $0xb8] sm:$0xff]
        %v2834 = vld [vmem:[#allocation2 + $0xc0] sm:$0xff]
        %v2835 = vld [vmem:[#allocation2 + $0xc8] sm:$0xff]
        %v2836 = vld [vmem:[#allocation2 + $0xd0] sm:$0xff]
        %v2837 = vld [vmem:[#allocation2 + $0xd8] sm:$0xff]
        %v2838 = vld [vmem:[#allocation2 + $0xe0] sm:$0xff]
        %v2839 = vld [vmem:[#allocation2 + $0xe8] sm:$0xff]
        %v2840 = vld [vmem:[#allocation2 + $0xf0] sm:$0xff]
        %v2841 = vld [vmem:[#allocation2 + $0xf8] sm:$0xff]
        %v2842 = vld [vmem:[#allocation2 + $0x100] sm:$0xff]
        %v2843 = vld [vmem:[#allocation2 + $0x108] sm:$0xff]
        %v2844 = vld [vmem:[#allocation2 + $0x110] sm:$0xff]
        %s2845 = scalar_lea.vmem %s5, 128
        %v2846 = vld [vmem:[%s2845] sm:$0xff]
        %v2847 = vld [vmem:[%s2845 + $0x8] sm:$0xff]
        %v2848 = vld [vmem:[%s2845 + $0x10] sm:$0xff]
        %v2849 = vld [vmem:[%s2845 + $0x18] sm:$0xff]
        %v2851 = vsel %vm586, %v2813, 0
        %v2854 = vsel %vm586, %v2814, 0
        %v2857 = vsel %vm586, %v2815, 0
        %v2860 = vsel %vm586, %v2816, 0
        %v2863 = vsel %vm586, %v2817, 0
        %v2866 = vsel %vm586, %v2818, 0
        %v2869 = vsel %vm586, %v2819, 0
        %v2872 = vsel %vm586, %v2820, 0
        %v2875 = vsel %vm586, %v2821, 0
        %v2878 = vsel %vm586, %v2822, 0
        %v2881 = vsel %vm586, %v2823, 0
        %v2884 = vsel %vm586, %v2824, 0
        %v2887 = vsel %vm586, %v2825, 0
        %v2890 = vsel %vm586, %v2826, 0
        %v2893 = vsel %vm586, %v2827, 0
        %v2896 = vsel %vm586, %v2828, 0
        %v2899 = vsel %vm586, %v2829, 0
        %v2902 = vsel %vm586, %v2830, 0
        %v2905 = vsel %vm586, %v2831, 0
        %v2908 = vsel %vm586, %v2832, 0
        %v2911 = vsel %vm586, %v2833, 0
        %v2914 = vsel %vm586, %v2834, 0
        %v2917 = vsel %vm586, %v2835, 0
        %v2920 = vsel %vm586, %v2836, 0
        %v2923 = vsel %vm586, %v2837, 0
        %v2926 = vsel %vm586, %v2838, 0
        %v2929 = vsel %vm586, %v2839, 0
        %v2932 = vsel %vm586, %v2840, 0
        %v2935 = vsel %vm586, %v2841, 0
        %v2938 = vsel %vm586, %v2842, 0
        %v2941 = vsel %vm586, %v2843, 0
        %v2944 = vsel %vm586, %v2844, 0
        %2946 = vmatpush.msra.mxu0 0.0
        %2947 = vmatpush.msra.mxu0 0.0
        %2948 = vmatpush.msra.mxu0 0.0
        %2949 = vmatpush.msra.mxu0 0.0
        %2950 = vmatpush.msra.mxu0 0.0
        %2951 = vmatpush.msra.mxu0 0.0
        %2952 = vmatpush.msra.mxu0 0.0
        %2953 = vmatpush.msra.mxu0 0.0
        %2954 = vmatpush.msra.mxu0 0.0
        %2955 = vmatpush.msra.mxu0 0.0
        %2956 = vmatpush.msra.mxu0 0.0
        %2957 = vmatpush.msra.mxu0 0.0
        %2958 = vmatpush.msra.mxu0 %v2849
        %2959 = vmatpush.msra.mxu0 %v2848
        %2960 = vmatpush.msra.mxu0 %v2847
        %2961 = vmatpush.msra.mxu0 %v2846
        %2962 = vmatmul.f32.gmra.mxu0 %v2851
        %v2963 = vpop.f32.mrf.mxu0
        %v2964 = vadd.f32 0.0, %v2963
        %2965 = vmatmul.f32.gmra.mxu0 %v2854
        %v2966 = vpop.f32.mrf.mxu0
        %v2967 = vadd.f32 0.0, %v2966
        %2968 = vmatmul.f32.gmra.mxu0 %v2857
        %v2969 = vpop.f32.mrf.mxu0
        %v2970 = vadd.f32 0.0, %v2969
        %2971 = vmatmul.f32.gmra.mxu0 %v2860
        %v2972 = vpop.f32.mrf.mxu0
        %v2973 = vadd.f32 0.0, %v2972
        %2974 = vmatmul.f32.gmra.mxu0 %v2863
        %v2975 = vpop.f32.mrf.mxu0
        %v2976 = vadd.f32 0.0, %v2975
        %2977 = vmatmul.f32.gmra.mxu0 %v2866
        %v2978 = vpop.f32.mrf.mxu0
        %v2979 = vadd.f32 0.0, %v2978
        %2980 = vmatmul.f32.gmra.mxu0 %v2869
        %v2981 = vpop.f32.mrf.mxu0
        %v2982 = vadd.f32 0.0, %v2981
        %2983 = vmatmul.f32.gmra.mxu0 %v2872
        %v2984 = vpop.f32.mrf.mxu0
        %v2985 = vadd.f32 0.0, %v2984
        %2986 = vmatmul.f32.gmra.mxu0 %v2875
        %v2987 = vpop.f32.mrf.mxu0
        %v2988 = vadd.f32 0.0, %v2987
        %2989 = vmatmul.f32.gmra.mxu0 %v2878
        %v2990 = vpop.f32.mrf.mxu0
        %v2991 = vadd.f32 0.0, %v2990
        %2992 = vmatmul.f32.gmra.mxu0 %v2881
        %v2993 = vpop.f32.mrf.mxu0
        %v2994 = vadd.f32 0.0, %v2993
        %2995 = vmatmul.f32.gmra.mxu0 %v2884
        %v2996 = vpop.f32.mrf.mxu0
        %v2997 = vadd.f32 0.0, %v2996
        %2998 = vmatmul.f32.gmra.mxu0 %v2887
        %v2999 = vpop.f32.mrf.mxu0
        %v3000 = vadd.f32 0.0, %v2999
        %3001 = vmatmul.f32.gmra.mxu0 %v2890
        %v3002 = vpop.f32.mrf.mxu0
        %v3003 = vadd.f32 0.0, %v3002
        %3004 = vmatmul.f32.gmra.mxu0 %v2893
        %v3005 = vpop.f32.mrf.mxu0
        %v3006 = vadd.f32 0.0, %v3005
        %3007 = vmatmul.f32.gmra.mxu0 %v2896
        %v3008 = vpop.f32.mrf.mxu0
        %v3009 = vadd.f32 0.0, %v3008
        %3010 = vmatmul.f32.gmra.mxu0 %v2899
        %v3011 = vpop.f32.mrf.mxu0
        %v3012 = vadd.f32 0.0, %v3011
        %3013 = vmatmul.f32.gmra.mxu0 %v2902
        %v3014 = vpop.f32.mrf.mxu0
        %v3015 = vadd.f32 0.0, %v3014
        %3016 = vmatmul.f32.gmra.mxu0 %v2905
        %v3017 = vpop.f32.mrf.mxu0
        %v3018 = vadd.f32 0.0, %v3017
        %3019 = vmatmul.f32.gmra.mxu0 %v2908
        %v3020 = vpop.f32.mrf.mxu0
        %v3021 = vadd.f32 0.0, %v3020
        %3022 = vmatmul.f32.gmra.mxu0 %v2911
        %v3023 = vpop.f32.mrf.mxu0
        %v3024 = vadd.f32 0.0, %v3023
        %3025 = vmatmul.f32.gmra.mxu0 %v2914
        %v3026 = vpop.f32.mrf.mxu0
        %v3027 = vadd.f32 0.0, %v3026
        %3028 = vmatmul.f32.gmra.mxu0 %v2917
        %v3029 = vpop.f32.mrf.mxu0
        %v3030 = vadd.f32 0.0, %v3029
        %3031 = vmatmul.f32.gmra.mxu0 %v2920
        %v3032 = vpop.f32.mrf.mxu0
        %v3033 = vadd.f32 0.0, %v3032
        %3034 = vmatmul.f32.gmra.mxu0 %v2923
        %v3035 = vpop.f32.mrf.mxu0
        %v3036 = vadd.f32 0.0, %v3035
        %3037 = vmatmul.f32.gmra.mxu0 %v2926
        %v3038 = vpop.f32.mrf.mxu0
        %v3039 = vadd.f32 0.0, %v3038
        %3040 = vmatmul.f32.gmra.mxu0 %v2929
        %v3041 = vpop.f32.mrf.mxu0
        %v3042 = vadd.f32 0.0, %v3041
        %3043 = vmatmul.f32.gmra.mxu0 %v2932
        %v3044 = vpop.f32.mrf.mxu0
        %v3045 = vadd.f32 0.0, %v3044
        %3046 = vmatmul.f32.gmra.mxu0 %v2935
        %v3047 = vpop.f32.mrf.mxu0
        %v3048 = vadd.f32 0.0, %v3047
        %3049 = vmatmul.f32.gmra.mxu0 %v2938
        %v3050 = vpop.f32.mrf.mxu0
        %v3051 = vadd.f32 0.0, %v3050
        %3052 = vmatmul.f32.gmra.mxu0 %v2941
        %v3053 = vpop.f32.mrf.mxu0
        %v3054 = vadd.f32 0.0, %v3053
        %3055 = vmatmul.f32.gmra.mxu0 %v2944
        %v3056 = vpop.f32.mrf.mxu0
        %v3057 = vadd.f32 0.0, %v3056
        %3058 = vdwg.mxu0
        %v3059 = vadd.f32 %v2781, %v2964
        %v3060 = vadd.f32 %v2782, %v2967
        %v3061 = vadd.f32 %v2783, %v2970
        %v3062 = vadd.f32 %v2784, %v2973
        %v3063 = vadd.f32 %v2785, %v2976
        %v3064 = vadd.f32 %v2786, %v2979
        %v3065 = vadd.f32 %v2787, %v2982
        %v3066 = vadd.f32 %v2788, %v2985
        %v3067 = vadd.f32 %v2789, %v2988
        %v3068 = vadd.f32 %v2790, %v2991
        %v3069 = vadd.f32 %v2791, %v2994
        %v3070 = vadd.f32 %v2792, %v2997
        %v3071 = vadd.f32 %v2793, %v3000
        %v3072 = vadd.f32 %v2794, %v3003
        %v3073 = vadd.f32 %v2795, %v3006
        %v3074 = vadd.f32 %v2796, %v3009
        %v3075 = vadd.f32 %v2797, %v3012
        %v3076 = vadd.f32 %v2798, %v3015
        %v3077 = vadd.f32 %v2799, %v3018
        %v3078 = vadd.f32 %v2800, %v3021
        %v3079 = vadd.f32 %v2801, %v3024
        %v3080 = vadd.f32 %v2802, %v3027
        %v3081 = vadd.f32 %v2803, %v3030
        %v3082 = vadd.f32 %v2804, %v3033
        %v3083 = vadd.f32 %v2805, %v3036
        %v3084 = vadd.f32 %v2806, %v3039
        %v3085 = vadd.f32 %v2807, %v3042
        %v3086 = vadd.f32 %v2808, %v3045
        %v3087 = vadd.f32 %v2809, %v3048
        %v3088 = vadd.f32 %v2810, %v3051
        %v3089 = vadd.f32 %v2811, %v3054
        %v3090 = vadd.f32 %v2812, %v3057
        %v3091 = vld [vmem:[#allocation2 + $0x19] sm:$0xff]
        %v3092 = vld [vmem:[#allocation2 + $0x21] sm:$0xff]
        %v3093 = vld [vmem:[#allocation2 + $0x29] sm:$0xff]
        %v3094 = vld [vmem:[#allocation2 + $0x31] sm:$0xff]
        %v3095 = vld [vmem:[#allocation2 + $0x39] sm:$0xff]
        %v3096 = vld [vmem:[#allocation2 + $0x41] sm:$0xff]
        %v3097 = vld [vmem:[#allocation2 + $0x49] sm:$0xff]
        %v3098 = vld [vmem:[#allocation2 + $0x51] sm:$0xff]
        %v3099 = vld [vmem:[#allocation2 + $0x59] sm:$0xff]
        %v3100 = vld [vmem:[#allocation2 + $0x61] sm:$0xff]
        %v3101 = vld [vmem:[#allocation2 + $0x69] sm:$0xff]
        %v3102 = vld [vmem:[#allocation2 + $0x71] sm:$0xff]
        %v3103 = vld [vmem:[#allocation2 + $0x79] sm:$0xff]
        %v3104 = vld [vmem:[#allocation2 + $0x81] sm:$0xff]
        %v3105 = vld [vmem:[#allocation2 + $0x89] sm:$0xff]
        %v3106 = vld [vmem:[#allocation2 + $0x91] sm:$0xff]
        %v3107 = vld [vmem:[#allocation2 + $0x99] sm:$0xff]
        %v3108 = vld [vmem:[#allocation2 + $0xa1] sm:$0xff]
        %v3109 = vld [vmem:[#allocation2 + $0xa9] sm:$0xff]
        %v3110 = vld [vmem:[#allocation2 + $0xb1] sm:$0xff]
        %v3111 = vld [vmem:[#allocation2 + $0xb9] sm:$0xff]
        %v3112 = vld [vmem:[#allocation2 + $0xc1] sm:$0xff]
        %v3113 = vld [vmem:[#allocation2 + $0xc9] sm:$0xff]
        %v3114 = vld [vmem:[#allocation2 + $0xd1] sm:$0xff]
        %v3115 = vld [vmem:[#allocation2 + $0xd9] sm:$0xff]
        %v3116 = vld [vmem:[#allocation2 + $0xe1] sm:$0xff]
        %v3117 = vld [vmem:[#allocation2 + $0xe9] sm:$0xff]
        %v3118 = vld [vmem:[#allocation2 + $0xf1] sm:$0xff]
        %v3119 = vld [vmem:[#allocation2 + $0xf9] sm:$0xff]
        %v3120 = vld [vmem:[#allocation2 + $0x101] sm:$0xff]
        %v3121 = vld [vmem:[#allocation2 + $0x109] sm:$0xff]
        %v3122 = vld [vmem:[#allocation2 + $0x111] sm:$0xff]
        %v3123 = vmul.f32 %v3091, %v1202
        %v3124 = vmul.f32 %v3092, %v1203
        %v3125 = vmul.f32 %v3093, %v1204
        %v3126 = vmul.f32 %v3094, %v1205
        %v3127 = vmul.f32 %v3095, %v1206
        %v3128 = vmul.f32 %v3096, %v1207
        %v3129 = vmul.f32 %v3097, %v1208
        %v3130 = vmul.f32 %v3098, %v1209
        %v3131 = vmul.f32 %v3099, %v1210
        %v3132 = vmul.f32 %v3100, %v1211
        %v3133 = vmul.f32 %v3101, %v1212
        %v3134 = vmul.f32 %v3102, %v1213
        %v3135 = vmul.f32 %v3103, %v1214
        %v3136 = vmul.f32 %v3104, %v1215
        %v3137 = vmul.f32 %v3105, %v1216
        %v3138 = vmul.f32 %v3106, %v1217
        %v3139 = vmul.f32 %v3107, %v1218
        %v3140 = vmul.f32 %v3108, %v1219
        %v3141 = vmul.f32 %v3109, %v1220
        %v3142 = vmul.f32 %v3110, %v1221
        %v3143 = vmul.f32 %v3111, %v1222
        %v3144 = vmul.f32 %v3112, %v1223
        %v3145 = vmul.f32 %v3113, %v1224
        %v3146 = vmul.f32 %v3114, %v1225
        %v3147 = vmul.f32 %v3115, %v1226
        %v3148 = vmul.f32 %v3116, %v1227
        %v3149 = vmul.f32 %v3117, %v1228
        %v3150 = vmul.f32 %v3118, %v1229
        %v3151 = vmul.f32 %v3119, %v1230
        %v3152 = vmul.f32 %v3120, %v1231
        %v3153 = vmul.f32 %v3121, %v1232
        %v3154 = vmul.f32 %v3122, %v1233
        %s3155 = scalar_lea.vmem %s5, 160
        %v3156 = vld [vmem:[%s3155] sm:$0xff]
        %v3157 = vld [vmem:[%s3155 + $0x8] sm:$0xff]
        %v3158 = vld [vmem:[%s3155 + $0x10] sm:$0xff]
        %v3159 = vld [vmem:[%s3155 + $0x18] sm:$0xff]
        %v3161 = vsel %vm586, %v3123, 0
        %v3164 = vsel %vm586, %v3124, 0
        %v3167 = vsel %vm586, %v3125, 0
        %v3170 = vsel %vm586, %v3126, 0
        %v3173 = vsel %vm586, %v3127, 0
        %v3176 = vsel %vm586, %v3128, 0
        %v3179 = vsel %vm586, %v3129, 0
        %v3182 = vsel %vm586, %v3130, 0
        %v3185 = vsel %vm586, %v3131, 0
        %v3188 = vsel %vm586, %v3132, 0
        %v3191 = vsel %vm586, %v3133, 0
        %v3194 = vsel %vm586, %v3134, 0
        %v3197 = vsel %vm586, %v3135, 0
        %v3200 = vsel %vm586, %v3136, 0
        %v3203 = vsel %vm586, %v3137, 0
        %v3206 = vsel %vm586, %v3138, 0
        %v3209 = vsel %vm586, %v3139, 0
        %v3212 = vsel %vm586, %v3140, 0
        %v3215 = vsel %vm586, %v3141, 0
        %v3218 = vsel %vm586, %v3142, 0
        %v3221 = vsel %vm586, %v3143, 0
        %v3224 = vsel %vm586, %v3144, 0
        %v3227 = vsel %vm586, %v3145, 0
        %v3230 = vsel %vm586, %v3146, 0
        %v3233 = vsel %vm586, %v3147, 0
        %v3236 = vsel %vm586, %v3148, 0
        %v3239 = vsel %vm586, %v3149, 0
        %v3242 = vsel %vm586, %v3150, 0
        %v3245 = vsel %vm586, %v3151, 0
        %v3248 = vsel %vm586, %v3152, 0
        %v3251 = vsel %vm586, %v3153, 0
        %v3254 = vsel %vm586, %v3154, 0
        %3256 = vmatpush.msra.mxu0 0.0
        %3257 = vmatpush.msra.mxu0 0.0
        %3258 = vmatpush.msra.mxu0 0.0
        %3259 = vmatpush.msra.mxu0 0.0
        %3260 = vmatpush.msra.mxu0 0.0
        %3261 = vmatpush.msra.mxu0 0.0
        %3262 = vmatpush.msra.mxu0 0.0
        %3263 = vmatpush.msra.mxu0 0.0
        %3264 = vmatpush.msra.mxu0 0.0
        %3265 = vmatpush.msra.mxu0 0.0
        %3266 = vmatpush.msra.mxu0 0.0
        %3267 = vmatpush.msra.mxu0 0.0
        %3268 = vmatpush.msra.mxu0 %v3159
        %3269 = vmatpush.msra.mxu0 %v3158
        %3270 = vmatpush.msra.mxu0 %v3157
        %3271 = vmatpush.msra.mxu0 %v3156
        %3272 = vmatmul.f32.gmra.mxu0 %v3161
        %v3273 = vpop.f32.mrf.mxu0
        %v3274 = vadd.f32 0.0, %v3273
        %3275 = vmatmul.f32.gmra.mxu0 %v3164
        %v3276 = vpop.f32.mrf.mxu0
        %v3277 = vadd.f32 0.0, %v3276
        %3278 = vmatmul.f32.gmra.mxu0 %v3167
        %v3279 = vpop.f32.mrf.mxu0
        %v3280 = vadd.f32 0.0, %v3279
        %3281 = vmatmul.f32.gmra.mxu0 %v3170
        %v3282 = vpop.f32.mrf.mxu0
        %v3283 = vadd.f32 0.0, %v3282
        %3284 = vmatmul.f32.gmra.mxu0 %v3173
        %v3285 = vpop.f32.mrf.mxu0
        %v3286 = vadd.f32 0.0, %v3285
        %3287 = vmatmul.f32.gmra.mxu0 %v3176
        %v3288 = vpop.f32.mrf.mxu0
        %v3289 = vadd.f32 0.0, %v3288
        %3290 = vmatmul.f32.gmra.mxu0 %v3179
        %v3291 = vpop.f32.mrf.mxu0
        %v3292 = vadd.f32 0.0, %v3291
        %3293 = vmatmul.f32.gmra.mxu0 %v3182
        %v3294 = vpop.f32.mrf.mxu0
        %v3295 = vadd.f32 0.0, %v3294
        %3296 = vmatmul.f32.gmra.mxu0 %v3185
        %v3297 = vpop.f32.mrf.mxu0
        %v3298 = vadd.f32 0.0, %v3297
        %3299 = vmatmul.f32.gmra.mxu0 %v3188
        %v3300 = vpop.f32.mrf.mxu0
        %v3301 = vadd.f32 0.0, %v3300
        %3302 = vmatmul.f32.gmra.mxu0 %v3191
        %v3303 = vpop.f32.mrf.mxu0
        %v3304 = vadd.f32 0.0, %v3303
        %3305 = vmatmul.f32.gmra.mxu0 %v3194
        %v3306 = vpop.f32.mrf.mxu0
        %v3307 = vadd.f32 0.0, %v3306
        %3308 = vmatmul.f32.gmra.mxu0 %v3197
        %v3309 = vpop.f32.mrf.mxu0
        %v3310 = vadd.f32 0.0, %v3309
        %3311 = vmatmul.f32.gmra.mxu0 %v3200
        %v3312 = vpop.f32.mrf.mxu0
        %v3313 = vadd.f32 0.0, %v3312
        %3314 = vmatmul.f32.gmra.mxu0 %v3203
        %v3315 = vpop.f32.mrf.mxu0
        %v3316 = vadd.f32 0.0, %v3315
        %3317 = vmatmul.f32.gmra.mxu0 %v3206
        %v3318 = vpop.f32.mrf.mxu0
        %v3319 = vadd.f32 0.0, %v3318
        %3320 = vmatmul.f32.gmra.mxu0 %v3209
        %v3321 = vpop.f32.mrf.mxu0
        %v3322 = vadd.f32 0.0, %v3321
        %3323 = vmatmul.f32.gmra.mxu0 %v3212
        %v3324 = vpop.f32.mrf.mxu0
        %v3325 = vadd.f32 0.0, %v3324
        %3326 = vmatmul.f32.gmra.mxu0 %v3215
        %v3327 = vpop.f32.mrf.mxu0
        %v3328 = vadd.f32 0.0, %v3327
        %3329 = vmatmul.f32.gmra.mxu0 %v3218
        %v3330 = vpop.f32.mrf.mxu0
        %v3331 = vadd.f32 0.0, %v3330
        %3332 = vmatmul.f32.gmra.mxu0 %v3221
        %v3333 = vpop.f32.mrf.mxu0
        %v3334 = vadd.f32 0.0, %v3333
        %3335 = vmatmul.f32.gmra.mxu0 %v3224
        %v3336 = vpop.f32.mrf.mxu0
        %v3337 = vadd.f32 0.0, %v3336
        %3338 = vmatmul.f32.gmra.mxu0 %v3227
        %v3339 = vpop.f32.mrf.mxu0
        %v3340 = vadd.f32 0.0, %v3339
        %3341 = vmatmul.f32.gmra.mxu0 %v3230
        %v3342 = vpop.f32.mrf.mxu0
        %v3343 = vadd.f32 0.0, %v3342
        %3344 = vmatmul.f32.gmra.mxu0 %v3233
        %v3345 = vpop.f32.mrf.mxu0
        %v3346 = vadd.f32 0.0, %v3345
        %3347 = vmatmul.f32.gmra.mxu0 %v3236
        %v3348 = vpop.f32.mrf.mxu0
        %v3349 = vadd.f32 0.0, %v3348
        %3350 = vmatmul.f32.gmra.mxu0 %v3239
        %v3351 = vpop.f32.mrf.mxu0
        %v3352 = vadd.f32 0.0, %v3351
        %3353 = vmatmul.f32.gmra.mxu0 %v3242
        %v3354 = vpop.f32.mrf.mxu0
        %v3355 = vadd.f32 0.0, %v3354
        %3356 = vmatmul.f32.gmra.mxu0 %v3245
        %v3357 = vpop.f32.mrf.mxu0
        %v3358 = vadd.f32 0.0, %v3357
        %3359 = vmatmul.f32.gmra.mxu0 %v3248
        %v3360 = vpop.f32.mrf.mxu0
        %v3361 = vadd.f32 0.0, %v3360
        %3362 = vmatmul.f32.gmra.mxu0 %v3251
        %v3363 = vpop.f32.mrf.mxu0
        %v3364 = vadd.f32 0.0, %v3363
        %3365 = vmatmul.f32.gmra.mxu0 %v3254
        %v3366 = vpop.f32.mrf.mxu0
        %v3367 = vadd.f32 0.0, %v3366
        %3368 = vdwg.mxu0
        %v3369 = vadd.f32 %v3059, %v3274
        %v3370 = vadd.f32 %v3060, %v3277
        %v3371 = vadd.f32 %v3061, %v3280
        %v3372 = vadd.f32 %v3062, %v3283
        %v3373 = vadd.f32 %v3063, %v3286
        %v3374 = vadd.f32 %v3064, %v3289
        %v3375 = vadd.f32 %v3065, %v3292
        %v3376 = vadd.f32 %v3066, %v3295
        %v3377 = vadd.f32 %v3067, %v3298
        %v3378 = vadd.f32 %v3068, %v3301
        %v3379 = vadd.f32 %v3069, %v3304
        %v3380 = vadd.f32 %v3070, %v3307
        %v3381 = vadd.f32 %v3071, %v3310
        %v3382 = vadd.f32 %v3072, %v3313
        %v3383 = vadd.f32 %v3073, %v3316
        %v3384 = vadd.f32 %v3074, %v3319
        %v3385 = vadd.f32 %v3075, %v3322
        %v3386 = vadd.f32 %v3076, %v3325
        %v3387 = vadd.f32 %v3077, %v3328
        %v3388 = vadd.f32 %v3078, %v3331
        %v3389 = vadd.f32 %v3079, %v3334
        %v3390 = vadd.f32 %v3080, %v3337
        %v3391 = vadd.f32 %v3081, %v3340
        %v3392 = vadd.f32 %v3082, %v3343
        %v3393 = vadd.f32 %v3083, %v3346
        %v3394 = vadd.f32 %v3084, %v3349
        %v3395 = vadd.f32 %v3085, %v3352
        %v3396 = vadd.f32 %v3086, %v3355
        %v3397 = vadd.f32 %v3087, %v3358
        %v3398 = vadd.f32 %v3088, %v3361
        %v3399 = vadd.f32 %v3089, %v3364
        %v3400 = vadd.f32 %v3090, %v3367
        %v3401 = vld [vmem:[#allocation2 + $0x27] sm:$0xff]
        %v3402 = vld [vmem:[#allocation2 + $0x2f] sm:$0xff]
        %v3403 = vld [vmem:[#allocation2 + $0x37] sm:$0xff]
        %v3404 = vld [vmem:[#allocation2 + $0x3f] sm:$0xff]
        %v3405 = vld [vmem:[#allocation2 + $0x47] sm:$0xff]
        %v3406 = vld [vmem:[#allocation2 + $0x4f] sm:$0xff]
        %v3407 = vld [vmem:[#allocation2 + $0x57] sm:$0xff]
        %v3408 = vld [vmem:[#allocation2 + $0x5f] sm:$0xff]
        %v3409 = vld [vmem:[#allocation2 + $0x67] sm:$0xff]
        %v3410 = vld [vmem:[#allocation2 + $0x6f] sm:$0xff]
        %v3411 = vld [vmem:[#allocation2 + $0x77] sm:$0xff]
        %v3412 = vld [vmem:[#allocation2 + $0x7f] sm:$0xff]
        %v3413 = vld [vmem:[#allocation2 + $0x87] sm:$0xff]
        %v3414 = vld [vmem:[#allocation2 + $0x8f] sm:$0xff]
        %v3415 = vld [vmem:[#allocation2 + $0x97] sm:$0xff]
        %v3416 = vld [vmem:[#allocation2 + $0x9f] sm:$0xff]
        %v3417 = vld [vmem:[#allocation2 + $0xa7] sm:$0xff]
        %v3418 = vld [vmem:[#allocation2 + $0xaf] sm:$0xff]
        %v3419 = vld [vmem:[#allocation2 + $0xb7] sm:$0xff]
        %v3420 = vld [vmem:[#allocation2 + $0xbf] sm:$0xff]
        %v3421 = vld [vmem:[#allocation2 + $0xc7] sm:$0xff]
        %v3422 = vld [vmem:[#allocation2 + $0xcf] sm:$0xff]
        %v3423 = vld [vmem:[#allocation2 + $0xd7] sm:$0xff]
        %v3424 = vld [vmem:[#allocation2 + $0xdf] sm:$0xff]
        %v3425 = vld [vmem:[#allocation2 + $0xe7] sm:$0xff]
        %v3426 = vld [vmem:[#allocation2 + $0xef] sm:$0xff]
        %v3427 = vld [vmem:[#allocation2 + $0xf7] sm:$0xff]
        %v3428 = vld [vmem:[#allocation2 + $0xff] sm:$0xff]
        %v3429 = vld [vmem:[#allocation2 + $0x107] sm:$0xff]
        %v3430 = vld [vmem:[#allocation2 + $0x10f] sm:$0xff]
        %v3431 = vld [vmem:[#allocation2 + $0x117] sm:$0xff]
        %v3432 = vld [vmem:[#allocation2 + $0x11f] sm:$0xff]
        %v3433 = vmul.f32 %v3401, %v1106
        %v3434 = vmul.f32 %v3402, %v1107
        %v3435 = vmul.f32 %v3403, %v1108
        %v3436 = vmul.f32 %v3404, %v1109
        %v3437 = vmul.f32 %v3405, %v1110
        %v3438 = vmul.f32 %v3406, %v1111
        %v3439 = vmul.f32 %v3407, %v1112
        %v3440 = vmul.f32 %v3408, %v1113
        %v3441 = vmul.f32 %v3409, %v1114
        %v3442 = vmul.f32 %v3410, %v1115
        %v3443 = vmul.f32 %v3411, %v1116
        %v3444 = vmul.f32 %v3412, %v1117
        %v3445 = vmul.f32 %v3413, %v1118
        %v3446 = vmul.f32 %v3414, %v1119
        %v3447 = vmul.f32 %v3415, %v1120
        %v3448 = vmul.f32 %v3416, %v1121
        %v3449 = vmul.f32 %v3417, %v1122
        %v3450 = vmul.f32 %v3418, %v1123
        %v3451 = vmul.f32 %v3419, %v1124
        %v3452 = vmul.f32 %v3420, %v1125
        %v3453 = vmul.f32 %v3421, %v1126
        %v3454 = vmul.f32 %v3422, %v1127
        %v3455 = vmul.f32 %v3423, %v1128
        %v3456 = vmul.f32 %v3424, %v1129
        %v3457 = vmul.f32 %v3425, %v1130
        %v3458 = vmul.f32 %v3426, %v1131
        %v3459 = vmul.f32 %v3427, %v1132
        %v3460 = vmul.f32 %v3428, %v1133
        %v3461 = vmul.f32 %v3429, %v1134
        %v3462 = vmul.f32 %v3430, %v1135
        %v3463 = vmul.f32 %v3431, %v1136
        %v3464 = vmul.f32 %v3432, %v1137
        %s3465 = scalar_lea.vmem %s5, 192
        %v3466 = vld [vmem:[%s3465] sm:$0xff]
        %v3467 = vld [vmem:[%s3465 + $0x8] sm:$0xff]
        %v3468 = vld [vmem:[%s3465 + $0x10] sm:$0xff]
        %v3469 = vld [vmem:[%s3465 + $0x18] sm:$0xff]
        %v3471 = vsel %vm586, %v3433, 0
        %v3474 = vsel %vm586, %v3434, 0
        %v3477 = vsel %vm586, %v3435, 0
        %v3480 = vsel %vm586, %v3436, 0
        %v3483 = vsel %vm586, %v3437, 0
        %v3486 = vsel %vm586, %v3438, 0
        %v3489 = vsel %vm586, %v3439, 0
        %v3492 = vsel %vm586, %v3440, 0
        %v3495 = vsel %vm586, %v3441, 0
        %v3498 = vsel %vm586, %v3442, 0
        %v3501 = vsel %vm586, %v3443, 0
        %v3504 = vsel %vm586, %v3444, 0
        %v3507 = vsel %vm586, %v3445, 0
        %v3510 = vsel %vm586, %v3446, 0
        %v3513 = vsel %vm586, %v3447, 0
        %v3516 = vsel %vm586, %v3448, 0
        %v3519 = vsel %vm586, %v3449, 0
        %v3522 = vsel %vm586, %v3450, 0
        %v3525 = vsel %vm586, %v3451, 0
        %v3528 = vsel %vm586, %v3452, 0
        %v3531 = vsel %vm586, %v3453, 0
        %v3534 = vsel %vm586, %v3454, 0
        %v3537 = vsel %vm586, %v3455, 0
        %v3540 = vsel %vm586, %v3456, 0
        %v3543 = vsel %vm586, %v3457, 0
        %v3546 = vsel %vm586, %v3458, 0
        %v3549 = vsel %vm586, %v3459, 0
        %v3552 = vsel %vm586, %v3460, 0
        %v3555 = vsel %vm586, %v3461, 0
        %v3558 = vsel %vm586, %v3462, 0
        %v3561 = vsel %vm586, %v3463, 0
        %v3564 = vsel %vm586, %v3464, 0
        %3566 = vmatpush.msra.mxu0 0.0
        %3567 = vmatpush.msra.mxu0 0.0
        %3568 = vmatpush.msra.mxu0 0.0
        %3569 = vmatpush.msra.mxu0 0.0
        %3570 = vmatpush.msra.mxu0 0.0
        %3571 = vmatpush.msra.mxu0 0.0
        %3572 = vmatpush.msra.mxu0 0.0
        %3573 = vmatpush.msra.mxu0 0.0
        %3574 = vmatpush.msra.mxu0 0.0
        %3575 = vmatpush.msra.mxu0 0.0
        %3576 = vmatpush.msra.mxu0 0.0
        %3577 = vmatpush.msra.mxu0 0.0
        %3578 = vmatpush.msra.mxu0 %v3469
        %3579 = vmatpush.msra.mxu0 %v3468
        %3580 = vmatpush.msra.mxu0 %v3467
        %3581 = vmatpush.msra.mxu0 %v3466
        %3582 = vmatmul.f32.gmra.mxu0 %v3471
        %v3583 = vpop.f32.mrf.mxu0
        %v3584 = vadd.f32 0.0, %v3583
        %3585 = vmatmul.f32.gmra.mxu0 %v3474
        %v3586 = vpop.f32.mrf.mxu0
        %v3587 = vadd.f32 0.0, %v3586
        %3588 = vmatmul.f32.gmra.mxu0 %v3477
        %v3589 = vpop.f32.mrf.mxu0
        %v3590 = vadd.f32 0.0, %v3589
        %3591 = vmatmul.f32.gmra.mxu0 %v3480
        %v3592 = vpop.f32.mrf.mxu0
        %v3593 = vadd.f32 0.0, %v3592
        %3594 = vmatmul.f32.gmra.mxu0 %v3483
        %v3595 = vpop.f32.mrf.mxu0
        %v3596 = vadd.f32 0.0, %v3595
        %3597 = vmatmul.f32.gmra.mxu0 %v3486
        %v3598 = vpop.f32.mrf.mxu0
        %v3599 = vadd.f32 0.0, %v3598
        %3600 = vmatmul.f32.gmra.mxu0 %v3489
        %v3601 = vpop.f32.mrf.mxu0
        %v3602 = vadd.f32 0.0, %v3601
        %3603 = vmatmul.f32.gmra.mxu0 %v3492
        %v3604 = vpop.f32.mrf.mxu0
        %v3605 = vadd.f32 0.0, %v3604
        %3606 = vmatmul.f32.gmra.mxu0 %v3495
        %v3607 = vpop.f32.mrf.mxu0
        %v3608 = vadd.f32 0.0, %v3607
        %3609 = vmatmul.f32.gmra.mxu0 %v3498
        %v3610 = vpop.f32.mrf.mxu0
        %v3611 = vadd.f32 0.0, %v3610
        %3612 = vmatmul.f32.gmra.mxu0 %v3501
        %v3613 = vpop.f32.mrf.mxu0
        %v3614 = vadd.f32 0.0, %v3613
        %3615 = vmatmul.f32.gmra.mxu0 %v3504
        %v3616 = vpop.f32.mrf.mxu0
        %v3617 = vadd.f32 0.0, %v3616
        %3618 = vmatmul.f32.gmra.mxu0 %v3507
        %v3619 = vpop.f32.mrf.mxu0
        %v3620 = vadd.f32 0.0, %v3619
        %3621 = vmatmul.f32.gmra.mxu0 %v3510
        %v3622 = vpop.f32.mrf.mxu0
        %v3623 = vadd.f32 0.0, %v3622
        %3624 = vmatmul.f32.gmra.mxu0 %v3513
        %v3625 = vpop.f32.mrf.mxu0
        %v3626 = vadd.f32 0.0, %v3625
        %3627 = vmatmul.f32.gmra.mxu0 %v3516
        %v3628 = vpop.f32.mrf.mxu0
        %v3629 = vadd.f32 0.0, %v3628
        %3630 = vmatmul.f32.gmra.mxu0 %v3519
        %v3631 = vpop.f32.mrf.mxu0
        %v3632 = vadd.f32 0.0, %v3631
        %3633 = vmatmul.f32.gmra.mxu0 %v3522
        %v3634 = vpop.f32.mrf.mxu0
        %v3635 = vadd.f32 0.0, %v3634
        %3636 = vmatmul.f32.gmra.mxu0 %v3525
        %v3637 = vpop.f32.mrf.mxu0
        %v3638 = vadd.f32 0.0, %v3637
        %3639 = vmatmul.f32.gmra.mxu0 %v3528
        %v3640 = vpop.f32.mrf.mxu0
        %v3641 = vadd.f32 0.0, %v3640
        %3642 = vmatmul.f32.gmra.mxu0 %v3531
        %v3643 = vpop.f32.mrf.mxu0
        %v3644 = vadd.f32 0.0, %v3643
        %3645 = vmatmul.f32.gmra.mxu0 %v3534
        %v3646 = vpop.f32.mrf.mxu0
        %v3647 = vadd.f32 0.0, %v3646
        %3648 = vmatmul.f32.gmra.mxu0 %v3537
        %v3649 = vpop.f32.mrf.mxu0
        %v3650 = vadd.f32 0.0, %v3649
        %3651 = vmatmul.f32.gmra.mxu0 %v3540
        %v3652 = vpop.f32.mrf.mxu0
        %v3653 = vadd.f32 0.0, %v3652
        %3654 = vmatmul.f32.gmra.mxu0 %v3543
        %v3655 = vpop.f32.mrf.mxu0
        %v3656 = vadd.f32 0.0, %v3655
        %3657 = vmatmul.f32.gmra.mxu0 %v3546
        %v3658 = vpop.f32.mrf.mxu0
        %v3659 = vadd.f32 0.0, %v3658
        %3660 = vmatmul.f32.gmra.mxu0 %v3549
        %v3661 = vpop.f32.mrf.mxu0
        %v3662 = vadd.f32 0.0, %v3661
        %3663 = vmatmul.f32.gmra.mxu0 %v3552
        %v3664 = vpop.f32.mrf.mxu0
        %v3665 = vadd.f32 0.0, %v3664
        %3666 = vmatmul.f32.gmra.mxu0 %v3555
        %v3667 = vpop.f32.mrf.mxu0
        %v3668 = vadd.f32 0.0, %v3667
        %3669 = vmatmul.f32.gmra.mxu0 %v3558
        %v3670 = vpop.f32.mrf.mxu0
        %v3671 = vadd.f32 0.0, %v3670
        %3672 = vmatmul.f32.gmra.mxu0 %v3561
        %v3673 = vpop.f32.mrf.mxu0
        %v3674 = vadd.f32 0.0, %v3673
        %3675 = vmatmul.f32.gmra.mxu0 %v3564
        %v3676 = vpop.f32.mrf.mxu0
        %v3677 = vadd.f32 0.0, %v3676
        %3678 = vdwg.mxu0
        %v3679 = vadd.f32 %v3369, %v3584
        %v3680 = vadd.f32 %v3370, %v3587
        %v3681 = vadd.f32 %v3371, %v3590
        %v3682 = vadd.f32 %v3372, %v3593
        %v3683 = vadd.f32 %v3373, %v3596
        %v3684 = vadd.f32 %v3374, %v3599
        %v3685 = vadd.f32 %v3375, %v3602
        %v3686 = vadd.f32 %v3376, %v3605
        %v3687 = vadd.f32 %v3377, %v3608
        %v3688 = vadd.f32 %v3378, %v3611
        %v3689 = vadd.f32 %v3379, %v3614
        %v3690 = vadd.f32 %v3380, %v3617
        %v3691 = vadd.f32 %v3381, %v3620
        %v3692 = vadd.f32 %v3382, %v3623
        %v3693 = vadd.f32 %v3383, %v3626
        %v3694 = vadd.f32 %v3384, %v3629
        %v3695 = vadd.f32 %v3385, %v3632
        %v3696 = vadd.f32 %v3386, %v3635
        %v3697 = vadd.f32 %v3387, %v3638
        %v3698 = vadd.f32 %v3388, %v3641
        %v3699 = vadd.f32 %v3389, %v3644
        %v3700 = vadd.f32 %v3390, %v3647
        %v3701 = vadd.f32 %v3391, %v3650
        %v3702 = vadd.f32 %v3392, %v3653
        %v3703 = vadd.f32 %v3393, %v3656
        %v3704 = vadd.f32 %v3394, %v3659
        %v3705 = vadd.f32 %v3395, %v3662
        %v3706 = vadd.f32 %v3396, %v3665
        %v3707 = vadd.f32 %v3397, %v3668
        %v3708 = vadd.f32 %v3398, %v3671
        %v3709 = vadd.f32 %v3399, %v3674
        %v3710 = vadd.f32 %v3400, %v3677
        %v3711 = vld [vmem:[#allocation2 + $0x28] sm:$0xff]
        %v3712 = vld [vmem:[#allocation2 + $0x30] sm:$0xff]
        %v3713 = vld [vmem:[#allocation2 + $0x38] sm:$0xff]
        %v3714 = vld [vmem:[#allocation2 + $0x40] sm:$0xff]
        %v3715 = vld [vmem:[#allocation2 + $0x48] sm:$0xff]
        %v3716 = vld [vmem:[#allocation2 + $0x50] sm:$0xff]
        %v3717 = vld [vmem:[#allocation2 + $0x58] sm:$0xff]
        %v3718 = vld [vmem:[#allocation2 + $0x60] sm:$0xff]
        %v3719 = vld [vmem:[#allocation2 + $0x68] sm:$0xff]
        %v3720 = vld [vmem:[#allocation2 + $0x70] sm:$0xff]
        %v3721 = vld [vmem:[#allocation2 + $0x78] sm:$0xff]
        %v3722 = vld [vmem:[#allocation2 + $0x80] sm:$0xff]
        %v3723 = vld [vmem:[#allocation2 + $0x88] sm:$0xff]
        %v3724 = vld [vmem:[#allocation2 + $0x90] sm:$0xff]
        %v3725 = vld [vmem:[#allocation2 + $0x98] sm:$0xff]
        %v3726 = vld [vmem:[#allocation2 + $0xa0] sm:$0xff]
        %v3727 = vld [vmem:[#allocation2 + $0xa8] sm:$0xff]
        %v3728 = vld [vmem:[#allocation2 + $0xb0] sm:$0xff]
        %v3729 = vld [vmem:[#allocation2 + $0xb8] sm:$0xff]
        %v3730 = vld [vmem:[#allocation2 + $0xc0] sm:$0xff]
        %v3731 = vld [vmem:[#allocation2 + $0xc8] sm:$0xff]
        %v3732 = vld [vmem:[#allocation2 + $0xd0] sm:$0xff]
        %v3733 = vld [vmem:[#allocation2 + $0xd8] sm:$0xff]
        %v3734 = vld [vmem:[#allocation2 + $0xe0] sm:$0xff]
        %v3735 = vld [vmem:[#allocation2 + $0xe8] sm:$0xff]
        %v3736 = vld [vmem:[#allocation2 + $0xf0] sm:$0xff]
        %v3737 = vld [vmem:[#allocation2 + $0xf8] sm:$0xff]
        %v3738 = vld [vmem:[#allocation2 + $0x100] sm:$0xff]
        %v3739 = vld [vmem:[#allocation2 + $0x108] sm:$0xff]
        %v3740 = vld [vmem:[#allocation2 + $0x110] sm:$0xff]
        %v3741 = vld [vmem:[#allocation2 + $0x118] sm:$0xff]
        %v3742 = vld [vmem:[#allocation2 + $0x120] sm:$0xff]
        %s3743 = scalar_lea.vmem %s5, 224
        %v3744 = vld [vmem:[%s3743] sm:$0xff]
        %v3745 = vld [vmem:[%s3743 + $0x8] sm:$0xff]
        %v3746 = vld [vmem:[%s3743 + $0x10] sm:$0xff]
        %v3747 = vld [vmem:[%s3743 + $0x18] sm:$0xff]
        %v3749 = vsel %vm586, %v3711, 0
        %v3752 = vsel %vm586, %v3712, 0
        %v3755 = vsel %vm586, %v3713, 0
        %v3758 = vsel %vm586, %v3714, 0
        %v3761 = vsel %vm586, %v3715, 0
        %v3764 = vsel %vm586, %v3716, 0
        %v3767 = vsel %vm586, %v3717, 0
        %v3770 = vsel %vm586, %v3718, 0
        %v3773 = vsel %vm586, %v3719, 0
        %v3776 = vsel %vm586, %v3720, 0
        %v3779 = vsel %vm586, %v3721, 0
        %v3782 = vsel %vm586, %v3722, 0
        %v3785 = vsel %vm586, %v3723, 0
        %v3788 = vsel %vm586, %v3724, 0
        %v3791 = vsel %vm586, %v3725, 0
        %v3794 = vsel %vm586, %v3726, 0
        %v3797 = vsel %vm586, %v3727, 0
        %v3800 = vsel %vm586, %v3728, 0
        %v3803 = vsel %vm586, %v3729, 0
        %v3806 = vsel %vm586, %v3730, 0
        %v3809 = vsel %vm586, %v3731, 0
        %v3812 = vsel %vm586, %v3732, 0
        %v3815 = vsel %vm586, %v3733, 0
        %v3818 = vsel %vm586, %v3734, 0
        %v3821 = vsel %vm586, %v3735, 0
        %v3824 = vsel %vm586, %v3736, 0
        %v3827 = vsel %vm586, %v3737, 0
        %v3830 = vsel %vm586, %v3738, 0
        %v3833 = vsel %vm586, %v3739, 0
        %v3836 = vsel %vm586, %v3740, 0
        %v3839 = vsel %vm586, %v3741, 0
        %v3842 = vsel %vm586, %v3742, 0
        %3844 = vmatpush.msra.mxu0 0.0
        %3845 = vmatpush.msra.mxu0 0.0
        %3846 = vmatpush.msra.mxu0 0.0
        %3847 = vmatpush.msra.mxu0 0.0
        %3848 = vmatpush.msra.mxu0 0.0
        %3849 = vmatpush.msra.mxu0 0.0
        %3850 = vmatpush.msra.mxu0 0.0
        %3851 = vmatpush.msra.mxu0 0.0
        %3852 = vmatpush.msra.mxu0 0.0
        %3853 = vmatpush.msra.mxu0 0.0
        %3854 = vmatpush.msra.mxu0 0.0
        %3855 = vmatpush.msra.mxu0 0.0
        %3856 = vmatpush.msra.mxu0 %v3747
        %3857 = vmatpush.msra.mxu0 %v3746
        %3858 = vmatpush.msra.mxu0 %v3745
        %3859 = vmatpush.msra.mxu0 %v3744
        %3860 = vmatmul.f32.gmra.mxu0 %v3749
        %v3861 = vpop.f32.mrf.mxu0
        %v3862 = vadd.f32 0.0, %v3861
        %3863 = vmatmul.f32.gmra.mxu0 %v3752
        %v3864 = vpop.f32.mrf.mxu0
        %v3865 = vadd.f32 0.0, %v3864
        %3866 = vmatmul.f32.gmra.mxu0 %v3755
        %v3867 = vpop.f32.mrf.mxu0
        %v3868 = vadd.f32 0.0, %v3867
        %3869 = vmatmul.f32.gmra.mxu0 %v3758
        %v3870 = vpop.f32.mrf.mxu0
        %v3871 = vadd.f32 0.0, %v3870
        %3872 = vmatmul.f32.gmra.mxu0 %v3761
        %v3873 = vpop.f32.mrf.mxu0
        %v3874 = vadd.f32 0.0, %v3873
        %3875 = vmatmul.f32.gmra.mxu0 %v3764
        %v3876 = vpop.f32.mrf.mxu0
        %v3877 = vadd.f32 0.0, %v3876
        %3878 = vmatmul.f32.gmra.mxu0 %v3767
        %v3879 = vpop.f32.mrf.mxu0
        %v3880 = vadd.f32 0.0, %v3879
        %3881 = vmatmul.f32.gmra.mxu0 %v3770
        %v3882 = vpop.f32.mrf.mxu0
        %v3883 = vadd.f32 0.0, %v3882
        %3884 = vmatmul.f32.gmra.mxu0 %v3773
        %v3885 = vpop.f32.mrf.mxu0
        %v3886 = vadd.f32 0.0, %v3885
        %3887 = vmatmul.f32.gmra.mxu0 %v3776
        %v3888 = vpop.f32.mrf.mxu0
        %v3889 = vadd.f32 0.0, %v3888
        %3890 = vmatmul.f32.gmra.mxu0 %v3779
        %v3891 = vpop.f32.mrf.mxu0
        %v3892 = vadd.f32 0.0, %v3891
        %3893 = vmatmul.f32.gmra.mxu0 %v3782
        %v3894 = vpop.f32.mrf.mxu0
        %v3895 = vadd.f32 0.0, %v3894
        %3896 = vmatmul.f32.gmra.mxu0 %v3785
        %v3897 = vpop.f32.mrf.mxu0
        %v3898 = vadd.f32 0.0, %v3897
        %3899 = vmatmul.f32.gmra.mxu0 %v3788
        %v3900 = vpop.f32.mrf.mxu0
        %v3901 = vadd.f32 0.0, %v3900
        %3902 = vmatmul.f32.gmra.mxu0 %v3791
        %v3903 = vpop.f32.mrf.mxu0
        %v3904 = vadd.f32 0.0, %v3903
        %3905 = vmatmul.f32.gmra.mxu0 %v3794
        %v3906 = vpop.f32.mrf.mxu0
        %v3907 = vadd.f32 0.0, %v3906
        %3908 = vmatmul.f32.gmra.mxu0 %v3797
        %v3909 = vpop.f32.mrf.mxu0
        %v3910 = vadd.f32 0.0, %v3909
        %3911 = vmatmul.f32.gmra.mxu0 %v3800
        %v3912 = vpop.f32.mrf.mxu0
        %v3913 = vadd.f32 0.0, %v3912
        %3914 = vmatmul.f32.gmra.mxu0 %v3803
        %v3915 = vpop.f32.mrf.mxu0
        %v3916 = vadd.f32 0.0, %v3915
        %3917 = vmatmul.f32.gmra.mxu0 %v3806
        %v3918 = vpop.f32.mrf.mxu0
        %v3919 = vadd.f32 0.0, %v3918
        %3920 = vmatmul.f32.gmra.mxu0 %v3809
        %v3921 = vpop.f32.mrf.mxu0
        %v3922 = vadd.f32 0.0, %v3921
        %3923 = vmatmul.f32.gmra.mxu0 %v3812
        %v3924 = vpop.f32.mrf.mxu0
        %v3925 = vadd.f32 0.0, %v3924
        %3926 = vmatmul.f32.gmra.mxu0 %v3815
        %v3927 = vpop.f32.mrf.mxu0
        %v3928 = vadd.f32 0.0, %v3927
        %3929 = vmatmul.f32.gmra.mxu0 %v3818
        %v3930 = vpop.f32.mrf.mxu0
        %v3931 = vadd.f32 0.0, %v3930
        %3932 = vmatmul.f32.gmra.mxu0 %v3821
        %v3933 = vpop.f32.mrf.mxu0
        %v3934 = vadd.f32 0.0, %v3933
        %3935 = vmatmul.f32.gmra.mxu0 %v3824
        %v3936 = vpop.f32.mrf.mxu0
        %v3937 = vadd.f32 0.0, %v3936
        %3938 = vmatmul.f32.gmra.mxu0 %v3827
        %v3939 = vpop.f32.mrf.mxu0
        %v3940 = vadd.f32 0.0, %v3939
        %3941 = vmatmul.f32.gmra.mxu0 %v3830
        %v3942 = vpop.f32.mrf.mxu0
        %v3943 = vadd.f32 0.0, %v3942
        %3944 = vmatmul.f32.gmra.mxu0 %v3833
        %v3945 = vpop.f32.mrf.mxu0
        %v3946 = vadd.f32 0.0, %v3945
        %3947 = vmatmul.f32.gmra.mxu0 %v3836
        %v3948 = vpop.f32.mrf.mxu0
        %v3949 = vadd.f32 0.0, %v3948
        %3950 = vmatmul.f32.gmra.mxu0 %v3839
        %v3951 = vpop.f32.mrf.mxu0
        %v3952 = vadd.f32 0.0, %v3951
        %3953 = vmatmul.f32.gmra.mxu0 %v3842
        %v3954 = vpop.f32.mrf.mxu0
        %v3955 = vadd.f32 0.0, %v3954
        %3956 = vdwg.mxu0
        %v3957 = vadd.f32 %v3679, %v3862
        %v3958 = vadd.f32 %v3680, %v3865
        %v3959 = vadd.f32 %v3681, %v3868
        %v3960 = vadd.f32 %v3682, %v3871
        %v3961 = vadd.f32 %v3683, %v3874
        %v3962 = vadd.f32 %v3684, %v3877
        %v3963 = vadd.f32 %v3685, %v3880
        %v3964 = vadd.f32 %v3686, %v3883
        %v3965 = vadd.f32 %v3687, %v3886
        %v3966 = vadd.f32 %v3688, %v3889
        %v3967 = vadd.f32 %v3689, %v3892
        %v3968 = vadd.f32 %v3690, %v3895
        %v3969 = vadd.f32 %v3691, %v3898
        %v3970 = vadd.f32 %v3692, %v3901
        %v3971 = vadd.f32 %v3693, %v3904
        %v3972 = vadd.f32 %v3694, %v3907
        %v3973 = vadd.f32 %v3695, %v3910
        %v3974 = vadd.f32 %v3696, %v3913
        %v3975 = vadd.f32 %v3697, %v3916
        %v3976 = vadd.f32 %v3698, %v3919
        %v3977 = vadd.f32 %v3699, %v3922
        %v3978 = vadd.f32 %v3700, %v3925
        %v3979 = vadd.f32 %v3701, %v3928
        %v3980 = vadd.f32 %v3702, %v3931
        %v3981 = vadd.f32 %v3703, %v3934
        %v3982 = vadd.f32 %v3704, %v3937
        %v3983 = vadd.f32 %v3705, %v3940
        %v3984 = vadd.f32 %v3706, %v3943
        %v3985 = vadd.f32 %v3707, %v3946
        %v3986 = vadd.f32 %v3708, %v3949
        %v3987 = vadd.f32 %v3709, %v3952
        %v3988 = vadd.f32 %v3710, %v3955
        %v3989 = vld [vmem:[#allocation2 + $0x29] sm:$0xff]
        %v3990 = vld [vmem:[#allocation2 + $0x31] sm:$0xff]
        %v3991 = vld [vmem:[#allocation2 + $0x39] sm:$0xff]
        %v3992 = vld [vmem:[#allocation2 + $0x41] sm:$0xff]
        %v3993 = vld [vmem:[#allocation2 + $0x49] sm:$0xff]
        %v3994 = vld [vmem:[#allocation2 + $0x51] sm:$0xff]
        %v3995 = vld [vmem:[#allocation2 + $0x59] sm:$0xff]
        %v3996 = vld [vmem:[#allocation2 + $0x61] sm:$0xff]
        %v3997 = vld [vmem:[#allocation2 + $0x69] sm:$0xff]
        %v3998 = vld [vmem:[#allocation2 + $0x71] sm:$0xff]
        %v3999 = vld [vmem:[#allocation2 + $0x79] sm:$0xff]
        %v4000 = vld [vmem:[#allocation2 + $0x81] sm:$0xff]
        %v4001 = vld [vmem:[#allocation2 + $0x89] sm:$0xff]
        %v4002 = vld [vmem:[#allocation2 + $0x91] sm:$0xff]
        %v4003 = vld [vmem:[#allocation2 + $0x99] sm:$0xff]
        %v4004 = vld [vmem:[#allocation2 + $0xa1] sm:$0xff]
        %v4005 = vld [vmem:[#allocation2 + $0xa9] sm:$0xff]
        %v4006 = vld [vmem:[#allocation2 + $0xb1] sm:$0xff]
        %v4007 = vld [vmem:[#allocation2 + $0xb9] sm:$0xff]
        %v4008 = vld [vmem:[#allocation2 + $0xc1] sm:$0xff]
        %v4009 = vld [vmem:[#allocation2 + $0xc9] sm:$0xff]
        %v4010 = vld [vmem:[#allocation2 + $0xd1] sm:$0xff]
        %v4011 = vld [vmem:[#allocation2 + $0xd9] sm:$0xff]
        %v4012 = vld [vmem:[#allocation2 + $0xe1] sm:$0xff]
        %v4013 = vld [vmem:[#allocation2 + $0xe9] sm:$0xff]
        %v4014 = vld [vmem:[#allocation2 + $0xf1] sm:$0xff]
        %v4015 = vld [vmem:[#allocation2 + $0xf9] sm:$0xff]
        %v4016 = vld [vmem:[#allocation2 + $0x101] sm:$0xff]
        %v4017 = vld [vmem:[#allocation2 + $0x109] sm:$0xff]
        %v4018 = vld [vmem:[#allocation2 + $0x111] sm:$0xff]
        %v4019 = vld [vmem:[#allocation2 + $0x119] sm:$0xff]
        %v4020 = vld [vmem:[#allocation2 + $0x121] sm:$0xff]
        %v4021 = vmul.f32 %v3989, %v1202
        %v4022 = vmul.f32 %v3990, %v1203
        %v4023 = vmul.f32 %v3991, %v1204
        %v4024 = vmul.f32 %v3992, %v1205
        %v4025 = vmul.f32 %v3993, %v1206
        %v4026 = vmul.f32 %v3994, %v1207
        %v4027 = vmul.f32 %v3995, %v1208
        %v4028 = vmul.f32 %v3996, %v1209
        %v4029 = vmul.f32 %v3997, %v1210
        %v4030 = vmul.f32 %v3998, %v1211
        %v4031 = vmul.f32 %v3999, %v1212
        %v4032 = vmul.f32 %v4000, %v1213
        %v4033 = vmul.f32 %v4001, %v1214
        %v4034 = vmul.f32 %v4002, %v1215
        %v4035 = vmul.f32 %v4003, %v1216
        %v4036 = vmul.f32 %v4004, %v1217
        %v4037 = vmul.f32 %v4005, %v1218
        %v4038 = vmul.f32 %v4006, %v1219
        %v4039 = vmul.f32 %v4007, %v1220
        %v4040 = vmul.f32 %v4008, %v1221
        %v4041 = vmul.f32 %v4009, %v1222
        %v4042 = vmul.f32 %v4010, %v1223
        %v4043 = vmul.f32 %v4011, %v1224
        %v4044 = vmul.f32 %v4012, %v1225
        %v4045 = vmul.f32 %v4013, %v1226
        %v4046 = vmul.f32 %v4014, %v1227
        %v4047 = vmul.f32 %v4015, %v1228
        %v4048 = vmul.f32 %v4016, %v1229
        %v4049 = vmul.f32 %v4017, %v1230
        %v4050 = vmul.f32 %v4018, %v1231
        %v4051 = vmul.f32 %v4019, %v1232
        %v4052 = vmul.f32 %v4020, %v1233
        %s4053 = scalar_lea.vmem %s5, 256
        %v4054 = vld [vmem:[%s4053] sm:$0xff]
        %v4055 = vld [vmem:[%s4053 + $0x8] sm:$0xff]
        %v4056 = vld [vmem:[%s4053 + $0x10] sm:$0xff]
        %v4057 = vld [vmem:[%s4053 + $0x18] sm:$0xff]
        %v4059 = vsel %vm586, %v4021, 0
        %v4062 = vsel %vm586, %v4022, 0
        %v4065 = vsel %vm586, %v4023, 0
        %v4068 = vsel %vm586, %v4024, 0
        %v4071 = vsel %vm586, %v4025, 0
        %v4074 = vsel %vm586, %v4026, 0
        %v4077 = vsel %vm586, %v4027, 0
        %v4080 = vsel %vm586, %v4028, 0
        %v4083 = vsel %vm586, %v4029, 0
        %v4086 = vsel %vm586, %v4030, 0
        %v4089 = vsel %vm586, %v4031, 0
        %v4092 = vsel %vm586, %v4032, 0
        %v4095 = vsel %vm586, %v4033, 0
        %v4098 = vsel %vm586, %v4034, 0
        %v4101 = vsel %vm586, %v4035, 0
        %v4104 = vsel %vm586, %v4036, 0
        %v4107 = vsel %vm586, %v4037, 0
        %v4110 = vsel %vm586, %v4038, 0
        %v4113 = vsel %vm586, %v4039, 0
        %v4116 = vsel %vm586, %v4040, 0
        %v4119 = vsel %vm586, %v4041, 0
        %v4122 = vsel %vm586, %v4042, 0
        %v4125 = vsel %vm586, %v4043, 0
        %v4128 = vsel %vm586, %v4044, 0
        %v4131 = vsel %vm586, %v4045, 0
        %v4134 = vsel %vm586, %v4046, 0
        %v4137 = vsel %vm586, %v4047, 0
        %v4140 = vsel %vm586, %v4048, 0
        %v4143 = vsel %vm586, %v4049, 0
        %v4146 = vsel %vm586, %v4050, 0
        %v4149 = vsel %vm586, %v4051, 0
        %v4152 = vsel %vm586, %v4052, 0
        %4154 = vmatpush.msra.mxu0 0.0
        %4155 = vmatpush.msra.mxu0 0.0
        %4156 = vmatpush.msra.mxu0 0.0
        %4157 = vmatpush.msra.mxu0 0.0
        %4158 = vmatpush.msra.mxu0 0.0
        %4159 = vmatpush.msra.mxu0 0.0
        %4160 = vmatpush.msra.mxu0 0.0
        %4161 = vmatpush.msra.mxu0 0.0
        %4162 = vmatpush.msra.mxu0 0.0
        %4163 = vmatpush.msra.mxu0 0.0
        %4164 = vmatpush.msra.mxu0 0.0
        %4165 = vmatpush.msra.mxu0 0.0
        %4166 = vmatpush.msra.mxu0 %v4057
        %4167 = vmatpush.msra.mxu0 %v4056
        %4168 = vmatpush.msra.mxu0 %v4055
        %4169 = vmatpush.msra.mxu0 %v4054
        %4170 = vmatmul.f32.gmra.mxu0 %v4059
        %v4171 = vpop.f32.mrf.mxu0
        %v4172 = vadd.f32 0.0, %v4171
        %4173 = vmatmul.f32.gmra.mxu0 %v4062
        %v4174 = vpop.f32.mrf.mxu0
        %v4175 = vadd.f32 0.0, %v4174
        %4176 = vmatmul.f32.gmra.mxu0 %v4065
        %v4177 = vpop.f32.mrf.mxu0
        %v4178 = vadd.f32 0.0, %v4177
        %4179 = vmatmul.f32.gmra.mxu0 %v4068
        %v4180 = vpop.f32.mrf.mxu0
        %v4181 = vadd.f32 0.0, %v4180
        %4182 = vmatmul.f32.gmra.mxu0 %v4071
        %v4183 = vpop.f32.mrf.mxu0
        %v4184 = vadd.f32 0.0, %v4183
        %4185 = vmatmul.f32.gmra.mxu0 %v4074
        %v4186 = vpop.f32.mrf.mxu0
        %v4187 = vadd.f32 0.0, %v4186
        %4188 = vmatmul.f32.gmra.mxu0 %v4077
        %v4189 = vpop.f32.mrf.mxu0
        %v4190 = vadd.f32 0.0, %v4189
        %4191 = vmatmul.f32.gmra.mxu0 %v4080
        %v4192 = vpop.f32.mrf.mxu0
        %v4193 = vadd.f32 0.0, %v4192
        %4194 = vmatmul.f32.gmra.mxu0 %v4083
        %v4195 = vpop.f32.mrf.mxu0
        %v4196 = vadd.f32 0.0, %v4195
        %4197 = vmatmul.f32.gmra.mxu0 %v4086
        %v4198 = vpop.f32.mrf.mxu0
        %v4199 = vadd.f32 0.0, %v4198
        %4200 = vmatmul.f32.gmra.mxu0 %v4089
        %v4201 = vpop.f32.mrf.mxu0
        %v4202 = vadd.f32 0.0, %v4201
        %4203 = vmatmul.f32.gmra.mxu0 %v4092
        %v4204 = vpop.f32.mrf.mxu0
        %v4205 = vadd.f32 0.0, %v4204
        %4206 = vmatmul.f32.gmra.mxu0 %v4095
        %v4207 = vpop.f32.mrf.mxu0
        %v4208 = vadd.f32 0.0, %v4207
        %4209 = vmatmul.f32.gmra.mxu0 %v4098
        %v4210 = vpop.f32.mrf.mxu0
        %v4211 = vadd.f32 0.0, %v4210
        %4212 = vmatmul.f32.gmra.mxu0 %v4101
        %v4213 = vpop.f32.mrf.mxu0
        %v4214 = vadd.f32 0.0, %v4213
        %4215 = vmatmul.f32.gmra.mxu0 %v4104
        %v4216 = vpop.f32.mrf.mxu0
        %v4217 = vadd.f32 0.0, %v4216
        %4218 = vmatmul.f32.gmra.mxu0 %v4107
        %v4219 = vpop.f32.mrf.mxu0
        %v4220 = vadd.f32 0.0, %v4219
        %4221 = vmatmul.f32.gmra.mxu0 %v4110
        %v4222 = vpop.f32.mrf.mxu0
        %v4223 = vadd.f32 0.0, %v4222
        %4224 = vmatmul.f32.gmra.mxu0 %v4113
        %v4225 = vpop.f32.mrf.mxu0
        %v4226 = vadd.f32 0.0, %v4225
        %4227 = vmatmul.f32.gmra.mxu0 %v4116
        %v4228 = vpop.f32.mrf.mxu0
        %v4229 = vadd.f32 0.0, %v4228
        %4230 = vmatmul.f32.gmra.mxu0 %v4119
        %v4231 = vpop.f32.mrf.mxu0
        %v4232 = vadd.f32 0.0, %v4231
        %4233 = vmatmul.f32.gmra.mxu0 %v4122
        %v4234 = vpop.f32.mrf.mxu0
        %v4235 = vadd.f32 0.0, %v4234
        %4236 = vmatmul.f32.gmra.mxu0 %v4125
        %v4237 = vpop.f32.mrf.mxu0
        %v4238 = vadd.f32 0.0, %v4237
        %4239 = vmatmul.f32.gmra.mxu0 %v4128
        %v4240 = vpop.f32.mrf.mxu0
        %v4241 = vadd.f32 0.0, %v4240
        %4242 = vmatmul.f32.gmra.mxu0 %v4131
        %v4243 = vpop.f32.mrf.mxu0
        %v4244 = vadd.f32 0.0, %v4243
        %4245 = vmatmul.f32.gmra.mxu0 %v4134
        %v4246 = vpop.f32.mrf.mxu0
        %v4247 = vadd.f32 0.0, %v4246
        %4248 = vmatmul.f32.gmra.mxu0 %v4137
        %v4249 = vpop.f32.mrf.mxu0
        %v4250 = vadd.f32 0.0, %v4249
        %4251 = vmatmul.f32.gmra.mxu0 %v4140
        %v4252 = vpop.f32.mrf.mxu0
        %v4253 = vadd.f32 0.0, %v4252
        %4254 = vmatmul.f32.gmra.mxu0 %v4143
        %v4255 = vpop.f32.mrf.mxu0
        %v4256 = vadd.f32 0.0, %v4255
        %4257 = vmatmul.f32.gmra.mxu0 %v4146
        %v4258 = vpop.f32.mrf.mxu0
        %v4259 = vadd.f32 0.0, %v4258
        %4260 = vmatmul.f32.gmra.mxu0 %v4149
        %v4261 = vpop.f32.mrf.mxu0
        %v4262 = vadd.f32 0.0, %v4261
        %4263 = vmatmul.f32.gmra.mxu0 %v4152
        %v4264 = vpop.f32.mrf.mxu0
        %v4265 = vadd.f32 0.0, %v4264
        %4266 = vdwg.mxu0
        %v4267 = vadd.f32 %v3957, %v4172
        %v4268 = vadd.f32 %v3958, %v4175
        %v4269 = vadd.f32 %v3959, %v4178
        %v4270 = vadd.f32 %v3960, %v4181
        %v4271 = vadd.f32 %v3961, %v4184
        %v4272 = vadd.f32 %v3962, %v4187
        %v4273 = vadd.f32 %v3963, %v4190
        %v4274 = vadd.f32 %v3964, %v4193
        %v4275 = vadd.f32 %v3965, %v4196
        %v4276 = vadd.f32 %v3966, %v4199
        %v4277 = vadd.f32 %v3967, %v4202
        %v4278 = vadd.f32 %v3968, %v4205
        %v4279 = vadd.f32 %v3969, %v4208
        %v4280 = vadd.f32 %v3970, %v4211
        %v4281 = vadd.f32 %v3971, %v4214
        %v4282 = vadd.f32 %v3972, %v4217
        %v4283 = vadd.f32 %v3973, %v4220
        %v4284 = vadd.f32 %v3974, %v4223
        %v4285 = vadd.f32 %v3975, %v4226
        %v4286 = vadd.f32 %v3976, %v4229
        %v4287 = vadd.f32 %v3977, %v4232
        %v4288 = vadd.f32 %v3978, %v4235
        %v4289 = vadd.f32 %v3979, %v4238
        %v4290 = vadd.f32 %v3980, %v4241
        %v4291 = vadd.f32 %v3981, %v4244
        %v4292 = vadd.f32 %v3982, %v4247
        %v4293 = vadd.f32 %v3983, %v4250
        %v4294 = vadd.f32 %v3984, %v4253
        %v4295 = vadd.f32 %v3985, %v4256
        %v4296 = vadd.f32 %v3986, %v4259
        %v4297 = vadd.f32 %v3987, %v4262
        %v4298 = vadd.f32 %v3988, %v4265
        %v4299 = vld [vmem:[%s6] sm:$0x1]
        %v4301 = vperm.slane %v4299, 0
        %v4303 = vadd.f32 %v4267, %v4301
        %v4304 = vadd.f32 %v4268, %v4301
        %v4305 = vadd.f32 %v4269, %v4301
        %v4306 = vadd.f32 %v4270, %v4301
        %v4307 = vadd.f32 %v4271, %v4301
        %v4308 = vadd.f32 %v4272, %v4301
        %v4309 = vadd.f32 %v4273, %v4301
        %v4310 = vadd.f32 %v4274, %v4301
        %v4311 = vadd.f32 %v4275, %v4301
        %v4312 = vadd.f32 %v4276, %v4301
        %v4313 = vadd.f32 %v4277, %v4301
        %v4314 = vadd.f32 %v4278, %v4301
        %v4315 = vadd.f32 %v4279, %v4301
        %v4316 = vadd.f32 %v4280, %v4301
        %v4317 = vadd.f32 %v4281, %v4301
        %v4318 = vadd.f32 %v4282, %v4301
        %v4319 = vadd.f32 %v4283, %v4301
        %v4320 = vadd.f32 %v4284, %v4301
        %v4321 = vadd.f32 %v4285, %v4301
        %v4322 = vadd.f32 %v4286, %v4301
        %v4323 = vadd.f32 %v4287, %v4301
        %v4324 = vadd.f32 %v4288, %v4301
        %v4325 = vadd.f32 %v4289, %v4301
        %v4326 = vadd.f32 %v4290, %v4301
        %v4327 = vadd.f32 %v4291, %v4301
        %v4328 = vadd.f32 %v4292, %v4301
        %v4329 = vadd.f32 %v4293, %v4301
        %v4330 = vadd.f32 %v4294, %v4301
        %v4331 = vadd.f32 %v4295, %v4301
        %v4332 = vadd.f32 %v4296, %v4301
        %v4333 = vadd.f32 %v4297, %v4301
        %v4334 = vadd.f32 %v4298, %v4301
        %v4335 = vmax.f32 %v4303, 0.0
        %v4336 = vmax.f32 %v4304, 0.0
        %v4337 = vmax.f32 %v4305, 0.0
        %v4338 = vmax.f32 %v4306, 0.0
        %v4339 = vmax.f32 %v4307, 0.0
        %v4340 = vmax.f32 %v4308, 0.0
        %v4341 = vmax.f32 %v4309, 0.0
        %v4342 = vmax.f32 %v4310, 0.0
        %v4343 = vmax.f32 %v4311, 0.0
        %v4344 = vmax.f32 %v4312, 0.0
        %v4345 = vmax.f32 %v4313, 0.0
        %v4346 = vmax.f32 %v4314, 0.0
        %v4347 = vmax.f32 %v4315, 0.0
        %v4348 = vmax.f32 %v4316, 0.0
        %v4349 = vmax.f32 %v4317, 0.0
        %v4350 = vmax.f32 %v4318, 0.0
        %v4351 = vmax.f32 %v4319, 0.0
        %v4352 = vmax.f32 %v4320, 0.0
        %v4353 = vmax.f32 %v4321, 0.0
        %v4354 = vmax.f32 %v4322, 0.0
        %v4355 = vmax.f32 %v4323, 0.0
        %v4356 = vmax.f32 %v4324, 0.0
        %v4357 = vmax.f32 %v4325, 0.0
        %v4358 = vmax.f32 %v4326, 0.0
        %v4359 = vmax.f32 %v4327, 0.0
        %v4360 = vmax.f32 %v4328, 0.0
        %v4361 = vmax.f32 %v4329, 0.0
        %v4362 = vmax.f32 %v4330, 0.0
        %v4363 = vmax.f32 %v4331, 0.0
        %v4364 = vmax.f32 %v4332, 0.0
        %v4365 = vmax.f32 %v4333, 0.0
        %v4366 = vmax.f32 %v4334, 0.0
        %v4367 = vld [vmem:[%s7] sm:$0xf]
        %v4368 = vld [vmem:[%s8] sm:$0x1]
        %v4370 = vperm.slane %v4368, 0
        %v4373 = vsel %vm1336, %v4367, 0
        %4375 = vmatpush.msra.mxu0 0.0
        %4376 = vmatpush.msra.mxu0 0.0
        %4377 = vmatpush.msra.mxu0 0.0
        %4378 = vmatpush.msra.mxu0 0.0
        %4379 = vmatpush.msra.mxu0 0.0
        %4380 = vmatpush.msra.mxu0 0.0
        %4381 = vmatpush.msra.mxu0 0.0
        %4382 = vmatpush.msra.mxu0 0.0
        %4383 = vmatpush.msra.mxu0 0.0
        %4384 = vmatpush.msra.mxu0 0.0
        %4385 = vmatpush.msra.mxu0 0.0
        %4386 = vmatpush.msra.mxu0 0.0
        %4387 = vmatpush.msra.mxu0 0.0
        %4388 = vmatpush.msra.mxu0 0.0
        %4389 = vmatpush.msra.mxu0 0.0
        %4390 = vmatpush.msra.mxu0 %v4373
        %4391 = vmatmul.f32.gmra.mxu0 %v1241
        %v4392 = vpop.f32.mrf.mxu0
        %v4393 = vadd.f32 %v4370, %v4392
        %4394 = vmatmul.f32.gmra.mxu0 %v1244
        %v4395 = vpop.f32.mrf.mxu0
        %v4396 = vadd.f32 %v4370, %v4395
        %4397 = vmatmul.f32.gmra.mxu0 %v1247
        %v4398 = vpop.f32.mrf.mxu0
        %v4399 = vadd.f32 %v4370, %v4398
        %4400 = vmatmul.f32.gmra.mxu0 %v1250
        %v4401 = vpop.f32.mrf.mxu0
        %v4402 = vadd.f32 %v4370, %v4401
        %4403 = vmatmul.f32.gmra.mxu0 %v1253
        %v4404 = vpop.f32.mrf.mxu0
        %v4405 = vadd.f32 %v4370, %v4404
        %4406 = vmatmul.f32.gmra.mxu0 %v1256
        %v4407 = vpop.f32.mrf.mxu0
        %v4408 = vadd.f32 %v4370, %v4407
        %4409 = vmatmul.f32.gmra.mxu0 %v1259
        %v4410 = vpop.f32.mrf.mxu0
        %v4411 = vadd.f32 %v4370, %v4410
        %4412 = vmatmul.f32.gmra.mxu0 %v1262
        %v4413 = vpop.f32.mrf.mxu0
        %v4414 = vadd.f32 %v4370, %v4413
        %4415 = vmatmul.f32.gmra.mxu0 %v1265
        %v4416 = vpop.f32.mrf.mxu0
        %v4417 = vadd.f32 %v4370, %v4416
        %4418 = vmatmul.f32.gmra.mxu0 %v1268
        %v4419 = vpop.f32.mrf.mxu0
        %v4420 = vadd.f32 %v4370, %v4419
        %4421 = vmatmul.f32.gmra.mxu0 %v1271
        %v4422 = vpop.f32.mrf.mxu0
        %v4423 = vadd.f32 %v4370, %v4422
        %4424 = vmatmul.f32.gmra.mxu0 %v1274
        %v4425 = vpop.f32.mrf.mxu0
        %v4426 = vadd.f32 %v4370, %v4425
        %4427 = vmatmul.f32.gmra.mxu0 %v1277
        %v4428 = vpop.f32.mrf.mxu0
        %v4429 = vadd.f32 %v4370, %v4428
        %4430 = vmatmul.f32.gmra.mxu0 %v1280
        %v4431 = vpop.f32.mrf.mxu0
        %v4432 = vadd.f32 %v4370, %v4431
        %4433 = vmatmul.f32.gmra.mxu0 %v1283
        %v4434 = vpop.f32.mrf.mxu0
        %v4435 = vadd.f32 %v4370, %v4434
        %4436 = vmatmul.f32.gmra.mxu0 %v1286
        %v4437 = vpop.f32.mrf.mxu0
        %v4438 = vadd.f32 %v4370, %v4437
        %4439 = vmatmul.f32.gmra.mxu0 %v1289
        %v4440 = vpop.f32.mrf.mxu0
        %v4441 = vadd.f32 %v4370, %v4440
        %4442 = vmatmul.f32.gmra.mxu0 %v1292
        %v4443 = vpop.f32.mrf.mxu0
        %v4444 = vadd.f32 %v4370, %v4443
        %4445 = vmatmul.f32.gmra.mxu0 %v1295
        %v4446 = vpop.f32.mrf.mxu0
        %v4447 = vadd.f32 %v4370, %v4446
        %4448 = vmatmul.f32.gmra.mxu0 %v1298
        %v4449 = vpop.f32.mrf.mxu0
        %v4450 = vadd.f32 %v4370, %v4449
        %4451 = vmatmul.f32.gmra.mxu0 %v1301
        %v4452 = vpop.f32.mrf.mxu0
        %v4453 = vadd.f32 %v4370, %v4452
        %4454 = vmatmul.f32.gmra.mxu0 %v1304
        %v4455 = vpop.f32.mrf.mxu0
        %v4456 = vadd.f32 %v4370, %v4455
        %4457 = vmatmul.f32.gmra.mxu0 %v1307
        %v4458 = vpop.f32.mrf.mxu0
        %v4459 = vadd.f32 %v4370, %v4458
        %4460 = vmatmul.f32.gmra.mxu0 %v1310
        %v4461 = vpop.f32.mrf.mxu0
        %v4462 = vadd.f32 %v4370, %v4461
        %4463 = vmatmul.f32.gmra.mxu0 %v1313
        %v4464 = vpop.f32.mrf.mxu0
        %v4465 = vadd.f32 %v4370, %v4464
        %4466 = vmatmul.f32.gmra.mxu0 %v1316
        %v4467 = vpop.f32.mrf.mxu0
        %v4468 = vadd.f32 %v4370, %v4467
        %4469 = vmatmul.f32.gmra.mxu0 %v1319
        %v4470 = vpop.f32.mrf.mxu0
        %v4471 = vadd.f32 %v4370, %v4470
        %4472 = vmatmul.f32.gmra.mxu0 %v1322
        %v4473 = vpop.f32.mrf.mxu0
        %v4474 = vadd.f32 %v4370, %v4473
        %4475 = vmatmul.f32.gmra.mxu0 %v1325
        %v4476 = vpop.f32.mrf.mxu0
        %v4477 = vadd.f32 %v4370, %v4476
        %4478 = vmatmul.f32.gmra.mxu0 %v1328
        %v4479 = vpop.f32.mrf.mxu0
        %v4480 = vadd.f32 %v4370, %v4479
        %4481 = vmatmul.f32.gmra.mxu0 %v1331
        %v4482 = vpop.f32.mrf.mxu0
        %v4483 = vadd.f32 %v4370, %v4482
        %4484 = vmatmul.f32.gmra.mxu0 %v1334
        %v4485 = vpop.f32.mrf.mxu0
        %v4486 = vadd.f32 %v4370, %v4485
        %4487 = vdwg.mxu0
        %v4488 = vmax.f32 %v4393, 0.0
        %v4489 = vmax.f32 %v4396, 0.0
        %v4490 = vmax.f32 %v4399, 0.0
        %v4491 = vmax.f32 %v4402, 0.0
        %v4492 = vmax.f32 %v4405, 0.0
        %v4493 = vmax.f32 %v4408, 0.0
        %v4494 = vmax.f32 %v4411, 0.0
        %v4495 = vmax.f32 %v4414, 0.0
        %v4496 = vmax.f32 %v4417, 0.0
        %v4497 = vmax.f32 %v4420, 0.0
        %v4498 = vmax.f32 %v4423, 0.0
        %v4499 = vmax.f32 %v4426, 0.0
        %v4500 = vmax.f32 %v4429, 0.0
        %v4501 = vmax.f32 %v4432, 0.0
        %v4502 = vmax.f32 %v4435, 0.0
        %v4503 = vmax.f32 %v4438, 0.0
        %v4504 = vmax.f32 %v4441, 0.0
        %v4505 = vmax.f32 %v4444, 0.0
        %v4506 = vmax.f32 %v4447, 0.0
        %v4507 = vmax.f32 %v4450, 0.0
        %v4508 = vmax.f32 %v4453, 0.0
        %v4509 = vmax.f32 %v4456, 0.0
        %v4510 = vmax.f32 %v4459, 0.0
        %v4511 = vmax.f32 %v4462, 0.0
        %v4512 = vmax.f32 %v4465, 0.0
        %v4513 = vmax.f32 %v4468, 0.0
        %v4514 = vmax.f32 %v4471, 0.0
        %v4515 = vmax.f32 %v4474, 0.0
        %v4516 = vmax.f32 %v4477, 0.0
        %v4517 = vmax.f32 %v4480, 0.0
        %v4518 = vmax.f32 %v4483, 0.0
        %v4519 = vmax.f32 %v4486, 0.0
        %4520 = vst.msk [vmem:[#allocation2 + $0x18] sm:$0xff] %vm586, %v4488
        %4521 = vst.msk [vmem:[#allocation2 + $0x20] sm:$0xff] %vm586, %v4489
        %4522 = vst.msk [vmem:[#allocation2 + $0x28] sm:$0xff] %vm586, %v4490
        %4523 = vst.msk [vmem:[#allocation2 + $0x30] sm:$0xff] %vm586, %v4491
        %4524 = vst.msk [vmem:[#allocation2 + $0x38] sm:$0xff] %vm586, %v4492
        %4525 = vst.msk [vmem:[#allocation2 + $0x40] sm:$0xff] %vm586, %v4493
        %4526 = vst.msk [vmem:[#allocation2 + $0x48] sm:$0xff] %vm586, %v4494
        %4527 = vst.msk [vmem:[#allocation2 + $0x50] sm:$0xff] %vm586, %v4495
        %4528 = vst.msk [vmem:[#allocation2 + $0x58] sm:$0xff] %vm586, %v4496
        %4529 = vst.msk [vmem:[#allocation2 + $0x60] sm:$0xff] %vm586, %v4497
        %4530 = vst.msk [vmem:[#allocation2 + $0x68] sm:$0xff] %vm586, %v4498
        %4531 = vst.msk [vmem:[#allocation2 + $0x70] sm:$0xff] %vm586, %v4499
        %4532 = vst.msk [vmem:[#allocation2 + $0x78] sm:$0xff] %vm586, %v4500
        %4533 = vst.msk [vmem:[#allocation2 + $0x80] sm:$0xff] %vm586, %v4501
        %4534 = vst.msk [vmem:[#allocation2 + $0x88] sm:$0xff] %vm586, %v4502
        %4535 = vst.msk [vmem:[#allocation2 + $0x90] sm:$0xff] %vm586, %v4503
        %4536 = vst.msk [vmem:[#allocation2 + $0x98] sm:$0xff] %vm586, %v4504
        %4537 = vst.msk [vmem:[#allocation2 + $0xa0] sm:$0xff] %vm586, %v4505
        %4538 = vst.msk [vmem:[#allocation2 + $0xa8] sm:$0xff] %vm586, %v4506
        %4539 = vst.msk [vmem:[#allocation2 + $0xb0] sm:$0xff] %vm586, %v4507
        %4540 = vst.msk [vmem:[#allocation2 + $0xb8] sm:$0xff] %vm586, %v4508
        %4541 = vst.msk [vmem:[#allocation2 + $0xc0] sm:$0xff] %vm586, %v4509
        %4542 = vst.msk [vmem:[#allocation2 + $0xc8] sm:$0xff] %vm586, %v4510
        %4543 = vst.msk [vmem:[#allocation2 + $0xd0] sm:$0xff] %vm586, %v4511
        %4544 = vst.msk [vmem:[#allocation2 + $0xd8] sm:$0xff] %vm586, %v4512
        %4545 = vst.msk [vmem:[#allocation2 + $0xe0] sm:$0xff] %vm586, %v4513
        %4546 = vst.msk [vmem:[#allocation2 + $0xe8] sm:$0xff] %vm586, %v4514
        %4547 = vst.msk [vmem:[#allocation2 + $0xf0] sm:$0xff] %vm586, %v4515
        %4548 = vst.msk [vmem:[#allocation2 + $0xf8] sm:$0xff] %vm586, %v4516
        %4549 = vst.msk [vmem:[#allocation2 + $0x100] sm:$0xff] %vm586, %v4517
        %4550 = vst.msk [vmem:[#allocation2 + $0x108] sm:$0xff] %vm586, %v4518
        %4551 = vst.msk [vmem:[#allocation2 + $0x110] sm:$0xff] %vm586, %v4519
        %v4552 = vld [vmem:[#allocation2 + $0x7] sm:$0xff]
        %v4553 = vld [vmem:[#allocation2 + $0xf] sm:$0xff]
        %v4554 = vld [vmem:[#allocation2 + $0x17] sm:$0xff]
        %v4555 = vld [vmem:[#allocation2 + $0x1f] sm:$0xff]
        %v4556 = vld [vmem:[#allocation2 + $0x27] sm:$0xff]
        %v4557 = vld [vmem:[#allocation2 + $0x2f] sm:$0xff]
        %v4558 = vld [vmem:[#allocation2 + $0x37] sm:$0xff]
        %v4559 = vld [vmem:[#allocation2 + $0x3f] sm:$0xff]
        %v4560 = vld [vmem:[#allocation2 + $0x47] sm:$0xff]
        %v4561 = vld [vmem:[#allocation2 + $0x4f] sm:$0xff]
        %v4562 = vld [vmem:[#allocation2 + $0x57] sm:$0xff]
        %v4563 = vld [vmem:[#allocation2 + $0x5f] sm:$0xff]
        %v4564 = vld [vmem:[#allocation2 + $0x67] sm:$0xff]
        %v4565 = vld [vmem:[#allocation2 + $0x6f] sm:$0xff]
        %v4566 = vld [vmem:[#allocation2 + $0x77] sm:$0xff]
        %v4567 = vld [vmem:[#allocation2 + $0x7f] sm:$0xff]
        %v4568 = vld [vmem:[#allocation2 + $0x87] sm:$0xff]
        %v4569 = vld [vmem:[#allocation2 + $0x8f] sm:$0xff]
        %v4570 = vld [vmem:[#allocation2 + $0x97] sm:$0xff]
        %v4571 = vld [vmem:[#allocation2 + $0x9f] sm:$0xff]
        %v4572 = vld [vmem:[#allocation2 + $0xa7] sm:$0xff]
        %v4573 = vld [vmem:[#allocation2 + $0xaf] sm:$0xff]
        %v4574 = vld [vmem:[#allocation2 + $0xb7] sm:$0xff]
        %v4575 = vld [vmem:[#allocation2 + $0xbf] sm:$0xff]
        %v4576 = vld [vmem:[#allocation2 + $0xc7] sm:$0xff]
        %v4577 = vld [vmem:[#allocation2 + $0xcf] sm:$0xff]
        %v4578 = vld [vmem:[#allocation2 + $0xd7] sm:$0xff]
        %v4579 = vld [vmem:[#allocation2 + $0xdf] sm:$0xff]
        %v4580 = vld [vmem:[#allocation2 + $0xe7] sm:$0xff]
        %v4581 = vld [vmem:[#allocation2 + $0xef] sm:$0xff]
        %v4582 = vld [vmem:[#allocation2 + $0xf7] sm:$0xff]
        %v4583 = vld [vmem:[#allocation2 + $0xff] sm:$0xff]
        %v4584 = vmul.f32 %v4552, %v1106
        %v4585 = vmul.f32 %v4553, %v1107
        %v4586 = vmul.f32 %v4554, %v1108
        %v4587 = vmul.f32 %v4555, %v1109
        %v4588 = vmul.f32 %v4556, %v1110
        %v4589 = vmul.f32 %v4557, %v1111
        %v4590 = vmul.f32 %v4558, %v1112
        %v4591 = vmul.f32 %v4559, %v1113
        %v4592 = vmul.f32 %v4560, %v1114
        %v4593 = vmul.f32 %v4561, %v1115
        %v4594 = vmul.f32 %v4562, %v1116
        %v4595 = vmul.f32 %v4563, %v1117
        %v4596 = vmul.f32 %v4564, %v1118
        %v4597 = vmul.f32 %v4565, %v1119
        %v4598 = vmul.f32 %v4566, %v1120
        %v4599 = vmul.f32 %v4567, %v1121
        %v4600 = vmul.f32 %v4568, %v1122
        %v4601 = vmul.f32 %v4569, %v1123
        %v4602 = vmul.f32 %v4570, %v1124
        %v4603 = vmul.f32 %v4571, %v1125
        %v4604 = vmul.f32 %v4572, %v1126
        %v4605 = vmul.f32 %v4573, %v1127
        %v4606 = vmul.f32 %v4574, %v1128
        %v4607 = vmul.f32 %v4575, %v1129
        %v4608 = vmul.f32 %v4576, %v1130
        %v4609 = vmul.f32 %v4577, %v1131
        %v4610 = vmul.f32 %v4578, %v1132
        %v4611 = vmul.f32 %v4579, %v1133
        %v4612 = vmul.f32 %v4580, %v1134
        %v4613 = vmul.f32 %v4581, %v1135
        %v4614 = vmul.f32 %v4582, %v1136
        %v4615 = vmul.f32 %v4583, %v1137
        %v4616 = vld [vmem:[#allocation3] sm:$0xff]
        %v4617 = vld [vmem:[#allocation3 + $0x8] sm:$0xff]
        %v4618 = vld [vmem:[#allocation3 + $0x10] sm:$0xff]
        %v4619 = vld [vmem:[#allocation3 + $0x18] sm:$0xff]
        %v4620 = vld [vmem:[#allocation2 + $0x8] sm:$0xff]
        %v4621 = vld [vmem:[#allocation2 + $0x10] sm:$0xff]
        %v4622 = vld [vmem:[#allocation2 + $0x18] sm:$0xff]
        %v4623 = vld [vmem:[#allocation2 + $0x20] sm:$0xff]
        %v4624 = vld [vmem:[#allocation2 + $0x28] sm:$0xff]
        %v4625 = vld [vmem:[#allocation2 + $0x30] sm:$0xff]
        %v4626 = vld [vmem:[#allocation2 + $0x38] sm:$0xff]
        %v4627 = vld [vmem:[#allocation2 + $0x40] sm:$0xff]
        %v4628 = vld [vmem:[#allocation2 + $0x48] sm:$0xff]
        %v4629 = vld [vmem:[#allocation2 + $0x50] sm:$0xff]
        %v4630 = vld [vmem:[#allocation2 + $0x58] sm:$0xff]
        %v4631 = vld [vmem:[#allocation2 + $0x60] sm:$0xff]
        %v4632 = vld [vmem:[#allocation2 + $0x68] sm:$0xff]
        %v4633 = vld [vmem:[#allocation2 + $0x70] sm:$0xff]
        %v4634 = vld [vmem:[#allocation2 + $0x78] sm:$0xff]
        %v4635 = vld [vmem:[#allocation2 + $0x80] sm:$0xff]
        %v4636 = vld [vmem:[#allocation2 + $0x88] sm:$0xff]
        %v4637 = vld [vmem:[#allocation2 + $0x90] sm:$0xff]
        %v4638 = vld [vmem:[#allocation2 + $0x98] sm:$0xff]
        %v4639 = vld [vmem:[#allocation2 + $0xa0] sm:$0xff]
        %v4640 = vld [vmem:[#allocation2 + $0xa8] sm:$0xff]
        %v4641 = vld [vmem:[#allocation2 + $0xb0] sm:$0xff]
        %v4642 = vld [vmem:[#allocation2 + $0xb8] sm:$0xff]
        %v4643 = vld [vmem:[#allocation2 + $0xc0] sm:$0xff]
        %v4644 = vld [vmem:[#allocation2 + $0xc8] sm:$0xff]
        %v4645 = vld [vmem:[#allocation2 + $0xd0] sm:$0xff]
        %v4646 = vld [vmem:[#allocation2 + $0xd8] sm:$0xff]
        %v4647 = vld [vmem:[#allocation2 + $0xe0] sm:$0xff]
        %v4648 = vld [vmem:[#allocation2 + $0xe8] sm:$0xff]
        %v4649 = vld [vmem:[#allocation2 + $0xf0] sm:$0xff]
        %v4650 = vld [vmem:[#allocation2 + $0xf8] sm:$0xff]
        %v4651 = vld [vmem:[#allocation2 + $0x100] sm:$0xff]
        %s4652 = scalar_lea.vmem [#allocation3], 32
        %v4653 = vld [vmem:[%s4652] sm:$0xff]
        %v4654 = vld [vmem:[%s4652 + $0x8] sm:$0xff]
        %v4655 = vld [vmem:[%s4652 + $0x10] sm:$0xff]
        %v4656 = vld [vmem:[%s4652 + $0x18] sm:$0xff]
        %v4658 = vsel %vm586, %v4620, 0
        %v4661 = vsel %vm586, %v4621, 0
        %v4664 = vsel %vm586, %v4622, 0
        %v4667 = vsel %vm586, %v4623, 0
        %v4670 = vsel %vm586, %v4624, 0
        %v4673 = vsel %vm586, %v4625, 0
        %v4676 = vsel %vm586, %v4626, 0
        %v4679 = vsel %vm586, %v4627, 0
        %v4682 = vsel %vm586, %v4628, 0
        %v4685 = vsel %vm586, %v4629, 0
        %v4688 = vsel %vm586, %v4630, 0
        %v4691 = vsel %vm586, %v4631, 0
        %v4694 = vsel %vm586, %v4632, 0
        %v4697 = vsel %vm586, %v4633, 0
        %v4700 = vsel %vm586, %v4634, 0
        %v4703 = vsel %vm586, %v4635, 0
        %v4706 = vsel %vm586, %v4636, 0
        %v4709 = vsel %vm586, %v4637, 0
        %v4712 = vsel %vm586, %v4638, 0
        %v4715 = vsel %vm586, %v4639, 0
        %v4718 = vsel %vm586, %v4640, 0
        %v4721 = vsel %vm586, %v4641, 0
        %v4724 = vsel %vm586, %v4642, 0
        %v4727 = vsel %vm586, %v4643, 0
        %v4730 = vsel %vm586, %v4644, 0
        %v4733 = vsel %vm586, %v4645, 0
        %v4736 = vsel %vm586, %v4646, 0
        %v4739 = vsel %vm586, %v4647, 0
        %v4742 = vsel %vm586, %v4648, 0
        %v4745 = vsel %vm586, %v4649, 0
        %v4748 = vsel %vm586, %v4650, 0
        %v4751 = vsel %vm586, %v4651, 0
        %4753 = vmatpush.msra.mxu0 0.0
        %4754 = vmatpush.msra.mxu0 0.0
        %4755 = vmatpush.msra.mxu0 0.0
        %4756 = vmatpush.msra.mxu0 0.0
        %4757 = vmatpush.msra.mxu0 0.0
        %4758 = vmatpush.msra.mxu0 0.0
        %4759 = vmatpush.msra.mxu0 0.0
        %4760 = vmatpush.msra.mxu0 0.0
        %4761 = vmatpush.msra.mxu0 0.0
        %4762 = vmatpush.msra.mxu0 0.0
        %4763 = vmatpush.msra.mxu0 0.0
        %4764 = vmatpush.msra.mxu0 0.0
        %4765 = vmatpush.msra.mxu0 %v4656
        %4766 = vmatpush.msra.mxu0 %v4655
        %4767 = vmatpush.msra.mxu0 %v4654
        %4768 = vmatpush.msra.mxu0 %v4653
        %4769 = vmatmul.f32.gmra.mxu0 %v4658
        %v4770 = vpop.f32.mrf.mxu0
        %v4771 = vadd.f32 0.0, %v4770
        %4772 = vmatmul.f32.gmra.mxu0 %v4661
        %v4773 = vpop.f32.mrf.mxu0
        %v4774 = vadd.f32 0.0, %v4773
        %4775 = vmatmul.f32.gmra.mxu0 %v4664
        %v4776 = vpop.f32.mrf.mxu0
        %v4777 = vadd.f32 0.0, %v4776
        %4778 = vmatmul.f32.gmra.mxu0 %v4667
        %v4779 = vpop.f32.mrf.mxu0
        %v4780 = vadd.f32 0.0, %v4779
        %4781 = vmatmul.f32.gmra.mxu0 %v4670
        %v4782 = vpop.f32.mrf.mxu0
        %v4783 = vadd.f32 0.0, %v4782
        %4784 = vmatmul.f32.gmra.mxu0 %v4673
        %v4785 = vpop.f32.mrf.mxu0
        %v4786 = vadd.f32 0.0, %v4785
        %4787 = vmatmul.f32.gmra.mxu0 %v4676
        %v4788 = vpop.f32.mrf.mxu0
        %v4789 = vadd.f32 0.0, %v4788
        %4790 = vmatmul.f32.gmra.mxu0 %v4679
        %v4791 = vpop.f32.mrf.mxu0
        %v4792 = vadd.f32 0.0, %v4791
        %4793 = vmatmul.f32.gmra.mxu0 %v4682
        %v4794 = vpop.f32.mrf.mxu0
        %v4795 = vadd.f32 0.0, %v4794
        %4796 = vmatmul.f32.gmra.mxu0 %v4685
        %v4797 = vpop.f32.mrf.mxu0
        %v4798 = vadd.f32 0.0, %v4797
        %4799 = vmatmul.f32.gmra.mxu0 %v4688
        %v4800 = vpop.f32.mrf.mxu0
        %v4801 = vadd.f32 0.0, %v4800
        %4802 = vmatmul.f32.gmra.mxu0 %v4691
        %v4803 = vpop.f32.mrf.mxu0
        %v4804 = vadd.f32 0.0, %v4803
        %4805 = vmatmul.f32.gmra.mxu0 %v4694
        %v4806 = vpop.f32.mrf.mxu0
        %v4807 = vadd.f32 0.0, %v4806
        %4808 = vmatmul.f32.gmra.mxu0 %v4697
        %v4809 = vpop.f32.mrf.mxu0
        %v4810 = vadd.f32 0.0, %v4809
        %4811 = vmatmul.f32.gmra.mxu0 %v4700
        %v4812 = vpop.f32.mrf.mxu0
        %v4813 = vadd.f32 0.0, %v4812
        %4814 = vmatmul.f32.gmra.mxu0 %v4703
        %v4815 = vpop.f32.mrf.mxu0
        %v4816 = vadd.f32 0.0, %v4815
        %4817 = vmatmul.f32.gmra.mxu0 %v4706
        %v4818 = vpop.f32.mrf.mxu0
        %v4819 = vadd.f32 0.0, %v4818
        %4820 = vmatmul.f32.gmra.mxu0 %v4709
        %v4821 = vpop.f32.mrf.mxu0
        %v4822 = vadd.f32 0.0, %v4821
        %4823 = vmatmul.f32.gmra.mxu0 %v4712
        %v4824 = vpop.f32.mrf.mxu0
        %v4825 = vadd.f32 0.0, %v4824
        %4826 = vmatmul.f32.gmra.mxu0 %v4715
        %v4827 = vpop.f32.mrf.mxu0
        %v4828 = vadd.f32 0.0, %v4827
        %4829 = vmatmul.f32.gmra.mxu0 %v4718
        %v4830 = vpop.f32.mrf.mxu0
        %v4831 = vadd.f32 0.0, %v4830
        %4832 = vmatmul.f32.gmra.mxu0 %v4721
        %v4833 = vpop.f32.mrf.mxu0
        %v4834 = vadd.f32 0.0, %v4833
        %4835 = vmatmul.f32.gmra.mxu0 %v4724
        %v4836 = vpop.f32.mrf.mxu0
        %v4837 = vadd.f32 0.0, %v4836
        %4838 = vmatmul.f32.gmra.mxu0 %v4727
        %v4839 = vpop.f32.mrf.mxu0
        %v4840 = vadd.f32 0.0, %v4839
        %4841 = vmatmul.f32.gmra.mxu0 %v4730
        %v4842 = vpop.f32.mrf.mxu0
        %v4843 = vadd.f32 0.0, %v4842
        %4844 = vmatmul.f32.gmra.mxu0 %v4733
        %v4845 = vpop.f32.mrf.mxu0
        %v4846 = vadd.f32 0.0, %v4845
        %4847 = vmatmul.f32.gmra.mxu0 %v4736
        %v4848 = vpop.f32.mrf.mxu0
        %v4849 = vadd.f32 0.0, %v4848
        %4850 = vmatmul.f32.gmra.mxu0 %v4739
        %v4851 = vpop.f32.mrf.mxu0
        %v4852 = vadd.f32 0.0, %v4851
        %4853 = vmatmul.f32.gmra.mxu0 %v4742
        %v4854 = vpop.f32.mrf.mxu0
        %v4855 = vadd.f32 0.0, %v4854
        %4856 = vmatmul.f32.gmra.mxu0 %v4745
        %v4857 = vpop.f32.mrf.mxu0
        %v4858 = vadd.f32 0.0, %v4857
        %4859 = vmatmul.f32.gmra.mxu0 %v4748
        %v4860 = vpop.f32.mrf.mxu0
        %v4861 = vadd.f32 0.0, %v4860
        %4862 = vmatmul.f32.gmra.mxu0 %v4751
        %v4863 = vpop.f32.mrf.mxu0
        %v4864 = vadd.f32 0.0, %v4863
        %4865 = vdwg.mxu0
        %v4867 = vsel %vm586, %v4584, 0
        %v4870 = vsel %vm586, %v4585, 0
        %v4873 = vsel %vm586, %v4586, 0
        %v4876 = vsel %vm586, %v4587, 0
        %v4879 = vsel %vm586, %v4588, 0
        %v4882 = vsel %vm586, %v4589, 0
        %v4885 = vsel %vm586, %v4590, 0
        %v4888 = vsel %vm586, %v4591, 0
        %v4891 = vsel %vm586, %v4592, 0
        %v4894 = vsel %vm586, %v4593, 0
        %v4897 = vsel %vm586, %v4594, 0
        %v4900 = vsel %vm586, %v4595, 0
        %v4903 = vsel %vm586, %v4596, 0
        %v4906 = vsel %vm586, %v4597, 0
        %v4909 = vsel %vm586, %v4598, 0
        %v4912 = vsel %vm586, %v4599, 0
        %v4915 = vsel %vm586, %v4600, 0
        %v4918 = vsel %vm586, %v4601, 0
        %v4921 = vsel %vm586, %v4602, 0
        %v4924 = vsel %vm586, %v4603, 0
        %v4927 = vsel %vm586, %v4604, 0
        %v4930 = vsel %vm586, %v4605, 0
        %v4933 = vsel %vm586, %v4606, 0
        %v4936 = vsel %vm586, %v4607, 0
        %v4939 = vsel %vm586, %v4608, 0
        %v4942 = vsel %vm586, %v4609, 0
        %v4945 = vsel %vm586, %v4610, 0
        %v4948 = vsel %vm586, %v4611, 0
        %v4951 = vsel %vm586, %v4612, 0
        %v4954 = vsel %vm586, %v4613, 0
        %v4957 = vsel %vm586, %v4614, 0
        %v4960 = vsel %vm586, %v4615, 0
        %4962 = vmatpush.msra.mxu0 0.0
        %4963 = vmatpush.msra.mxu0 0.0
        %4964 = vmatpush.msra.mxu0 0.0
        %4965 = vmatpush.msra.mxu0 0.0
        %4966 = vmatpush.msra.mxu0 0.0
        %4967 = vmatpush.msra.mxu0 0.0
        %4968 = vmatpush.msra.mxu0 0.0
        %4969 = vmatpush.msra.mxu0 0.0
        %4970 = vmatpush.msra.mxu0 0.0
        %4971 = vmatpush.msra.mxu0 0.0
        %4972 = vmatpush.msra.mxu0 0.0
        %4973 = vmatpush.msra.mxu0 0.0
        %4974 = vmatpush.msra.mxu0 %v4619
        %4975 = vmatpush.msra.mxu0 %v4618
        %4976 = vmatpush.msra.mxu0 %v4617
        %4977 = vmatpush.msra.mxu0 %v4616
        %4978 = vmatmul.f32.gmra.mxu0 %v4867
        %v4979 = vpop.f32.mrf.mxu0
        %v4980 = vadd.f32 %v4771, %v4979
        %4981 = vmatmul.f32.gmra.mxu0 %v4870
        %v4982 = vpop.f32.mrf.mxu0
        %v4983 = vadd.f32 %v4774, %v4982
        %4984 = vmatmul.f32.gmra.mxu0 %v4873
        %v4985 = vpop.f32.mrf.mxu0
        %v4986 = vadd.f32 %v4777, %v4985
        %4987 = vmatmul.f32.gmra.mxu0 %v4876
        %v4988 = vpop.f32.mrf.mxu0
        %v4989 = vadd.f32 %v4780, %v4988
        %4990 = vmatmul.f32.gmra.mxu0 %v4879
        %v4991 = vpop.f32.mrf.mxu0
        %v4992 = vadd.f32 %v4783, %v4991
        %4993 = vmatmul.f32.gmra.mxu0 %v4882
        %v4994 = vpop.f32.mrf.mxu0
        %v4995 = vadd.f32 %v4786, %v4994
        %4996 = vmatmul.f32.gmra.mxu0 %v4885
        %v4997 = vpop.f32.mrf.mxu0
        %v4998 = vadd.f32 %v4789, %v4997
        %4999 = vmatmul.f32.gmra.mxu0 %v4888
        %v5000 = vpop.f32.mrf.mxu0
        %v5001 = vadd.f32 %v4792, %v5000
        %5002 = vmatmul.f32.gmra.mxu0 %v4891
        %v5003 = vpop.f32.mrf.mxu0
        %v5004 = vadd.f32 %v4795, %v5003
        %5005 = vmatmul.f32.gmra.mxu0 %v4894
        %v5006 = vpop.f32.mrf.mxu0
        %v5007 = vadd.f32 %v4798, %v5006
        %5008 = vmatmul.f32.gmra.mxu0 %v4897
        %v5009 = vpop.f32.mrf.mxu0
        %v5010 = vadd.f32 %v4801, %v5009
        %5011 = vmatmul.f32.gmra.mxu0 %v4900
        %v5012 = vpop.f32.mrf.mxu0
        %v5013 = vadd.f32 %v4804, %v5012
        %5014 = vmatmul.f32.gmra.mxu0 %v4903
        %v5015 = vpop.f32.mrf.mxu0
        %v5016 = vadd.f32 %v4807, %v5015
        %5017 = vmatmul.f32.gmra.mxu0 %v4906
        %v5018 = vpop.f32.mrf.mxu0
        %v5019 = vadd.f32 %v4810, %v5018
        %5020 = vmatmul.f32.gmra.mxu0 %v4909
        %v5021 = vpop.f32.mrf.mxu0
        %v5022 = vadd.f32 %v4813, %v5021
        %5023 = vmatmul.f32.gmra.mxu0 %v4912
        %v5024 = vpop.f32.mrf.mxu0
        %v5025 = vadd.f32 %v4816, %v5024
        %5026 = vmatmul.f32.gmra.mxu0 %v4915
        %v5027 = vpop.f32.mrf.mxu0
        %v5028 = vadd.f32 %v4819, %v5027
        %5029 = vmatmul.f32.gmra.mxu0 %v4918
        %v5030 = vpop.f32.mrf.mxu0
        %v5031 = vadd.f32 %v4822, %v5030
        %5032 = vmatmul.f32.gmra.mxu0 %v4921
        %v5033 = vpop.f32.mrf.mxu0
        %v5034 = vadd.f32 %v4825, %v5033
        %5035 = vmatmul.f32.gmra.mxu0 %v4924
        %v5036 = vpop.f32.mrf.mxu0
        %v5037 = vadd.f32 %v4828, %v5036
        %5038 = vmatmul.f32.gmra.mxu0 %v4927
        %v5039 = vpop.f32.mrf.mxu0
        %v5040 = vadd.f32 %v4831, %v5039
        %5041 = vmatmul.f32.gmra.mxu0 %v4930
        %v5042 = vpop.f32.mrf.mxu0
        %v5043 = vadd.f32 %v4834, %v5042
        %5044 = vmatmul.f32.gmra.mxu0 %v4933
        %v5045 = vpop.f32.mrf.mxu0
        %v5046 = vadd.f32 %v4837, %v5045
        %5047 = vmatmul.f32.gmra.mxu0 %v4936
        %v5048 = vpop.f32.mrf.mxu0
        %v5049 = vadd.f32 %v4840, %v5048
        %5050 = vmatmul.f32.gmra.mxu0 %v4939
        %v5051 = vpop.f32.mrf.mxu0
        %v5052 = vadd.f32 %v4843, %v5051
        %5053 = vmatmul.f32.gmra.mxu0 %v4942
        %v5054 = vpop.f32.mrf.mxu0
        %v5055 = vadd.f32 %v4846, %v5054
        %5056 = vmatmul.f32.gmra.mxu0 %v4945
        %v5057 = vpop.f32.mrf.mxu0
        %v5058 = vadd.f32 %v4849, %v5057
        %5059 = vmatmul.f32.gmra.mxu0 %v4948
        %v5060 = vpop.f32.mrf.mxu0
        %v5061 = vadd.f32 %v4852, %v5060
        %5062 = vmatmul.f32.gmra.mxu0 %v4951
        %v5063 = vpop.f32.mrf.mxu0
        %v5064 = vadd.f32 %v4855, %v5063
        %5065 = vmatmul.f32.gmra.mxu0 %v4954
        %v5066 = vpop.f32.mrf.mxu0
        %v5067 = vadd.f32 %v4858, %v5066
        %5068 = vmatmul.f32.gmra.mxu0 %v4957
        %v5069 = vpop.f32.mrf.mxu0
        %v5070 = vadd.f32 %v4861, %v5069
        %5071 = vmatmul.f32.gmra.mxu0 %v4960
        %v5072 = vpop.f32.mrf.mxu0
        %v5073 = vadd.f32 %v4864, %v5072
        %5074 = vdwg.mxu0
        %v5075 = vld [vmem:[#allocation2 + $0x9] sm:$0xff]
        %v5076 = vld [vmem:[#allocation2 + $0x11] sm:$0xff]
        %v5077 = vld [vmem:[#allocation2 + $0x19] sm:$0xff]
        %v5078 = vld [vmem:[#allocation2 + $0x21] sm:$0xff]
        %v5079 = vld [vmem:[#allocation2 + $0x29] sm:$0xff]
        %v5080 = vld [vmem:[#allocation2 + $0x31] sm:$0xff]
        %v5081 = vld [vmem:[#allocation2 + $0x39] sm:$0xff]
        %v5082 = vld [vmem:[#allocation2 + $0x41] sm:$0xff]
        %v5083 = vld [vmem:[#allocation2 + $0x49] sm:$0xff]
        %v5084 = vld [vmem:[#allocation2 + $0x51] sm:$0xff]
        %v5085 = vld [vmem:[#allocation2 + $0x59] sm:$0xff]
        %v5086 = vld [vmem:[#allocation2 + $0x61] sm:$0xff]
        %v5087 = vld [vmem:[#allocation2 + $0x69] sm:$0xff]
        %v5088 = vld [vmem:[#allocation2 + $0x71] sm:$0xff]
        %v5089 = vld [vmem:[#allocation2 + $0x79] sm:$0xff]
        %v5090 = vld [vmem:[#allocation2 + $0x81] sm:$0xff]
        %v5091 = vld [vmem:[#allocation2 + $0x89] sm:$0xff]
        %v5092 = vld [vmem:[#allocation2 + $0x91] sm:$0xff]
        %v5093 = vld [vmem:[#allocation2 + $0x99] sm:$0xff]
        %v5094 = vld [vmem:[#allocation2 + $0xa1] sm:$0xff]
        %v5095 = vld [vmem:[#allocation2 + $0xa9] sm:$0xff]
        %v5096 = vld [vmem:[#allocation2 + $0xb1] sm:$0xff]
        %v5097 = vld [vmem:[#allocation2 + $0xb9] sm:$0xff]
        %v5098 = vld [vmem:[#allocation2 + $0xc1] sm:$0xff]
        %v5099 = vld [vmem:[#allocation2 + $0xc9] sm:$0xff]
        %v5100 = vld [vmem:[#allocation2 + $0xd1] sm:$0xff]
        %v5101 = vld [vmem:[#allocation2 + $0xd9] sm:$0xff]
        %v5102 = vld [vmem:[#allocation2 + $0xe1] sm:$0xff]
        %v5103 = vld [vmem:[#allocation2 + $0xe9] sm:$0xff]
        %v5104 = vld [vmem:[#allocation2 + $0xf1] sm:$0xff]
        %v5105 = vld [vmem:[#allocation2 + $0xf9] sm:$0xff]
        %v5106 = vld [vmem:[#allocation2 + $0x101] sm:$0xff]
        %v5107 = vmul.f32 %v5075, %v1202
        %v5108 = vmul.f32 %v5076, %v1203
        %v5109 = vmul.f32 %v5077, %v1204
        %v5110 = vmul.f32 %v5078, %v1205
        %v5111 = vmul.f32 %v5079, %v1206
        %v5112 = vmul.f32 %v5080, %v1207
        %v5113 = vmul.f32 %v5081, %v1208
        %v5114 = vmul.f32 %v5082, %v1209
        %v5115 = vmul.f32 %v5083, %v1210
        %v5116 = vmul.f32 %v5084, %v1211
        %v5117 = vmul.f32 %v5085, %v1212
        %v5118 = vmul.f32 %v5086, %v1213
        %v5119 = vmul.f32 %v5087, %v1214
        %v5120 = vmul.f32 %v5088, %v1215
        %v5121 = vmul.f32 %v5089, %v1216
        %v5122 = vmul.f32 %v5090, %v1217
        %v5123 = vmul.f32 %v5091, %v1218
        %v5124 = vmul.f32 %v5092, %v1219
        %v5125 = vmul.f32 %v5093, %v1220
        %v5126 = vmul.f32 %v5094, %v1221
        %v5127 = vmul.f32 %v5095, %v1222
        %v5128 = vmul.f32 %v5096, %v1223
        %v5129 = vmul.f32 %v5097, %v1224
        %v5130 = vmul.f32 %v5098, %v1225
        %v5131 = vmul.f32 %v5099, %v1226
        %v5132 = vmul.f32 %v5100, %v1227
        %v5133 = vmul.f32 %v5101, %v1228
        %v5134 = vmul.f32 %v5102, %v1229
        %v5135 = vmul.f32 %v5103, %v1230
        %v5136 = vmul.f32 %v5104, %v1231
        %v5137 = vmul.f32 %v5105, %v1232
        %v5138 = vmul.f32 %v5106, %v1233
        %s5139 = scalar_lea.vmem [#allocation3], 64
        %v5140 = vld [vmem:[%s5139] sm:$0xff]
        %v5141 = vld [vmem:[%s5139 + $0x8] sm:$0xff]
        %v5142 = vld [vmem:[%s5139 + $0x10] sm:$0xff]
        %v5143 = vld [vmem:[%s5139 + $0x18] sm:$0xff]
        %v5145 = vsel %vm586, %v5107, 0
        %v5148 = vsel %vm586, %v5108, 0
        %v5151 = vsel %vm586, %v5109, 0
        %v5154 = vsel %vm586, %v5110, 0
        %v5157 = vsel %vm586, %v5111, 0
        %v5160 = vsel %vm586, %v5112, 0
        %v5163 = vsel %vm586, %v5113, 0
        %v5166 = vsel %vm586, %v5114, 0
        %v5169 = vsel %vm586, %v5115, 0
        %v5172 = vsel %vm586, %v5116, 0
        %v5175 = vsel %vm586, %v5117, 0
        %v5178 = vsel %vm586, %v5118, 0
        %v5181 = vsel %vm586, %v5119, 0
        %v5184 = vsel %vm586, %v5120, 0
        %v5187 = vsel %vm586, %v5121, 0
        %v5190 = vsel %vm586, %v5122, 0
        %v5193 = vsel %vm586, %v5123, 0
        %v5196 = vsel %vm586, %v5124, 0
        %v5199 = vsel %vm586, %v5125, 0
        %v5202 = vsel %vm586, %v5126, 0
        %v5205 = vsel %vm586, %v5127, 0
        %v5208 = vsel %vm586, %v5128, 0
        %v5211 = vsel %vm586, %v5129, 0
        %v5214 = vsel %vm586, %v5130, 0
        %v5217 = vsel %vm586, %v5131, 0
        %v5220 = vsel %vm586, %v5132, 0
        %v5223 = vsel %vm586, %v5133, 0
        %v5226 = vsel %vm586, %v5134, 0
        %v5229 = vsel %vm586, %v5135, 0
        %v5232 = vsel %vm586, %v5136, 0
        %v5235 = vsel %vm586, %v5137, 0
        %v5238 = vsel %vm586, %v5138, 0
        %5240 = vmatpush.msra.mxu0 0.0
        %5241 = vmatpush.msra.mxu0 0.0
        %5242 = vmatpush.msra.mxu0 0.0
        %5243 = vmatpush.msra.mxu0 0.0
        %5244 = vmatpush.msra.mxu0 0.0
        %5245 = vmatpush.msra.mxu0 0.0
        %5246 = vmatpush.msra.mxu0 0.0
        %5247 = vmatpush.msra.mxu0 0.0
        %5248 = vmatpush.msra.mxu0 0.0
        %5249 = vmatpush.msra.mxu0 0.0
        %5250 = vmatpush.msra.mxu0 0.0
        %5251 = vmatpush.msra.mxu0 0.0
        %5252 = vmatpush.msra.mxu0 %v5143
        %5253 = vmatpush.msra.mxu0 %v5142
        %5254 = vmatpush.msra.mxu0 %v5141
        %5255 = vmatpush.msra.mxu0 %v5140
        %5256 = vmatmul.f32.gmra.mxu0 %v5145
        %v5257 = vpop.f32.mrf.mxu0
        %v5258 = vadd.f32 0.0, %v5257
        %5259 = vmatmul.f32.gmra.mxu0 %v5148
        %v5260 = vpop.f32.mrf.mxu0
        %v5261 = vadd.f32 0.0, %v5260
        %5262 = vmatmul.f32.gmra.mxu0 %v5151
        %v5263 = vpop.f32.mrf.mxu0
        %v5264 = vadd.f32 0.0, %v5263
        %5265 = vmatmul.f32.gmra.mxu0 %v5154
        %v5266 = vpop.f32.mrf.mxu0
        %v5267 = vadd.f32 0.0, %v5266
        %5268 = vmatmul.f32.gmra.mxu0 %v5157
        %v5269 = vpop.f32.mrf.mxu0
        %v5270 = vadd.f32 0.0, %v5269
        %5271 = vmatmul.f32.gmra.mxu0 %v5160
        %v5272 = vpop.f32.mrf.mxu0
        %v5273 = vadd.f32 0.0, %v5272
        %5274 = vmatmul.f32.gmra.mxu0 %v5163
        %v5275 = vpop.f32.mrf.mxu0
        %v5276 = vadd.f32 0.0, %v5275
        %5277 = vmatmul.f32.gmra.mxu0 %v5166
        %v5278 = vpop.f32.mrf.mxu0
        %v5279 = vadd.f32 0.0, %v5278
        %5280 = vmatmul.f32.gmra.mxu0 %v5169
        %v5281 = vpop.f32.mrf.mxu0
        %v5282 = vadd.f32 0.0, %v5281
        %5283 = vmatmul.f32.gmra.mxu0 %v5172
        %v5284 = vpop.f32.mrf.mxu0
        %v5285 = vadd.f32 0.0, %v5284
        %5286 = vmatmul.f32.gmra.mxu0 %v5175
        %v5287 = vpop.f32.mrf.mxu0
        %v5288 = vadd.f32 0.0, %v5287
        %5289 = vmatmul.f32.gmra.mxu0 %v5178
        %v5290 = vpop.f32.mrf.mxu0
        %v5291 = vadd.f32 0.0, %v5290
        %5292 = vmatmul.f32.gmra.mxu0 %v5181
        %v5293 = vpop.f32.mrf.mxu0
        %v5294 = vadd.f32 0.0, %v5293
        %5295 = vmatmul.f32.gmra.mxu0 %v5184
        %v5296 = vpop.f32.mrf.mxu0
        %v5297 = vadd.f32 0.0, %v5296
        %5298 = vmatmul.f32.gmra.mxu0 %v5187
        %v5299 = vpop.f32.mrf.mxu0
        %v5300 = vadd.f32 0.0, %v5299
        %5301 = vmatmul.f32.gmra.mxu0 %v5190
        %v5302 = vpop.f32.mrf.mxu0
        %v5303 = vadd.f32 0.0, %v5302
        %5304 = vmatmul.f32.gmra.mxu0 %v5193
        %v5305 = vpop.f32.mrf.mxu0
        %v5306 = vadd.f32 0.0, %v5305
        %5307 = vmatmul.f32.gmra.mxu0 %v5196
        %v5308 = vpop.f32.mrf.mxu0
        %v5309 = vadd.f32 0.0, %v5308
        %5310 = vmatmul.f32.gmra.mxu0 %v5199
        %v5311 = vpop.f32.mrf.mxu0
        %v5312 = vadd.f32 0.0, %v5311
        %5313 = vmatmul.f32.gmra.mxu0 %v5202
        %v5314 = vpop.f32.mrf.mxu0
        %v5315 = vadd.f32 0.0, %v5314
        %5316 = vmatmul.f32.gmra.mxu0 %v5205
        %v5317 = vpop.f32.mrf.mxu0
        %v5318 = vadd.f32 0.0, %v5317
        %5319 = vmatmul.f32.gmra.mxu0 %v5208
        %v5320 = vpop.f32.mrf.mxu0
        %v5321 = vadd.f32 0.0, %v5320
        %5322 = vmatmul.f32.gmra.mxu0 %v5211
        %v5323 = vpop.f32.mrf.mxu0
        %v5324 = vadd.f32 0.0, %v5323
        %5325 = vmatmul.f32.gmra.mxu0 %v5214
        %v5326 = vpop.f32.mrf.mxu0
        %v5327 = vadd.f32 0.0, %v5326
        %5328 = vmatmul.f32.gmra.mxu0 %v5217
        %v5329 = vpop.f32.mrf.mxu0
        %v5330 = vadd.f32 0.0, %v5329
        %5331 = vmatmul.f32.gmra.mxu0 %v5220
        %v5332 = vpop.f32.mrf.mxu0
        %v5333 = vadd.f32 0.0, %v5332
        %5334 = vmatmul.f32.gmra.mxu0 %v5223
        %v5335 = vpop.f32.mrf.mxu0
        %v5336 = vadd.f32 0.0, %v5335
        %5337 = vmatmul.f32.gmra.mxu0 %v5226
        %v5338 = vpop.f32.mrf.mxu0
        %v5339 = vadd.f32 0.0, %v5338
        %5340 = vmatmul.f32.gmra.mxu0 %v5229
        %v5341 = vpop.f32.mrf.mxu0
        %v5342 = vadd.f32 0.0, %v5341
        %5343 = vmatmul.f32.gmra.mxu0 %v5232
        %v5344 = vpop.f32.mrf.mxu0
        %v5345 = vadd.f32 0.0, %v5344
        %5346 = vmatmul.f32.gmra.mxu0 %v5235
        %v5347 = vpop.f32.mrf.mxu0
        %v5348 = vadd.f32 0.0, %v5347
        %5349 = vmatmul.f32.gmra.mxu0 %v5238
        %v5350 = vpop.f32.mrf.mxu0
        %v5351 = vadd.f32 0.0, %v5350
        %5352 = vdwg.mxu0
        %v5353 = vadd.f32 %v4980, %v5258
        %v5354 = vadd.f32 %v4983, %v5261
        %v5355 = vadd.f32 %v4986, %v5264
        %v5356 = vadd.f32 %v4989, %v5267
        %v5357 = vadd.f32 %v4992, %v5270
        %v5358 = vadd.f32 %v4995, %v5273
        %v5359 = vadd.f32 %v4998, %v5276
        %v5360 = vadd.f32 %v5001, %v5279
        %v5361 = vadd.f32 %v5004, %v5282
        %v5362 = vadd.f32 %v5007, %v5285
        %v5363 = vadd.f32 %v5010, %v5288
        %v5364 = vadd.f32 %v5013, %v5291
        %v5365 = vadd.f32 %v5016, %v5294
        %v5366 = vadd.f32 %v5019, %v5297
        %v5367 = vadd.f32 %v5022, %v5300
        %v5368 = vadd.f32 %v5025, %v5303
        %v5369 = vadd.f32 %v5028, %v5306
        %v5370 = vadd.f32 %v5031, %v5309
        %v5371 = vadd.f32 %v5034, %v5312
        %v5372 = vadd.f32 %v5037, %v5315
        %v5373 = vadd.f32 %v5040, %v5318
        %v5374 = vadd.f32 %v5043, %v5321
        %v5375 = vadd.f32 %v5046, %v5324
        %v5376 = vadd.f32 %v5049, %v5327
        %v5377 = vadd.f32 %v5052, %v5330
        %v5378 = vadd.f32 %v5055, %v5333
        %v5379 = vadd.f32 %v5058, %v5336
        %v5380 = vadd.f32 %v5061, %v5339
        %v5381 = vadd.f32 %v5064, %v5342
        %v5382 = vadd.f32 %v5067, %v5345
        %v5383 = vadd.f32 %v5070, %v5348
        %v5384 = vadd.f32 %v5073, %v5351
        %v5385 = vld [vmem:[#allocation2 + $0x17] sm:$0xff]
        %v5386 = vld [vmem:[#allocation2 + $0x1f] sm:$0xff]
        %v5387 = vld [vmem:[#allocation2 + $0x27] sm:$0xff]
        %v5388 = vld [vmem:[#allocation2 + $0x2f] sm:$0xff]
        %v5389 = vld [vmem:[#allocation2 + $0x37] sm:$0xff]
        %v5390 = vld [vmem:[#allocation2 + $0x3f] sm:$0xff]
        %v5391 = vld [vmem:[#allocation2 + $0x47] sm:$0xff]
        %v5392 = vld [vmem:[#allocation2 + $0x4f] sm:$0xff]
        %v5393 = vld [vmem:[#allocation2 + $0x57] sm:$0xff]
        %v5394 = vld [vmem:[#allocation2 + $0x5f] sm:$0xff]
        %v5395 = vld [vmem:[#allocation2 + $0x67] sm:$0xff]
        %v5396 = vld [vmem:[#allocation2 + $0x6f] sm:$0xff]
        %v5397 = vld [vmem:[#allocation2 + $0x77] sm:$0xff]
        %v5398 = vld [vmem:[#allocation2 + $0x7f] sm:$0xff]
        %v5399 = vld [vmem:[#allocation2 + $0x87] sm:$0xff]
        %v5400 = vld [vmem:[#allocation2 + $0x8f] sm:$0xff]
        %v5401 = vld [vmem:[#allocation2 + $0x97] sm:$0xff]
        %v5402 = vld [vmem:[#allocation2 + $0x9f] sm:$0xff]
        %v5403 = vld [vmem:[#allocation2 + $0xa7] sm:$0xff]
        %v5404 = vld [vmem:[#allocation2 + $0xaf] sm:$0xff]
        %v5405 = vld [vmem:[#allocation2 + $0xb7] sm:$0xff]
        %v5406 = vld [vmem:[#allocation2 + $0xbf] sm:$0xff]
        %v5407 = vld [vmem:[#allocation2 + $0xc7] sm:$0xff]
        %v5408 = vld [vmem:[#allocation2 + $0xcf] sm:$0xff]
        %v5409 = vld [vmem:[#allocation2 + $0xd7] sm:$0xff]
        %v5410 = vld [vmem:[#allocation2 + $0xdf] sm:$0xff]
        %v5411 = vld [vmem:[#allocation2 + $0xe7] sm:$0xff]
        %v5412 = vld [vmem:[#allocation2 + $0xef] sm:$0xff]
        %v5413 = vld [vmem:[#allocation2 + $0xf7] sm:$0xff]
        %v5414 = vld [vmem:[#allocation2 + $0xff] sm:$0xff]
        %v5415 = vld [vmem:[#allocation2 + $0x107] sm:$0xff]
        %v5416 = vld [vmem:[#allocation2 + $0x10f] sm:$0xff]
        %v5417 = vmul.f32 %v5385, %v1106
        %v5418 = vmul.f32 %v5386, %v1107
        %v5419 = vmul.f32 %v5387, %v1108
        %v5420 = vmul.f32 %v5388, %v1109
        %v5421 = vmul.f32 %v5389, %v1110
        %v5422 = vmul.f32 %v5390, %v1111
        %v5423 = vmul.f32 %v5391, %v1112
        %v5424 = vmul.f32 %v5392, %v1113
        %v5425 = vmul.f32 %v5393, %v1114
        %v5426 = vmul.f32 %v5394, %v1115
        %v5427 = vmul.f32 %v5395, %v1116
        %v5428 = vmul.f32 %v5396, %v1117
        %v5429 = vmul.f32 %v5397, %v1118
        %v5430 = vmul.f32 %v5398, %v1119
        %v5431 = vmul.f32 %v5399, %v1120
        %v5432 = vmul.f32 %v5400, %v1121
        %v5433 = vmul.f32 %v5401, %v1122
        %v5434 = vmul.f32 %v5402, %v1123
        %v5435 = vmul.f32 %v5403, %v1124
        %v5436 = vmul.f32 %v5404, %v1125
        %v5437 = vmul.f32 %v5405, %v1126
        %v5438 = vmul.f32 %v5406, %v1127
        %v5439 = vmul.f32 %v5407, %v1128
        %v5440 = vmul.f32 %v5408, %v1129
        %v5441 = vmul.f32 %v5409, %v1130
        %v5442 = vmul.f32 %v5410, %v1131
        %v5443 = vmul.f32 %v5411, %v1132
        %v5444 = vmul.f32 %v5412, %v1133
        %v5445 = vmul.f32 %v5413, %v1134
        %v5446 = vmul.f32 %v5414, %v1135
        %v5447 = vmul.f32 %v5415, %v1136
        %v5448 = vmul.f32 %v5416, %v1137
        %s5449 = scalar_lea.vmem [#allocation3], 96
        %v5450 = vld [vmem:[%s5449] sm:$0xff]
        %v5451 = vld [vmem:[%s5449 + $0x8] sm:$0xff]
        %v5452 = vld [vmem:[%s5449 + $0x10] sm:$0xff]
        %v5453 = vld [vmem:[%s5449 + $0x18] sm:$0xff]
        %v5455 = vsel %vm586, %v5417, 0
        %v5458 = vsel %vm586, %v5418, 0
        %v5461 = vsel %vm586, %v5419, 0
        %v5464 = vsel %vm586, %v5420, 0
        %v5467 = vsel %vm586, %v5421, 0
        %v5470 = vsel %vm586, %v5422, 0
        %v5473 = vsel %vm586, %v5423, 0
        %v5476 = vsel %vm586, %v5424, 0
        %v5479 = vsel %vm586, %v5425, 0
        %v5482 = vsel %vm586, %v5426, 0
        %v5485 = vsel %vm586, %v5427, 0
        %v5488 = vsel %vm586, %v5428, 0
        %v5491 = vsel %vm586, %v5429, 0
        %v5494 = vsel %vm586, %v5430, 0
        %v5497 = vsel %vm586, %v5431, 0
        %v5500 = vsel %vm586, %v5432, 0
        %v5503 = vsel %vm586, %v5433, 0
        %v5506 = vsel %vm586, %v5434, 0
        %v5509 = vsel %vm586, %v5435, 0
        %v5512 = vsel %vm586, %v5436, 0
        %v5515 = vsel %vm586, %v5437, 0
        %v5518 = vsel %vm586, %v5438, 0
        %v5521 = vsel %vm586, %v5439, 0
        %v5524 = vsel %vm586, %v5440, 0
        %v5527 = vsel %vm586, %v5441, 0
        %v5530 = vsel %vm586, %v5442, 0
        %v5533 = vsel %vm586, %v5443, 0
        %v5536 = vsel %vm586, %v5444, 0
        %v5539 = vsel %vm586, %v5445, 0
        %v5542 = vsel %vm586, %v5446, 0
        %v5545 = vsel %vm586, %v5447, 0
        %v5548 = vsel %vm586, %v5448, 0
        %5550 = vmatpush.msra.mxu0 0.0
        %5551 = vmatpush.msra.mxu0 0.0
        %5552 = vmatpush.msra.mxu0 0.0
        %5553 = vmatpush.msra.mxu0 0.0
        %5554 = vmatpush.msra.mxu0 0.0
        %5555 = vmatpush.msra.mxu0 0.0
        %5556 = vmatpush.msra.mxu0 0.0
        %5557 = vmatpush.msra.mxu0 0.0
        %5558 = vmatpush.msra.mxu0 0.0
        %5559 = vmatpush.msra.mxu0 0.0
        %5560 = vmatpush.msra.mxu0 0.0
        %5561 = vmatpush.msra.mxu0 0.0
        %5562 = vmatpush.msra.mxu0 %v5453
        %5563 = vmatpush.msra.mxu0 %v5452
        %5564 = vmatpush.msra.mxu0 %v5451
        %5565 = vmatpush.msra.mxu0 %v5450
        %5566 = vmatmul.f32.gmra.mxu0 %v5455
        %v5567 = vpop.f32.mrf.mxu0
        %v5568 = vadd.f32 0.0, %v5567
        %5569 = vmatmul.f32.gmra.mxu0 %v5458
        %v5570 = vpop.f32.mrf.mxu0
        %v5571 = vadd.f32 0.0, %v5570
        %5572 = vmatmul.f32.gmra.mxu0 %v5461
        %v5573 = vpop.f32.mrf.mxu0
        %v5574 = vadd.f32 0.0, %v5573
        %5575 = vmatmul.f32.gmra.mxu0 %v5464
        %v5576 = vpop.f32.mrf.mxu0
        %v5577 = vadd.f32 0.0, %v5576
        %5578 = vmatmul.f32.gmra.mxu0 %v5467
        %v5579 = vpop.f32.mrf.mxu0
        %v5580 = vadd.f32 0.0, %v5579
        %5581 = vmatmul.f32.gmra.mxu0 %v5470
        %v5582 = vpop.f32.mrf.mxu0
        %v5583 = vadd.f32 0.0, %v5582
        %5584 = vmatmul.f32.gmra.mxu0 %v5473
        %v5585 = vpop.f32.mrf.mxu0
        %v5586 = vadd.f32 0.0, %v5585
        %5587 = vmatmul.f32.gmra.mxu0 %v5476
        %v5588 = vpop.f32.mrf.mxu0
        %v5589 = vadd.f32 0.0, %v5588
        %5590 = vmatmul.f32.gmra.mxu0 %v5479
        %v5591 = vpop.f32.mrf.mxu0
        %v5592 = vadd.f32 0.0, %v5591
        %5593 = vmatmul.f32.gmra.mxu0 %v5482
        %v5594 = vpop.f32.mrf.mxu0
        %v5595 = vadd.f32 0.0, %v5594
        %5596 = vmatmul.f32.gmra.mxu0 %v5485
        %v5597 = vpop.f32.mrf.mxu0
        %v5598 = vadd.f32 0.0, %v5597
        %5599 = vmatmul.f32.gmra.mxu0 %v5488
        %v5600 = vpop.f32.mrf.mxu0
        %v5601 = vadd.f32 0.0, %v5600
        %5602 = vmatmul.f32.gmra.mxu0 %v5491
        %v5603 = vpop.f32.mrf.mxu0
        %v5604 = vadd.f32 0.0, %v5603
        %5605 = vmatmul.f32.gmra.mxu0 %v5494
        %v5606 = vpop.f32.mrf.mxu0
        %v5607 = vadd.f32 0.0, %v5606
        %5608 = vmatmul.f32.gmra.mxu0 %v5497
        %v5609 = vpop.f32.mrf.mxu0
        %v5610 = vadd.f32 0.0, %v5609
        %5611 = vmatmul.f32.gmra.mxu0 %v5500
        %v5612 = vpop.f32.mrf.mxu0
        %v5613 = vadd.f32 0.0, %v5612
        %5614 = vmatmul.f32.gmra.mxu0 %v5503
        %v5615 = vpop.f32.mrf.mxu0
        %v5616 = vadd.f32 0.0, %v5615
        %5617 = vmatmul.f32.gmra.mxu0 %v5506
        %v5618 = vpop.f32.mrf.mxu0
        %v5619 = vadd.f32 0.0, %v5618
        %5620 = vmatmul.f32.gmra.mxu0 %v5509
        %v5621 = vpop.f32.mrf.mxu0
        %v5622 = vadd.f32 0.0, %v5621
        %5623 = vmatmul.f32.gmra.mxu0 %v5512
        %v5624 = vpop.f32.mrf.mxu0
        %v5625 = vadd.f32 0.0, %v5624
        %5626 = vmatmul.f32.gmra.mxu0 %v5515
        %v5627 = vpop.f32.mrf.mxu0
        %v5628 = vadd.f32 0.0, %v5627
        %5629 = vmatmul.f32.gmra.mxu0 %v5518
        %v5630 = vpop.f32.mrf.mxu0
        %v5631 = vadd.f32 0.0, %v5630
        %5632 = vmatmul.f32.gmra.mxu0 %v5521
        %v5633 = vpop.f32.mrf.mxu0
        %v5634 = vadd.f32 0.0, %v5633
        %5635 = vmatmul.f32.gmra.mxu0 %v5524
        %v5636 = vpop.f32.mrf.mxu0
        %v5637 = vadd.f32 0.0, %v5636
        %5638 = vmatmul.f32.gmra.mxu0 %v5527
        %v5639 = vpop.f32.mrf.mxu0
        %v5640 = vadd.f32 0.0, %v5639
        %5641 = vmatmul.f32.gmra.mxu0 %v5530
        %v5642 = vpop.f32.mrf.mxu0
        %v5643 = vadd.f32 0.0, %v5642
        %5644 = vmatmul.f32.gmra.mxu0 %v5533
        %v5645 = vpop.f32.mrf.mxu0
        %v5646 = vadd.f32 0.0, %v5645
        %5647 = vmatmul.f32.gmra.mxu0 %v5536
        %v5648 = vpop.f32.mrf.mxu0
        %v5649 = vadd.f32 0.0, %v5648
        %5650 = vmatmul.f32.gmra.mxu0 %v5539
        %v5651 = vpop.f32.mrf.mxu0
        %v5652 = vadd.f32 0.0, %v5651
        %5653 = vmatmul.f32.gmra.mxu0 %v5542
        %v5654 = vpop.f32.mrf.mxu0
        %v5655 = vadd.f32 0.0, %v5654
        %5656 = vmatmul.f32.gmra.mxu0 %v5545
        %v5657 = vpop.f32.mrf.mxu0
        %v5658 = vadd.f32 0.0, %v5657
        %5659 = vmatmul.f32.gmra.mxu0 %v5548
        %v5660 = vpop.f32.mrf.mxu0
        %v5661 = vadd.f32 0.0, %v5660
        %5662 = vdwg.mxu0
        %v5663 = vadd.f32 %v5353, %v5568
        %v5664 = vadd.f32 %v5354, %v5571
        %v5665 = vadd.f32 %v5355, %v5574
        %v5666 = vadd.f32 %v5356, %v5577
        %v5667 = vadd.f32 %v5357, %v5580
        %v5668 = vadd.f32 %v5358, %v5583
        %v5669 = vadd.f32 %v5359, %v5586
        %v5670 = vadd.f32 %v5360, %v5589
        %v5671 = vadd.f32 %v5361, %v5592
        %v5672 = vadd.f32 %v5362, %v5595
        %v5673 = vadd.f32 %v5363, %v5598
        %v5674 = vadd.f32 %v5364, %v5601
        %v5675 = vadd.f32 %v5365, %v5604
        %v5676 = vadd.f32 %v5366, %v5607
        %v5677 = vadd.f32 %v5367, %v5610
        %v5678 = vadd.f32 %v5368, %v5613
        %v5679 = vadd.f32 %v5369, %v5616
        %v5680 = vadd.f32 %v5370, %v5619
        %v5681 = vadd.f32 %v5371, %v5622
        %v5682 = vadd.f32 %v5372, %v5625
        %v5683 = vadd.f32 %v5373, %v5628
        %v5684 = vadd.f32 %v5374, %v5631
        %v5685 = vadd.f32 %v5375, %v5634
        %v5686 = vadd.f32 %v5376, %v5637
        %v5687 = vadd.f32 %v5377, %v5640
        %v5688 = vadd.f32 %v5378, %v5643
        %v5689 = vadd.f32 %v5379, %v5646
        %v5690 = vadd.f32 %v5380, %v5649
        %v5691 = vadd.f32 %v5381, %v5652
        %v5692 = vadd.f32 %v5382, %v5655
        %v5693 = vadd.f32 %v5383, %v5658
        %v5694 = vadd.f32 %v5384, %v5661
        %v5695 = vld [vmem:[#allocation2 + $0x18] sm:$0xff]
        %v5696 = vld [vmem:[#allocation2 + $0x20] sm:$0xff]
        %v5697 = vld [vmem:[#allocation2 + $0x28] sm:$0xff]
        %v5698 = vld [vmem:[#allocation2 + $0x30] sm:$0xff]
        %v5699 = vld [vmem:[#allocation2 + $0x38] sm:$0xff]
        %v5700 = vld [vmem:[#allocation2 + $0x40] sm:$0xff]
        %v5701 = vld [vmem:[#allocation2 + $0x48] sm:$0xff]
        %v5702 = vld [vmem:[#allocation2 + $0x50] sm:$0xff]
        %v5703 = vld [vmem:[#allocation2 + $0x58] sm:$0xff]
        %v5704 = vld [vmem:[#allocation2 + $0x60] sm:$0xff]
        %v5705 = vld [vmem:[#allocation2 + $0x68] sm:$0xff]
        %v5706 = vld [vmem:[#allocation2 + $0x70] sm:$0xff]
        %v5707 = vld [vmem:[#allocation2 + $0x78] sm:$0xff]
        %v5708 = vld [vmem:[#allocation2 + $0x80] sm:$0xff]
        %v5709 = vld [vmem:[#allocation2 + $0x88] sm:$0xff]
        %v5710 = vld [vmem:[#allocation2 + $0x90] sm:$0xff]
        %v5711 = vld [vmem:[#allocation2 + $0x98] sm:$0xff]
        %v5712 = vld [vmem:[#allocation2 + $0xa0] sm:$0xff]
        %v5713 = vld [vmem:[#allocation2 + $0xa8] sm:$0xff]
        %v5714 = vld [vmem:[#allocation2 + $0xb0] sm:$0xff]
        %v5715 = vld [vmem:[#allocation2 + $0xb8] sm:$0xff]
        %v5716 = vld [vmem:[#allocation2 + $0xc0] sm:$0xff]
        %v5717 = vld [vmem:[#allocation2 + $0xc8] sm:$0xff]
        %v5718 = vld [vmem:[#allocation2 + $0xd0] sm:$0xff]
        %v5719 = vld [vmem:[#allocation2 + $0xd8] sm:$0xff]
        %v5720 = vld [vmem:[#allocation2 + $0xe0] sm:$0xff]
        %v5721 = vld [vmem:[#allocation2 + $0xe8] sm:$0xff]
        %v5722 = vld [vmem:[#allocation2 + $0xf0] sm:$0xff]
        %v5723 = vld [vmem:[#allocation2 + $0xf8] sm:$0xff]
        %v5724 = vld [vmem:[#allocation2 + $0x100] sm:$0xff]
        %v5725 = vld [vmem:[#allocation2 + $0x108] sm:$0xff]
        %v5726 = vld [vmem:[#allocation2 + $0x110] sm:$0xff]
        %s5727 = scalar_lea.vmem [#allocation3], 128
        %v5728 = vld [vmem:[%s5727] sm:$0xff]
        %v5729 = vld [vmem:[%s5727 + $0x8] sm:$0xff]
        %v5730 = vld [vmem:[%s5727 + $0x10] sm:$0xff]
        %v5731 = vld [vmem:[%s5727 + $0x18] sm:$0xff]
        %v5733 = vsel %vm586, %v5695, 0
        %v5736 = vsel %vm586, %v5696, 0
        %v5739 = vsel %vm586, %v5697, 0
        %v5742 = vsel %vm586, %v5698, 0
        %v5745 = vsel %vm586, %v5699, 0
        %v5748 = vsel %vm586, %v5700, 0
        %v5751 = vsel %vm586, %v5701, 0
        %v5754 = vsel %vm586, %v5702, 0
        %v5757 = vsel %vm586, %v5703, 0
        %v5760 = vsel %vm586, %v5704, 0
        %v5763 = vsel %vm586, %v5705, 0
        %v5766 = vsel %vm586, %v5706, 0
        %v5769 = vsel %vm586, %v5707, 0
        %v5772 = vsel %vm586, %v5708, 0
        %v5775 = vsel %vm586, %v5709, 0
        %v5778 = vsel %vm586, %v5710, 0
        %v5781 = vsel %vm586, %v5711, 0
        %v5784 = vsel %vm586, %v5712, 0
        %v5787 = vsel %vm586, %v5713, 0
        %v5790 = vsel %vm586, %v5714, 0
        %v5793 = vsel %vm586, %v5715, 0
        %v5796 = vsel %vm586, %v5716, 0
        %v5799 = vsel %vm586, %v5717, 0
        %v5802 = vsel %vm586, %v5718, 0
        %v5805 = vsel %vm586, %v5719, 0
        %v5808 = vsel %vm586, %v5720, 0
        %v5811 = vsel %vm586, %v5721, 0
        %v5814 = vsel %vm586, %v5722, 0
        %v5817 = vsel %vm586, %v5723, 0
        %v5820 = vsel %vm586, %v5724, 0
        %v5823 = vsel %vm586, %v5725, 0
        %v5826 = vsel %vm586, %v5726, 0
        %5828 = vmatpush.msra.mxu0 0.0
        %5829 = vmatpush.msra.mxu0 0.0
        %5830 = vmatpush.msra.mxu0 0.0
        %5831 = vmatpush.msra.mxu0 0.0
        %5832 = vmatpush.msra.mxu0 0.0
        %5833 = vmatpush.msra.mxu0 0.0
        %5834 = vmatpush.msra.mxu0 0.0
        %5835 = vmatpush.msra.mxu0 0.0
        %5836 = vmatpush.msra.mxu0 0.0
        %5837 = vmatpush.msra.mxu0 0.0
        %5838 = vmatpush.msra.mxu0 0.0
        %5839 = vmatpush.msra.mxu0 0.0
        %5840 = vmatpush.msra.mxu0 %v5731
        %5841 = vmatpush.msra.mxu0 %v5730
        %5842 = vmatpush.msra.mxu0 %v5729
        %5843 = vmatpush.msra.mxu0 %v5728
        %5844 = vmatmul.f32.gmra.mxu0 %v5733
        %v5845 = vpop.f32.mrf.mxu0
        %v5846 = vadd.f32 0.0, %v5845
        %5847 = vmatmul.f32.gmra.mxu0 %v5736
        %v5848 = vpop.f32.mrf.mxu0
        %v5849 = vadd.f32 0.0, %v5848
        %5850 = vmatmul.f32.gmra.mxu0 %v5739
        %v5851 = vpop.f32.mrf.mxu0
        %v5852 = vadd.f32 0.0, %v5851
        %5853 = vmatmul.f32.gmra.mxu0 %v5742
        %v5854 = vpop.f32.mrf.mxu0
        %v5855 = vadd.f32 0.0, %v5854
        %5856 = vmatmul.f32.gmra.mxu0 %v5745
        %v5857 = vpop.f32.mrf.mxu0
        %v5858 = vadd.f32 0.0, %v5857
        %5859 = vmatmul.f32.gmra.mxu0 %v5748
        %v5860 = vpop.f32.mrf.mxu0
        %v5861 = vadd.f32 0.0, %v5860
        %5862 = vmatmul.f32.gmra.mxu0 %v5751
        %v5863 = vpop.f32.mrf.mxu0
        %v5864 = vadd.f32 0.0, %v5863
        %5865 = vmatmul.f32.gmra.mxu0 %v5754
        %v5866 = vpop.f32.mrf.mxu0
        %v5867 = vadd.f32 0.0, %v5866
        %5868 = vmatmul.f32.gmra.mxu0 %v5757
        %v5869 = vpop.f32.mrf.mxu0
        %v5870 = vadd.f32 0.0, %v5869
        %5871 = vmatmul.f32.gmra.mxu0 %v5760
        %v5872 = vpop.f32.mrf.mxu0
        %v5873 = vadd.f32 0.0, %v5872
        %5874 = vmatmul.f32.gmra.mxu0 %v5763
        %v5875 = vpop.f32.mrf.mxu0
        %v5876 = vadd.f32 0.0, %v5875
        %5877 = vmatmul.f32.gmra.mxu0 %v5766
        %v5878 = vpop.f32.mrf.mxu0
        %v5879 = vadd.f32 0.0, %v5878
        %5880 = vmatmul.f32.gmra.mxu0 %v5769
        %v5881 = vpop.f32.mrf.mxu0
        %v5882 = vadd.f32 0.0, %v5881
        %5883 = vmatmul.f32.gmra.mxu0 %v5772
        %v5884 = vpop.f32.mrf.mxu0
        %v5885 = vadd.f32 0.0, %v5884
        %5886 = vmatmul.f32.gmra.mxu0 %v5775
        %v5887 = vpop.f32.mrf.mxu0
        %v5888 = vadd.f32 0.0, %v5887
        %5889 = vmatmul.f32.gmra.mxu0 %v5778
        %v5890 = vpop.f32.mrf.mxu0
        %v5891 = vadd.f32 0.0, %v5890
        %5892 = vmatmul.f32.gmra.mxu0 %v5781
        %v5893 = vpop.f32.mrf.mxu0
        %v5894 = vadd.f32 0.0, %v5893
        %5895 = vmatmul.f32.gmra.mxu0 %v5784
        %v5896 = vpop.f32.mrf.mxu0
        %v5897 = vadd.f32 0.0, %v5896
        %5898 = vmatmul.f32.gmra.mxu0 %v5787
        %v5899 = vpop.f32.mrf.mxu0
        %v5900 = vadd.f32 0.0, %v5899
        %5901 = vmatmul.f32.gmra.mxu0 %v5790
        %v5902 = vpop.f32.mrf.mxu0
        %v5903 = vadd.f32 0.0, %v5902
        %5904 = vmatmul.f32.gmra.mxu0 %v5793
        %v5905 = vpop.f32.mrf.mxu0
        %v5906 = vadd.f32 0.0, %v5905
        %5907 = vmatmul.f32.gmra.mxu0 %v5796
        %v5908 = vpop.f32.mrf.mxu0
        %v5909 = vadd.f32 0.0, %v5908
        %5910 = vmatmul.f32.gmra.mxu0 %v5799
        %v5911 = vpop.f32.mrf.mxu0
        %v5912 = vadd.f32 0.0, %v5911
        %5913 = vmatmul.f32.gmra.mxu0 %v5802
        %v5914 = vpop.f32.mrf.mxu0
        %v5915 = vadd.f32 0.0, %v5914
        %5916 = vmatmul.f32.gmra.mxu0 %v5805
        %v5917 = vpop.f32.mrf.mxu0
        %v5918 = vadd.f32 0.0, %v5917
        %5919 = vmatmul.f32.gmra.mxu0 %v5808
        %v5920 = vpop.f32.mrf.mxu0
        %v5921 = vadd.f32 0.0, %v5920
        %5922 = vmatmul.f32.gmra.mxu0 %v5811
        %v5923 = vpop.f32.mrf.mxu0
        %v5924 = vadd.f32 0.0, %v5923
        %5925 = vmatmul.f32.gmra.mxu0 %v5814
        %v5926 = vpop.f32.mrf.mxu0
        %v5927 = vadd.f32 0.0, %v5926
        %5928 = vmatmul.f32.gmra.mxu0 %v5817
        %v5929 = vpop.f32.mrf.mxu0
        %v5930 = vadd.f32 0.0, %v5929
        %5931 = vmatmul.f32.gmra.mxu0 %v5820
        %v5932 = vpop.f32.mrf.mxu0
        %v5933 = vadd.f32 0.0, %v5932
        %5934 = vmatmul.f32.gmra.mxu0 %v5823
        %v5935 = vpop.f32.mrf.mxu0
        %v5936 = vadd.f32 0.0, %v5935
        %5937 = vmatmul.f32.gmra.mxu0 %v5826
        %v5938 = vpop.f32.mrf.mxu0
        %v5939 = vadd.f32 0.0, %v5938
        %5940 = vdwg.mxu0
        %v5941 = vadd.f32 %v5663, %v5846
        %v5942 = vadd.f32 %v5664, %v5849
        %v5943 = vadd.f32 %v5665, %v5852
        %v5944 = vadd.f32 %v5666, %v5855
        %v5945 = vadd.f32 %v5667, %v5858
        %v5946 = vadd.f32 %v5668, %v5861
        %v5947 = vadd.f32 %v5669, %v5864
        %v5948 = vadd.f32 %v5670, %v5867
        %v5949 = vadd.f32 %v5671, %v5870
        %v5950 = vadd.f32 %v5672, %v5873
        %v5951 = vadd.f32 %v5673, %v5876
        %v5952 = vadd.f32 %v5674, %v5879
        %v5953 = vadd.f32 %v5675, %v5882
        %v5954 = vadd.f32 %v5676, %v5885
        %v5955 = vadd.f32 %v5677, %v5888
        %v5956 = vadd.f32 %v5678, %v5891
        %v5957 = vadd.f32 %v5679, %v5894
        %v5958 = vadd.f32 %v5680, %v5897
        %v5959 = vadd.f32 %v5681, %v5900
        %v5960 = vadd.f32 %v5682, %v5903
        %v5961 = vadd.f32 %v5683, %v5906
        %v5962 = vadd.f32 %v5684, %v5909
        %v5963 = vadd.f32 %v5685, %v5912
        %v5964 = vadd.f32 %v5686, %v5915
        %v5965 = vadd.f32 %v5687, %v5918
        %v5966 = vadd.f32 %v5688, %v5921
        %v5967 = vadd.f32 %v5689, %v5924
        %v5968 = vadd.f32 %v5690, %v5927
        %v5969 = vadd.f32 %v5691, %v5930
        %v5970 = vadd.f32 %v5692, %v5933
        %v5971 = vadd.f32 %v5693, %v5936
        %v5972 = vadd.f32 %v5694, %v5939
        %v5973 = vld [vmem:[#allocation2 + $0x19] sm:$0xff]
        %v5974 = vld [vmem:[#allocation2 + $0x21] sm:$0xff]
        %v5975 = vld [vmem:[#allocation2 + $0x29] sm:$0xff]
        %v5976 = vld [vmem:[#allocation2 + $0x31] sm:$0xff]
        %v5977 = vld [vmem:[#allocation2 + $0x39] sm:$0xff]
        %v5978 = vld [vmem:[#allocation2 + $0x41] sm:$0xff]
        %v5979 = vld [vmem:[#allocation2 + $0x49] sm:$0xff]
        %v5980 = vld [vmem:[#allocation2 + $0x51] sm:$0xff]
        %v5981 = vld [vmem:[#allocation2 + $0x59] sm:$0xff]
        %v5982 = vld [vmem:[#allocation2 + $0x61] sm:$0xff]
        %v5983 = vld [vmem:[#allocation2 + $0x69] sm:$0xff]
        %v5984 = vld [vmem:[#allocation2 + $0x71] sm:$0xff]
        %v5985 = vld [vmem:[#allocation2 + $0x79] sm:$0xff]
        %v5986 = vld [vmem:[#allocation2 + $0x81] sm:$0xff]
        %v5987 = vld [vmem:[#allocation2 + $0x89] sm:$0xff]
        %v5988 = vld [vmem:[#allocation2 + $0x91] sm:$0xff]
        %v5989 = vld [vmem:[#allocation2 + $0x99] sm:$0xff]
        %v5990 = vld [vmem:[#allocation2 + $0xa1] sm:$0xff]
        %v5991 = vld [vmem:[#allocation2 + $0xa9] sm:$0xff]
        %v5992 = vld [vmem:[#allocation2 + $0xb1] sm:$0xff]
        %v5993 = vld [vmem:[#allocation2 + $0xb9] sm:$0xff]
        %v5994 = vld [vmem:[#allocation2 + $0xc1] sm:$0xff]
        %v5995 = vld [vmem:[#allocation2 + $0xc9] sm:$0xff]
        %v5996 = vld [vmem:[#allocation2 + $0xd1] sm:$0xff]
        %v5997 = vld [vmem:[#allocation2 + $0xd9] sm:$0xff]
        %v5998 = vld [vmem:[#allocation2 + $0xe1] sm:$0xff]
        %v5999 = vld [vmem:[#allocation2 + $0xe9] sm:$0xff]
        %v6000 = vld [vmem:[#allocation2 + $0xf1] sm:$0xff]
        %v6001 = vld [vmem:[#allocation2 + $0xf9] sm:$0xff]
        %v6002 = vld [vmem:[#allocation2 + $0x101] sm:$0xff]
        %v6003 = vld [vmem:[#allocation2 + $0x109] sm:$0xff]
        %v6004 = vld [vmem:[#allocation2 + $0x111] sm:$0xff]
        %v6005 = vmul.f32 %v5973, %v1202
        %v6006 = vmul.f32 %v5974, %v1203
        %v6007 = vmul.f32 %v5975, %v1204
        %v6008 = vmul.f32 %v5976, %v1205
        %v6009 = vmul.f32 %v5977, %v1206
        %v6010 = vmul.f32 %v5978, %v1207
        %v6011 = vmul.f32 %v5979, %v1208
        %v6012 = vmul.f32 %v5980, %v1209
        %v6013 = vmul.f32 %v5981, %v1210
        %v6014 = vmul.f32 %v5982, %v1211
        %v6015 = vmul.f32 %v5983, %v1212
        %v6016 = vmul.f32 %v5984, %v1213
        %v6017 = vmul.f32 %v5985, %v1214
        %v6018 = vmul.f32 %v5986, %v1215
        %v6019 = vmul.f32 %v5987, %v1216
        %v6020 = vmul.f32 %v5988, %v1217
        %v6021 = vmul.f32 %v5989, %v1218
        %v6022 = vmul.f32 %v5990, %v1219
        %v6023 = vmul.f32 %v5991, %v1220
        %v6024 = vmul.f32 %v5992, %v1221
        %v6025 = vmul.f32 %v5993, %v1222
        %v6026 = vmul.f32 %v5994, %v1223
        %v6027 = vmul.f32 %v5995, %v1224
        %v6028 = vmul.f32 %v5996, %v1225
        %v6029 = vmul.f32 %v5997, %v1226
        %v6030 = vmul.f32 %v5998, %v1227
        %v6031 = vmul.f32 %v5999, %v1228
        %v6032 = vmul.f32 %v6000, %v1229
        %v6033 = vmul.f32 %v6001, %v1230
        %v6034 = vmul.f32 %v6002, %v1231
        %v6035 = vmul.f32 %v6003, %v1232
        %v6036 = vmul.f32 %v6004, %v1233
        %s6037 = scalar_lea.vmem [#allocation3], 160
        %v6038 = vld [vmem:[%s6037] sm:$0xff]
        %v6039 = vld [vmem:[%s6037 + $0x8] sm:$0xff]
        %v6040 = vld [vmem:[%s6037 + $0x10] sm:$0xff]
        %v6041 = vld [vmem:[%s6037 + $0x18] sm:$0xff]
        %v6043 = vsel %vm586, %v6005, 0
        %v6046 = vsel %vm586, %v6006, 0
        %v6049 = vsel %vm586, %v6007, 0
        %v6052 = vsel %vm586, %v6008, 0
        %v6055 = vsel %vm586, %v6009, 0
        %v6058 = vsel %vm586, %v6010, 0
        %v6061 = vsel %vm586, %v6011, 0
        %v6064 = vsel %vm586, %v6012, 0
        %v6067 = vsel %vm586, %v6013, 0
        %v6070 = vsel %vm586, %v6014, 0
        %v6073 = vsel %vm586, %v6015, 0
        %v6076 = vsel %vm586, %v6016, 0
        %v6079 = vsel %vm586, %v6017, 0
        %v6082 = vsel %vm586, %v6018, 0
        %v6085 = vsel %vm586, %v6019, 0
        %v6088 = vsel %vm586, %v6020, 0
        %v6091 = vsel %vm586, %v6021, 0
        %v6094 = vsel %vm586, %v6022, 0
        %v6097 = vsel %vm586, %v6023, 0
        %v6100 = vsel %vm586, %v6024, 0
        %v6103 = vsel %vm586, %v6025, 0
        %v6106 = vsel %vm586, %v6026, 0
        %v6109 = vsel %vm586, %v6027, 0
        %v6112 = vsel %vm586, %v6028, 0
        %v6115 = vsel %vm586, %v6029, 0
        %v6118 = vsel %vm586, %v6030, 0
        %v6121 = vsel %vm586, %v6031, 0
        %v6124 = vsel %vm586, %v6032, 0
        %v6127 = vsel %vm586, %v6033, 0
        %v6130 = vsel %vm586, %v6034, 0
        %v6133 = vsel %vm586, %v6035, 0
        %v6136 = vsel %vm586, %v6036, 0
        %6138 = vmatpush.msra.mxu0 0.0
        %6139 = vmatpush.msra.mxu0 0.0
        %6140 = vmatpush.msra.mxu0 0.0
        %6141 = vmatpush.msra.mxu0 0.0
        %6142 = vmatpush.msra.mxu0 0.0
        %6143 = vmatpush.msra.mxu0 0.0
        %6144 = vmatpush.msra.mxu0 0.0
        %6145 = vmatpush.msra.mxu0 0.0
        %6146 = vmatpush.msra.mxu0 0.0
        %6147 = vmatpush.msra.mxu0 0.0
        %6148 = vmatpush.msra.mxu0 0.0
        %6149 = vmatpush.msra.mxu0 0.0
        %6150 = vmatpush.msra.mxu0 %v6041
        %6151 = vmatpush.msra.mxu0 %v6040
        %6152 = vmatpush.msra.mxu0 %v6039
        %6153 = vmatpush.msra.mxu0 %v6038
        %6154 = vmatmul.f32.gmra.mxu0 %v6043
        %v6155 = vpop.f32.mrf.mxu0
        %v6156 = vadd.f32 0.0, %v6155
        %6157 = vmatmul.f32.gmra.mxu0 %v6046
        %v6158 = vpop.f32.mrf.mxu0
        %v6159 = vadd.f32 0.0, %v6158
        %6160 = vmatmul.f32.gmra.mxu0 %v6049
        %v6161 = vpop.f32.mrf.mxu0
        %v6162 = vadd.f32 0.0, %v6161
        %6163 = vmatmul.f32.gmra.mxu0 %v6052
        %v6164 = vpop.f32.mrf.mxu0
        %v6165 = vadd.f32 0.0, %v6164
        %6166 = vmatmul.f32.gmra.mxu0 %v6055
        %v6167 = vpop.f32.mrf.mxu0
        %v6168 = vadd.f32 0.0, %v6167
        %6169 = vmatmul.f32.gmra.mxu0 %v6058
        %v6170 = vpop.f32.mrf.mxu0
        %v6171 = vadd.f32 0.0, %v6170
        %6172 = vmatmul.f32.gmra.mxu0 %v6061
        %v6173 = vpop.f32.mrf.mxu0
        %v6174 = vadd.f32 0.0, %v6173
        %6175 = vmatmul.f32.gmra.mxu0 %v6064
        %v6176 = vpop.f32.mrf.mxu0
        %v6177 = vadd.f32 0.0, %v6176
        %6178 = vmatmul.f32.gmra.mxu0 %v6067
        %v6179 = vpop.f32.mrf.mxu0
        %v6180 = vadd.f32 0.0, %v6179
        %6181 = vmatmul.f32.gmra.mxu0 %v6070
        %v6182 = vpop.f32.mrf.mxu0
        %v6183 = vadd.f32 0.0, %v6182
        %6184 = vmatmul.f32.gmra.mxu0 %v6073
        %v6185 = vpop.f32.mrf.mxu0
        %v6186 = vadd.f32 0.0, %v6185
        %6187 = vmatmul.f32.gmra.mxu0 %v6076
        %v6188 = vpop.f32.mrf.mxu0
        %v6189 = vadd.f32 0.0, %v6188
        %6190 = vmatmul.f32.gmra.mxu0 %v6079
        %v6191 = vpop.f32.mrf.mxu0
        %v6192 = vadd.f32 0.0, %v6191
        %6193 = vmatmul.f32.gmra.mxu0 %v6082
        %v6194 = vpop.f32.mrf.mxu0
        %v6195 = vadd.f32 0.0, %v6194
        %6196 = vmatmul.f32.gmra.mxu0 %v6085
        %v6197 = vpop.f32.mrf.mxu0
        %v6198 = vadd.f32 0.0, %v6197
        %6199 = vmatmul.f32.gmra.mxu0 %v6088
        %v6200 = vpop.f32.mrf.mxu0
        %v6201 = vadd.f32 0.0, %v6200
        %6202 = vmatmul.f32.gmra.mxu0 %v6091
        %v6203 = vpop.f32.mrf.mxu0
        %v6204 = vadd.f32 0.0, %v6203
        %6205 = vmatmul.f32.gmra.mxu0 %v6094
        %v6206 = vpop.f32.mrf.mxu0
        %v6207 = vadd.f32 0.0, %v6206
        %6208 = vmatmul.f32.gmra.mxu0 %v6097
        %v6209 = vpop.f32.mrf.mxu0
        %v6210 = vadd.f32 0.0, %v6209
        %6211 = vmatmul.f32.gmra.mxu0 %v6100
        %v6212 = vpop.f32.mrf.mxu0
        %v6213 = vadd.f32 0.0, %v6212
        %6214 = vmatmul.f32.gmra.mxu0 %v6103
        %v6215 = vpop.f32.mrf.mxu0
        %v6216 = vadd.f32 0.0, %v6215
        %6217 = vmatmul.f32.gmra.mxu0 %v6106
        %v6218 = vpop.f32.mrf.mxu0
        %v6219 = vadd.f32 0.0, %v6218
        %6220 = vmatmul.f32.gmra.mxu0 %v6109
        %v6221 = vpop.f32.mrf.mxu0
        %v6222 = vadd.f32 0.0, %v6221
        %6223 = vmatmul.f32.gmra.mxu0 %v6112
        %v6224 = vpop.f32.mrf.mxu0
        %v6225 = vadd.f32 0.0, %v6224
        %6226 = vmatmul.f32.gmra.mxu0 %v6115
        %v6227 = vpop.f32.mrf.mxu0
        %v6228 = vadd.f32 0.0, %v6227
        %6229 = vmatmul.f32.gmra.mxu0 %v6118
        %v6230 = vpop.f32.mrf.mxu0
        %v6231 = vadd.f32 0.0, %v6230
        %6232 = vmatmul.f32.gmra.mxu0 %v6121
        %v6233 = vpop.f32.mrf.mxu0
        %v6234 = vadd.f32 0.0, %v6233
        %6235 = vmatmul.f32.gmra.mxu0 %v6124
        %v6236 = vpop.f32.mrf.mxu0
        %v6237 = vadd.f32 0.0, %v6236
        %6238 = vmatmul.f32.gmra.mxu0 %v6127
        %v6239 = vpop.f32.mrf.mxu0
        %v6240 = vadd.f32 0.0, %v6239
        %6241 = vmatmul.f32.gmra.mxu0 %v6130
        %v6242 = vpop.f32.mrf.mxu0
        %v6243 = vadd.f32 0.0, %v6242
        %6244 = vmatmul.f32.gmra.mxu0 %v6133
        %v6245 = vpop.f32.mrf.mxu0
        %v6246 = vadd.f32 0.0, %v6245
        %6247 = vmatmul.f32.gmra.mxu0 %v6136
        %v6248 = vpop.f32.mrf.mxu0
        %v6249 = vadd.f32 0.0, %v6248
        %6250 = vdwg.mxu0
        %v6251 = vadd.f32 %v5941, %v6156
        %v6252 = vadd.f32 %v5942, %v6159
        %v6253 = vadd.f32 %v5943, %v6162
        %v6254 = vadd.f32 %v5944, %v6165
        %v6255 = vadd.f32 %v5945, %v6168
        %v6256 = vadd.f32 %v5946, %v6171
        %v6257 = vadd.f32 %v5947, %v6174
        %v6258 = vadd.f32 %v5948, %v6177
        %v6259 = vadd.f32 %v5949, %v6180
        %v6260 = vadd.f32 %v5950, %v6183
        %v6261 = vadd.f32 %v5951, %v6186
        %v6262 = vadd.f32 %v5952, %v6189
        %v6263 = vadd.f32 %v5953, %v6192
        %v6264 = vadd.f32 %v5954, %v6195
        %v6265 = vadd.f32 %v5955, %v6198
        %v6266 = vadd.f32 %v5956, %v6201
        %v6267 = vadd.f32 %v5957, %v6204
        %v6268 = vadd.f32 %v5958, %v6207
        %v6269 = vadd.f32 %v5959, %v6210
        %v6270 = vadd.f32 %v5960, %v6213
        %v6271 = vadd.f32 %v5961, %v6216
        %v6272 = vadd.f32 %v5962, %v6219
        %v6273 = vadd.f32 %v5963, %v6222
        %v6274 = vadd.f32 %v5964, %v6225
        %v6275 = vadd.f32 %v5965, %v6228
        %v6276 = vadd.f32 %v5966, %v6231
        %v6277 = vadd.f32 %v5967, %v6234
        %v6278 = vadd.f32 %v5968, %v6237
        %v6279 = vadd.f32 %v5969, %v6240
        %v6280 = vadd.f32 %v5970, %v6243
        %v6281 = vadd.f32 %v5971, %v6246
        %v6282 = vadd.f32 %v5972, %v6249
        %v6283 = vld [vmem:[#allocation2 + $0x27] sm:$0xff]
        %v6284 = vld [vmem:[#allocation2 + $0x2f] sm:$0xff]
        %v6285 = vld [vmem:[#allocation2 + $0x37] sm:$0xff]
        %v6286 = vld [vmem:[#allocation2 + $0x3f] sm:$0xff]
        %v6287 = vld [vmem:[#allocation2 + $0x47] sm:$0xff]
        %v6288 = vld [vmem:[#allocation2 + $0x4f] sm:$0xff]
        %v6289 = vld [vmem:[#allocation2 + $0x57] sm:$0xff]
        %v6290 = vld [vmem:[#allocation2 + $0x5f] sm:$0xff]
        %v6291 = vld [vmem:[#allocation2 + $0x67] sm:$0xff]
        %v6292 = vld [vmem:[#allocation2 + $0x6f] sm:$0xff]
        %v6293 = vld [vmem:[#allocation2 + $0x77] sm:$0xff]
        %v6294 = vld [vmem:[#allocation2 + $0x7f] sm:$0xff]
        %v6295 = vld [vmem:[#allocation2 + $0x87] sm:$0xff]
        %v6296 = vld [vmem:[#allocation2 + $0x8f] sm:$0xff]
        %v6297 = vld [vmem:[#allocation2 + $0x97] sm:$0xff]
        %v6298 = vld [vmem:[#allocation2 + $0x9f] sm:$0xff]
        %v6299 = vld [vmem:[#allocation2 + $0xa7] sm:$0xff]
        %v6300 = vld [vmem:[#allocation2 + $0xaf] sm:$0xff]
        %v6301 = vld [vmem:[#allocation2 + $0xb7] sm:$0xff]
        %v6302 = vld [vmem:[#allocation2 + $0xbf] sm:$0xff]
        %v6303 = vld [vmem:[#allocation2 + $0xc7] sm:$0xff]
        %v6304 = vld [vmem:[#allocation2 + $0xcf] sm:$0xff]
        %v6305 = vld [vmem:[#allocation2 + $0xd7] sm:$0xff]
        %v6306 = vld [vmem:[#allocation2 + $0xdf] sm:$0xff]
        %v6307 = vld [vmem:[#allocation2 + $0xe7] sm:$0xff]
        %v6308 = vld [vmem:[#allocation2 + $0xef] sm:$0xff]
        %v6309 = vld [vmem:[#allocation2 + $0xf7] sm:$0xff]
        %v6310 = vld [vmem:[#allocation2 + $0xff] sm:$0xff]
        %v6311 = vld [vmem:[#allocation2 + $0x107] sm:$0xff]
        %v6312 = vld [vmem:[#allocation2 + $0x10f] sm:$0xff]
        %v6313 = vld [vmem:[#allocation2 + $0x117] sm:$0xff]
        %v6314 = vld [vmem:[#allocation2 + $0x11f] sm:$0xff]
        %v6315 = vmul.f32 %v6283, %v1106
        %v6316 = vmul.f32 %v6284, %v1107
        %v6317 = vmul.f32 %v6285, %v1108
        %v6318 = vmul.f32 %v6286, %v1109
        %v6319 = vmul.f32 %v6287, %v1110
        %v6320 = vmul.f32 %v6288, %v1111
        %v6321 = vmul.f32 %v6289, %v1112
        %v6322 = vmul.f32 %v6290, %v1113
        %v6323 = vmul.f32 %v6291, %v1114
        %v6324 = vmul.f32 %v6292, %v1115
        %v6325 = vmul.f32 %v6293, %v1116
        %v6326 = vmul.f32 %v6294, %v1117
        %v6327 = vmul.f32 %v6295, %v1118
        %v6328 = vmul.f32 %v6296, %v1119
        %v6329 = vmul.f32 %v6297, %v1120
        %v6330 = vmul.f32 %v6298, %v1121
        %v6331 = vmul.f32 %v6299, %v1122
        %v6332 = vmul.f32 %v6300, %v1123
        %v6333 = vmul.f32 %v6301, %v1124
        %v6334 = vmul.f32 %v6302, %v1125
        %v6335 = vmul.f32 %v6303, %v1126
        %v6336 = vmul.f32 %v6304, %v1127
        %v6337 = vmul.f32 %v6305, %v1128
        %v6338 = vmul.f32 %v6306, %v1129
        %v6339 = vmul.f32 %v6307, %v1130
        %v6340 = vmul.f32 %v6308, %v1131
        %v6341 = vmul.f32 %v6309, %v1132
        %v6342 = vmul.f32 %v6310, %v1133
        %v6343 = vmul.f32 %v6311, %v1134
        %v6344 = vmul.f32 %v6312, %v1135
        %v6345 = vmul.f32 %v6313, %v1136
        %v6346 = vmul.f32 %v6314, %v1137
        %s6347 = scalar_lea.vmem [#allocation3], 192
        %v6348 = vld [vmem:[%s6347] sm:$0xff]
        %v6349 = vld [vmem:[%s6347 + $0x8] sm:$0xff]
        %v6350 = vld [vmem:[%s6347 + $0x10] sm:$0xff]
        %v6351 = vld [vmem:[%s6347 + $0x18] sm:$0xff]
        %v6353 = vsel %vm586, %v6315, 0
        %v6356 = vsel %vm586, %v6316, 0
        %v6359 = vsel %vm586, %v6317, 0
        %v6362 = vsel %vm586, %v6318, 0
        %v6365 = vsel %vm586, %v6319, 0
        %v6368 = vsel %vm586, %v6320, 0
        %v6371 = vsel %vm586, %v6321, 0
        %v6374 = vsel %vm586, %v6322, 0
        %v6377 = vsel %vm586, %v6323, 0
        %v6380 = vsel %vm586, %v6324, 0
        %v6383 = vsel %vm586, %v6325, 0
        %v6386 = vsel %vm586, %v6326, 0
        %v6389 = vsel %vm586, %v6327, 0
        %v6392 = vsel %vm586, %v6328, 0
        %v6395 = vsel %vm586, %v6329, 0
        %v6398 = vsel %vm586, %v6330, 0
        %v6401 = vsel %vm586, %v6331, 0
        %v6404 = vsel %vm586, %v6332, 0
        %v6407 = vsel %vm586, %v6333, 0
        %v6410 = vsel %vm586, %v6334, 0
        %v6413 = vsel %vm586, %v6335, 0
        %v6416 = vsel %vm586, %v6336, 0
        %v6419 = vsel %vm586, %v6337, 0
        %v6422 = vsel %vm586, %v6338, 0
        %v6425 = vsel %vm586, %v6339, 0
        %v6428 = vsel %vm586, %v6340, 0
        %v6431 = vsel %vm586, %v6341, 0
        %v6434 = vsel %vm586, %v6342, 0
        %v6437 = vsel %vm586, %v6343, 0
        %v6440 = vsel %vm586, %v6344, 0
        %v6443 = vsel %vm586, %v6345, 0
        %v6446 = vsel %vm586, %v6346, 0
        %6448 = vmatpush.msra.mxu0 0.0
        %6449 = vmatpush.msra.mxu0 0.0
        %6450 = vmatpush.msra.mxu0 0.0
        %6451 = vmatpush.msra.mxu0 0.0
        %6452 = vmatpush.msra.mxu0 0.0
        %6453 = vmatpush.msra.mxu0 0.0
        %6454 = vmatpush.msra.mxu0 0.0
        %6455 = vmatpush.msra.mxu0 0.0
        %6456 = vmatpush.msra.mxu0 0.0
        %6457 = vmatpush.msra.mxu0 0.0
        %6458 = vmatpush.msra.mxu0 0.0
        %6459 = vmatpush.msra.mxu0 0.0
        %6460 = vmatpush.msra.mxu0 %v6351
        %6461 = vmatpush.msra.mxu0 %v6350
        %6462 = vmatpush.msra.mxu0 %v6349
        %6463 = vmatpush.msra.mxu0 %v6348
        %6464 = vmatmul.f32.gmra.mxu0 %v6353
        %v6465 = vpop.f32.mrf.mxu0
        %v6466 = vadd.f32 0.0, %v6465
        %6467 = vmatmul.f32.gmra.mxu0 %v6356
        %v6468 = vpop.f32.mrf.mxu0
        %v6469 = vadd.f32 0.0, %v6468
        %6470 = vmatmul.f32.gmra.mxu0 %v6359
        %v6471 = vpop.f32.mrf.mxu0
        %v6472 = vadd.f32 0.0, %v6471
        %6473 = vmatmul.f32.gmra.mxu0 %v6362
        %v6474 = vpop.f32.mrf.mxu0
        %v6475 = vadd.f32 0.0, %v6474
        %6476 = vmatmul.f32.gmra.mxu0 %v6365
        %v6477 = vpop.f32.mrf.mxu0
        %v6478 = vadd.f32 0.0, %v6477
        %6479 = vmatmul.f32.gmra.mxu0 %v6368
        %v6480 = vpop.f32.mrf.mxu0
        %v6481 = vadd.f32 0.0, %v6480
        %6482 = vmatmul.f32.gmra.mxu0 %v6371
        %v6483 = vpop.f32.mrf.mxu0
        %v6484 = vadd.f32 0.0, %v6483
        %6485 = vmatmul.f32.gmra.mxu0 %v6374
        %v6486 = vpop.f32.mrf.mxu0
        %v6487 = vadd.f32 0.0, %v6486
        %6488 = vmatmul.f32.gmra.mxu0 %v6377
        %v6489 = vpop.f32.mrf.mxu0
        %v6490 = vadd.f32 0.0, %v6489
        %6491 = vmatmul.f32.gmra.mxu0 %v6380
        %v6492 = vpop.f32.mrf.mxu0
        %v6493 = vadd.f32 0.0, %v6492
        %6494 = vmatmul.f32.gmra.mxu0 %v6383
        %v6495 = vpop.f32.mrf.mxu0
        %v6496 = vadd.f32 0.0, %v6495
        %6497 = vmatmul.f32.gmra.mxu0 %v6386
        %v6498 = vpop.f32.mrf.mxu0
        %v6499 = vadd.f32 0.0, %v6498
        %6500 = vmatmul.f32.gmra.mxu0 %v6389
        %v6501 = vpop.f32.mrf.mxu0
        %v6502 = vadd.f32 0.0, %v6501
        %6503 = vmatmul.f32.gmra.mxu0 %v6392
        %v6504 = vpop.f32.mrf.mxu0
        %v6505 = vadd.f32 0.0, %v6504
        %6506 = vmatmul.f32.gmra.mxu0 %v6395
        %v6507 = vpop.f32.mrf.mxu0
        %v6508 = vadd.f32 0.0, %v6507
        %6509 = vmatmul.f32.gmra.mxu0 %v6398
        %v6510 = vpop.f32.mrf.mxu0
        %v6511 = vadd.f32 0.0, %v6510
        %6512 = vmatmul.f32.gmra.mxu0 %v6401
        %v6513 = vpop.f32.mrf.mxu0
        %v6514 = vadd.f32 0.0, %v6513
        %6515 = vmatmul.f32.gmra.mxu0 %v6404
        %v6516 = vpop.f32.mrf.mxu0
        %v6517 = vadd.f32 0.0, %v6516
        %6518 = vmatmul.f32.gmra.mxu0 %v6407
        %v6519 = vpop.f32.mrf.mxu0
        %v6520 = vadd.f32 0.0, %v6519
        %6521 = vmatmul.f32.gmra.mxu0 %v6410
        %v6522 = vpop.f32.mrf.mxu0
        %v6523 = vadd.f32 0.0, %v6522
        %6524 = vmatmul.f32.gmra.mxu0 %v6413
        %v6525 = vpop.f32.mrf.mxu0
        %v6526 = vadd.f32 0.0, %v6525
        %6527 = vmatmul.f32.gmra.mxu0 %v6416
        %v6528 = vpop.f32.mrf.mxu0
        %v6529 = vadd.f32 0.0, %v6528
        %6530 = vmatmul.f32.gmra.mxu0 %v6419
        %v6531 = vpop.f32.mrf.mxu0
        %v6532 = vadd.f32 0.0, %v6531
        %6533 = vmatmul.f32.gmra.mxu0 %v6422
        %v6534 = vpop.f32.mrf.mxu0
        %v6535 = vadd.f32 0.0, %v6534
        %6536 = vmatmul.f32.gmra.mxu0 %v6425
        %v6537 = vpop.f32.mrf.mxu0
        %v6538 = vadd.f32 0.0, %v6537
        %6539 = vmatmul.f32.gmra.mxu0 %v6428
        %v6540 = vpop.f32.mrf.mxu0
        %v6541 = vadd.f32 0.0, %v6540
        %6542 = vmatmul.f32.gmra.mxu0 %v6431
        %v6543 = vpop.f32.mrf.mxu0
        %v6544 = vadd.f32 0.0, %v6543
        %6545 = vmatmul.f32.gmra.mxu0 %v6434
        %v6546 = vpop.f32.mrf.mxu0
        %v6547 = vadd.f32 0.0, %v6546
        %6548 = vmatmul.f32.gmra.mxu0 %v6437
        %v6549 = vpop.f32.mrf.mxu0
        %v6550 = vadd.f32 0.0, %v6549
        %6551 = vmatmul.f32.gmra.mxu0 %v6440
        %v6552 = vpop.f32.mrf.mxu0
        %v6553 = vadd.f32 0.0, %v6552
        %6554 = vmatmul.f32.gmra.mxu0 %v6443
        %v6555 = vpop.f32.mrf.mxu0
        %v6556 = vadd.f32 0.0, %v6555
        %6557 = vmatmul.f32.gmra.mxu0 %v6446
        %v6558 = vpop.f32.mrf.mxu0
        %v6559 = vadd.f32 0.0, %v6558
        %6560 = vdwg.mxu0
        %v6561 = vadd.f32 %v6251, %v6466
        %v6562 = vadd.f32 %v6252, %v6469
        %v6563 = vadd.f32 %v6253, %v6472
        %v6564 = vadd.f32 %v6254, %v6475
        %v6565 = vadd.f32 %v6255, %v6478
        %v6566 = vadd.f32 %v6256, %v6481
        %v6567 = vadd.f32 %v6257, %v6484
        %v6568 = vadd.f32 %v6258, %v6487
        %v6569 = vadd.f32 %v6259, %v6490
        %v6570 = vadd.f32 %v6260, %v6493
        %v6571 = vadd.f32 %v6261, %v6496
        %v6572 = vadd.f32 %v6262, %v6499
        %v6573 = vadd.f32 %v6263, %v6502
        %v6574 = vadd.f32 %v6264, %v6505
        %v6575 = vadd.f32 %v6265, %v6508
        %v6576 = vadd.f32 %v6266, %v6511
        %v6577 = vadd.f32 %v6267, %v6514
        %v6578 = vadd.f32 %v6268, %v6517
        %v6579 = vadd.f32 %v6269, %v6520
        %v6580 = vadd.f32 %v6270, %v6523
        %v6581 = vadd.f32 %v6271, %v6526
        %v6582 = vadd.f32 %v6272, %v6529
        %v6583 = vadd.f32 %v6273, %v6532
        %v6584 = vadd.f32 %v6274, %v6535
        %v6585 = vadd.f32 %v6275, %v6538
        %v6586 = vadd.f32 %v6276, %v6541
        %v6587 = vadd.f32 %v6277, %v6544
        %v6588 = vadd.f32 %v6278, %v6547
        %v6589 = vadd.f32 %v6279, %v6550
        %v6590 = vadd.f32 %v6280, %v6553
        %v6591 = vadd.f32 %v6281, %v6556
        %v6592 = vadd.f32 %v6282, %v6559
        %v6593 = vld [vmem:[#allocation2 + $0x28] sm:$0xff]
        %v6594 = vld [vmem:[#allocation2 + $0x30] sm:$0xff]
        %v6595 = vld [vmem:[#allocation2 + $0x38] sm:$0xff]
        %v6596 = vld [vmem:[#allocation2 + $0x40] sm:$0xff]
        %v6597 = vld [vmem:[#allocation2 + $0x48] sm:$0xff]
        %v6598 = vld [vmem:[#allocation2 + $0x50] sm:$0xff]
        %v6599 = vld [vmem:[#allocation2 + $0x58] sm:$0xff]
        %v6600 = vld [vmem:[#allocation2 + $0x60] sm:$0xff]
        %v6601 = vld [vmem:[#allocation2 + $0x68] sm:$0xff]
        %v6602 = vld [vmem:[#allocation2 + $0x70] sm:$0xff]
        %v6603 = vld [vmem:[#allocation2 + $0x78] sm:$0xff]
        %v6604 = vld [vmem:[#allocation2 + $0x80] sm:$0xff]
        %v6605 = vld [vmem:[#allocation2 + $0x88] sm:$0xff]
        %v6606 = vld [vmem:[#allocation2 + $0x90] sm:$0xff]
        %v6607 = vld [vmem:[#allocation2 + $0x98] sm:$0xff]
        %v6608 = vld [vmem:[#allocation2 + $0xa0] sm:$0xff]
        %v6609 = vld [vmem:[#allocation2 + $0xa8] sm:$0xff]
        %v6610 = vld [vmem:[#allocation2 + $0xb0] sm:$0xff]
        %v6611 = vld [vmem:[#allocation2 + $0xb8] sm:$0xff]
        %v6612 = vld [vmem:[#allocation2 + $0xc0] sm:$0xff]
        %v6613 = vld [vmem:[#allocation2 + $0xc8] sm:$0xff]
        %v6614 = vld [vmem:[#allocation2 + $0xd0] sm:$0xff]
        %v6615 = vld [vmem:[#allocation2 + $0xd8] sm:$0xff]
        %v6616 = vld [vmem:[#allocation2 + $0xe0] sm:$0xff]
        %v6617 = vld [vmem:[#allocation2 + $0xe8] sm:$0xff]
        %v6618 = vld [vmem:[#allocation2 + $0xf0] sm:$0xff]
        %v6619 = vld [vmem:[#allocation2 + $0xf8] sm:$0xff]
        %v6620 = vld [vmem:[#allocation2 + $0x100] sm:$0xff]
        %v6621 = vld [vmem:[#allocation2 + $0x108] sm:$0xff]
        %v6622 = vld [vmem:[#allocation2 + $0x110] sm:$0xff]
        %v6623 = vld [vmem:[#allocation2 + $0x118] sm:$0xff]
        %v6624 = vld [vmem:[#allocation2 + $0x120] sm:$0xff]
        %s6625 = scalar_lea.vmem [#allocation3], 224
        %v6626 = vld [vmem:[%s6625] sm:$0xff]
        %v6627 = vld [vmem:[%s6625 + $0x8] sm:$0xff]
        %v6628 = vld [vmem:[%s6625 + $0x10] sm:$0xff]
        %v6629 = vld [vmem:[%s6625 + $0x18] sm:$0xff]
        %v6631 = vsel %vm586, %v6593, 0
        %v6634 = vsel %vm586, %v6594, 0
        %v6637 = vsel %vm586, %v6595, 0
        %v6640 = vsel %vm586, %v6596, 0
        %v6643 = vsel %vm586, %v6597, 0
        %v6646 = vsel %vm586, %v6598, 0
        %v6649 = vsel %vm586, %v6599, 0
        %v6652 = vsel %vm586, %v6600, 0
        %v6655 = vsel %vm586, %v6601, 0
        %v6658 = vsel %vm586, %v6602, 0
        %v6661 = vsel %vm586, %v6603, 0
        %v6664 = vsel %vm586, %v6604, 0
        %v6667 = vsel %vm586, %v6605, 0
        %v6670 = vsel %vm586, %v6606, 0
        %v6673 = vsel %vm586, %v6607, 0
        %v6676 = vsel %vm586, %v6608, 0
        %v6679 = vsel %vm586, %v6609, 0
        %v6682 = vsel %vm586, %v6610, 0
        %v6685 = vsel %vm586, %v6611, 0
        %v6688 = vsel %vm586, %v6612, 0
        %v6691 = vsel %vm586, %v6613, 0
        %v6694 = vsel %vm586, %v6614, 0
        %v6697 = vsel %vm586, %v6615, 0
        %v6700 = vsel %vm586, %v6616, 0
        %v6703 = vsel %vm586, %v6617, 0
        %v6706 = vsel %vm586, %v6618, 0
        %v6709 = vsel %vm586, %v6619, 0
        %v6712 = vsel %vm586, %v6620, 0
        %v6715 = vsel %vm586, %v6621, 0
        %v6718 = vsel %vm586, %v6622, 0
        %v6721 = vsel %vm586, %v6623, 0
        %v6724 = vsel %vm586, %v6624, 0
        %6726 = vmatpush.msra.mxu0 0.0
        %6727 = vmatpush.msra.mxu0 0.0
        %6728 = vmatpush.msra.mxu0 0.0
        %6729 = vmatpush.msra.mxu0 0.0
        %6730 = vmatpush.msra.mxu0 0.0
        %6731 = vmatpush.msra.mxu0 0.0
        %6732 = vmatpush.msra.mxu0 0.0
        %6733 = vmatpush.msra.mxu0 0.0
        %6734 = vmatpush.msra.mxu0 0.0
        %6735 = vmatpush.msra.mxu0 0.0
        %6736 = vmatpush.msra.mxu0 0.0
        %6737 = vmatpush.msra.mxu0 0.0
        %6738 = vmatpush.msra.mxu0 %v6629
        %6739 = vmatpush.msra.mxu0 %v6628
        %6740 = vmatpush.msra.mxu0 %v6627
        %6741 = vmatpush.msra.mxu0 %v6626
        %6742 = vmatmul.f32.gmra.mxu0 %v6631
        %v6743 = vpop.f32.mrf.mxu0
        %v6744 = vadd.f32 0.0, %v6743
        %6745 = vmatmul.f32.gmra.mxu0 %v6634
        %v6746 = vpop.f32.mrf.mxu0
        %v6747 = vadd.f32 0.0, %v6746
        %6748 = vmatmul.f32.gmra.mxu0 %v6637
        %v6749 = vpop.f32.mrf.mxu0
        %v6750 = vadd.f32 0.0, %v6749
        %6751 = vmatmul.f32.gmra.mxu0 %v6640
        %v6752 = vpop.f32.mrf.mxu0
        %v6753 = vadd.f32 0.0, %v6752
        %6754 = vmatmul.f32.gmra.mxu0 %v6643
        %v6755 = vpop.f32.mrf.mxu0
        %v6756 = vadd.f32 0.0, %v6755
        %6757 = vmatmul.f32.gmra.mxu0 %v6646
        %v6758 = vpop.f32.mrf.mxu0
        %v6759 = vadd.f32 0.0, %v6758
        %6760 = vmatmul.f32.gmra.mxu0 %v6649
        %v6761 = vpop.f32.mrf.mxu0
        %v6762 = vadd.f32 0.0, %v6761
        %6763 = vmatmul.f32.gmra.mxu0 %v6652
        %v6764 = vpop.f32.mrf.mxu0
        %v6765 = vadd.f32 0.0, %v6764
        %6766 = vmatmul.f32.gmra.mxu0 %v6655
        %v6767 = vpop.f32.mrf.mxu0
        %v6768 = vadd.f32 0.0, %v6767
        %6769 = vmatmul.f32.gmra.mxu0 %v6658
        %v6770 = vpop.f32.mrf.mxu0
        %v6771 = vadd.f32 0.0, %v6770
        %6772 = vmatmul.f32.gmra.mxu0 %v6661
        %v6773 = vpop.f32.mrf.mxu0
        %v6774 = vadd.f32 0.0, %v6773
        %6775 = vmatmul.f32.gmra.mxu0 %v6664
        %v6776 = vpop.f32.mrf.mxu0
        %v6777 = vadd.f32 0.0, %v6776
        %6778 = vmatmul.f32.gmra.mxu0 %v6667
        %v6779 = vpop.f32.mrf.mxu0
        %v6780 = vadd.f32 0.0, %v6779
        %6781 = vmatmul.f32.gmra.mxu0 %v6670
        %v6782 = vpop.f32.mrf.mxu0
        %v6783 = vadd.f32 0.0, %v6782
        %6784 = vmatmul.f32.gmra.mxu0 %v6673
        %v6785 = vpop.f32.mrf.mxu0
        %v6786 = vadd.f32 0.0, %v6785
        %6787 = vmatmul.f32.gmra.mxu0 %v6676
        %v6788 = vpop.f32.mrf.mxu0
        %v6789 = vadd.f32 0.0, %v6788
        %6790 = vmatmul.f32.gmra.mxu0 %v6679
        %v6791 = vpop.f32.mrf.mxu0
        %v6792 = vadd.f32 0.0, %v6791
        %6793 = vmatmul.f32.gmra.mxu0 %v6682
        %v6794 = vpop.f32.mrf.mxu0
        %v6795 = vadd.f32 0.0, %v6794
        %6796 = vmatmul.f32.gmra.mxu0 %v6685
        %v6797 = vpop.f32.mrf.mxu0
        %v6798 = vadd.f32 0.0, %v6797
        %6799 = vmatmul.f32.gmra.mxu0 %v6688
        %v6800 = vpop.f32.mrf.mxu0
        %v6801 = vadd.f32 0.0, %v6800
        %6802 = vmatmul.f32.gmra.mxu0 %v6691
        %v6803 = vpop.f32.mrf.mxu0
        %v6804 = vadd.f32 0.0, %v6803
        %6805 = vmatmul.f32.gmra.mxu0 %v6694
        %v6806 = vpop.f32.mrf.mxu0
        %v6807 = vadd.f32 0.0, %v6806
        %6808 = vmatmul.f32.gmra.mxu0 %v6697
        %v6809 = vpop.f32.mrf.mxu0
        %v6810 = vadd.f32 0.0, %v6809
        %6811 = vmatmul.f32.gmra.mxu0 %v6700
        %v6812 = vpop.f32.mrf.mxu0
        %v6813 = vadd.f32 0.0, %v6812
        %6814 = vmatmul.f32.gmra.mxu0 %v6703
        %v6815 = vpop.f32.mrf.mxu0
        %v6816 = vadd.f32 0.0, %v6815
        %6817 = vmatmul.f32.gmra.mxu0 %v6706
        %v6818 = vpop.f32.mrf.mxu0
        %v6819 = vadd.f32 0.0, %v6818
        %6820 = vmatmul.f32.gmra.mxu0 %v6709
        %v6821 = vpop.f32.mrf.mxu0
        %v6822 = vadd.f32 0.0, %v6821
        %6823 = vmatmul.f32.gmra.mxu0 %v6712
        %v6824 = vpop.f32.mrf.mxu0
        %v6825 = vadd.f32 0.0, %v6824
        %6826 = vmatmul.f32.gmra.mxu0 %v6715
        %v6827 = vpop.f32.mrf.mxu0
        %v6828 = vadd.f32 0.0, %v6827
        %6829 = vmatmul.f32.gmra.mxu0 %v6718
        %v6830 = vpop.f32.mrf.mxu0
        %v6831 = vadd.f32 0.0, %v6830
        %6832 = vmatmul.f32.gmra.mxu0 %v6721
        %v6833 = vpop.f32.mrf.mxu0
        %v6834 = vadd.f32 0.0, %v6833
        %6835 = vmatmul.f32.gmra.mxu0 %v6724
        %v6836 = vpop.f32.mrf.mxu0
        %v6837 = vadd.f32 0.0, %v6836
        %6838 = vdwg.mxu0
        %v6839 = vadd.f32 %v6561, %v6744
        %v6840 = vadd.f32 %v6562, %v6747
        %v6841 = vadd.f32 %v6563, %v6750
        %v6842 = vadd.f32 %v6564, %v6753
        %v6843 = vadd.f32 %v6565, %v6756
        %v6844 = vadd.f32 %v6566, %v6759
        %v6845 = vadd.f32 %v6567, %v6762
        %v6846 = vadd.f32 %v6568, %v6765
        %v6847 = vadd.f32 %v6569, %v6768
        %v6848 = vadd.f32 %v6570, %v6771
        %v6849 = vadd.f32 %v6571, %v6774
        %v6850 = vadd.f32 %v6572, %v6777
        %v6851 = vadd.f32 %v6573, %v6780
        %v6852 = vadd.f32 %v6574, %v6783
        %v6853 = vadd.f32 %v6575, %v6786
        %v6854 = vadd.f32 %v6576, %v6789
        %v6855 = vadd.f32 %v6577, %v6792
        %v6856 = vadd.f32 %v6578, %v6795
        %v6857 = vadd.f32 %v6579, %v6798
        %v6858 = vadd.f32 %v6580, %v6801
        %v6859 = vadd.f32 %v6581, %v6804
        %v6860 = vadd.f32 %v6582, %v6807
        %v6861 = vadd.f32 %v6583, %v6810
        %v6862 = vadd.f32 %v6584, %v6813
        %v6863 = vadd.f32 %v6585, %v6816
        %v6864 = vadd.f32 %v6586, %v6819
        %v6865 = vadd.f32 %v6587, %v6822
        %v6866 = vadd.f32 %v6588, %v6825
        %v6867 = vadd.f32 %v6589, %v6828
        %v6868 = vadd.f32 %v6590, %v6831
        %v6869 = vadd.f32 %v6591, %v6834
        %v6870 = vadd.f32 %v6592, %v6837
        %v6871 = vld [vmem:[#allocation2 + $0x29] sm:$0xff]
        %v6872 = vld [vmem:[#allocation2 + $0x31] sm:$0xff]
        %v6873 = vld [vmem:[#allocation2 + $0x39] sm:$0xff]
        %v6874 = vld [vmem:[#allocation2 + $0x41] sm:$0xff]
        %v6875 = vld [vmem:[#allocation2 + $0x49] sm:$0xff]
        %v6876 = vld [vmem:[#allocation2 + $0x51] sm:$0xff]
        %v6877 = vld [vmem:[#allocation2 + $0x59] sm:$0xff]
        %v6878 = vld [vmem:[#allocation2 + $0x61] sm:$0xff]
        %v6879 = vld [vmem:[#allocation2 + $0x69] sm:$0xff]
        %v6880 = vld [vmem:[#allocation2 + $0x71] sm:$0xff]
        %v6881 = vld [vmem:[#allocation2 + $0x79] sm:$0xff]
        %v6882 = vld [vmem:[#allocation2 + $0x81] sm:$0xff]
        %v6883 = vld [vmem:[#allocation2 + $0x89] sm:$0xff]
        %v6884 = vld [vmem:[#allocation2 + $0x91] sm:$0xff]
        %v6885 = vld [vmem:[#allocation2 + $0x99] sm:$0xff]
        %v6886 = vld [vmem:[#allocation2 + $0xa1] sm:$0xff]
        %v6887 = vld [vmem:[#allocation2 + $0xa9] sm:$0xff]
        %v6888 = vld [vmem:[#allocation2 + $0xb1] sm:$0xff]
        %v6889 = vld [vmem:[#allocation2 + $0xb9] sm:$0xff]
        %v6890 = vld [vmem:[#allocation2 + $0xc1] sm:$0xff]
        %v6891 = vld [vmem:[#allocation2 + $0xc9] sm:$0xff]
        %v6892 = vld [vmem:[#allocation2 + $0xd1] sm:$0xff]
        %v6893 = vld [vmem:[#allocation2 + $0xd9] sm:$0xff]
        %v6894 = vld [vmem:[#allocation2 + $0xe1] sm:$0xff]
        %v6895 = vld [vmem:[#allocation2 + $0xe9] sm:$0xff]
        %v6896 = vld [vmem:[#allocation2 + $0xf1] sm:$0xff]
        %v6897 = vld [vmem:[#allocation2 + $0xf9] sm:$0xff]
        %v6898 = vld [vmem:[#allocation2 + $0x101] sm:$0xff]
        %v6899 = vld [vmem:[#allocation2 + $0x109] sm:$0xff]
        %v6900 = vld [vmem:[#allocation2 + $0x111] sm:$0xff]
        %v6901 = vld [vmem:[#allocation2 + $0x119] sm:$0xff]
        %v6902 = vld [vmem:[#allocation2 + $0x121] sm:$0xff]
        %v6903 = vmul.f32 %v6871, %v1202
        %v6904 = vmul.f32 %v6872, %v1203
        %v6905 = vmul.f32 %v6873, %v1204
        %v6906 = vmul.f32 %v6874, %v1205
        %v6907 = vmul.f32 %v6875, %v1206
        %v6908 = vmul.f32 %v6876, %v1207
        %v6909 = vmul.f32 %v6877, %v1208
        %v6910 = vmul.f32 %v6878, %v1209
        %v6911 = vmul.f32 %v6879, %v1210
        %v6912 = vmul.f32 %v6880, %v1211
        %v6913 = vmul.f32 %v6881, %v1212
        %v6914 = vmul.f32 %v6882, %v1213
        %v6915 = vmul.f32 %v6883, %v1214
        %v6916 = vmul.f32 %v6884, %v1215
        %v6917 = vmul.f32 %v6885, %v1216
        %v6918 = vmul.f32 %v6886, %v1217
        %v6919 = vmul.f32 %v6887, %v1218
        %v6920 = vmul.f32 %v6888, %v1219
        %v6921 = vmul.f32 %v6889, %v1220
        %v6922 = vmul.f32 %v6890, %v1221
        %v6923 = vmul.f32 %v6891, %v1222
        %v6924 = vmul.f32 %v6892, %v1223
        %v6925 = vmul.f32 %v6893, %v1224
        %v6926 = vmul.f32 %v6894, %v1225
        %v6927 = vmul.f32 %v6895, %v1226
        %v6928 = vmul.f32 %v6896, %v1227
        %v6929 = vmul.f32 %v6897, %v1228
        %v6930 = vmul.f32 %v6898, %v1229
        %v6931 = vmul.f32 %v6899, %v1230
        %v6932 = vmul.f32 %v6900, %v1231
        %v6933 = vmul.f32 %v6901, %v1232
        %v6934 = vmul.f32 %v6902, %v1233
        %s6935 = scalar_lea.vmem [#allocation3], 256
        %v6936 = vld [vmem:[%s6935] sm:$0xff]
        %v6937 = vld [vmem:[%s6935 + $0x8] sm:$0xff]
        %v6938 = vld [vmem:[%s6935 + $0x10] sm:$0xff]
        %v6939 = vld [vmem:[%s6935 + $0x18] sm:$0xff]
        %v6941 = vsel %vm586, %v6903, 0
        %v6944 = vsel %vm586, %v6904, 0
        %v6947 = vsel %vm586, %v6905, 0
        %v6950 = vsel %vm586, %v6906, 0
        %v6953 = vsel %vm586, %v6907, 0
        %v6956 = vsel %vm586, %v6908, 0
        %v6959 = vsel %vm586, %v6909, 0
        %v6962 = vsel %vm586, %v6910, 0
        %v6965 = vsel %vm586, %v6911, 0
        %v6968 = vsel %vm586, %v6912, 0
        %v6971 = vsel %vm586, %v6913, 0
        %v6974 = vsel %vm586, %v6914, 0
        %v6977 = vsel %vm586, %v6915, 0
        %v6980 = vsel %vm586, %v6916, 0
        %v6983 = vsel %vm586, %v6917, 0
        %v6986 = vsel %vm586, %v6918, 0
        %v6989 = vsel %vm586, %v6919, 0
        %v6992 = vsel %vm586, %v6920, 0
        %v6995 = vsel %vm586, %v6921, 0
        %v6998 = vsel %vm586, %v6922, 0
        %v7001 = vsel %vm586, %v6923, 0
        %v7004 = vsel %vm586, %v6924, 0
        %v7007 = vsel %vm586, %v6925, 0
        %v7010 = vsel %vm586, %v6926, 0
        %v7013 = vsel %vm586, %v6927, 0
        %v7016 = vsel %vm586, %v6928, 0
        %v7019 = vsel %vm586, %v6929, 0
        %v7022 = vsel %vm586, %v6930, 0
        %v7025 = vsel %vm586, %v6931, 0
        %v7028 = vsel %vm586, %v6932, 0
        %v7031 = vsel %vm586, %v6933, 0
        %v7034 = vsel %vm586, %v6934, 0
        %7036 = vmatpush.msra.mxu0 0.0
        %7037 = vmatpush.msra.mxu0 0.0
        %7038 = vmatpush.msra.mxu0 0.0
        %7039 = vmatpush.msra.mxu0 0.0
        %7040 = vmatpush.msra.mxu0 0.0
        %7041 = vmatpush.msra.mxu0 0.0
        %7042 = vmatpush.msra.mxu0 0.0
        %7043 = vmatpush.msra.mxu0 0.0
        %7044 = vmatpush.msra.mxu0 0.0
        %7045 = vmatpush.msra.mxu0 0.0
        %7046 = vmatpush.msra.mxu0 0.0
        %7047 = vmatpush.msra.mxu0 0.0
        %7048 = vmatpush.msra.mxu0 %v6939
        %7049 = vmatpush.msra.mxu0 %v6938
        %7050 = vmatpush.msra.mxu0 %v6937
        %7051 = vmatpush.msra.mxu0 %v6936
        %7052 = vmatmul.f32.gmra.mxu0 %v6941
        %v7053 = vpop.f32.mrf.mxu0
        %v7054 = vadd.f32 0.0, %v7053
        %7055 = vmatmul.f32.gmra.mxu0 %v6944
        %v7056 = vpop.f32.mrf.mxu0
        %v7057 = vadd.f32 0.0, %v7056
        %7058 = vmatmul.f32.gmra.mxu0 %v6947
        %v7059 = vpop.f32.mrf.mxu0
        %v7060 = vadd.f32 0.0, %v7059
        %7061 = vmatmul.f32.gmra.mxu0 %v6950
        %v7062 = vpop.f32.mrf.mxu0
        %v7063 = vadd.f32 0.0, %v7062
        %7064 = vmatmul.f32.gmra.mxu0 %v6953
        %v7065 = vpop.f32.mrf.mxu0
        %v7066 = vadd.f32 0.0, %v7065
        %7067 = vmatmul.f32.gmra.mxu0 %v6956
        %v7068 = vpop.f32.mrf.mxu0
        %v7069 = vadd.f32 0.0, %v7068
        %7070 = vmatmul.f32.gmra.mxu0 %v6959
        %v7071 = vpop.f32.mrf.mxu0
        %v7072 = vadd.f32 0.0, %v7071
        %7073 = vmatmul.f32.gmra.mxu0 %v6962
        %v7074 = vpop.f32.mrf.mxu0
        %v7075 = vadd.f32 0.0, %v7074
        %7076 = vmatmul.f32.gmra.mxu0 %v6965
        %v7077 = vpop.f32.mrf.mxu0
        %v7078 = vadd.f32 0.0, %v7077
        %7079 = vmatmul.f32.gmra.mxu0 %v6968
        %v7080 = vpop.f32.mrf.mxu0
        %v7081 = vadd.f32 0.0, %v7080
        %7082 = vmatmul.f32.gmra.mxu0 %v6971
        %v7083 = vpop.f32.mrf.mxu0
        %v7084 = vadd.f32 0.0, %v7083
        %7085 = vmatmul.f32.gmra.mxu0 %v6974
        %v7086 = vpop.f32.mrf.mxu0
        %v7087 = vadd.f32 0.0, %v7086
        %7088 = vmatmul.f32.gmra.mxu0 %v6977
        %v7089 = vpop.f32.mrf.mxu0
        %v7090 = vadd.f32 0.0, %v7089
        %7091 = vmatmul.f32.gmra.mxu0 %v6980
        %v7092 = vpop.f32.mrf.mxu0
        %v7093 = vadd.f32 0.0, %v7092
        %7094 = vmatmul.f32.gmra.mxu0 %v6983
        %v7095 = vpop.f32.mrf.mxu0
        %v7096 = vadd.f32 0.0, %v7095
        %7097 = vmatmul.f32.gmra.mxu0 %v6986
        %v7098 = vpop.f32.mrf.mxu0
        %v7099 = vadd.f32 0.0, %v7098
        %7100 = vmatmul.f32.gmra.mxu0 %v6989
        %v7101 = vpop.f32.mrf.mxu0
        %v7102 = vadd.f32 0.0, %v7101
        %7103 = vmatmul.f32.gmra.mxu0 %v6992
        %v7104 = vpop.f32.mrf.mxu0
        %v7105 = vadd.f32 0.0, %v7104
        %7106 = vmatmul.f32.gmra.mxu0 %v6995
        %v7107 = vpop.f32.mrf.mxu0
        %v7108 = vadd.f32 0.0, %v7107
        %7109 = vmatmul.f32.gmra.mxu0 %v6998
        %v7110 = vpop.f32.mrf.mxu0
        %v7111 = vadd.f32 0.0, %v7110
        %7112 = vmatmul.f32.gmra.mxu0 %v7001
        %v7113 = vpop.f32.mrf.mxu0
        %v7114 = vadd.f32 0.0, %v7113
        %7115 = vmatmul.f32.gmra.mxu0 %v7004
        %v7116 = vpop.f32.mrf.mxu0
        %v7117 = vadd.f32 0.0, %v7116
        %7118 = vmatmul.f32.gmra.mxu0 %v7007
        %v7119 = vpop.f32.mrf.mxu0
        %v7120 = vadd.f32 0.0, %v7119
        %7121 = vmatmul.f32.gmra.mxu0 %v7010
        %v7122 = vpop.f32.mrf.mxu0
        %v7123 = vadd.f32 0.0, %v7122
        %7124 = vmatmul.f32.gmra.mxu0 %v7013
        %v7125 = vpop.f32.mrf.mxu0
        %v7126 = vadd.f32 0.0, %v7125
        %7127 = vmatmul.f32.gmra.mxu0 %v7016
        %v7128 = vpop.f32.mrf.mxu0
        %v7129 = vadd.f32 0.0, %v7128
        %7130 = vmatmul.f32.gmra.mxu0 %v7019
        %v7131 = vpop.f32.mrf.mxu0
        %v7132 = vadd.f32 0.0, %v7131
        %7133 = vmatmul.f32.gmra.mxu0 %v7022
        %v7134 = vpop.f32.mrf.mxu0
        %v7135 = vadd.f32 0.0, %v7134
        %7136 = vmatmul.f32.gmra.mxu0 %v7025
        %v7137 = vpop.f32.mrf.mxu0
        %v7138 = vadd.f32 0.0, %v7137
        %7139 = vmatmul.f32.gmra.mxu0 %v7028
        %v7140 = vpop.f32.mrf.mxu0
        %v7141 = vadd.f32 0.0, %v7140
        %7142 = vmatmul.f32.gmra.mxu0 %v7031
        %v7143 = vpop.f32.mrf.mxu0
        %v7144 = vadd.f32 0.0, %v7143
        %7145 = vmatmul.f32.gmra.mxu0 %v7034
        %v7146 = vpop.f32.mrf.mxu0
        %v7147 = vadd.f32 0.0, %v7146
        %7148 = vdwg.mxu0
        %v7149 = vadd.f32 %v6839, %v7054
        %v7150 = vadd.f32 %v6840, %v7057
        %v7151 = vadd.f32 %v6841, %v7060
        %v7152 = vadd.f32 %v6842, %v7063
        %v7153 = vadd.f32 %v6843, %v7066
        %v7154 = vadd.f32 %v6844, %v7069
        %v7155 = vadd.f32 %v6845, %v7072
        %v7156 = vadd.f32 %v6846, %v7075
        %v7157 = vadd.f32 %v6847, %v7078
        %v7158 = vadd.f32 %v6848, %v7081
        %v7159 = vadd.f32 %v6849, %v7084
        %v7160 = vadd.f32 %v6850, %v7087
        %v7161 = vadd.f32 %v6851, %v7090
        %v7162 = vadd.f32 %v6852, %v7093
        %v7163 = vadd.f32 %v6853, %v7096
        %v7164 = vadd.f32 %v6854, %v7099
        %v7165 = vadd.f32 %v6855, %v7102
        %v7166 = vadd.f32 %v6856, %v7105
        %v7167 = vadd.f32 %v6857, %v7108
        %v7168 = vadd.f32 %v6858, %v7111
        %v7169 = vadd.f32 %v6859, %v7114
        %v7170 = vadd.f32 %v6860, %v7117
        %v7171 = vadd.f32 %v6861, %v7120
        %v7172 = vadd.f32 %v6862, %v7123
        %v7173 = vadd.f32 %v6863, %v7126
        %v7174 = vadd.f32 %v6864, %v7129
        %v7175 = vadd.f32 %v6865, %v7132
        %v7176 = vadd.f32 %v6866, %v7135
        %v7177 = vadd.f32 %v6867, %v7138
        %v7178 = vadd.f32 %v6868, %v7141
        %v7179 = vadd.f32 %v6869, %v7144
        %v7180 = vadd.f32 %v6870, %v7147
        %v7181 = vld [vmem:[%s10] sm:$0x1]
        %v7183 = vperm.slane %v7181, 0
        %v7185 = vadd.f32 %v7149, %v7183
        %v7186 = vadd.f32 %v7150, %v7183
        %v7187 = vadd.f32 %v7151, %v7183
        %v7188 = vadd.f32 %v7152, %v7183
        %v7189 = vadd.f32 %v7153, %v7183
        %v7190 = vadd.f32 %v7154, %v7183
        %v7191 = vadd.f32 %v7155, %v7183
        %v7192 = vadd.f32 %v7156, %v7183
        %v7193 = vadd.f32 %v7157, %v7183
        %v7194 = vadd.f32 %v7158, %v7183
        %v7195 = vadd.f32 %v7159, %v7183
        %v7196 = vadd.f32 %v7160, %v7183
        %v7197 = vadd.f32 %v7161, %v7183
        %v7198 = vadd.f32 %v7162, %v7183
        %v7199 = vadd.f32 %v7163, %v7183
        %v7200 = vadd.f32 %v7164, %v7183
        %v7201 = vadd.f32 %v7165, %v7183
        %v7202 = vadd.f32 %v7166, %v7183
        %v7203 = vadd.f32 %v7167, %v7183
        %v7204 = vadd.f32 %v7168, %v7183
        %v7205 = vadd.f32 %v7169, %v7183
        %v7206 = vadd.f32 %v7170, %v7183
        %v7207 = vadd.f32 %v7171, %v7183
        %v7208 = vadd.f32 %v7172, %v7183
        %v7209 = vadd.f32 %v7173, %v7183
        %v7210 = vadd.f32 %v7174, %v7183
        %v7211 = vadd.f32 %v7175, %v7183
        %v7212 = vadd.f32 %v7176, %v7183
        %v7213 = vadd.f32 %v7177, %v7183
        %v7214 = vadd.f32 %v7178, %v7183
        %v7215 = vadd.f32 %v7179, %v7183
        %v7216 = vadd.f32 %v7180, %v7183
        %v7217 = vmax.f32 %v7185, 0.0
        %v7218 = vmax.f32 %v7186, 0.0
        %v7219 = vmax.f32 %v7187, 0.0
        %v7220 = vmax.f32 %v7188, 0.0
        %v7221 = vmax.f32 %v7189, 0.0
        %v7222 = vmax.f32 %v7190, 0.0
        %v7223 = vmax.f32 %v7191, 0.0
        %v7224 = vmax.f32 %v7192, 0.0
        %v7225 = vmax.f32 %v7193, 0.0
        %v7226 = vmax.f32 %v7194, 0.0
        %v7227 = vmax.f32 %v7195, 0.0
        %v7228 = vmax.f32 %v7196, 0.0
        %v7229 = vmax.f32 %v7197, 0.0
        %v7230 = vmax.f32 %v7198, 0.0
        %v7231 = vmax.f32 %v7199, 0.0
        %v7232 = vmax.f32 %v7200, 0.0
        %v7233 = vmax.f32 %v7201, 0.0
        %v7234 = vmax.f32 %v7202, 0.0
        %v7235 = vmax.f32 %v7203, 0.0
        %v7236 = vmax.f32 %v7204, 0.0
        %v7237 = vmax.f32 %v7205, 0.0
        %v7238 = vmax.f32 %v7206, 0.0
        %v7239 = vmax.f32 %v7207, 0.0
        %v7240 = vmax.f32 %v7208, 0.0
        %v7241 = vmax.f32 %v7209, 0.0
        %v7242 = vmax.f32 %v7210, 0.0
        %v7243 = vmax.f32 %v7211, 0.0
        %v7244 = vmax.f32 %v7212, 0.0
        %v7245 = vmax.f32 %v7213, 0.0
        %v7246 = vmax.f32 %v7214, 0.0
        %v7247 = vmax.f32 %v7215, 0.0
        %v7248 = vmax.f32 %v7216, 0.0
        %7249 = vst.msk [vmem:[#allocation2 + $0x18] sm:$0xff] %vm586, %v7217
        %7250 = vst.msk [vmem:[#allocation2 + $0x20] sm:$0xff] %vm586, %v7218
        %7251 = vst.msk [vmem:[#allocation2 + $0x28] sm:$0xff] %vm586, %v7219
        %7252 = vst.msk [vmem:[#allocation2 + $0x30] sm:$0xff] %vm586, %v7220
        %7253 = vst.msk [vmem:[#allocation2 + $0x38] sm:$0xff] %vm586, %v7221
        %7254 = vst.msk [vmem:[#allocation2 + $0x40] sm:$0xff] %vm586, %v7222
        %7255 = vst.msk [vmem:[#allocation2 + $0x48] sm:$0xff] %vm586, %v7223
        %7256 = vst.msk [vmem:[#allocation2 + $0x50] sm:$0xff] %vm586, %v7224
        %7257 = vst.msk [vmem:[#allocation2 + $0x58] sm:$0xff] %vm586, %v7225
        %7258 = vst.msk [vmem:[#allocation2 + $0x60] sm:$0xff] %vm586, %v7226
        %7259 = vst.msk [vmem:[#allocation2 + $0x68] sm:$0xff] %vm586, %v7227
        %7260 = vst.msk [vmem:[#allocation2 + $0x70] sm:$0xff] %vm586, %v7228
        %7261 = vst.msk [vmem:[#allocation2 + $0x78] sm:$0xff] %vm586, %v7229
        %7262 = vst.msk [vmem:[#allocation2 + $0x80] sm:$0xff] %vm586, %v7230
        %7263 = vst.msk [vmem:[#allocation2 + $0x88] sm:$0xff] %vm586, %v7231
        %7264 = vst.msk [vmem:[#allocation2 + $0x90] sm:$0xff] %vm586, %v7232
        %7265 = vst.msk [vmem:[#allocation2 + $0x98] sm:$0xff] %vm586, %v7233
        %7266 = vst.msk [vmem:[#allocation2 + $0xa0] sm:$0xff] %vm586, %v7234
        %7267 = vst.msk [vmem:[#allocation2 + $0xa8] sm:$0xff] %vm586, %v7235
        %7268 = vst.msk [vmem:[#allocation2 + $0xb0] sm:$0xff] %vm586, %v7236
        %7269 = vst.msk [vmem:[#allocation2 + $0xb8] sm:$0xff] %vm586, %v7237
        %7270 = vst.msk [vmem:[#allocation2 + $0xc0] sm:$0xff] %vm586, %v7238
        %7271 = vst.msk [vmem:[#allocation2 + $0xc8] sm:$0xff] %vm586, %v7239
        %7272 = vst.msk [vmem:[#allocation2 + $0xd0] sm:$0xff] %vm586, %v7240
        %7273 = vst.msk [vmem:[#allocation2 + $0xd8] sm:$0xff] %vm586, %v7241
        %7274 = vst.msk [vmem:[#allocation2 + $0xe0] sm:$0xff] %vm586, %v7242
        %7275 = vst.msk [vmem:[#allocation2 + $0xe8] sm:$0xff] %vm586, %v7243
        %7276 = vst.msk [vmem:[#allocation2 + $0xf0] sm:$0xff] %vm586, %v7244
        %7277 = vst.msk [vmem:[#allocation2 + $0xf8] sm:$0xff] %vm586, %v7245
        %7278 = vst.msk [vmem:[#allocation2 + $0x100] sm:$0xff] %vm586, %v7246
        %7279 = vst.msk [vmem:[#allocation2 + $0x108] sm:$0xff] %vm586, %v7247
        %7280 = vst.msk [vmem:[#allocation2 + $0x110] sm:$0xff] %vm586, %v7248
        %v7281 = vld [vmem:[#allocation2 + $0x7] sm:$0xff]
        %v7282 = vld [vmem:[#allocation2 + $0xf] sm:$0xff]
        %v7283 = vld [vmem:[#allocation2 + $0x17] sm:$0xff]
        %v7284 = vld [vmem:[#allocation2 + $0x1f] sm:$0xff]
        %v7285 = vld [vmem:[#allocation2 + $0x27] sm:$0xff]
        %v7286 = vld [vmem:[#allocation2 + $0x2f] sm:$0xff]
        %v7287 = vld [vmem:[#allocation2 + $0x37] sm:$0xff]
        %v7288 = vld [vmem:[#allocation2 + $0x3f] sm:$0xff]
        %v7289 = vld [vmem:[#allocation2 + $0x47] sm:$0xff]
        %v7290 = vld [vmem:[#allocation2 + $0x4f] sm:$0xff]
        %v7291 = vld [vmem:[#allocation2 + $0x57] sm:$0xff]
        %v7292 = vld [vmem:[#allocation2 + $0x5f] sm:$0xff]
        %v7293 = vld [vmem:[#allocation2 + $0x67] sm:$0xff]
        %v7294 = vld [vmem:[#allocation2 + $0x6f] sm:$0xff]
        %v7295 = vld [vmem:[#allocation2 + $0x77] sm:$0xff]
        %v7296 = vld [vmem:[#allocation2 + $0x7f] sm:$0xff]
        %v7297 = vld [vmem:[#allocation2 + $0x87] sm:$0xff]
        %v7298 = vld [vmem:[#allocation2 + $0x8f] sm:$0xff]
        %v7299 = vld [vmem:[#allocation2 + $0x97] sm:$0xff]
        %v7300 = vld [vmem:[#allocation2 + $0x9f] sm:$0xff]
        %v7301 = vld [vmem:[#allocation2 + $0xa7] sm:$0xff]
        %v7302 = vld [vmem:[#allocation2 + $0xaf] sm:$0xff]
        %v7303 = vld [vmem:[#allocation2 + $0xb7] sm:$0xff]
        %v7304 = vld [vmem:[#allocation2 + $0xbf] sm:$0xff]
        %v7305 = vld [vmem:[#allocation2 + $0xc7] sm:$0xff]
        %v7306 = vld [vmem:[#allocation2 + $0xcf] sm:$0xff]
        %v7307 = vld [vmem:[#allocation2 + $0xd7] sm:$0xff]
        %v7308 = vld [vmem:[#allocation2 + $0xdf] sm:$0xff]
        %v7309 = vld [vmem:[#allocation2 + $0xe7] sm:$0xff]
        %v7310 = vld [vmem:[#allocation2 + $0xef] sm:$0xff]
        %v7311 = vld [vmem:[#allocation2 + $0xf7] sm:$0xff]
        %v7312 = vld [vmem:[#allocation2 + $0xff] sm:$0xff]
        %v7313 = vmul.f32 %v7281, %v1106
        %v7314 = vmul.f32 %v7282, %v1107
        %v7315 = vmul.f32 %v7283, %v1108
        %v7316 = vmul.f32 %v7284, %v1109
        %v7317 = vmul.f32 %v7285, %v1110
        %v7318 = vmul.f32 %v7286, %v1111
        %v7319 = vmul.f32 %v7287, %v1112
        %v7320 = vmul.f32 %v7288, %v1113
        %v7321 = vmul.f32 %v7289, %v1114
        %v7322 = vmul.f32 %v7290, %v1115
        %v7323 = vmul.f32 %v7291, %v1116
        %v7324 = vmul.f32 %v7292, %v1117
        %v7325 = vmul.f32 %v7293, %v1118
        %v7326 = vmul.f32 %v7294, %v1119
        %v7327 = vmul.f32 %v7295, %v1120
        %v7328 = vmul.f32 %v7296, %v1121
        %v7329 = vmul.f32 %v7297, %v1122
        %v7330 = vmul.f32 %v7298, %v1123
        %v7331 = vmul.f32 %v7299, %v1124
        %v7332 = vmul.f32 %v7300, %v1125
        %v7333 = vmul.f32 %v7301, %v1126
        %v7334 = vmul.f32 %v7302, %v1127
        %v7335 = vmul.f32 %v7303, %v1128
        %v7336 = vmul.f32 %v7304, %v1129
        %v7337 = vmul.f32 %v7305, %v1130
        %v7338 = vmul.f32 %v7306, %v1131
        %v7339 = vmul.f32 %v7307, %v1132
        %v7340 = vmul.f32 %v7308, %v1133
        %v7341 = vmul.f32 %v7309, %v1134
        %v7342 = vmul.f32 %v7310, %v1135
        %v7343 = vmul.f32 %v7311, %v1136
        %v7344 = vmul.f32 %v7312, %v1137
        %v7345 = vld [vmem:[#allocation6] sm:$0xff]
        %v7346 = vld [vmem:[#allocation6 + $0x8] sm:$0xff]
        %v7347 = vld [vmem:[#allocation6 + $0x10] sm:$0xff]
        %v7348 = vld [vmem:[#allocation6 + $0x18] sm:$0xff]
        %v7349 = vld [vmem:[#allocation2 + $0x8] sm:$0xff]
        %v7350 = vld [vmem:[#allocation2 + $0x10] sm:$0xff]
        %v7351 = vld [vmem:[#allocation2 + $0x18] sm:$0xff]
        %v7352 = vld [vmem:[#allocation2 + $0x20] sm:$0xff]
        %v7353 = vld [vmem:[#allocation2 + $0x28] sm:$0xff]
        %v7354 = vld [vmem:[#allocation2 + $0x30] sm:$0xff]
        %v7355 = vld [vmem:[#allocation2 + $0x38] sm:$0xff]
        %v7356 = vld [vmem:[#allocation2 + $0x40] sm:$0xff]
        %v7357 = vld [vmem:[#allocation2 + $0x48] sm:$0xff]
        %v7358 = vld [vmem:[#allocation2 + $0x50] sm:$0xff]
        %v7359 = vld [vmem:[#allocation2 + $0x58] sm:$0xff]
        %v7360 = vld [vmem:[#allocation2 + $0x60] sm:$0xff]
        %v7361 = vld [vmem:[#allocation2 + $0x68] sm:$0xff]
        %v7362 = vld [vmem:[#allocation2 + $0x70] sm:$0xff]
        %v7363 = vld [vmem:[#allocation2 + $0x78] sm:$0xff]
        %v7364 = vld [vmem:[#allocation2 + $0x80] sm:$0xff]
        %v7365 = vld [vmem:[#allocation2 + $0x88] sm:$0xff]
        %v7366 = vld [vmem:[#allocation2 + $0x90] sm:$0xff]
        %v7367 = vld [vmem:[#allocation2 + $0x98] sm:$0xff]
        %v7368 = vld [vmem:[#allocation2 + $0xa0] sm:$0xff]
        %v7369 = vld [vmem:[#allocation2 + $0xa8] sm:$0xff]
        %v7370 = vld [vmem:[#allocation2 + $0xb0] sm:$0xff]
        %v7371 = vld [vmem:[#allocation2 + $0xb8] sm:$0xff]
        %v7372 = vld [vmem:[#allocation2 + $0xc0] sm:$0xff]
        %v7373 = vld [vmem:[#allocation2 + $0xc8] sm:$0xff]
        %v7374 = vld [vmem:[#allocation2 + $0xd0] sm:$0xff]
        %v7375 = vld [vmem:[#allocation2 + $0xd8] sm:$0xff]
        %v7376 = vld [vmem:[#allocation2 + $0xe0] sm:$0xff]
        %v7377 = vld [vmem:[#allocation2 + $0xe8] sm:$0xff]
        %v7378 = vld [vmem:[#allocation2 + $0xf0] sm:$0xff]
        %v7379 = vld [vmem:[#allocation2 + $0xf8] sm:$0xff]
        %v7380 = vld [vmem:[#allocation2 + $0x100] sm:$0xff]
        %s7381 = scalar_lea.vmem [#allocation6], 32
        %v7382 = vld [vmem:[%s7381] sm:$0xff]
        %v7383 = vld [vmem:[%s7381 + $0x8] sm:$0xff]
        %v7384 = vld [vmem:[%s7381 + $0x10] sm:$0xff]
        %v7385 = vld [vmem:[%s7381 + $0x18] sm:$0xff]
        %v7387 = vsel %vm586, %v7349, 0
        %v7390 = vsel %vm586, %v7350, 0
        %v7393 = vsel %vm586, %v7351, 0
        %v7396 = vsel %vm586, %v7352, 0
        %v7399 = vsel %vm586, %v7353, 0
        %v7402 = vsel %vm586, %v7354, 0
        %v7405 = vsel %vm586, %v7355, 0
        %v7408 = vsel %vm586, %v7356, 0
        %v7411 = vsel %vm586, %v7357, 0
        %v7414 = vsel %vm586, %v7358, 0
        %v7417 = vsel %vm586, %v7359, 0
        %v7420 = vsel %vm586, %v7360, 0
        %v7423 = vsel %vm586, %v7361, 0
        %v7426 = vsel %vm586, %v7362, 0
        %v7429 = vsel %vm586, %v7363, 0
        %v7432 = vsel %vm586, %v7364, 0
        %v7435 = vsel %vm586, %v7365, 0
        %v7438 = vsel %vm586, %v7366, 0
        %v7441 = vsel %vm586, %v7367, 0
        %v7444 = vsel %vm586, %v7368, 0
        %v7447 = vsel %vm586, %v7369, 0
        %v7450 = vsel %vm586, %v7370, 0
        %v7453 = vsel %vm586, %v7371, 0
        %v7456 = vsel %vm586, %v7372, 0
        %v7459 = vsel %vm586, %v7373, 0
        %v7462 = vsel %vm586, %v7374, 0
        %v7465 = vsel %vm586, %v7375, 0
        %v7468 = vsel %vm586, %v7376, 0
        %v7471 = vsel %vm586, %v7377, 0
        %v7474 = vsel %vm586, %v7378, 0
        %v7477 = vsel %vm586, %v7379, 0
        %v7480 = vsel %vm586, %v7380, 0
        %7482 = vmatpush.msra.mxu0 0.0
        %7483 = vmatpush.msra.mxu0 0.0
        %7484 = vmatpush.msra.mxu0 0.0
        %7485 = vmatpush.msra.mxu0 0.0
        %7486 = vmatpush.msra.mxu0 0.0
        %7487 = vmatpush.msra.mxu0 0.0
        %7488 = vmatpush.msra.mxu0 0.0
        %7489 = vmatpush.msra.mxu0 0.0
        %7490 = vmatpush.msra.mxu0 0.0
        %7491 = vmatpush.msra.mxu0 0.0
        %7492 = vmatpush.msra.mxu0 0.0
        %7493 = vmatpush.msra.mxu0 0.0
        %7494 = vmatpush.msra.mxu0 %v7385
        %7495 = vmatpush.msra.mxu0 %v7384
        %7496 = vmatpush.msra.mxu0 %v7383
        %7497 = vmatpush.msra.mxu0 %v7382
        %7498 = vmatmul.f32.gmra.mxu0 %v7387
        %v7499 = vpop.f32.mrf.mxu0
        %v7500 = vadd.f32 0.0, %v7499
        %7501 = vmatmul.f32.gmra.mxu0 %v7390
        %v7502 = vpop.f32.mrf.mxu0
        %v7503 = vadd.f32 0.0, %v7502
        %7504 = vmatmul.f32.gmra.mxu0 %v7393
        %v7505 = vpop.f32.mrf.mxu0
        %v7506 = vadd.f32 0.0, %v7505
        %7507 = vmatmul.f32.gmra.mxu0 %v7396
        %v7508 = vpop.f32.mrf.mxu0
        %v7509 = vadd.f32 0.0, %v7508
        %7510 = vmatmul.f32.gmra.mxu0 %v7399
        %v7511 = vpop.f32.mrf.mxu0
        %v7512 = vadd.f32 0.0, %v7511
        %7513 = vmatmul.f32.gmra.mxu0 %v7402
        %v7514 = vpop.f32.mrf.mxu0
        %v7515 = vadd.f32 0.0, %v7514
        %7516 = vmatmul.f32.gmra.mxu0 %v7405
        %v7517 = vpop.f32.mrf.mxu0
        %v7518 = vadd.f32 0.0, %v7517
        %7519 = vmatmul.f32.gmra.mxu0 %v7408
        %v7520 = vpop.f32.mrf.mxu0
        %v7521 = vadd.f32 0.0, %v7520
        %7522 = vmatmul.f32.gmra.mxu0 %v7411
        %v7523 = vpop.f32.mrf.mxu0
        %v7524 = vadd.f32 0.0, %v7523
        %7525 = vmatmul.f32.gmra.mxu0 %v7414
        %v7526 = vpop.f32.mrf.mxu0
        %v7527 = vadd.f32 0.0, %v7526
        %7528 = vmatmul.f32.gmra.mxu0 %v7417
        %v7529 = vpop.f32.mrf.mxu0
        %v7530 = vadd.f32 0.0, %v7529
        %7531 = vmatmul.f32.gmra.mxu0 %v7420
        %v7532 = vpop.f32.mrf.mxu0
        %v7533 = vadd.f32 0.0, %v7532
        %7534 = vmatmul.f32.gmra.mxu0 %v7423
        %v7535 = vpop.f32.mrf.mxu0
        %v7536 = vadd.f32 0.0, %v7535
        %7537 = vmatmul.f32.gmra.mxu0 %v7426
        %v7538 = vpop.f32.mrf.mxu0
        %v7539 = vadd.f32 0.0, %v7538
        %7540 = vmatmul.f32.gmra.mxu0 %v7429
        %v7541 = vpop.f32.mrf.mxu0
        %v7542 = vadd.f32 0.0, %v7541
        %7543 = vmatmul.f32.gmra.mxu0 %v7432
        %v7544 = vpop.f32.mrf.mxu0
        %v7545 = vadd.f32 0.0, %v7544
        %7546 = vmatmul.f32.gmra.mxu0 %v7435
        %v7547 = vpop.f32.mrf.mxu0
        %v7548 = vadd.f32 0.0, %v7547
        %7549 = vmatmul.f32.gmra.mxu0 %v7438
        %v7550 = vpop.f32.mrf.mxu0
        %v7551 = vadd.f32 0.0, %v7550
        %7552 = vmatmul.f32.gmra.mxu0 %v7441
        %v7553 = vpop.f32.mrf.mxu0
        %v7554 = vadd.f32 0.0, %v7553
        %7555 = vmatmul.f32.gmra.mxu0 %v7444
        %v7556 = vpop.f32.mrf.mxu0
        %v7557 = vadd.f32 0.0, %v7556
        %7558 = vmatmul.f32.gmra.mxu0 %v7447
        %v7559 = vpop.f32.mrf.mxu0
        %v7560 = vadd.f32 0.0, %v7559
        %7561 = vmatmul.f32.gmra.mxu0 %v7450
        %v7562 = vpop.f32.mrf.mxu0
        %v7563 = vadd.f32 0.0, %v7562
        %7564 = vmatmul.f32.gmra.mxu0 %v7453
        %v7565 = vpop.f32.mrf.mxu0
        %v7566 = vadd.f32 0.0, %v7565
        %7567 = vmatmul.f32.gmra.mxu0 %v7456
        %v7568 = vpop.f32.mrf.mxu0
        %v7569 = vadd.f32 0.0, %v7568
        %7570 = vmatmul.f32.gmra.mxu0 %v7459
        %v7571 = vpop.f32.mrf.mxu0
        %v7572 = vadd.f32 0.0, %v7571
        %7573 = vmatmul.f32.gmra.mxu0 %v7462
        %v7574 = vpop.f32.mrf.mxu0
        %v7575 = vadd.f32 0.0, %v7574
        %7576 = vmatmul.f32.gmra.mxu0 %v7465
        %v7577 = vpop.f32.mrf.mxu0
        %v7578 = vadd.f32 0.0, %v7577
        %7579 = vmatmul.f32.gmra.mxu0 %v7468
        %v7580 = vpop.f32.mrf.mxu0
        %v7581 = vadd.f32 0.0, %v7580
        %7582 = vmatmul.f32.gmra.mxu0 %v7471
        %v7583 = vpop.f32.mrf.mxu0
        %v7584 = vadd.f32 0.0, %v7583
        %7585 = vmatmul.f32.gmra.mxu0 %v7474
        %v7586 = vpop.f32.mrf.mxu0
        %v7587 = vadd.f32 0.0, %v7586
        %7588 = vmatmul.f32.gmra.mxu0 %v7477
        %v7589 = vpop.f32.mrf.mxu0
        %v7590 = vadd.f32 0.0, %v7589
        %7591 = vmatmul.f32.gmra.mxu0 %v7480
        %v7592 = vpop.f32.mrf.mxu0
        %v7593 = vadd.f32 0.0, %v7592
        %7594 = vdwg.mxu0
        %v7596 = vsel %vm586, %v7313, 0
        %v7599 = vsel %vm586, %v7314, 0
        %v7602 = vsel %vm586, %v7315, 0
        %v7605 = vsel %vm586, %v7316, 0
        %v7608 = vsel %vm586, %v7317, 0
        %v7611 = vsel %vm586, %v7318, 0
        %v7614 = vsel %vm586, %v7319, 0
        %v7617 = vsel %vm586, %v7320, 0
        %v7620 = vsel %vm586, %v7321, 0
        %v7623 = vsel %vm586, %v7322, 0
        %v7626 = vsel %vm586, %v7323, 0
        %v7629 = vsel %vm586, %v7324, 0
        %v7632 = vsel %vm586, %v7325, 0
        %v7635 = vsel %vm586, %v7326, 0
        %v7638 = vsel %vm586, %v7327, 0
        %v7641 = vsel %vm586, %v7328, 0
        %v7644 = vsel %vm586, %v7329, 0
        %v7647 = vsel %vm586, %v7330, 0
        %v7650 = vsel %vm586, %v7331, 0
        %v7653 = vsel %vm586, %v7332, 0
        %v7656 = vsel %vm586, %v7333, 0
        %v7659 = vsel %vm586, %v7334, 0
        %v7662 = vsel %vm586, %v7335, 0
        %v7665 = vsel %vm586, %v7336, 0
        %v7668 = vsel %vm586, %v7337, 0
        %v7671 = vsel %vm586, %v7338, 0
        %v7674 = vsel %vm586, %v7339, 0
        %v7677 = vsel %vm586, %v7340, 0
        %v7680 = vsel %vm586, %v7341, 0
        %v7683 = vsel %vm586, %v7342, 0
        %v7686 = vsel %vm586, %v7343, 0
        %v7689 = vsel %vm586, %v7344, 0
        %7691 = vmatpush.msra.mxu0 0.0
        %7692 = vmatpush.msra.mxu0 0.0
        %7693 = vmatpush.msra.mxu0 0.0
        %7694 = vmatpush.msra.mxu0 0.0
        %7695 = vmatpush.msra.mxu0 0.0
        %7696 = vmatpush.msra.mxu0 0.0
        %7697 = vmatpush.msra.mxu0 0.0
        %7698 = vmatpush.msra.mxu0 0.0
        %7699 = vmatpush.msra.mxu0 0.0
        %7700 = vmatpush.msra.mxu0 0.0
        %7701 = vmatpush.msra.mxu0 0.0
        %7702 = vmatpush.msra.mxu0 0.0
        %7703 = vmatpush.msra.mxu0 %v7348
        %7704 = vmatpush.msra.mxu0 %v7347
        %7705 = vmatpush.msra.mxu0 %v7346
        %7706 = vmatpush.msra.mxu0 %v7345
        %7707 = vmatmul.f32.gmra.mxu0 %v7596
        %v7708 = vpop.f32.mrf.mxu0
        %v7709 = vadd.f32 %v7500, %v7708
        %7710 = vmatmul.f32.gmra.mxu0 %v7599
        %v7711 = vpop.f32.mrf.mxu0
        %v7712 = vadd.f32 %v7503, %v7711
        %7713 = vmatmul.f32.gmra.mxu0 %v7602
        %v7714 = vpop.f32.mrf.mxu0
        %v7715 = vadd.f32 %v7506, %v7714
        %7716 = vmatmul.f32.gmra.mxu0 %v7605
        %v7717 = vpop.f32.mrf.mxu0
        %v7718 = vadd.f32 %v7509, %v7717
        %7719 = vmatmul.f32.gmra.mxu0 %v7608
        %v7720 = vpop.f32.mrf.mxu0
        %v7721 = vadd.f32 %v7512, %v7720
        %7722 = vmatmul.f32.gmra.mxu0 %v7611
        %v7723 = vpop.f32.mrf.mxu0
        %v7724 = vadd.f32 %v7515, %v7723
        %7725 = vmatmul.f32.gmra.mxu0 %v7614
        %v7726 = vpop.f32.mrf.mxu0
        %v7727 = vadd.f32 %v7518, %v7726
        %7728 = vmatmul.f32.gmra.mxu0 %v7617
        %v7729 = vpop.f32.mrf.mxu0
        %v7730 = vadd.f32 %v7521, %v7729
        %7731 = vmatmul.f32.gmra.mxu0 %v7620
        %v7732 = vpop.f32.mrf.mxu0
        %v7733 = vadd.f32 %v7524, %v7732
        %7734 = vmatmul.f32.gmra.mxu0 %v7623
        %v7735 = vpop.f32.mrf.mxu0
        %v7736 = vadd.f32 %v7527, %v7735
        %7737 = vmatmul.f32.gmra.mxu0 %v7626
        %v7738 = vpop.f32.mrf.mxu0
        %v7739 = vadd.f32 %v7530, %v7738
        %7740 = vmatmul.f32.gmra.mxu0 %v7629
        %v7741 = vpop.f32.mrf.mxu0
        %v7742 = vadd.f32 %v7533, %v7741
        %7743 = vmatmul.f32.gmra.mxu0 %v7632
        %v7744 = vpop.f32.mrf.mxu0
        %v7745 = vadd.f32 %v7536, %v7744
        %7746 = vmatmul.f32.gmra.mxu0 %v7635
        %v7747 = vpop.f32.mrf.mxu0
        %v7748 = vadd.f32 %v7539, %v7747
        %7749 = vmatmul.f32.gmra.mxu0 %v7638
        %v7750 = vpop.f32.mrf.mxu0
        %v7751 = vadd.f32 %v7542, %v7750
        %7752 = vmatmul.f32.gmra.mxu0 %v7641
        %v7753 = vpop.f32.mrf.mxu0
        %v7754 = vadd.f32 %v7545, %v7753
        %7755 = vmatmul.f32.gmra.mxu0 %v7644
        %v7756 = vpop.f32.mrf.mxu0
        %v7757 = vadd.f32 %v7548, %v7756
        %7758 = vmatmul.f32.gmra.mxu0 %v7647
        %v7759 = vpop.f32.mrf.mxu0
        %v7760 = vadd.f32 %v7551, %v7759
        %7761 = vmatmul.f32.gmra.mxu0 %v7650
        %v7762 = vpop.f32.mrf.mxu0
        %v7763 = vadd.f32 %v7554, %v7762
        %7764 = vmatmul.f32.gmra.mxu0 %v7653
        %v7765 = vpop.f32.mrf.mxu0
        %v7766 = vadd.f32 %v7557, %v7765
        %7767 = vmatmul.f32.gmra.mxu0 %v7656
        %v7768 = vpop.f32.mrf.mxu0
        %v7769 = vadd.f32 %v7560, %v7768
        %7770 = vmatmul.f32.gmra.mxu0 %v7659
        %v7771 = vpop.f32.mrf.mxu0
        %v7772 = vadd.f32 %v7563, %v7771
        %7773 = vmatmul.f32.gmra.mxu0 %v7662
        %v7774 = vpop.f32.mrf.mxu0
        %v7775 = vadd.f32 %v7566, %v7774
        %7776 = vmatmul.f32.gmra.mxu0 %v7665
        %v7777 = vpop.f32.mrf.mxu0
        %v7778 = vadd.f32 %v7569, %v7777
        %7779 = vmatmul.f32.gmra.mxu0 %v7668
        %v7780 = vpop.f32.mrf.mxu0
        %v7781 = vadd.f32 %v7572, %v7780
        %7782 = vmatmul.f32.gmra.mxu0 %v7671
        %v7783 = vpop.f32.mrf.mxu0
        %v7784 = vadd.f32 %v7575, %v7783
        %7785 = vmatmul.f32.gmra.mxu0 %v7674
        %v7786 = vpop.f32.mrf.mxu0
        %v7787 = vadd.f32 %v7578, %v7786
        %7788 = vmatmul.f32.gmra.mxu0 %v7677
        %v7789 = vpop.f32.mrf.mxu0
        %v7790 = vadd.f32 %v7581, %v7789
        %7791 = vmatmul.f32.gmra.mxu0 %v7680
        %v7792 = vpop.f32.mrf.mxu0
        %v7793 = vadd.f32 %v7584, %v7792
        %7794 = vmatmul.f32.gmra.mxu0 %v7683
        %v7795 = vpop.f32.mrf.mxu0
        %v7796 = vadd.f32 %v7587, %v7795
        %7797 = vmatmul.f32.gmra.mxu0 %v7686
        %v7798 = vpop.f32.mrf.mxu0
        %v7799 = vadd.f32 %v7590, %v7798
        %7800 = vmatmul.f32.gmra.mxu0 %v7689
        %v7801 = vpop.f32.mrf.mxu0
        %v7802 = vadd.f32 %v7593, %v7801
        %7803 = vdwg.mxu0
        %v7804 = vld [vmem:[#allocation2 + $0x9] sm:$0xff]
        %v7805 = vld [vmem:[#allocation2 + $0x11] sm:$0xff]
        %v7806 = vld [vmem:[#allocation2 + $0x19] sm:$0xff]
        %v7807 = vld [vmem:[#allocation2 + $0x21] sm:$0xff]
        %v7808 = vld [vmem:[#allocation2 + $0x29] sm:$0xff]
        %v7809 = vld [vmem:[#allocation2 + $0x31] sm:$0xff]
        %v7810 = vld [vmem:[#allocation2 + $0x39] sm:$0xff]
        %v7811 = vld [vmem:[#allocation2 + $0x41] sm:$0xff]
        %v7812 = vld [vmem:[#allocation2 + $0x49] sm:$0xff]
        %v7813 = vld [vmem:[#allocation2 + $0x51] sm:$0xff]
        %v7814 = vld [vmem:[#allocation2 + $0x59] sm:$0xff]
        %v7815 = vld [vmem:[#allocation2 + $0x61] sm:$0xff]
        %v7816 = vld [vmem:[#allocation2 + $0x69] sm:$0xff]
        %v7817 = vld [vmem:[#allocation2 + $0x71] sm:$0xff]
        %v7818 = vld [vmem:[#allocation2 + $0x79] sm:$0xff]
        %v7819 = vld [vmem:[#allocation2 + $0x81] sm:$0xff]
        %v7820 = vld [vmem:[#allocation2 + $0x89] sm:$0xff]
        %v7821 = vld [vmem:[#allocation2 + $0x91] sm:$0xff]
        %v7822 = vld [vmem:[#allocation2 + $0x99] sm:$0xff]
        %v7823 = vld [vmem:[#allocation2 + $0xa1] sm:$0xff]
        %v7824 = vld [vmem:[#allocation2 + $0xa9] sm:$0xff]
        %v7825 = vld [vmem:[#allocation2 + $0xb1] sm:$0xff]
        %v7826 = vld [vmem:[#allocation2 + $0xb9] sm:$0xff]
        %v7827 = vld [vmem:[#allocation2 + $0xc1] sm:$0xff]
        %v7828 = vld [vmem:[#allocation2 + $0xc9] sm:$0xff]
        %v7829 = vld [vmem:[#allocation2 + $0xd1] sm:$0xff]
        %v7830 = vld [vmem:[#allocation2 + $0xd9] sm:$0xff]
        %v7831 = vld [vmem:[#allocation2 + $0xe1] sm:$0xff]
        %v7832 = vld [vmem:[#allocation2 + $0xe9] sm:$0xff]
        %v7833 = vld [vmem:[#allocation2 + $0xf1] sm:$0xff]
        %v7834 = vld [vmem:[#allocation2 + $0xf9] sm:$0xff]
        %v7835 = vld [vmem:[#allocation2 + $0x101] sm:$0xff]
        %v7836 = vmul.f32 %v7804, %v1202
        %v7837 = vmul.f32 %v7805, %v1203
        %v7838 = vmul.f32 %v7806, %v1204
        %v7839 = vmul.f32 %v7807, %v1205
        %v7840 = vmul.f32 %v7808, %v1206
        %v7841 = vmul.f32 %v7809, %v1207
        %v7842 = vmul.f32 %v7810, %v1208
        %v7843 = vmul.f32 %v7811, %v1209
        %v7844 = vmul.f32 %v7812, %v1210
        %v7845 = vmul.f32 %v7813, %v1211
        %v7846 = vmul.f32 %v7814, %v1212
        %v7847 = vmul.f32 %v7815, %v1213
        %v7848 = vmul.f32 %v7816, %v1214
        %v7849 = vmul.f32 %v7817, %v1215
        %v7850 = vmul.f32 %v7818, %v1216
        %v7851 = vmul.f32 %v7819, %v1217
        %v7852 = vmul.f32 %v7820, %v1218
        %v7853 = vmul.f32 %v7821, %v1219
        %v7854 = vmul.f32 %v7822, %v1220
        %v7855 = vmul.f32 %v7823, %v1221
        %v7856 = vmul.f32 %v7824, %v1222
        %v7857 = vmul.f32 %v7825, %v1223
        %v7858 = vmul.f32 %v7826, %v1224
        %v7859 = vmul.f32 %v7827, %v1225
        %v7860 = vmul.f32 %v7828, %v1226
        %v7861 = vmul.f32 %v7829, %v1227
        %v7862 = vmul.f32 %v7830, %v1228
        %v7863 = vmul.f32 %v7831, %v1229
        %v7864 = vmul.f32 %v7832, %v1230
        %v7865 = vmul.f32 %v7833, %v1231
        %v7866 = vmul.f32 %v7834, %v1232
        %v7867 = vmul.f32 %v7835, %v1233
        %s7868 = scalar_lea.vmem [#allocation6], 64
        %v7869 = vld [vmem:[%s7868] sm:$0xff]
        %v7870 = vld [vmem:[%s7868 + $0x8] sm:$0xff]
        %v7871 = vld [vmem:[%s7868 + $0x10] sm:$0xff]
        %v7872 = vld [vmem:[%s7868 + $0x18] sm:$0xff]
        %v7874 = vsel %vm586, %v7836, 0
        %v7877 = vsel %vm586, %v7837, 0
        %v7880 = vsel %vm586, %v7838, 0
        %v7883 = vsel %vm586, %v7839, 0
        %v7886 = vsel %vm586, %v7840, 0
        %v7889 = vsel %vm586, %v7841, 0
        %v7892 = vsel %vm586, %v7842, 0
        %v7895 = vsel %vm586, %v7843, 0
        %v7898 = vsel %vm586, %v7844, 0
        %v7901 = vsel %vm586, %v7845, 0
        %v7904 = vsel %vm586, %v7846, 0
        %v7907 = vsel %vm586, %v7847, 0
        %v7910 = vsel %vm586, %v7848, 0
        %v7913 = vsel %vm586, %v7849, 0
        %v7916 = vsel %vm586, %v7850, 0
        %v7919 = vsel %vm586, %v7851, 0
        %v7922 = vsel %vm586, %v7852, 0
        %v7925 = vsel %vm586, %v7853, 0
        %v7928 = vsel %vm586, %v7854, 0
        %v7931 = vsel %vm586, %v7855, 0
        %v7934 = vsel %vm586, %v7856, 0
        %v7937 = vsel %vm586, %v7857, 0
        %v7940 = vsel %vm586, %v7858, 0
        %v7943 = vsel %vm586, %v7859, 0
        %v7946 = vsel %vm586, %v7860, 0
        %v7949 = vsel %vm586, %v7861, 0
        %v7952 = vsel %vm586, %v7862, 0
        %v7955 = vsel %vm586, %v7863, 0
        %v7958 = vsel %vm586, %v7864, 0
        %v7961 = vsel %vm586, %v7865, 0
        %v7964 = vsel %vm586, %v7866, 0
        %v7967 = vsel %vm586, %v7867, 0
        %7969 = vmatpush.msra.mxu0 0.0
        %7970 = vmatpush.msra.mxu0 0.0
        %7971 = vmatpush.msra.mxu0 0.0
        %7972 = vmatpush.msra.mxu0 0.0
        %7973 = vmatpush.msra.mxu0 0.0
        %7974 = vmatpush.msra.mxu0 0.0
        %7975 = vmatpush.msra.mxu0 0.0
        %7976 = vmatpush.msra.mxu0 0.0
        %7977 = vmatpush.msra.mxu0 0.0
        %7978 = vmatpush.msra.mxu0 0.0
        %7979 = vmatpush.msra.mxu0 0.0
        %7980 = vmatpush.msra.mxu0 0.0
        %7981 = vmatpush.msra.mxu0 %v7872
        %7982 = vmatpush.msra.mxu0 %v7871
        %7983 = vmatpush.msra.mxu0 %v7870
        %7984 = vmatpush.msra.mxu0 %v7869
        %7985 = vmatmul.f32.gmra.mxu0 %v7874
        %v7986 = vpop.f32.mrf.mxu0
        %v7987 = vadd.f32 0.0, %v7986
        %7988 = vmatmul.f32.gmra.mxu0 %v7877
        %v7989 = vpop.f32.mrf.mxu0
        %v7990 = vadd.f32 0.0, %v7989
        %7991 = vmatmul.f32.gmra.mxu0 %v7880
        %v7992 = vpop.f32.mrf.mxu0
        %v7993 = vadd.f32 0.0, %v7992
        %7994 = vmatmul.f32.gmra.mxu0 %v7883
        %v7995 = vpop.f32.mrf.mxu0
        %v7996 = vadd.f32 0.0, %v7995
        %7997 = vmatmul.f32.gmra.mxu0 %v7886
        %v7998 = vpop.f32.mrf.mxu0
        %v7999 = vadd.f32 0.0, %v7998
        %8000 = vmatmul.f32.gmra.mxu0 %v7889
        %v8001 = vpop.f32.mrf.mxu0
        %v8002 = vadd.f32 0.0, %v8001
        %8003 = vmatmul.f32.gmra.mxu0 %v7892
        %v8004 = vpop.f32.mrf.mxu0
        %v8005 = vadd.f32 0.0, %v8004
        %8006 = vmatmul.f32.gmra.mxu0 %v7895
        %v8007 = vpop.f32.mrf.mxu0
        %v8008 = vadd.f32 0.0, %v8007
        %8009 = vmatmul.f32.gmra.mxu0 %v7898
        %v8010 = vpop.f32.mrf.mxu0
        %v8011 = vadd.f32 0.0, %v8010
        %8012 = vmatmul.f32.gmra.mxu0 %v7901
        %v8013 = vpop.f32.mrf.mxu0
        %v8014 = vadd.f32 0.0, %v8013
        %8015 = vmatmul.f32.gmra.mxu0 %v7904
        %v8016 = vpop.f32.mrf.mxu0
        %v8017 = vadd.f32 0.0, %v8016
        %8018 = vmatmul.f32.gmra.mxu0 %v7907
        %v8019 = vpop.f32.mrf.mxu0
        %v8020 = vadd.f32 0.0, %v8019
        %8021 = vmatmul.f32.gmra.mxu0 %v7910
        %v8022 = vpop.f32.mrf.mxu0
        %v8023 = vadd.f32 0.0, %v8022
        %8024 = vmatmul.f32.gmra.mxu0 %v7913
        %v8025 = vpop.f32.mrf.mxu0
        %v8026 = vadd.f32 0.0, %v8025
        %8027 = vmatmul.f32.gmra.mxu0 %v7916
        %v8028 = vpop.f32.mrf.mxu0
        %v8029 = vadd.f32 0.0, %v8028
        %8030 = vmatmul.f32.gmra.mxu0 %v7919
        %v8031 = vpop.f32.mrf.mxu0
        %v8032 = vadd.f32 0.0, %v8031
        %8033 = vmatmul.f32.gmra.mxu0 %v7922
        %v8034 = vpop.f32.mrf.mxu0
        %v8035 = vadd.f32 0.0, %v8034
        %8036 = vmatmul.f32.gmra.mxu0 %v7925
        %v8037 = vpop.f32.mrf.mxu0
        %v8038 = vadd.f32 0.0, %v8037
        %8039 = vmatmul.f32.gmra.mxu0 %v7928
        %v8040 = vpop.f32.mrf.mxu0
        %v8041 = vadd.f32 0.0, %v8040
        %8042 = vmatmul.f32.gmra.mxu0 %v7931
        %v8043 = vpop.f32.mrf.mxu0
        %v8044 = vadd.f32 0.0, %v8043
        %8045 = vmatmul.f32.gmra.mxu0 %v7934
        %v8046 = vpop.f32.mrf.mxu0
        %v8047 = vadd.f32 0.0, %v8046
        %8048 = vmatmul.f32.gmra.mxu0 %v7937
        %v8049 = vpop.f32.mrf.mxu0
        %v8050 = vadd.f32 0.0, %v8049
        %8051 = vmatmul.f32.gmra.mxu0 %v7940
        %v8052 = vpop.f32.mrf.mxu0
        %v8053 = vadd.f32 0.0, %v8052
        %8054 = vmatmul.f32.gmra.mxu0 %v7943
        %v8055 = vpop.f32.mrf.mxu0
        %v8056 = vadd.f32 0.0, %v8055
        %8057 = vmatmul.f32.gmra.mxu0 %v7946
        %v8058 = vpop.f32.mrf.mxu0
        %v8059 = vadd.f32 0.0, %v8058
        %8060 = vmatmul.f32.gmra.mxu0 %v7949
        %v8061 = vpop.f32.mrf.mxu0
        %v8062 = vadd.f32 0.0, %v8061
        %8063 = vmatmul.f32.gmra.mxu0 %v7952
        %v8064 = vpop.f32.mrf.mxu0
        %v8065 = vadd.f32 0.0, %v8064
        %8066 = vmatmul.f32.gmra.mxu0 %v7955
        %v8067 = vpop.f32.mrf.mxu0
        %v8068 = vadd.f32 0.0, %v8067
        %8069 = vmatmul.f32.gmra.mxu0 %v7958
        %v8070 = vpop.f32.mrf.mxu0
        %v8071 = vadd.f32 0.0, %v8070
        %8072 = vmatmul.f32.gmra.mxu0 %v7961
        %v8073 = vpop.f32.mrf.mxu0
        %v8074 = vadd.f32 0.0, %v8073
        %8075 = vmatmul.f32.gmra.mxu0 %v7964
        %v8076 = vpop.f32.mrf.mxu0
        %v8077 = vadd.f32 0.0, %v8076
        %8078 = vmatmul.f32.gmra.mxu0 %v7967
        %v8079 = vpop.f32.mrf.mxu0
        %v8080 = vadd.f32 0.0, %v8079
        %8081 = vdwg.mxu0
        %v8082 = vadd.f32 %v7709, %v7987
        %v8083 = vadd.f32 %v7712, %v7990
        %v8084 = vadd.f32 %v7715, %v7993
        %v8085 = vadd.f32 %v7718, %v7996
        %v8086 = vadd.f32 %v7721, %v7999
        %v8087 = vadd.f32 %v7724, %v8002
        %v8088 = vadd.f32 %v7727, %v8005
        %v8089 = vadd.f32 %v7730, %v8008
        %v8090 = vadd.f32 %v7733, %v8011
        %v8091 = vadd.f32 %v7736, %v8014
        %v8092 = vadd.f32 %v7739, %v8017
        %v8093 = vadd.f32 %v7742, %v8020
        %v8094 = vadd.f32 %v7745, %v8023
        %v8095 = vadd.f32 %v7748, %v8026
        %v8096 = vadd.f32 %v7751, %v8029
        %v8097 = vadd.f32 %v7754, %v8032
        %v8098 = vadd.f32 %v7757, %v8035
        %v8099 = vadd.f32 %v7760, %v8038
        %v8100 = vadd.f32 %v7763, %v8041
        %v8101 = vadd.f32 %v7766, %v8044
        %v8102 = vadd.f32 %v7769, %v8047
        %v8103 = vadd.f32 %v7772, %v8050
        %v8104 = vadd.f32 %v7775, %v8053
        %v8105 = vadd.f32 %v7778, %v8056
        %v8106 = vadd.f32 %v7781, %v8059
        %v8107 = vadd.f32 %v7784, %v8062
        %v8108 = vadd.f32 %v7787, %v8065
        %v8109 = vadd.f32 %v7790, %v8068
        %v8110 = vadd.f32 %v7793, %v8071
        %v8111 = vadd.f32 %v7796, %v8074
        %v8112 = vadd.f32 %v7799, %v8077
        %v8113 = vadd.f32 %v7802, %v8080
        %v8114 = vld [vmem:[#allocation2 + $0x17] sm:$0xff]
        %v8115 = vld [vmem:[#allocation2 + $0x1f] sm:$0xff]
        %v8116 = vld [vmem:[#allocation2 + $0x27] sm:$0xff]
        %v8117 = vld [vmem:[#allocation2 + $0x2f] sm:$0xff]
        %v8118 = vld [vmem:[#allocation2 + $0x37] sm:$0xff]
        %v8119 = vld [vmem:[#allocation2 + $0x3f] sm:$0xff]
        %v8120 = vld [vmem:[#allocation2 + $0x47] sm:$0xff]
        %v8121 = vld [vmem:[#allocation2 + $0x4f] sm:$0xff]
        %v8122 = vld [vmem:[#allocation2 + $0x57] sm:$0xff]
        %v8123 = vld [vmem:[#allocation2 + $0x5f] sm:$0xff]
        %v8124 = vld [vmem:[#allocation2 + $0x67] sm:$0xff]
        %v8125 = vld [vmem:[#allocation2 + $0x6f] sm:$0xff]
        %v8126 = vld [vmem:[#allocation2 + $0x77] sm:$0xff]
        %v8127 = vld [vmem:[#allocation2 + $0x7f] sm:$0xff]
        %v8128 = vld [vmem:[#allocation2 + $0x87] sm:$0xff]
        %v8129 = vld [vmem:[#allocation2 + $0x8f] sm:$0xff]
        %v8130 = vld [vmem:[#allocation2 + $0x97] sm:$0xff]
        %v8131 = vld [vmem:[#allocation2 + $0x9f] sm:$0xff]
        %v8132 = vld [vmem:[#allocation2 + $0xa7] sm:$0xff]
        %v8133 = vld [vmem:[#allocation2 + $0xaf] sm:$0xff]
        %v8134 = vld [vmem:[#allocation2 + $0xb7] sm:$0xff]
        %v8135 = vld [vmem:[#allocation2 + $0xbf] sm:$0xff]
        %v8136 = vld [vmem:[#allocation2 + $0xc7] sm:$0xff]
        %v8137 = vld [vmem:[#allocation2 + $0xcf] sm:$0xff]
        %v8138 = vld [vmem:[#allocation2 + $0xd7] sm:$0xff]
        %v8139 = vld [vmem:[#allocation2 + $0xdf] sm:$0xff]
        %v8140 = vld [vmem:[#allocation2 + $0xe7] sm:$0xff]
        %v8141 = vld [vmem:[#allocation2 + $0xef] sm:$0xff]
        %v8142 = vld [vmem:[#allocation2 + $0xf7] sm:$0xff]
        %v8143 = vld [vmem:[#allocation2 + $0xff] sm:$0xff]
        %v8144 = vld [vmem:[#allocation2 + $0x107] sm:$0xff]
        %v8145 = vld [vmem:[#allocation2 + $0x10f] sm:$0xff]
        %v8146 = vmul.f32 %v8114, %v1106
        %v8147 = vmul.f32 %v8115, %v1107
        %v8148 = vmul.f32 %v8116, %v1108
        %v8149 = vmul.f32 %v8117, %v1109
        %v8150 = vmul.f32 %v8118, %v1110
        %v8151 = vmul.f32 %v8119, %v1111
        %v8152 = vmul.f32 %v8120, %v1112
        %v8153 = vmul.f32 %v8121, %v1113
        %v8154 = vmul.f32 %v8122, %v1114
        %v8155 = vmul.f32 %v8123, %v1115
        %v8156 = vmul.f32 %v8124, %v1116
        %v8157 = vmul.f32 %v8125, %v1117
        %v8158 = vmul.f32 %v8126, %v1118
        %v8159 = vmul.f32 %v8127, %v1119
        %v8160 = vmul.f32 %v8128, %v1120
        %v8161 = vmul.f32 %v8129, %v1121
        %v8162 = vmul.f32 %v8130, %v1122
        %v8163 = vmul.f32 %v8131, %v1123
        %v8164 = vmul.f32 %v8132, %v1124
        %v8165 = vmul.f32 %v8133, %v1125
        %v8166 = vmul.f32 %v8134, %v1126
        %v8167 = vmul.f32 %v8135, %v1127
        %v8168 = vmul.f32 %v8136, %v1128
        %v8169 = vmul.f32 %v8137, %v1129
        %v8170 = vmul.f32 %v8138, %v1130
        %v8171 = vmul.f32 %v8139, %v1131
        %v8172 = vmul.f32 %v8140, %v1132
        %v8173 = vmul.f32 %v8141, %v1133
        %v8174 = vmul.f32 %v8142, %v1134
        %v8175 = vmul.f32 %v8143, %v1135
        %v8176 = vmul.f32 %v8144, %v1136
        %v8177 = vmul.f32 %v8145, %v1137
        %s8178 = scalar_lea.vmem [#allocation6], 96
        %v8179 = vld [vmem:[%s8178] sm:$0xff]
        %v8180 = vld [vmem:[%s8178 + $0x8] sm:$0xff]
        %v8181 = vld [vmem:[%s8178 + $0x10] sm:$0xff]
        %v8182 = vld [vmem:[%s8178 + $0x18] sm:$0xff]
        %v8184 = vsel %vm586, %v8146, 0
        %v8187 = vsel %vm586, %v8147, 0
        %v8190 = vsel %vm586, %v8148, 0
        %v8193 = vsel %vm586, %v8149, 0
        %v8196 = vsel %vm586, %v8150, 0
        %v8199 = vsel %vm586, %v8151, 0
        %v8202 = vsel %vm586, %v8152, 0
        %v8205 = vsel %vm586, %v8153, 0
        %v8208 = vsel %vm586, %v8154, 0
        %v8211 = vsel %vm586, %v8155, 0
        %v8214 = vsel %vm586, %v8156, 0
        %v8217 = vsel %vm586, %v8157, 0
        %v8220 = vsel %vm586, %v8158, 0
        %v8223 = vsel %vm586, %v8159, 0
        %v8226 = vsel %vm586, %v8160, 0
        %v8229 = vsel %vm586, %v8161, 0
        %v8232 = vsel %vm586, %v8162, 0
        %v8235 = vsel %vm586, %v8163, 0
        %v8238 = vsel %vm586, %v8164, 0
        %v8241 = vsel %vm586, %v8165, 0
        %v8244 = vsel %vm586, %v8166, 0
        %v8247 = vsel %vm586, %v8167, 0
        %v8250 = vsel %vm586, %v8168, 0
        %v8253 = vsel %vm586, %v8169, 0
        %v8256 = vsel %vm586, %v8170, 0
        %v8259 = vsel %vm586, %v8171, 0
        %v8262 = vsel %vm586, %v8172, 0
        %v8265 = vsel %vm586, %v8173, 0
        %v8268 = vsel %vm586, %v8174, 0
        %v8271 = vsel %vm586, %v8175, 0
        %v8274 = vsel %vm586, %v8176, 0
        %v8277 = vsel %vm586, %v8177, 0
        %8279 = vmatpush.msra.mxu0 0.0
        %8280 = vmatpush.msra.mxu0 0.0
        %8281 = vmatpush.msra.mxu0 0.0
        %8282 = vmatpush.msra.mxu0 0.0
        %8283 = vmatpush.msra.mxu0 0.0
        %8284 = vmatpush.msra.mxu0 0.0
        %8285 = vmatpush.msra.mxu0 0.0
        %8286 = vmatpush.msra.mxu0 0.0
        %8287 = vmatpush.msra.mxu0 0.0
        %8288 = vmatpush.msra.mxu0 0.0
        %8289 = vmatpush.msra.mxu0 0.0
        %8290 = vmatpush.msra.mxu0 0.0
        %8291 = vmatpush.msra.mxu0 %v8182
        %8292 = vmatpush.msra.mxu0 %v8181
        %8293 = vmatpush.msra.mxu0 %v8180
        %8294 = vmatpush.msra.mxu0 %v8179
        %8295 = vmatmul.f32.gmra.mxu0 %v8184
        %v8296 = vpop.f32.mrf.mxu0
        %v8297 = vadd.f32 0.0, %v8296
        %8298 = vmatmul.f32.gmra.mxu0 %v8187
        %v8299 = vpop.f32.mrf.mxu0
        %v8300 = vadd.f32 0.0, %v8299
        %8301 = vmatmul.f32.gmra.mxu0 %v8190
        %v8302 = vpop.f32.mrf.mxu0
        %v8303 = vadd.f32 0.0, %v8302
        %8304 = vmatmul.f32.gmra.mxu0 %v8193
        %v8305 = vpop.f32.mrf.mxu0
        %v8306 = vadd.f32 0.0, %v8305
        %8307 = vmatmul.f32.gmra.mxu0 %v8196
        %v8308 = vpop.f32.mrf.mxu0
        %v8309 = vadd.f32 0.0, %v8308
        %8310 = vmatmul.f32.gmra.mxu0 %v8199
        %v8311 = vpop.f32.mrf.mxu0
        %v8312 = vadd.f32 0.0, %v8311
        %8313 = vmatmul.f32.gmra.mxu0 %v8202
        %v8314 = vpop.f32.mrf.mxu0
        %v8315 = vadd.f32 0.0, %v8314
        %8316 = vmatmul.f32.gmra.mxu0 %v8205
        %v8317 = vpop.f32.mrf.mxu0
        %v8318 = vadd.f32 0.0, %v8317
        %8319 = vmatmul.f32.gmra.mxu0 %v8208
        %v8320 = vpop.f32.mrf.mxu0
        %v8321 = vadd.f32 0.0, %v8320
        %8322 = vmatmul.f32.gmra.mxu0 %v8211
        %v8323 = vpop.f32.mrf.mxu0
        %v8324 = vadd.f32 0.0, %v8323
        %8325 = vmatmul.f32.gmra.mxu0 %v8214
        %v8326 = vpop.f32.mrf.mxu0
        %v8327 = vadd.f32 0.0, %v8326
        %8328 = vmatmul.f32.gmra.mxu0 %v8217
        %v8329 = vpop.f32.mrf.mxu0
        %v8330 = vadd.f32 0.0, %v8329
        %8331 = vmatmul.f32.gmra.mxu0 %v8220
        %v8332 = vpop.f32.mrf.mxu0
        %v8333 = vadd.f32 0.0, %v8332
        %8334 = vmatmul.f32.gmra.mxu0 %v8223
        %v8335 = vpop.f32.mrf.mxu0
        %v8336 = vadd.f32 0.0, %v8335
        %8337 = vmatmul.f32.gmra.mxu0 %v8226
        %v8338 = vpop.f32.mrf.mxu0
        %v8339 = vadd.f32 0.0, %v8338
        %8340 = vmatmul.f32.gmra.mxu0 %v8229
        %v8341 = vpop.f32.mrf.mxu0
        %v8342 = vadd.f32 0.0, %v8341
        %8343 = vmatmul.f32.gmra.mxu0 %v8232
        %v8344 = vpop.f32.mrf.mxu0
        %v8345 = vadd.f32 0.0, %v8344
        %8346 = vmatmul.f32.gmra.mxu0 %v8235
        %v8347 = vpop.f32.mrf.mxu0
        %v8348 = vadd.f32 0.0, %v8347
        %8349 = vmatmul.f32.gmra.mxu0 %v8238
        %v8350 = vpop.f32.mrf.mxu0
        %v8351 = vadd.f32 0.0, %v8350
        %8352 = vmatmul.f32.gmra.mxu0 %v8241
        %v8353 = vpop.f32.mrf.mxu0
        %v8354 = vadd.f32 0.0, %v8353
        %8355 = vmatmul.f32.gmra.mxu0 %v8244
        %v8356 = vpop.f32.mrf.mxu0
        %v8357 = vadd.f32 0.0, %v8356
        %8358 = vmatmul.f32.gmra.mxu0 %v8247
        %v8359 = vpop.f32.mrf.mxu0
        %v8360 = vadd.f32 0.0, %v8359
        %8361 = vmatmul.f32.gmra.mxu0 %v8250
        %v8362 = vpop.f32.mrf.mxu0
        %v8363 = vadd.f32 0.0, %v8362
        %8364 = vmatmul.f32.gmra.mxu0 %v8253
        %v8365 = vpop.f32.mrf.mxu0
        %v8366 = vadd.f32 0.0, %v8365
        %8367 = vmatmul.f32.gmra.mxu0 %v8256
        %v8368 = vpop.f32.mrf.mxu0
        %v8369 = vadd.f32 0.0, %v8368
        %8370 = vmatmul.f32.gmra.mxu0 %v8259
        %v8371 = vpop.f32.mrf.mxu0
        %v8372 = vadd.f32 0.0, %v8371
        %8373 = vmatmul.f32.gmra.mxu0 %v8262
        %v8374 = vpop.f32.mrf.mxu0
        %v8375 = vadd.f32 0.0, %v8374
        %8376 = vmatmul.f32.gmra.mxu0 %v8265
        %v8377 = vpop.f32.mrf.mxu0
        %v8378 = vadd.f32 0.0, %v8377
        %8379 = vmatmul.f32.gmra.mxu0 %v8268
        %v8380 = vpop.f32.mrf.mxu0
        %v8381 = vadd.f32 0.0, %v8380
        %8382 = vmatmul.f32.gmra.mxu0 %v8271
        %v8383 = vpop.f32.mrf.mxu0
        %v8384 = vadd.f32 0.0, %v8383
        %8385 = vmatmul.f32.gmra.mxu0 %v8274
        %v8386 = vpop.f32.mrf.mxu0
        %v8387 = vadd.f32 0.0, %v8386
        %8388 = vmatmul.f32.gmra.mxu0 %v8277
        %v8389 = vpop.f32.mrf.mxu0
        %v8390 = vadd.f32 0.0, %v8389
        %8391 = vdwg.mxu0
        %v8392 = vadd.f32 %v8082, %v8297
        %v8393 = vadd.f32 %v8083, %v8300
        %v8394 = vadd.f32 %v8084, %v8303
        %v8395 = vadd.f32 %v8085, %v8306
        %v8396 = vadd.f32 %v8086, %v8309
        %v8397 = vadd.f32 %v8087, %v8312
        %v8398 = vadd.f32 %v8088, %v8315
        %v8399 = vadd.f32 %v8089, %v8318
        %v8400 = vadd.f32 %v8090, %v8321
        %v8401 = vadd.f32 %v8091, %v8324
        %v8402 = vadd.f32 %v8092, %v8327
        %v8403 = vadd.f32 %v8093, %v8330
        %v8404 = vadd.f32 %v8094, %v8333
        %v8405 = vadd.f32 %v8095, %v8336
        %v8406 = vadd.f32 %v8096, %v8339
        %v8407 = vadd.f32 %v8097, %v8342
        %v8408 = vadd.f32 %v8098, %v8345
        %v8409 = vadd.f32 %v8099, %v8348
        %v8410 = vadd.f32 %v8100, %v8351
        %v8411 = vadd.f32 %v8101, %v8354
        %v8412 = vadd.f32 %v8102, %v8357
        %v8413 = vadd.f32 %v8103, %v8360
        %v8414 = vadd.f32 %v8104, %v8363
        %v8415 = vadd.f32 %v8105, %v8366
        %v8416 = vadd.f32 %v8106, %v8369
        %v8417 = vadd.f32 %v8107, %v8372
        %v8418 = vadd.f32 %v8108, %v8375
        %v8419 = vadd.f32 %v8109, %v8378
        %v8420 = vadd.f32 %v8110, %v8381
        %v8421 = vadd.f32 %v8111, %v8384
        %v8422 = vadd.f32 %v8112, %v8387
        %v8423 = vadd.f32 %v8113, %v8390
        %v8424 = vld [vmem:[#allocation2 + $0x18] sm:$0xff]
        %v8425 = vld [vmem:[#allocation2 + $0x20] sm:$0xff]
        %v8426 = vld [vmem:[#allocation2 + $0x28] sm:$0xff]
        %v8427 = vld [vmem:[#allocation2 + $0x30] sm:$0xff]
        %v8428 = vld [vmem:[#allocation2 + $0x38] sm:$0xff]
        %v8429 = vld [vmem:[#allocation2 + $0x40] sm:$0xff]
        %v8430 = vld [vmem:[#allocation2 + $0x48] sm:$0xff]
        %v8431 = vld [vmem:[#allocation2 + $0x50] sm:$0xff]
        %v8432 = vld [vmem:[#allocation2 + $0x58] sm:$0xff]
        %v8433 = vld [vmem:[#allocation2 + $0x60] sm:$0xff]
        %v8434 = vld [vmem:[#allocation2 + $0x68] sm:$0xff]
        %v8435 = vld [vmem:[#allocation2 + $0x70] sm:$0xff]
        %v8436 = vld [vmem:[#allocation2 + $0x78] sm:$0xff]
        %v8437 = vld [vmem:[#allocation2 + $0x80] sm:$0xff]
        %v8438 = vld [vmem:[#allocation2 + $0x88] sm:$0xff]
        %v8439 = vld [vmem:[#allocation2 + $0x90] sm:$0xff]
        %v8440 = vld [vmem:[#allocation2 + $0x98] sm:$0xff]
        %v8441 = vld [vmem:[#allocation2 + $0xa0] sm:$0xff]
        %v8442 = vld [vmem:[#allocation2 + $0xa8] sm:$0xff]
        %v8443 = vld [vmem:[#allocation2 + $0xb0] sm:$0xff]
        %v8444 = vld [vmem:[#allocation2 + $0xb8] sm:$0xff]
        %v8445 = vld [vmem:[#allocation2 + $0xc0] sm:$0xff]
        %v8446 = vld [vmem:[#allocation2 + $0xc8] sm:$0xff]
        %v8447 = vld [vmem:[#allocation2 + $0xd0] sm:$0xff]
        %v8448 = vld [vmem:[#allocation2 + $0xd8] sm:$0xff]
        %v8449 = vld [vmem:[#allocation2 + $0xe0] sm:$0xff]
        %v8450 = vld [vmem:[#allocation2 + $0xe8] sm:$0xff]
        %v8451 = vld [vmem:[#allocation2 + $0xf0] sm:$0xff]
        %v8452 = vld [vmem:[#allocation2 + $0xf8] sm:$0xff]
        %v8453 = vld [vmem:[#allocation2 + $0x100] sm:$0xff]
        %v8454 = vld [vmem:[#allocation2 + $0x108] sm:$0xff]
        %v8455 = vld [vmem:[#allocation2 + $0x110] sm:$0xff]
        %s8456 = scalar_lea.vmem [#allocation6], 128
        %v8457 = vld [vmem:[%s8456] sm:$0xff]
        %v8458 = vld [vmem:[%s8456 + $0x8] sm:$0xff]
        %v8459 = vld [vmem:[%s8456 + $0x10] sm:$0xff]
        %v8460 = vld [vmem:[%s8456 + $0x18] sm:$0xff]
        %v8462 = vsel %vm586, %v8424, 0
        %v8465 = vsel %vm586, %v8425, 0
        %v8468 = vsel %vm586, %v8426, 0
        %v8471 = vsel %vm586, %v8427, 0
        %v8474 = vsel %vm586, %v8428, 0
        %v8477 = vsel %vm586, %v8429, 0
        %v8480 = vsel %vm586, %v8430, 0
        %v8483 = vsel %vm586, %v8431, 0
        %v8486 = vsel %vm586, %v8432, 0
        %v8489 = vsel %vm586, %v8433, 0
        %v8492 = vsel %vm586, %v8434, 0
        %v8495 = vsel %vm586, %v8435, 0
        %v8498 = vsel %vm586, %v8436, 0
        %v8501 = vsel %vm586, %v8437, 0
        %v8504 = vsel %vm586, %v8438, 0
        %v8507 = vsel %vm586, %v8439, 0
        %v8510 = vsel %vm586, %v8440, 0
        %v8513 = vsel %vm586, %v8441, 0
        %v8516 = vsel %vm586, %v8442, 0
        %v8519 = vsel %vm586, %v8443, 0
        %v8522 = vsel %vm586, %v8444, 0
        %v8525 = vsel %vm586, %v8445, 0
        %v8528 = vsel %vm586, %v8446, 0
        %v8531 = vsel %vm586, %v8447, 0
        %v8534 = vsel %vm586, %v8448, 0
        %v8537 = vsel %vm586, %v8449, 0
        %v8540 = vsel %vm586, %v8450, 0
        %v8543 = vsel %vm586, %v8451, 0
        %v8546 = vsel %vm586, %v8452, 0
        %v8549 = vsel %vm586, %v8453, 0
        %v8552 = vsel %vm586, %v8454, 0
        %v8555 = vsel %vm586, %v8455, 0
        %8557 = vmatpush.msra.mxu0 0.0
        %8558 = vmatpush.msra.mxu0 0.0
        %8559 = vmatpush.msra.mxu0 0.0
        %8560 = vmatpush.msra.mxu0 0.0
        %8561 = vmatpush.msra.mxu0 0.0
        %8562 = vmatpush.msra.mxu0 0.0
        %8563 = vmatpush.msra.mxu0 0.0
        %8564 = vmatpush.msra.mxu0 0.0
        %8565 = vmatpush.msra.mxu0 0.0
        %8566 = vmatpush.msra.mxu0 0.0
        %8567 = vmatpush.msra.mxu0 0.0
        %8568 = vmatpush.msra.mxu0 0.0
        %8569 = vmatpush.msra.mxu0 %v8460
        %8570 = vmatpush.msra.mxu0 %v8459
        %8571 = vmatpush.msra.mxu0 %v8458
        %8572 = vmatpush.msra.mxu0 %v8457
        %8573 = vmatmul.f32.gmra.mxu0 %v8462
        %v8574 = vpop.f32.mrf.mxu0
        %v8575 = vadd.f32 0.0, %v8574
        %8576 = vmatmul.f32.gmra.mxu0 %v8465
        %v8577 = vpop.f32.mrf.mxu0
        %v8578 = vadd.f32 0.0, %v8577
        %8579 = vmatmul.f32.gmra.mxu0 %v8468
        %v8580 = vpop.f32.mrf.mxu0
        %v8581 = vadd.f32 0.0, %v8580
        %8582 = vmatmul.f32.gmra.mxu0 %v8471
        %v8583 = vpop.f32.mrf.mxu0
        %v8584 = vadd.f32 0.0, %v8583
        %8585 = vmatmul.f32.gmra.mxu0 %v8474
        %v8586 = vpop.f32.mrf.mxu0
        %v8587 = vadd.f32 0.0, %v8586
        %8588 = vmatmul.f32.gmra.mxu0 %v8477
        %v8589 = vpop.f32.mrf.mxu0
        %v8590 = vadd.f32 0.0, %v8589
        %8591 = vmatmul.f32.gmra.mxu0 %v8480
        %v8592 = vpop.f32.mrf.mxu0
        %v8593 = vadd.f32 0.0, %v8592
        %8594 = vmatmul.f32.gmra.mxu0 %v8483
        %v8595 = vpop.f32.mrf.mxu0
        %v8596 = vadd.f32 0.0, %v8595
        %8597 = vmatmul.f32.gmra.mxu0 %v8486
        %v8598 = vpop.f32.mrf.mxu0
        %v8599 = vadd.f32 0.0, %v8598
        %8600 = vmatmul.f32.gmra.mxu0 %v8489
        %v8601 = vpop.f32.mrf.mxu0
        %v8602 = vadd.f32 0.0, %v8601
        %8603 = vmatmul.f32.gmra.mxu0 %v8492
        %v8604 = vpop.f32.mrf.mxu0
        %v8605 = vadd.f32 0.0, %v8604
        %8606 = vmatmul.f32.gmra.mxu0 %v8495
        %v8607 = vpop.f32.mrf.mxu0
        %v8608 = vadd.f32 0.0, %v8607
        %8609 = vmatmul.f32.gmra.mxu0 %v8498
        %v8610 = vpop.f32.mrf.mxu0
        %v8611 = vadd.f32 0.0, %v8610
        %8612 = vmatmul.f32.gmra.mxu0 %v8501
        %v8613 = vpop.f32.mrf.mxu0
        %v8614 = vadd.f32 0.0, %v8613
        %8615 = vmatmul.f32.gmra.mxu0 %v8504
        %v8616 = vpop.f32.mrf.mxu0
        %v8617 = vadd.f32 0.0, %v8616
        %8618 = vmatmul.f32.gmra.mxu0 %v8507
        %v8619 = vpop.f32.mrf.mxu0
        %v8620 = vadd.f32 0.0, %v8619
        %8621 = vmatmul.f32.gmra.mxu0 %v8510
        %v8622 = vpop.f32.mrf.mxu0
        %v8623 = vadd.f32 0.0, %v8622
        %8624 = vmatmul.f32.gmra.mxu0 %v8513
        %v8625 = vpop.f32.mrf.mxu0
        %v8626 = vadd.f32 0.0, %v8625
        %8627 = vmatmul.f32.gmra.mxu0 %v8516
        %v8628 = vpop.f32.mrf.mxu0
        %v8629 = vadd.f32 0.0, %v8628
        %8630 = vmatmul.f32.gmra.mxu0 %v8519
        %v8631 = vpop.f32.mrf.mxu0
        %v8632 = vadd.f32 0.0, %v8631
        %8633 = vmatmul.f32.gmra.mxu0 %v8522
        %v8634 = vpop.f32.mrf.mxu0
        %v8635 = vadd.f32 0.0, %v8634
        %8636 = vmatmul.f32.gmra.mxu0 %v8525
        %v8637 = vpop.f32.mrf.mxu0
        %v8638 = vadd.f32 0.0, %v8637
        %8639 = vmatmul.f32.gmra.mxu0 %v8528
        %v8640 = vpop.f32.mrf.mxu0
        %v8641 = vadd.f32 0.0, %v8640
        %8642 = vmatmul.f32.gmra.mxu0 %v8531
        %v8643 = vpop.f32.mrf.mxu0
        %v8644 = vadd.f32 0.0, %v8643
        %8645 = vmatmul.f32.gmra.mxu0 %v8534
        %v8646 = vpop.f32.mrf.mxu0
        %v8647 = vadd.f32 0.0, %v8646
        %8648 = vmatmul.f32.gmra.mxu0 %v8537
        %v8649 = vpop.f32.mrf.mxu0
        %v8650 = vadd.f32 0.0, %v8649
        %8651 = vmatmul.f32.gmra.mxu0 %v8540
        %v8652 = vpop.f32.mrf.mxu0
        %v8653 = vadd.f32 0.0, %v8652
        %8654 = vmatmul.f32.gmra.mxu0 %v8543
        %v8655 = vpop.f32.mrf.mxu0
        %v8656 = vadd.f32 0.0, %v8655
        %8657 = vmatmul.f32.gmra.mxu0 %v8546
        %v8658 = vpop.f32.mrf.mxu0
        %v8659 = vadd.f32 0.0, %v8658
        %8660 = vmatmul.f32.gmra.mxu0 %v8549
        %v8661 = vpop.f32.mrf.mxu0
        %v8662 = vadd.f32 0.0, %v8661
        %8663 = vmatmul.f32.gmra.mxu0 %v8552
        %v8664 = vpop.f32.mrf.mxu0
        %v8665 = vadd.f32 0.0, %v8664
        %8666 = vmatmul.f32.gmra.mxu0 %v8555
        %v8667 = vpop.f32.mrf.mxu0
        %v8668 = vadd.f32 0.0, %v8667
        %8669 = vdwg.mxu0
        %v8670 = vadd.f32 %v8392, %v8575
        %v8671 = vadd.f32 %v8393, %v8578
        %v8672 = vadd.f32 %v8394, %v8581
        %v8673 = vadd.f32 %v8395, %v8584
        %v8674 = vadd.f32 %v8396, %v8587
        %v8675 = vadd.f32 %v8397, %v8590
        %v8676 = vadd.f32 %v8398, %v8593
        %v8677 = vadd.f32 %v8399, %v8596
        %v8678 = vadd.f32 %v8400, %v8599
        %v8679 = vadd.f32 %v8401, %v8602
        %v8680 = vadd.f32 %v8402, %v8605
        %v8681 = vadd.f32 %v8403, %v8608
        %v8682 = vadd.f32 %v8404, %v8611
        %v8683 = vadd.f32 %v8405, %v8614
        %v8684 = vadd.f32 %v8406, %v8617
        %v8685 = vadd.f32 %v8407, %v8620
        %v8686 = vadd.f32 %v8408, %v8623
        %v8687 = vadd.f32 %v8409, %v8626
        %v8688 = vadd.f32 %v8410, %v8629
        %v8689 = vadd.f32 %v8411, %v8632
        %v8690 = vadd.f32 %v8412, %v8635
        %v8691 = vadd.f32 %v8413, %v8638
        %v8692 = vadd.f32 %v8414, %v8641
        %v8693 = vadd.f32 %v8415, %v8644
        %v8694 = vadd.f32 %v8416, %v8647
        %v8695 = vadd.f32 %v8417, %v8650
        %v8696 = vadd.f32 %v8418, %v8653
        %v8697 = vadd.f32 %v8419, %v8656
        %v8698 = vadd.f32 %v8420, %v8659
        %v8699 = vadd.f32 %v8421, %v8662
        %v8700 = vadd.f32 %v8422, %v8665
        %v8701 = vadd.f32 %v8423, %v8668
        %v8702 = vld [vmem:[#allocation2 + $0x19] sm:$0xff]
        %v8703 = vld [vmem:[#allocation2 + $0x21] sm:$0xff]
        %v8704 = vld [vmem:[#allocation2 + $0x29] sm:$0xff]
        %v8705 = vld [vmem:[#allocation2 + $0x31] sm:$0xff]
        %v8706 = vld [vmem:[#allocation2 + $0x39] sm:$0xff]
        %v8707 = vld [vmem:[#allocation2 + $0x41] sm:$0xff]
        %v8708 = vld [vmem:[#allocation2 + $0x49] sm:$0xff]
        %v8709 = vld [vmem:[#allocation2 + $0x51] sm:$0xff]
        %v8710 = vld [vmem:[#allocation2 + $0x59] sm:$0xff]
        %v8711 = vld [vmem:[#allocation2 + $0x61] sm:$0xff]
        %v8712 = vld [vmem:[#allocation2 + $0x69] sm:$0xff]
        %v8713 = vld [vmem:[#allocation2 + $0x71] sm:$0xff]
        %v8714 = vld [vmem:[#allocation2 + $0x79] sm:$0xff]
        %v8715 = vld [vmem:[#allocation2 + $0x81] sm:$0xff]
        %v8716 = vld [vmem:[#allocation2 + $0x89] sm:$0xff]
        %v8717 = vld [vmem:[#allocation2 + $0x91] sm:$0xff]
        %v8718 = vld [vmem:[#allocation2 + $0x99] sm:$0xff]
        %v8719 = vld [vmem:[#allocation2 + $0xa1] sm:$0xff]
        %v8720 = vld [vmem:[#allocation2 + $0xa9] sm:$0xff]
        %v8721 = vld [vmem:[#allocation2 + $0xb1] sm:$0xff]
        %v8722 = vld [vmem:[#allocation2 + $0xb9] sm:$0xff]
        %v8723 = vld [vmem:[#allocation2 + $0xc1] sm:$0xff]
        %v8724 = vld [vmem:[#allocation2 + $0xc9] sm:$0xff]
        %v8725 = vld [vmem:[#allocation2 + $0xd1] sm:$0xff]
        %v8726 = vld [vmem:[#allocation2 + $0xd9] sm:$0xff]
        %v8727 = vld [vmem:[#allocation2 + $0xe1] sm:$0xff]
        %v8728 = vld [vmem:[#allocation2 + $0xe9] sm:$0xff]
        %v8729 = vld [vmem:[#allocation2 + $0xf1] sm:$0xff]
        %v8730 = vld [vmem:[#allocation2 + $0xf9] sm:$0xff]
        %v8731 = vld [vmem:[#allocation2 + $0x101] sm:$0xff]
        %v8732 = vld [vmem:[#allocation2 + $0x109] sm:$0xff]
        %v8733 = vld [vmem:[#allocation2 + $0x111] sm:$0xff]
        %v8734 = vmul.f32 %v8702, %v1202
        %v8735 = vmul.f32 %v8703, %v1203
        %v8736 = vmul.f32 %v8704, %v1204
        %v8737 = vmul.f32 %v8705, %v1205
        %v8738 = vmul.f32 %v8706, %v1206
        %v8739 = vmul.f32 %v8707, %v1207
        %v8740 = vmul.f32 %v8708, %v1208
        %v8741 = vmul.f32 %v8709, %v1209
        %v8742 = vmul.f32 %v8710, %v1210
        %v8743 = vmul.f32 %v8711, %v1211
        %v8744 = vmul.f32 %v8712, %v1212
        %v8745 = vmul.f32 %v8713, %v1213
        %v8746 = vmul.f32 %v8714, %v1214
        %v8747 = vmul.f32 %v8715, %v1215
        %v8748 = vmul.f32 %v8716, %v1216
        %v8749 = vmul.f32 %v8717, %v1217
        %v8750 = vmul.f32 %v8718, %v1218
        %v8751 = vmul.f32 %v8719, %v1219
        %v8752 = vmul.f32 %v8720, %v1220
        %v8753 = vmul.f32 %v8721, %v1221
        %v8754 = vmul.f32 %v8722, %v1222
        %v8755 = vmul.f32 %v8723, %v1223
        %v8756 = vmul.f32 %v8724, %v1224
        %v8757 = vmul.f32 %v8725, %v1225
        %v8758 = vmul.f32 %v8726, %v1226
        %v8759 = vmul.f32 %v8727, %v1227
        %v8760 = vmul.f32 %v8728, %v1228
        %v8761 = vmul.f32 %v8729, %v1229
        %v8762 = vmul.f32 %v8730, %v1230
        %v8763 = vmul.f32 %v8731, %v1231
        %v8764 = vmul.f32 %v8732, %v1232
        %v8765 = vmul.f32 %v8733, %v1233
        %s8766 = scalar_lea.vmem [#allocation6], 160
        %v8767 = vld [vmem:[%s8766] sm:$0xff]
        %v8768 = vld [vmem:[%s8766 + $0x8] sm:$0xff]
        %v8769 = vld [vmem:[%s8766 + $0x10] sm:$0xff]
        %v8770 = vld [vmem:[%s8766 + $0x18] sm:$0xff]
        %v8772 = vsel %vm586, %v8734, 0
        %v8775 = vsel %vm586, %v8735, 0
        %v8778 = vsel %vm586, %v8736, 0
        %v8781 = vsel %vm586, %v8737, 0
        %v8784 = vsel %vm586, %v8738, 0
        %v8787 = vsel %vm586, %v8739, 0
        %v8790 = vsel %vm586, %v8740, 0
        %v8793 = vsel %vm586, %v8741, 0
        %v8796 = vsel %vm586, %v8742, 0
        %v8799 = vsel %vm586, %v8743, 0
        %v8802 = vsel %vm586, %v8744, 0
        %v8805 = vsel %vm586, %v8745, 0
        %v8808 = vsel %vm586, %v8746, 0
        %v8811 = vsel %vm586, %v8747, 0
        %v8814 = vsel %vm586, %v8748, 0
        %v8817 = vsel %vm586, %v8749, 0
        %v8820 = vsel %vm586, %v8750, 0
        %v8823 = vsel %vm586, %v8751, 0
        %v8826 = vsel %vm586, %v8752, 0
        %v8829 = vsel %vm586, %v8753, 0
        %v8832 = vsel %vm586, %v8754, 0
        %v8835 = vsel %vm586, %v8755, 0
        %v8838 = vsel %vm586, %v8756, 0
        %v8841 = vsel %vm586, %v8757, 0
        %v8844 = vsel %vm586, %v8758, 0
        %v8847 = vsel %vm586, %v8759, 0
        %v8850 = vsel %vm586, %v8760, 0
        %v8853 = vsel %vm586, %v8761, 0
        %v8856 = vsel %vm586, %v8762, 0
        %v8859 = vsel %vm586, %v8763, 0
        %v8862 = vsel %vm586, %v8764, 0
        %v8865 = vsel %vm586, %v8765, 0
        %8867 = vmatpush.msra.mxu0 0.0
        %8868 = vmatpush.msra.mxu0 0.0
        %8869 = vmatpush.msra.mxu0 0.0
        %8870 = vmatpush.msra.mxu0 0.0
        %8871 = vmatpush.msra.mxu0 0.0
        %8872 = vmatpush.msra.mxu0 0.0
        %8873 = vmatpush.msra.mxu0 0.0
        %8874 = vmatpush.msra.mxu0 0.0
        %8875 = vmatpush.msra.mxu0 0.0
        %8876 = vmatpush.msra.mxu0 0.0
        %8877 = vmatpush.msra.mxu0 0.0
        %8878 = vmatpush.msra.mxu0 0.0
        %8879 = vmatpush.msra.mxu0 %v8770
        %8880 = vmatpush.msra.mxu0 %v8769
        %8881 = vmatpush.msra.mxu0 %v8768
        %8882 = vmatpush.msra.mxu0 %v8767
        %8883 = vmatmul.f32.gmra.mxu0 %v8772
        %v8884 = vpop.f32.mrf.mxu0
        %v8885 = vadd.f32 0.0, %v8884
        %8886 = vmatmul.f32.gmra.mxu0 %v8775
        %v8887 = vpop.f32.mrf.mxu0
        %v8888 = vadd.f32 0.0, %v8887
        %8889 = vmatmul.f32.gmra.mxu0 %v8778
        %v8890 = vpop.f32.mrf.mxu0
        %v8891 = vadd.f32 0.0, %v8890
        %8892 = vmatmul.f32.gmra.mxu0 %v8781
        %v8893 = vpop.f32.mrf.mxu0
        %v8894 = vadd.f32 0.0, %v8893
        %8895 = vmatmul.f32.gmra.mxu0 %v8784
        %v8896 = vpop.f32.mrf.mxu0
        %v8897 = vadd.f32 0.0, %v8896
        %8898 = vmatmul.f32.gmra.mxu0 %v8787
        %v8899 = vpop.f32.mrf.mxu0
        %v8900 = vadd.f32 0.0, %v8899
        %8901 = vmatmul.f32.gmra.mxu0 %v8790
        %v8902 = vpop.f32.mrf.mxu0
        %v8903 = vadd.f32 0.0, %v8902
        %8904 = vmatmul.f32.gmra.mxu0 %v8793
        %v8905 = vpop.f32.mrf.mxu0
        %v8906 = vadd.f32 0.0, %v8905
        %8907 = vmatmul.f32.gmra.mxu0 %v8796
        %v8908 = vpop.f32.mrf.mxu0
        %v8909 = vadd.f32 0.0, %v8908
        %8910 = vmatmul.f32.gmra.mxu0 %v8799
        %v8911 = vpop.f32.mrf.mxu0
        %v8912 = vadd.f32 0.0, %v8911
        %8913 = vmatmul.f32.gmra.mxu0 %v8802
        %v8914 = vpop.f32.mrf.mxu0
        %v8915 = vadd.f32 0.0, %v8914
        %8916 = vmatmul.f32.gmra.mxu0 %v8805
        %v8917 = vpop.f32.mrf.mxu0
        %v8918 = vadd.f32 0.0, %v8917
        %8919 = vmatmul.f32.gmra.mxu0 %v8808
        %v8920 = vpop.f32.mrf.mxu0
        %v8921 = vadd.f32 0.0, %v8920
        %8922 = vmatmul.f32.gmra.mxu0 %v8811
        %v8923 = vpop.f32.mrf.mxu0
        %v8924 = vadd.f32 0.0, %v8923
        %8925 = vmatmul.f32.gmra.mxu0 %v8814
        %v8926 = vpop.f32.mrf.mxu0
        %v8927 = vadd.f32 0.0, %v8926
        %8928 = vmatmul.f32.gmra.mxu0 %v8817
        %v8929 = vpop.f32.mrf.mxu0
        %v8930 = vadd.f32 0.0, %v8929
        %8931 = vmatmul.f32.gmra.mxu0 %v8820
        %v8932 = vpop.f32.mrf.mxu0
        %v8933 = vadd.f32 0.0, %v8932
        %8934 = vmatmul.f32.gmra.mxu0 %v8823
        %v8935 = vpop.f32.mrf.mxu0
        %v8936 = vadd.f32 0.0, %v8935
        %8937 = vmatmul.f32.gmra.mxu0 %v8826
        %v8938 = vpop.f32.mrf.mxu0
        %v8939 = vadd.f32 0.0, %v8938
        %8940 = vmatmul.f32.gmra.mxu0 %v8829
        %v8941 = vpop.f32.mrf.mxu0
        %v8942 = vadd.f32 0.0, %v8941
        %8943 = vmatmul.f32.gmra.mxu0 %v8832
        %v8944 = vpop.f32.mrf.mxu0
        %v8945 = vadd.f32 0.0, %v8944
        %8946 = vmatmul.f32.gmra.mxu0 %v8835
        %v8947 = vpop.f32.mrf.mxu0
        %v8948 = vadd.f32 0.0, %v8947
        %8949 = vmatmul.f32.gmra.mxu0 %v8838
        %v8950 = vpop.f32.mrf.mxu0
        %v8951 = vadd.f32 0.0, %v8950
        %8952 = vmatmul.f32.gmra.mxu0 %v8841
        %v8953 = vpop.f32.mrf.mxu0
        %v8954 = vadd.f32 0.0, %v8953
        %8955 = vmatmul.f32.gmra.mxu0 %v8844
        %v8956 = vpop.f32.mrf.mxu0
        %v8957 = vadd.f32 0.0, %v8956
        %8958 = vmatmul.f32.gmra.mxu0 %v8847
        %v8959 = vpop.f32.mrf.mxu0
        %v8960 = vadd.f32 0.0, %v8959
        %8961 = vmatmul.f32.gmra.mxu0 %v8850
        %v8962 = vpop.f32.mrf.mxu0
        %v8963 = vadd.f32 0.0, %v8962
        %8964 = vmatmul.f32.gmra.mxu0 %v8853
        %v8965 = vpop.f32.mrf.mxu0
        %v8966 = vadd.f32 0.0, %v8965
        %8967 = vmatmul.f32.gmra.mxu0 %v8856
        %v8968 = vpop.f32.mrf.mxu0
        %v8969 = vadd.f32 0.0, %v8968
        %8970 = vmatmul.f32.gmra.mxu0 %v8859
        %v8971 = vpop.f32.mrf.mxu0
        %v8972 = vadd.f32 0.0, %v8971
        %8973 = vmatmul.f32.gmra.mxu0 %v8862
        %v8974 = vpop.f32.mrf.mxu0
        %v8975 = vadd.f32 0.0, %v8974
        %8976 = vmatmul.f32.gmra.mxu0 %v8865
        %v8977 = vpop.f32.mrf.mxu0
        %v8978 = vadd.f32 0.0, %v8977
        %8979 = vdwg.mxu0
        %v8980 = vadd.f32 %v8670, %v8885
        %v8981 = vadd.f32 %v8671, %v8888
        %v8982 = vadd.f32 %v8672, %v8891
        %v8983 = vadd.f32 %v8673, %v8894
        %v8984 = vadd.f32 %v8674, %v8897
        %v8985 = vadd.f32 %v8675, %v8900
        %v8986 = vadd.f32 %v8676, %v8903
        %v8987 = vadd.f32 %v8677, %v8906
        %v8988 = vadd.f32 %v8678, %v8909
        %v8989 = vadd.f32 %v8679, %v8912
        %v8990 = vadd.f32 %v8680, %v8915
        %v8991 = vadd.f32 %v8681, %v8918
        %v8992 = vadd.f32 %v8682, %v8921
        %v8993 = vadd.f32 %v8683, %v8924
        %v8994 = vadd.f32 %v8684, %v8927
        %v8995 = vadd.f32 %v8685, %v8930
        %v8996 = vadd.f32 %v8686, %v8933
        %v8997 = vadd.f32 %v8687, %v8936
        %v8998 = vadd.f32 %v8688, %v8939
        %v8999 = vadd.f32 %v8689, %v8942
        %v9000 = vadd.f32 %v8690, %v8945
        %v9001 = vadd.f32 %v8691, %v8948
        %v9002 = vadd.f32 %v8692, %v8951
        %v9003 = vadd.f32 %v8693, %v8954
        %v9004 = vadd.f32 %v8694, %v8957
        %v9005 = vadd.f32 %v8695, %v8960
        %v9006 = vadd.f32 %v8696, %v8963
        %v9007 = vadd.f32 %v8697, %v8966
        %v9008 = vadd.f32 %v8698, %v8969
        %v9009 = vadd.f32 %v8699, %v8972
        %v9010 = vadd.f32 %v8700, %v8975
        %v9011 = vadd.f32 %v8701, %v8978
        %v9012 = vld [vmem:[#allocation2 + $0x27] sm:$0xff]
        %v9013 = vld [vmem:[#allocation2 + $0x2f] sm:$0xff]
        %v9014 = vld [vmem:[#allocation2 + $0x37] sm:$0xff]
        %v9015 = vld [vmem:[#allocation2 + $0x3f] sm:$0xff]
        %v9016 = vld [vmem:[#allocation2 + $0x47] sm:$0xff]
        %v9017 = vld [vmem:[#allocation2 + $0x4f] sm:$0xff]
        %v9018 = vld [vmem:[#allocation2 + $0x57] sm:$0xff]
        %v9019 = vld [vmem:[#allocation2 + $0x5f] sm:$0xff]
        %v9020 = vld [vmem:[#allocation2 + $0x67] sm:$0xff]
        %v9021 = vld [vmem:[#allocation2 + $0x6f] sm:$0xff]
        %v9022 = vld [vmem:[#allocation2 + $0x77] sm:$0xff]
        %v9023 = vld [vmem:[#allocation2 + $0x7f] sm:$0xff]
        %v9024 = vld [vmem:[#allocation2 + $0x87] sm:$0xff]
        %v9025 = vld [vmem:[#allocation2 + $0x8f] sm:$0xff]
        %v9026 = vld [vmem:[#allocation2 + $0x97] sm:$0xff]
        %v9027 = vld [vmem:[#allocation2 + $0x9f] sm:$0xff]
        %v9028 = vld [vmem:[#allocation2 + $0xa7] sm:$0xff]
        %v9029 = vld [vmem:[#allocation2 + $0xaf] sm:$0xff]
        %v9030 = vld [vmem:[#allocation2 + $0xb7] sm:$0xff]
        %v9031 = vld [vmem:[#allocation2 + $0xbf] sm:$0xff]
        %v9032 = vld [vmem:[#allocation2 + $0xc7] sm:$0xff]
        %v9033 = vld [vmem:[#allocation2 + $0xcf] sm:$0xff]
        %v9034 = vld [vmem:[#allocation2 + $0xd7] sm:$0xff]
        %v9035 = vld [vmem:[#allocation2 + $0xdf] sm:$0xff]
        %v9036 = vld [vmem:[#allocation2 + $0xe7] sm:$0xff]
        %v9037 = vld [vmem:[#allocation2 + $0xef] sm:$0xff]
        %v9038 = vld [vmem:[#allocation2 + $0xf7] sm:$0xff]
        %v9039 = vld [vmem:[#allocation2 + $0xff] sm:$0xff]
        %v9040 = vld [vmem:[#allocation2 + $0x107] sm:$0xff]
        %v9041 = vld [vmem:[#allocation2 + $0x10f] sm:$0xff]
        %v9042 = vld [vmem:[#allocation2 + $0x117] sm:$0xff]
        %v9043 = vld [vmem:[#allocation2 + $0x11f] sm:$0xff]
        %v9044 = vmul.f32 %v9012, %v1106
        %v9045 = vmul.f32 %v9013, %v1107
        %v9046 = vmul.f32 %v9014, %v1108
        %v9047 = vmul.f32 %v9015, %v1109
        %v9048 = vmul.f32 %v9016, %v1110
        %v9049 = vmul.f32 %v9017, %v1111
        %v9050 = vmul.f32 %v9018, %v1112
        %v9051 = vmul.f32 %v9019, %v1113
        %v9052 = vmul.f32 %v9020, %v1114
        %v9053 = vmul.f32 %v9021, %v1115
        %v9054 = vmul.f32 %v9022, %v1116
        %v9055 = vmul.f32 %v9023, %v1117
        %v9056 = vmul.f32 %v9024, %v1118
        %v9057 = vmul.f32 %v9025, %v1119
        %v9058 = vmul.f32 %v9026, %v1120
        %v9059 = vmul.f32 %v9027, %v1121
        %v9060 = vmul.f32 %v9028, %v1122
        %v9061 = vmul.f32 %v9029, %v1123
        %v9062 = vmul.f32 %v9030, %v1124
        %v9063 = vmul.f32 %v9031, %v1125
        %v9064 = vmul.f32 %v9032, %v1126
        %v9065 = vmul.f32 %v9033, %v1127
        %v9066 = vmul.f32 %v9034, %v1128
        %v9067 = vmul.f32 %v9035, %v1129
        %v9068 = vmul.f32 %v9036, %v1130
        %v9069 = vmul.f32 %v9037, %v1131
        %v9070 = vmul.f32 %v9038, %v1132
        %v9071 = vmul.f32 %v9039, %v1133
        %v9072 = vmul.f32 %v9040, %v1134
        %v9073 = vmul.f32 %v9041, %v1135
        %v9074 = vmul.f32 %v9042, %v1136
        %v9075 = vmul.f32 %v9043, %v1137
        %s9076 = scalar_lea.vmem [#allocation6], 192
        %v9077 = vld [vmem:[%s9076] sm:$0xff]
        %v9078 = vld [vmem:[%s9076 + $0x8] sm:$0xff]
        %v9079 = vld [vmem:[%s9076 + $0x10] sm:$0xff]
        %v9080 = vld [vmem:[%s9076 + $0x18] sm:$0xff]
        %v9082 = vsel %vm586, %v9044, 0
        %v9085 = vsel %vm586, %v9045, 0
        %v9088 = vsel %vm586, %v9046, 0
        %v9091 = vsel %vm586, %v9047, 0
        %v9094 = vsel %vm586, %v9048, 0
        %v9097 = vsel %vm586, %v9049, 0
        %v9100 = vsel %vm586, %v9050, 0
        %v9103 = vsel %vm586, %v9051, 0
        %v9106 = vsel %vm586, %v9052, 0
        %v9109 = vsel %vm586, %v9053, 0
        %v9112 = vsel %vm586, %v9054, 0
        %v9115 = vsel %vm586, %v9055, 0
        %v9118 = vsel %vm586, %v9056, 0
        %v9121 = vsel %vm586, %v9057, 0
        %v9124 = vsel %vm586, %v9058, 0
        %v9127 = vsel %vm586, %v9059, 0
        %v9130 = vsel %vm586, %v9060, 0
        %v9133 = vsel %vm586, %v9061, 0
        %v9136 = vsel %vm586, %v9062, 0
        %v9139 = vsel %vm586, %v9063, 0
        %v9142 = vsel %vm586, %v9064, 0
        %v9145 = vsel %vm586, %v9065, 0
        %v9148 = vsel %vm586, %v9066, 0
        %v9151 = vsel %vm586, %v9067, 0
        %v9154 = vsel %vm586, %v9068, 0
        %v9157 = vsel %vm586, %v9069, 0
        %v9160 = vsel %vm586, %v9070, 0
        %v9163 = vsel %vm586, %v9071, 0
        %v9166 = vsel %vm586, %v9072, 0
        %v9169 = vsel %vm586, %v9073, 0
        %v9172 = vsel %vm586, %v9074, 0
        %v9175 = vsel %vm586, %v9075, 0
        %9177 = vmatpush.msra.mxu0 0.0
        %9178 = vmatpush.msra.mxu0 0.0
        %9179 = vmatpush.msra.mxu0 0.0
        %9180 = vmatpush.msra.mxu0 0.0
        %9181 = vmatpush.msra.mxu0 0.0
        %9182 = vmatpush.msra.mxu0 0.0
        %9183 = vmatpush.msra.mxu0 0.0
        %9184 = vmatpush.msra.mxu0 0.0
        %9185 = vmatpush.msra.mxu0 0.0
        %9186 = vmatpush.msra.mxu0 0.0
        %9187 = vmatpush.msra.mxu0 0.0
        %9188 = vmatpush.msra.mxu0 0.0
        %9189 = vmatpush.msra.mxu0 %v9080
        %9190 = vmatpush.msra.mxu0 %v9079
        %9191 = vmatpush.msra.mxu0 %v9078
        %9192 = vmatpush.msra.mxu0 %v9077
        %9193 = vmatmul.f32.gmra.mxu0 %v9082
        %v9194 = vpop.f32.mrf.mxu0
        %v9195 = vadd.f32 0.0, %v9194
        %9196 = vmatmul.f32.gmra.mxu0 %v9085
        %v9197 = vpop.f32.mrf.mxu0
        %v9198 = vadd.f32 0.0, %v9197
        %9199 = vmatmul.f32.gmra.mxu0 %v9088
        %v9200 = vpop.f32.mrf.mxu0
        %v9201 = vadd.f32 0.0, %v9200
        %9202 = vmatmul.f32.gmra.mxu0 %v9091
        %v9203 = vpop.f32.mrf.mxu0
        %v9204 = vadd.f32 0.0, %v9203
        %9205 = vmatmul.f32.gmra.mxu0 %v9094
        %v9206 = vpop.f32.mrf.mxu0
        %v9207 = vadd.f32 0.0, %v9206
        %9208 = vmatmul.f32.gmra.mxu0 %v9097
        %v9209 = vpop.f32.mrf.mxu0
        %v9210 = vadd.f32 0.0, %v9209
        %9211 = vmatmul.f32.gmra.mxu0 %v9100
        %v9212 = vpop.f32.mrf.mxu0
        %v9213 = vadd.f32 0.0, %v9212
        %9214 = vmatmul.f32.gmra.mxu0 %v9103
        %v9215 = vpop.f32.mrf.mxu0
        %v9216 = vadd.f32 0.0, %v9215
        %9217 = vmatmul.f32.gmra.mxu0 %v9106
        %v9218 = vpop.f32.mrf.mxu0
        %v9219 = vadd.f32 0.0, %v9218
        %9220 = vmatmul.f32.gmra.mxu0 %v9109
        %v9221 = vpop.f32.mrf.mxu0
        %v9222 = vadd.f32 0.0, %v9221
        %9223 = vmatmul.f32.gmra.mxu0 %v9112
        %v9224 = vpop.f32.mrf.mxu0
        %v9225 = vadd.f32 0.0, %v9224
        %9226 = vmatmul.f32.gmra.mxu0 %v9115
        %v9227 = vpop.f32.mrf.mxu0
        %v9228 = vadd.f32 0.0, %v9227
        %9229 = vmatmul.f32.gmra.mxu0 %v9118
        %v9230 = vpop.f32.mrf.mxu0
        %v9231 = vadd.f32 0.0, %v9230
        %9232 = vmatmul.f32.gmra.mxu0 %v9121
        %v9233 = vpop.f32.mrf.mxu0
        %v9234 = vadd.f32 0.0, %v9233
        %9235 = vmatmul.f32.gmra.mxu0 %v9124
        %v9236 = vpop.f32.mrf.mxu0
        %v9237 = vadd.f32 0.0, %v9236
        %9238 = vmatmul.f32.gmra.mxu0 %v9127
        %v9239 = vpop.f32.mrf.mxu0
        %v9240 = vadd.f32 0.0, %v9239
        %9241 = vmatmul.f32.gmra.mxu0 %v9130
        %v9242 = vpop.f32.mrf.mxu0
        %v9243 = vadd.f32 0.0, %v9242
        %9244 = vmatmul.f32.gmra.mxu0 %v9133
        %v9245 = vpop.f32.mrf.mxu0
        %v9246 = vadd.f32 0.0, %v9245
        %9247 = vmatmul.f32.gmra.mxu0 %v9136
        %v9248 = vpop.f32.mrf.mxu0
        %v9249 = vadd.f32 0.0, %v9248
        %9250 = vmatmul.f32.gmra.mxu0 %v9139
        %v9251 = vpop.f32.mrf.mxu0
        %v9252 = vadd.f32 0.0, %v9251
        %9253 = vmatmul.f32.gmra.mxu0 %v9142
        %v9254 = vpop.f32.mrf.mxu0
        %v9255 = vadd.f32 0.0, %v9254
        %9256 = vmatmul.f32.gmra.mxu0 %v9145
        %v9257 = vpop.f32.mrf.mxu0
        %v9258 = vadd.f32 0.0, %v9257
        %9259 = vmatmul.f32.gmra.mxu0 %v9148
        %v9260 = vpop.f32.mrf.mxu0
        %v9261 = vadd.f32 0.0, %v9260
        %9262 = vmatmul.f32.gmra.mxu0 %v9151
        %v9263 = vpop.f32.mrf.mxu0
        %v9264 = vadd.f32 0.0, %v9263
        %9265 = vmatmul.f32.gmra.mxu0 %v9154
        %v9266 = vpop.f32.mrf.mxu0
        %v9267 = vadd.f32 0.0, %v9266
        %9268 = vmatmul.f32.gmra.mxu0 %v9157
        %v9269 = vpop.f32.mrf.mxu0
        %v9270 = vadd.f32 0.0, %v9269
        %9271 = vmatmul.f32.gmra.mxu0 %v9160
        %v9272 = vpop.f32.mrf.mxu0
        %v9273 = vadd.f32 0.0, %v9272
        %9274 = vmatmul.f32.gmra.mxu0 %v9163
        %v9275 = vpop.f32.mrf.mxu0
        %v9276 = vadd.f32 0.0, %v9275
        %9277 = vmatmul.f32.gmra.mxu0 %v9166
        %v9278 = vpop.f32.mrf.mxu0
        %v9279 = vadd.f32 0.0, %v9278
        %9280 = vmatmul.f32.gmra.mxu0 %v9169
        %v9281 = vpop.f32.mrf.mxu0
        %v9282 = vadd.f32 0.0, %v9281
        %9283 = vmatmul.f32.gmra.mxu0 %v9172
        %v9284 = vpop.f32.mrf.mxu0
        %v9285 = vadd.f32 0.0, %v9284
        %9286 = vmatmul.f32.gmra.mxu0 %v9175
        %v9287 = vpop.f32.mrf.mxu0
        %v9288 = vadd.f32 0.0, %v9287
        %9289 = vdwg.mxu0
        %v9290 = vadd.f32 %v8980, %v9195
        %v9291 = vadd.f32 %v8981, %v9198
        %v9292 = vadd.f32 %v8982, %v9201
        %v9293 = vadd.f32 %v8983, %v9204
        %v9294 = vadd.f32 %v8984, %v9207
        %v9295 = vadd.f32 %v8985, %v9210
        %v9296 = vadd.f32 %v8986, %v9213
        %v9297 = vadd.f32 %v8987, %v9216
        %v9298 = vadd.f32 %v8988, %v9219
        %v9299 = vadd.f32 %v8989, %v9222
        %v9300 = vadd.f32 %v8990, %v9225
        %v9301 = vadd.f32 %v8991, %v9228
        %v9302 = vadd.f32 %v8992, %v9231
        %v9303 = vadd.f32 %v8993, %v9234
        %v9304 = vadd.f32 %v8994, %v9237
        %v9305 = vadd.f32 %v8995, %v9240
        %v9306 = vadd.f32 %v8996, %v9243
        %v9307 = vadd.f32 %v8997, %v9246
        %v9308 = vadd.f32 %v8998, %v9249
        %v9309 = vadd.f32 %v8999, %v9252
        %v9310 = vadd.f32 %v9000, %v9255
        %v9311 = vadd.f32 %v9001, %v9258
        %v9312 = vadd.f32 %v9002, %v9261
        %v9313 = vadd.f32 %v9003, %v9264
        %v9314 = vadd.f32 %v9004, %v9267
        %v9315 = vadd.f32 %v9005, %v9270
        %v9316 = vadd.f32 %v9006, %v9273
        %v9317 = vadd.f32 %v9007, %v9276
        %v9318 = vadd.f32 %v9008, %v9279
        %v9319 = vadd.f32 %v9009, %v9282
        %v9320 = vadd.f32 %v9010, %v9285
        %v9321 = vadd.f32 %v9011, %v9288
        %v9322 = vld [vmem:[#allocation2 + $0x28] sm:$0xff]
        %v9323 = vld [vmem:[#allocation2 + $0x30] sm:$0xff]
        %v9324 = vld [vmem:[#allocation2 + $0x38] sm:$0xff]
        %v9325 = vld [vmem:[#allocation2 + $0x40] sm:$0xff]
        %v9326 = vld [vmem:[#allocation2 + $0x48] sm:$0xff]
        %v9327 = vld [vmem:[#allocation2 + $0x50] sm:$0xff]
        %v9328 = vld [vmem:[#allocation2 + $0x58] sm:$0xff]
        %v9329 = vld [vmem:[#allocation2 + $0x60] sm:$0xff]
        %v9330 = vld [vmem:[#allocation2 + $0x68] sm:$0xff]
        %v9331 = vld [vmem:[#allocation2 + $0x70] sm:$0xff]
        %v9332 = vld [vmem:[#allocation2 + $0x78] sm:$0xff]
        %v9333 = vld [vmem:[#allocation2 + $0x80] sm:$0xff]
        %v9334 = vld [vmem:[#allocation2 + $0x88] sm:$0xff]
        %v9335 = vld [vmem:[#allocation2 + $0x90] sm:$0xff]
        %v9336 = vld [vmem:[#allocation2 + $0x98] sm:$0xff]
        %v9337 = vld [vmem:[#allocation2 + $0xa0] sm:$0xff]
        %v9338 = vld [vmem:[#allocation2 + $0xa8] sm:$0xff]
        %v9339 = vld [vmem:[#allocation2 + $0xb0] sm:$0xff]
        %v9340 = vld [vmem:[#allocation2 + $0xb8] sm:$0xff]
        %v9341 = vld [vmem:[#allocation2 + $0xc0] sm:$0xff]
        %v9342 = vld [vmem:[#allocation2 + $0xc8] sm:$0xff]
        %v9343 = vld [vmem:[#allocation2 + $0xd0] sm:$0xff]
        %v9344 = vld [vmem:[#allocation2 + $0xd8] sm:$0xff]
        %v9345 = vld [vmem:[#allocation2 + $0xe0] sm:$0xff]
        %v9346 = vld [vmem:[#allocation2 + $0xe8] sm:$0xff]
        %v9347 = vld [vmem:[#allocation2 + $0xf0] sm:$0xff]
        %v9348 = vld [vmem:[#allocation2 + $0xf8] sm:$0xff]
        %v9349 = vld [vmem:[#allocation2 + $0x100] sm:$0xff]
        %v9350 = vld [vmem:[#allocation2 + $0x108] sm:$0xff]
        %v9351 = vld [vmem:[#allocation2 + $0x110] sm:$0xff]
        %v9352 = vld [vmem:[#allocation2 + $0x118] sm:$0xff]
        %v9353 = vld [vmem:[#allocation2 + $0x120] sm:$0xff]
        %s9354 = scalar_lea.vmem [#allocation6], 224
        %v9355 = vld [vmem:[%s9354] sm:$0xff]
        %v9356 = vld [vmem:[%s9354 + $0x8] sm:$0xff]
        %v9357 = vld [vmem:[%s9354 + $0x10] sm:$0xff]
        %v9358 = vld [vmem:[%s9354 + $0x18] sm:$0xff]
        %v9360 = vsel %vm586, %v9322, 0
        %v9363 = vsel %vm586, %v9323, 0
        %v9366 = vsel %vm586, %v9324, 0
        %v9369 = vsel %vm586, %v9325, 0
        %v9372 = vsel %vm586, %v9326, 0
        %v9375 = vsel %vm586, %v9327, 0
        %v9378 = vsel %vm586, %v9328, 0
        %v9381 = vsel %vm586, %v9329, 0
        %v9384 = vsel %vm586, %v9330, 0
        %v9387 = vsel %vm586, %v9331, 0
        %v9390 = vsel %vm586, %v9332, 0
        %v9393 = vsel %vm586, %v9333, 0
        %v9396 = vsel %vm586, %v9334, 0
        %v9399 = vsel %vm586, %v9335, 0
        %v9402 = vsel %vm586, %v9336, 0
        %v9405 = vsel %vm586, %v9337, 0
        %v9408 = vsel %vm586, %v9338, 0
        %v9411 = vsel %vm586, %v9339, 0
        %v9414 = vsel %vm586, %v9340, 0
        %v9417 = vsel %vm586, %v9341, 0
        %v9420 = vsel %vm586, %v9342, 0
        %v9423 = vsel %vm586, %v9343, 0
        %v9426 = vsel %vm586, %v9344, 0
        %v9429 = vsel %vm586, %v9345, 0
        %v9432 = vsel %vm586, %v9346, 0
        %v9435 = vsel %vm586, %v9347, 0
        %v9438 = vsel %vm586, %v9348, 0
        %v9441 = vsel %vm586, %v9349, 0
        %v9444 = vsel %vm586, %v9350, 0
        %v9447 = vsel %vm586, %v9351, 0
        %v9450 = vsel %vm586, %v9352, 0
        %v9453 = vsel %vm586, %v9353, 0
        %9455 = vmatpush.msra.mxu0 0.0
        %9456 = vmatpush.msra.mxu0 0.0
        %9457 = vmatpush.msra.mxu0 0.0
        %9458 = vmatpush.msra.mxu0 0.0
        %9459 = vmatpush.msra.mxu0 0.0
        %9460 = vmatpush.msra.mxu0 0.0
        %9461 = vmatpush.msra.mxu0 0.0
        %9462 = vmatpush.msra.mxu0 0.0
        %9463 = vmatpush.msra.mxu0 0.0
        %9464 = vmatpush.msra.mxu0 0.0
        %9465 = vmatpush.msra.mxu0 0.0
        %9466 = vmatpush.msra.mxu0 0.0
        %9467 = vmatpush.msra.mxu0 %v9358
        %9468 = vmatpush.msra.mxu0 %v9357
        %9469 = vmatpush.msra.mxu0 %v9356
        %9470 = vmatpush.msra.mxu0 %v9355
        %9471 = vmatmul.f32.gmra.mxu0 %v9360
        %v9472 = vpop.f32.mrf.mxu0
        %v9473 = vadd.f32 0.0, %v9472
        %9474 = vmatmul.f32.gmra.mxu0 %v9363
        %v9475 = vpop.f32.mrf.mxu0
        %v9476 = vadd.f32 0.0, %v9475
        %9477 = vmatmul.f32.gmra.mxu0 %v9366
        %v9478 = vpop.f32.mrf.mxu0
        %v9479 = vadd.f32 0.0, %v9478
        %9480 = vmatmul.f32.gmra.mxu0 %v9369
        %v9481 = vpop.f32.mrf.mxu0
        %v9482 = vadd.f32 0.0, %v9481
        %9483 = vmatmul.f32.gmra.mxu0 %v9372
        %v9484 = vpop.f32.mrf.mxu0
        %v9485 = vadd.f32 0.0, %v9484
        %9486 = vmatmul.f32.gmra.mxu0 %v9375
        %v9487 = vpop.f32.mrf.mxu0
        %v9488 = vadd.f32 0.0, %v9487
        %9489 = vmatmul.f32.gmra.mxu0 %v9378
        %v9490 = vpop.f32.mrf.mxu0
        %v9491 = vadd.f32 0.0, %v9490
        %9492 = vmatmul.f32.gmra.mxu0 %v9381
        %v9493 = vpop.f32.mrf.mxu0
        %v9494 = vadd.f32 0.0, %v9493
        %9495 = vmatmul.f32.gmra.mxu0 %v9384
        %v9496 = vpop.f32.mrf.mxu0
        %v9497 = vadd.f32 0.0, %v9496
        %9498 = vmatmul.f32.gmra.mxu0 %v9387
        %v9499 = vpop.f32.mrf.mxu0
        %v9500 = vadd.f32 0.0, %v9499
        %9501 = vmatmul.f32.gmra.mxu0 %v9390
        %v9502 = vpop.f32.mrf.mxu0
        %v9503 = vadd.f32 0.0, %v9502
        %9504 = vmatmul.f32.gmra.mxu0 %v9393
        %v9505 = vpop.f32.mrf.mxu0
        %v9506 = vadd.f32 0.0, %v9505
        %9507 = vmatmul.f32.gmra.mxu0 %v9396
        %v9508 = vpop.f32.mrf.mxu0
        %v9509 = vadd.f32 0.0, %v9508
        %9510 = vmatmul.f32.gmra.mxu0 %v9399
        %v9511 = vpop.f32.mrf.mxu0
        %v9512 = vadd.f32 0.0, %v9511
        %9513 = vmatmul.f32.gmra.mxu0 %v9402
        %v9514 = vpop.f32.mrf.mxu0
        %v9515 = vadd.f32 0.0, %v9514
        %9516 = vmatmul.f32.gmra.mxu0 %v9405
        %v9517 = vpop.f32.mrf.mxu0
        %v9518 = vadd.f32 0.0, %v9517
        %9519 = vmatmul.f32.gmra.mxu0 %v9408
        %v9520 = vpop.f32.mrf.mxu0
        %v9521 = vadd.f32 0.0, %v9520
        %9522 = vmatmul.f32.gmra.mxu0 %v9411
        %v9523 = vpop.f32.mrf.mxu0
        %v9524 = vadd.f32 0.0, %v9523
        %9525 = vmatmul.f32.gmra.mxu0 %v9414
        %v9526 = vpop.f32.mrf.mxu0
        %v9527 = vadd.f32 0.0, %v9526
        %9528 = vmatmul.f32.gmra.mxu0 %v9417
        %v9529 = vpop.f32.mrf.mxu0
        %v9530 = vadd.f32 0.0, %v9529
        %9531 = vmatmul.f32.gmra.mxu0 %v9420
        %v9532 = vpop.f32.mrf.mxu0
        %v9533 = vadd.f32 0.0, %v9532
        %9534 = vmatmul.f32.gmra.mxu0 %v9423
        %v9535 = vpop.f32.mrf.mxu0
        %v9536 = vadd.f32 0.0, %v9535
        %9537 = vmatmul.f32.gmra.mxu0 %v9426
        %v9538 = vpop.f32.mrf.mxu0
        %v9539 = vadd.f32 0.0, %v9538
        %9540 = vmatmul.f32.gmra.mxu0 %v9429
        %v9541 = vpop.f32.mrf.mxu0
        %v9542 = vadd.f32 0.0, %v9541
        %9543 = vmatmul.f32.gmra.mxu0 %v9432
        %v9544 = vpop.f32.mrf.mxu0
        %v9545 = vadd.f32 0.0, %v9544
        %9546 = vmatmul.f32.gmra.mxu0 %v9435
        %v9547 = vpop.f32.mrf.mxu0
        %v9548 = vadd.f32 0.0, %v9547
        %9549 = vmatmul.f32.gmra.mxu0 %v9438
        %v9550 = vpop.f32.mrf.mxu0
        %v9551 = vadd.f32 0.0, %v9550
        %9552 = vmatmul.f32.gmra.mxu0 %v9441
        %v9553 = vpop.f32.mrf.mxu0
        %v9554 = vadd.f32 0.0, %v9553
        %9555 = vmatmul.f32.gmra.mxu0 %v9444
        %v9556 = vpop.f32.mrf.mxu0
        %v9557 = vadd.f32 0.0, %v9556
        %9558 = vmatmul.f32.gmra.mxu0 %v9447
        %v9559 = vpop.f32.mrf.mxu0
        %v9560 = vadd.f32 0.0, %v9559
        %9561 = vmatmul.f32.gmra.mxu0 %v9450
        %v9562 = vpop.f32.mrf.mxu0
        %v9563 = vadd.f32 0.0, %v9562
        %9564 = vmatmul.f32.gmra.mxu0 %v9453
        %v9565 = vpop.f32.mrf.mxu0
        %v9566 = vadd.f32 0.0, %v9565
        %9567 = vdwg.mxu0
        %v9568 = vadd.f32 %v9290, %v9473
        %v9569 = vadd.f32 %v9291, %v9476
        %v9570 = vadd.f32 %v9292, %v9479
        %v9571 = vadd.f32 %v9293, %v9482
        %v9572 = vadd.f32 %v9294, %v9485
        %v9573 = vadd.f32 %v9295, %v9488
        %v9574 = vadd.f32 %v9296, %v9491
        %v9575 = vadd.f32 %v9297, %v9494
        %v9576 = vadd.f32 %v9298, %v9497
        %v9577 = vadd.f32 %v9299, %v9500
        %v9578 = vadd.f32 %v9300, %v9503
        %v9579 = vadd.f32 %v9301, %v9506
        %v9580 = vadd.f32 %v9302, %v9509
        %v9581 = vadd.f32 %v9303, %v9512
        %v9582 = vadd.f32 %v9304, %v9515
        %v9583 = vadd.f32 %v9305, %v9518
        %v9584 = vadd.f32 %v9306, %v9521
        %v9585 = vadd.f32 %v9307, %v9524
        %v9586 = vadd.f32 %v9308, %v9527
        %v9587 = vadd.f32 %v9309, %v9530
        %v9588 = vadd.f32 %v9310, %v9533
        %v9589 = vadd.f32 %v9311, %v9536
        %v9590 = vadd.f32 %v9312, %v9539
        %v9591 = vadd.f32 %v9313, %v9542
        %v9592 = vadd.f32 %v9314, %v9545
        %v9593 = vadd.f32 %v9315, %v9548
        %v9594 = vadd.f32 %v9316, %v9551
        %v9595 = vadd.f32 %v9317, %v9554
        %v9596 = vadd.f32 %v9318, %v9557
        %v9597 = vadd.f32 %v9319, %v9560
        %v9598 = vadd.f32 %v9320, %v9563
        %v9599 = vadd.f32 %v9321, %v9566
        %v9600 = vld [vmem:[#allocation2 + $0x29] sm:$0xff]
        %v9601 = vld [vmem:[#allocation2 + $0x31] sm:$0xff]
        %v9602 = vld [vmem:[#allocation2 + $0x39] sm:$0xff]
        %v9603 = vld [vmem:[#allocation2 + $0x41] sm:$0xff]
        %v9604 = vld [vmem:[#allocation2 + $0x49] sm:$0xff]
        %v9605 = vld [vmem:[#allocation2 + $0x51] sm:$0xff]
        %v9606 = vld [vmem:[#allocation2 + $0x59] sm:$0xff]
        %v9607 = vld [vmem:[#allocation2 + $0x61] sm:$0xff]
        %v9608 = vld [vmem:[#allocation2 + $0x69] sm:$0xff]
        %v9609 = vld [vmem:[#allocation2 + $0x71] sm:$0xff]
        %v9610 = vld [vmem:[#allocation2 + $0x79] sm:$0xff]
        %v9611 = vld [vmem:[#allocation2 + $0x81] sm:$0xff]
        %v9612 = vld [vmem:[#allocation2 + $0x89] sm:$0xff]
        %v9613 = vld [vmem:[#allocation2 + $0x91] sm:$0xff]
        %v9614 = vld [vmem:[#allocation2 + $0x99] sm:$0xff]
        %v9615 = vld [vmem:[#allocation2 + $0xa1] sm:$0xff]
        %v9616 = vld [vmem:[#allocation2 + $0xa9] sm:$0xff]
        %v9617 = vld [vmem:[#allocation2 + $0xb1] sm:$0xff]
        %v9618 = vld [vmem:[#allocation2 + $0xb9] sm:$0xff]
        %v9619 = vld [vmem:[#allocation2 + $0xc1] sm:$0xff]
        %v9620 = vld [vmem:[#allocation2 + $0xc9] sm:$0xff]
        %v9621 = vld [vmem:[#allocation2 + $0xd1] sm:$0xff]
        %v9622 = vld [vmem:[#allocation2 + $0xd9] sm:$0xff]
        %v9623 = vld [vmem:[#allocation2 + $0xe1] sm:$0xff]
        %v9624 = vld [vmem:[#allocation2 + $0xe9] sm:$0xff]
        %v9625 = vld [vmem:[#allocation2 + $0xf1] sm:$0xff]
        %v9626 = vld [vmem:[#allocation2 + $0xf9] sm:$0xff]
        %v9627 = vld [vmem:[#allocation2 + $0x101] sm:$0xff]
        %v9628 = vld [vmem:[#allocation2 + $0x109] sm:$0xff]
        %v9629 = vld [vmem:[#allocation2 + $0x111] sm:$0xff]
        %v9630 = vld [vmem:[#allocation2 + $0x119] sm:$0xff]
        %v9631 = vld [vmem:[#allocation2 + $0x121] sm:$0xff]
        %v9632 = vmul.f32 %v9600, %v1202
        %v9633 = vmul.f32 %v9601, %v1203
        %v9634 = vmul.f32 %v9602, %v1204
        %v9635 = vmul.f32 %v9603, %v1205
        %v9636 = vmul.f32 %v9604, %v1206
        %v9637 = vmul.f32 %v9605, %v1207
        %v9638 = vmul.f32 %v9606, %v1208
        %v9639 = vmul.f32 %v9607, %v1209
        %v9640 = vmul.f32 %v9608, %v1210
        %v9641 = vmul.f32 %v9609, %v1211
        %v9642 = vmul.f32 %v9610, %v1212
        %v9643 = vmul.f32 %v9611, %v1213
        %v9644 = vmul.f32 %v9612, %v1214
        %v9645 = vmul.f32 %v9613, %v1215
        %v9646 = vmul.f32 %v9614, %v1216
        %v9647 = vmul.f32 %v9615, %v1217
        %v9648 = vmul.f32 %v9616, %v1218
        %v9649 = vmul.f32 %v9617, %v1219
        %v9650 = vmul.f32 %v9618, %v1220
        %v9651 = vmul.f32 %v9619, %v1221
        %v9652 = vmul.f32 %v9620, %v1222
        %v9653 = vmul.f32 %v9621, %v1223
        %v9654 = vmul.f32 %v9622, %v1224
        %v9655 = vmul.f32 %v9623, %v1225
        %v9656 = vmul.f32 %v9624, %v1226
        %v9657 = vmul.f32 %v9625, %v1227
        %v9658 = vmul.f32 %v9626, %v1228
        %v9659 = vmul.f32 %v9627, %v1229
        %v9660 = vmul.f32 %v9628, %v1230
        %v9661 = vmul.f32 %v9629, %v1231
        %v9662 = vmul.f32 %v9630, %v1232
        %v9663 = vmul.f32 %v9631, %v1233
        %s9664 = scalar_lea.vmem [#allocation6], 256
        %v9665 = vld [vmem:[%s9664] sm:$0xff]
        %v9666 = vld [vmem:[%s9664 + $0x8] sm:$0xff]
        %v9667 = vld [vmem:[%s9664 + $0x10] sm:$0xff]
        %v9668 = vld [vmem:[%s9664 + $0x18] sm:$0xff]
        %v9670 = vsel %vm586, %v9632, 0
        %v9673 = vsel %vm586, %v9633, 0
        %v9676 = vsel %vm586, %v9634, 0
        %v9679 = vsel %vm586, %v9635, 0
        %v9682 = vsel %vm586, %v9636, 0
        %v9685 = vsel %vm586, %v9637, 0
        %v9688 = vsel %vm586, %v9638, 0
        %v9691 = vsel %vm586, %v9639, 0
        %v9694 = vsel %vm586, %v9640, 0
        %v9697 = vsel %vm586, %v9641, 0
        %v9700 = vsel %vm586, %v9642, 0
        %v9703 = vsel %vm586, %v9643, 0
        %v9706 = vsel %vm586, %v9644, 0
        %v9709 = vsel %vm586, %v9645, 0
        %v9712 = vsel %vm586, %v9646, 0
        %v9715 = vsel %vm586, %v9647, 0
        %v9718 = vsel %vm586, %v9648, 0
        %v9721 = vsel %vm586, %v9649, 0
        %v9724 = vsel %vm586, %v9650, 0
        %v9727 = vsel %vm586, %v9651, 0
        %v9730 = vsel %vm586, %v9652, 0
        %v9733 = vsel %vm586, %v9653, 0
        %v9736 = vsel %vm586, %v9654, 0
        %v9739 = vsel %vm586, %v9655, 0
        %v9742 = vsel %vm586, %v9656, 0
        %v9745 = vsel %vm586, %v9657, 0
        %v9748 = vsel %vm586, %v9658, 0
        %v9751 = vsel %vm586, %v9659, 0
        %v9754 = vsel %vm586, %v9660, 0
        %v9757 = vsel %vm586, %v9661, 0
        %v9760 = vsel %vm586, %v9662, 0
        %v9763 = vsel %vm586, %v9663, 0
        %9765 = vmatpush.msra.mxu0 0.0
        %9766 = vmatpush.msra.mxu0 0.0
        %9767 = vmatpush.msra.mxu0 0.0
        %9768 = vmatpush.msra.mxu0 0.0
        %9769 = vmatpush.msra.mxu0 0.0
        %9770 = vmatpush.msra.mxu0 0.0
        %9771 = vmatpush.msra.mxu0 0.0
        %9772 = vmatpush.msra.mxu0 0.0
        %9773 = vmatpush.msra.mxu0 0.0
        %9774 = vmatpush.msra.mxu0 0.0
        %9775 = vmatpush.msra.mxu0 0.0
        %9776 = vmatpush.msra.mxu0 0.0
        %9777 = vmatpush.msra.mxu0 %v9668
        %9778 = vmatpush.msra.mxu0 %v9667
        %9779 = vmatpush.msra.mxu0 %v9666
        %9780 = vmatpush.msra.mxu0 %v9665
        %9781 = vmatmul.f32.gmra.mxu0 %v9670
        %v9782 = vpop.f32.mrf.mxu0
        %v9783 = vadd.f32 0.0, %v9782
        %9784 = vmatmul.f32.gmra.mxu0 %v9673
        %v9785 = vpop.f32.mrf.mxu0
        %v9786 = vadd.f32 0.0, %v9785
        %9787 = vmatmul.f32.gmra.mxu0 %v9676
        %v9788 = vpop.f32.mrf.mxu0
        %v9789 = vadd.f32 0.0, %v9788
        %9790 = vmatmul.f32.gmra.mxu0 %v9679
        %v9791 = vpop.f32.mrf.mxu0
        %v9792 = vadd.f32 0.0, %v9791
        %9793 = vmatmul.f32.gmra.mxu0 %v9682
        %v9794 = vpop.f32.mrf.mxu0
        %v9795 = vadd.f32 0.0, %v9794
        %9796 = vmatmul.f32.gmra.mxu0 %v9685
        %v9797 = vpop.f32.mrf.mxu0
        %v9798 = vadd.f32 0.0, %v9797
        %9799 = vmatmul.f32.gmra.mxu0 %v9688
        %v9800 = vpop.f32.mrf.mxu0
        %v9801 = vadd.f32 0.0, %v9800
        %9802 = vmatmul.f32.gmra.mxu0 %v9691
        %v9803 = vpop.f32.mrf.mxu0
        %v9804 = vadd.f32 0.0, %v9803
        %9805 = vmatmul.f32.gmra.mxu0 %v9694
        %v9806 = vpop.f32.mrf.mxu0
        %v9807 = vadd.f32 0.0, %v9806
        %9808 = vmatmul.f32.gmra.mxu0 %v9697
        %v9809 = vpop.f32.mrf.mxu0
        %v9810 = vadd.f32 0.0, %v9809
        %9811 = vmatmul.f32.gmra.mxu0 %v9700
        %v9812 = vpop.f32.mrf.mxu0
        %v9813 = vadd.f32 0.0, %v9812
        %9814 = vmatmul.f32.gmra.mxu0 %v9703
        %v9815 = vpop.f32.mrf.mxu0
        %v9816 = vadd.f32 0.0, %v9815
        %9817 = vmatmul.f32.gmra.mxu0 %v9706
        %v9818 = vpop.f32.mrf.mxu0
        %v9819 = vadd.f32 0.0, %v9818
        %9820 = vmatmul.f32.gmra.mxu0 %v9709
        %v9821 = vpop.f32.mrf.mxu0
        %v9822 = vadd.f32 0.0, %v9821
        %9823 = vmatmul.f32.gmra.mxu0 %v9712
        %v9824 = vpop.f32.mrf.mxu0
        %v9825 = vadd.f32 0.0, %v9824
        %9826 = vmatmul.f32.gmra.mxu0 %v9715
        %v9827 = vpop.f32.mrf.mxu0
        %v9828 = vadd.f32 0.0, %v9827
        %9829 = vmatmul.f32.gmra.mxu0 %v9718
        %v9830 = vpop.f32.mrf.mxu0
        %v9831 = vadd.f32 0.0, %v9830
        %9832 = vmatmul.f32.gmra.mxu0 %v9721
        %v9833 = vpop.f32.mrf.mxu0
        %v9834 = vadd.f32 0.0, %v9833
        %9835 = vmatmul.f32.gmra.mxu0 %v9724
        %v9836 = vpop.f32.mrf.mxu0
        %v9837 = vadd.f32 0.0, %v9836
        %9838 = vmatmul.f32.gmra.mxu0 %v9727
        %v9839 = vpop.f32.mrf.mxu0
        %v9840 = vadd.f32 0.0, %v9839
        %9841 = vmatmul.f32.gmra.mxu0 %v9730
        %v9842 = vpop.f32.mrf.mxu0
        %v9843 = vadd.f32 0.0, %v9842
        %9844 = vmatmul.f32.gmra.mxu0 %v9733
        %v9845 = vpop.f32.mrf.mxu0
        %v9846 = vadd.f32 0.0, %v9845
        %9847 = vmatmul.f32.gmra.mxu0 %v9736
        %v9848 = vpop.f32.mrf.mxu0
        %v9849 = vadd.f32 0.0, %v9848
        %9850 = vmatmul.f32.gmra.mxu0 %v9739
        %v9851 = vpop.f32.mrf.mxu0
        %v9852 = vadd.f32 0.0, %v9851
        %9853 = vmatmul.f32.gmra.mxu0 %v9742
        %v9854 = vpop.f32.mrf.mxu0
        %v9855 = vadd.f32 0.0, %v9854
        %9856 = vmatmul.f32.gmra.mxu0 %v9745
        %v9857 = vpop.f32.mrf.mxu0
        %v9858 = vadd.f32 0.0, %v9857
        %9859 = vmatmul.f32.gmra.mxu0 %v9748
        %v9860 = vpop.f32.mrf.mxu0
        %v9861 = vadd.f32 0.0, %v9860
        %9862 = vmatmul.f32.gmra.mxu0 %v9751
        %v9863 = vpop.f32.mrf.mxu0
        %v9864 = vadd.f32 0.0, %v9863
        %9865 = vmatmul.f32.gmra.mxu0 %v9754
        %v9866 = vpop.f32.mrf.mxu0
        %v9867 = vadd.f32 0.0, %v9866
        %9868 = vmatmul.f32.gmra.mxu0 %v9757
        %v9869 = vpop.f32.mrf.mxu0
        %v9870 = vadd.f32 0.0, %v9869
        %9871 = vmatmul.f32.gmra.mxu0 %v9760
        %v9872 = vpop.f32.mrf.mxu0
        %v9873 = vadd.f32 0.0, %v9872
        %9874 = vmatmul.f32.gmra.mxu0 %v9763
        %v9875 = vpop.f32.mrf.mxu0
        %v9876 = vadd.f32 0.0, %v9875
        %9877 = vdwg.mxu0
        %v9878 = vadd.f32 %v9568, %v9783
        %v9879 = vadd.f32 %v9569, %v9786
        %v9880 = vadd.f32 %v9570, %v9789
        %v9881 = vadd.f32 %v9571, %v9792
        %v9882 = vadd.f32 %v9572, %v9795
        %v9883 = vadd.f32 %v9573, %v9798
        %v9884 = vadd.f32 %v9574, %v9801
        %v9885 = vadd.f32 %v9575, %v9804
        %v9886 = vadd.f32 %v9576, %v9807
        %v9887 = vadd.f32 %v9577, %v9810
        %v9888 = vadd.f32 %v9578, %v9813
        %v9889 = vadd.f32 %v9579, %v9816
        %v9890 = vadd.f32 %v9580, %v9819
        %v9891 = vadd.f32 %v9581, %v9822
        %v9892 = vadd.f32 %v9582, %v9825
        %v9893 = vadd.f32 %v9583, %v9828
        %v9894 = vadd.f32 %v9584, %v9831
        %v9895 = vadd.f32 %v9585, %v9834
        %v9896 = vadd.f32 %v9586, %v9837
        %v9897 = vadd.f32 %v9587, %v9840
        %v9898 = vadd.f32 %v9588, %v9843
        %v9899 = vadd.f32 %v9589, %v9846
        %v9900 = vadd.f32 %v9590, %v9849
        %v9901 = vadd.f32 %v9591, %v9852
        %v9902 = vadd.f32 %v9592, %v9855
        %v9903 = vadd.f32 %v9593, %v9858
        %v9904 = vadd.f32 %v9594, %v9861
        %v9905 = vadd.f32 %v9595, %v9864
        %v9906 = vadd.f32 %v9596, %v9867
        %v9907 = vadd.f32 %v9597, %v9870
        %v9908 = vadd.f32 %v9598, %v9873
        %v9909 = vadd.f32 %v9599, %v9876
        %v9910 = vld [vmem:[%s12] sm:$0x1]
        %v9912 = vperm.slane %v9910, 0
        %v9914 = vadd.f32 %v9878, %v9912
        %v9915 = vadd.f32 %v9879, %v9912
        %v9916 = vadd.f32 %v9880, %v9912
        %v9917 = vadd.f32 %v9881, %v9912
        %v9918 = vadd.f32 %v9882, %v9912
        %v9919 = vadd.f32 %v9883, %v9912
        %v9920 = vadd.f32 %v9884, %v9912
        %v9921 = vadd.f32 %v9885, %v9912
        %v9922 = vadd.f32 %v9886, %v9912
        %v9923 = vadd.f32 %v9887, %v9912
        %v9924 = vadd.f32 %v9888, %v9912
        %v9925 = vadd.f32 %v9889, %v9912
        %v9926 = vadd.f32 %v9890, %v9912
        %v9927 = vadd.f32 %v9891, %v9912
        %v9928 = vadd.f32 %v9892, %v9912
        %v9929 = vadd.f32 %v9893, %v9912
        %v9930 = vadd.f32 %v9894, %v9912
        %v9931 = vadd.f32 %v9895, %v9912
        %v9932 = vadd.f32 %v9896, %v9912
        %v9933 = vadd.f32 %v9897, %v9912
        %v9934 = vadd.f32 %v9898, %v9912
        %v9935 = vadd.f32 %v9899, %v9912
        %v9936 = vadd.f32 %v9900, %v9912
        %v9937 = vadd.f32 %v9901, %v9912
        %v9938 = vadd.f32 %v9902, %v9912
        %v9939 = vadd.f32 %v9903, %v9912
        %v9940 = vadd.f32 %v9904, %v9912
        %v9941 = vadd.f32 %v9905, %v9912
        %v9942 = vadd.f32 %v9906, %v9912
        %v9943 = vadd.f32 %v9907, %v9912
        %v9944 = vadd.f32 %v9908, %v9912
        %v9945 = vadd.f32 %v9909, %v9912
        %v9946 = vmax.f32 %v9914, 0.0
        %v9947 = vmax.f32 %v9915, 0.0
        %v9948 = vmax.f32 %v9916, 0.0
        %v9949 = vmax.f32 %v9917, 0.0
        %v9950 = vmax.f32 %v9918, 0.0
        %v9951 = vmax.f32 %v9919, 0.0
        %v9952 = vmax.f32 %v9920, 0.0
        %v9953 = vmax.f32 %v9921, 0.0
        %v9954 = vmax.f32 %v9922, 0.0
        %v9955 = vmax.f32 %v9923, 0.0
        %v9956 = vmax.f32 %v9924, 0.0
        %v9957 = vmax.f32 %v9925, 0.0
        %v9958 = vmax.f32 %v9926, 0.0
        %v9959 = vmax.f32 %v9927, 0.0
        %v9960 = vmax.f32 %v9928, 0.0
        %v9961 = vmax.f32 %v9929, 0.0
        %v9962 = vmax.f32 %v9930, 0.0
        %v9963 = vmax.f32 %v9931, 0.0
        %v9964 = vmax.f32 %v9932, 0.0
        %v9965 = vmax.f32 %v9933, 0.0
        %v9966 = vmax.f32 %v9934, 0.0
        %v9967 = vmax.f32 %v9935, 0.0
        %v9968 = vmax.f32 %v9936, 0.0
        %v9969 = vmax.f32 %v9937, 0.0
        %v9970 = vmax.f32 %v9938, 0.0
        %v9971 = vmax.f32 %v9939, 0.0
        %v9972 = vmax.f32 %v9940, 0.0
        %v9973 = vmax.f32 %v9941, 0.0
        %v9974 = vmax.f32 %v9942, 0.0
        %v9975 = vmax.f32 %v9943, 0.0
        %v9976 = vmax.f32 %v9944, 0.0
        %v9977 = vmax.f32 %v9945, 0.0
        %v9978 = vld [vmem:[%s13] sm:$0xff]
        %v9979 = vld [vmem:[%s13 + $0x8] sm:$0xff]
        %v9980 = vld [vmem:[%s13 + $0x10] sm:$0xff]
        %v9981 = vld [vmem:[%s13 + $0x18] sm:$0xff]
        %v9982 = vld [vmem:[%s14] sm:$0xff]
        %v9983 = vld [vmem:[%s14 + $0x8] sm:$0xff]
        %v9984 = vld [vmem:[%s14 + $0x10] sm:$0xff]
        %v9985 = vld [vmem:[%s14 + $0x18] sm:$0xff]
        %v9987 = vsel %vm586, %v4335, 0
        %v9990 = vsel %vm586, %v4336, 0
        %v9993 = vsel %vm586, %v4337, 0
        %v9996 = vsel %vm586, %v4338, 0
        %v9999 = vsel %vm586, %v4339, 0
        %v10002 = vsel %vm586, %v4340, 0
        %v10005 = vsel %vm586, %v4341, 0
        %v10008 = vsel %vm586, %v4342, 0
        %v10011 = vsel %vm586, %v4343, 0
        %v10014 = vsel %vm586, %v4344, 0
        %v10017 = vsel %vm586, %v4345, 0
        %v10020 = vsel %vm586, %v4346, 0
        %v10023 = vsel %vm586, %v4347, 0
        %v10026 = vsel %vm586, %v4348, 0
        %v10029 = vsel %vm586, %v4349, 0
        %v10032 = vsel %vm586, %v4350, 0
        %v10035 = vsel %vm586, %v4351, 0
        %v10038 = vsel %vm586, %v4352, 0
        %v10041 = vsel %vm586, %v4353, 0
        %v10044 = vsel %vm586, %v4354, 0
        %v10047 = vsel %vm586, %v4355, 0
        %v10050 = vsel %vm586, %v4356, 0
        %v10053 = vsel %vm586, %v4357, 0
        %v10056 = vsel %vm586, %v4358, 0
        %v10059 = vsel %vm586, %v4359, 0
        %v10062 = vsel %vm586, %v4360, 0
        %v10065 = vsel %vm586, %v4361, 0
        %v10068 = vsel %vm586, %v4362, 0
        %v10071 = vsel %vm586, %v4363, 0
        %v10074 = vsel %vm586, %v4364, 0
        %v10077 = vsel %vm586, %v4365, 0
        %v10080 = vsel %vm586, %v4366, 0
        %10082 = vmatpush.msra.mxu0 0.0
        %10083 = vmatpush.msra.mxu0 0.0
        %10084 = vmatpush.msra.mxu0 0.0
        %10085 = vmatpush.msra.mxu0 0.0
        %10086 = vmatpush.msra.mxu0 0.0
        %10087 = vmatpush.msra.mxu0 0.0
        %10088 = vmatpush.msra.mxu0 0.0
        %10089 = vmatpush.msra.mxu0 0.0
        %10090 = vmatpush.msra.mxu0 0.0
        %10091 = vmatpush.msra.mxu0 0.0
        %10092 = vmatpush.msra.mxu0 0.0
        %10093 = vmatpush.msra.mxu0 0.0
        %10094 = vmatpush.msra.mxu0 %v9985
        %10095 = vmatpush.msra.mxu0 %v9984
        %10096 = vmatpush.msra.mxu0 %v9983
        %10097 = vmatpush.msra.mxu0 %v9982
        %10098 = vmatmul.f32.gmra.mxu0 %v9987
        %v10099 = vpop.f32.mrf.mxu0
        %v10100 = vadd.f32 0.0, %v10099
        %10101 = vmatmul.f32.gmra.mxu0 %v9990
        %v10102 = vpop.f32.mrf.mxu0
        %v10103 = vadd.f32 0.0, %v10102
        %10104 = vmatmul.f32.gmra.mxu0 %v9993
        %v10105 = vpop.f32.mrf.mxu0
        %v10106 = vadd.f32 0.0, %v10105
        %10107 = vmatmul.f32.gmra.mxu0 %v9996
        %v10108 = vpop.f32.mrf.mxu0
        %v10109 = vadd.f32 0.0, %v10108
        %10110 = vmatmul.f32.gmra.mxu0 %v9999
        %v10111 = vpop.f32.mrf.mxu0
        %v10112 = vadd.f32 0.0, %v10111
        %10113 = vmatmul.f32.gmra.mxu0 %v10002
        %v10114 = vpop.f32.mrf.mxu0
        %v10115 = vadd.f32 0.0, %v10114
        %10116 = vmatmul.f32.gmra.mxu0 %v10005
        %v10117 = vpop.f32.mrf.mxu0
        %v10118 = vadd.f32 0.0, %v10117
        %10119 = vmatmul.f32.gmra.mxu0 %v10008
        %v10120 = vpop.f32.mrf.mxu0
        %v10121 = vadd.f32 0.0, %v10120
        %10122 = vmatmul.f32.gmra.mxu0 %v10011
        %v10123 = vpop.f32.mrf.mxu0
        %v10124 = vadd.f32 0.0, %v10123
        %10125 = vmatmul.f32.gmra.mxu0 %v10014
        %v10126 = vpop.f32.mrf.mxu0
        %v10127 = vadd.f32 0.0, %v10126
        %10128 = vmatmul.f32.gmra.mxu0 %v10017
        %v10129 = vpop.f32.mrf.mxu0
        %v10130 = vadd.f32 0.0, %v10129
        %10131 = vmatmul.f32.gmra.mxu0 %v10020
        %v10132 = vpop.f32.mrf.mxu0
        %v10133 = vadd.f32 0.0, %v10132
        %10134 = vmatmul.f32.gmra.mxu0 %v10023
        %v10135 = vpop.f32.mrf.mxu0
        %v10136 = vadd.f32 0.0, %v10135
        %10137 = vmatmul.f32.gmra.mxu0 %v10026
        %v10138 = vpop.f32.mrf.mxu0
        %v10139 = vadd.f32 0.0, %v10138
        %10140 = vmatmul.f32.gmra.mxu0 %v10029
        %v10141 = vpop.f32.mrf.mxu0
        %v10142 = vadd.f32 0.0, %v10141
        %10143 = vmatmul.f32.gmra.mxu0 %v10032
        %v10144 = vpop.f32.mrf.mxu0
        %v10145 = vadd.f32 0.0, %v10144
        %10146 = vmatmul.f32.gmra.mxu0 %v10035
        %v10147 = vpop.f32.mrf.mxu0
        %v10148 = vadd.f32 0.0, %v10147
        %10149 = vmatmul.f32.gmra.mxu0 %v10038
        %v10150 = vpop.f32.mrf.mxu0
        %v10151 = vadd.f32 0.0, %v10150
        %10152 = vmatmul.f32.gmra.mxu0 %v10041
        %v10153 = vpop.f32.mrf.mxu0
        %v10154 = vadd.f32 0.0, %v10153
        %10155 = vmatmul.f32.gmra.mxu0 %v10044
        %v10156 = vpop.f32.mrf.mxu0
        %v10157 = vadd.f32 0.0, %v10156
        %10158 = vmatmul.f32.gmra.mxu0 %v10047
        %v10159 = vpop.f32.mrf.mxu0
        %v10160 = vadd.f32 0.0, %v10159
        %10161 = vmatmul.f32.gmra.mxu0 %v10050
        %v10162 = vpop.f32.mrf.mxu0
        %v10163 = vadd.f32 0.0, %v10162
        %10164 = vmatmul.f32.gmra.mxu0 %v10053
        %v10165 = vpop.f32.mrf.mxu0
        %v10166 = vadd.f32 0.0, %v10165
        %10167 = vmatmul.f32.gmra.mxu0 %v10056
        %v10168 = vpop.f32.mrf.mxu0
        %v10169 = vadd.f32 0.0, %v10168
        %10170 = vmatmul.f32.gmra.mxu0 %v10059
        %v10171 = vpop.f32.mrf.mxu0
        %v10172 = vadd.f32 0.0, %v10171
        %10173 = vmatmul.f32.gmra.mxu0 %v10062
        %v10174 = vpop.f32.mrf.mxu0
        %v10175 = vadd.f32 0.0, %v10174
        %10176 = vmatmul.f32.gmra.mxu0 %v10065
        %v10177 = vpop.f32.mrf.mxu0
        %v10178 = vadd.f32 0.0, %v10177
        %10179 = vmatmul.f32.gmra.mxu0 %v10068
        %v10180 = vpop.f32.mrf.mxu0
        %v10181 = vadd.f32 0.0, %v10180
        %10182 = vmatmul.f32.gmra.mxu0 %v10071
        %v10183 = vpop.f32.mrf.mxu0
        %v10184 = vadd.f32 0.0, %v10183
        %10185 = vmatmul.f32.gmra.mxu0 %v10074
        %v10186 = vpop.f32.mrf.mxu0
        %v10187 = vadd.f32 0.0, %v10186
        %10188 = vmatmul.f32.gmra.mxu0 %v10077
        %v10189 = vpop.f32.mrf.mxu0
        %v10190 = vadd.f32 0.0, %v10189
        %10191 = vmatmul.f32.gmra.mxu0 %v10080
        %v10192 = vpop.f32.mrf.mxu0
        %v10193 = vadd.f32 0.0, %v10192
        %10194 = vdwg.mxu0
        %v10196 = vsel %vm586, %v1453, 0
        %v10199 = vsel %vm586, %v1454, 0
        %v10202 = vsel %vm586, %v1455, 0
        %v10205 = vsel %vm586, %v1456, 0
        %v10208 = vsel %vm586, %v1457, 0
        %v10211 = vsel %vm586, %v1458, 0
        %v10214 = vsel %vm586, %v1459, 0
        %v10217 = vsel %vm586, %v1460, 0
        %v10220 = vsel %vm586, %v1461, 0
        %v10223 = vsel %vm586, %v1462, 0
        %v10226 = vsel %vm586, %v1463, 0
        %v10229 = vsel %vm586, %v1464, 0
        %v10232 = vsel %vm586, %v1465, 0
        %v10235 = vsel %vm586, %v1466, 0
        %v10238 = vsel %vm586, %v1467, 0
        %v10241 = vsel %vm586, %v1468, 0
        %v10244 = vsel %vm586, %v1469, 0
        %v10247 = vsel %vm586, %v1470, 0
        %v10250 = vsel %vm586, %v1471, 0
        %v10253 = vsel %vm586, %v1472, 0
        %v10256 = vsel %vm586, %v1473, 0
        %v10259 = vsel %vm586, %v1474, 0
        %v10262 = vsel %vm586, %v1475, 0
        %v10265 = vsel %vm586, %v1476, 0
        %v10268 = vsel %vm586, %v1477, 0
        %v10271 = vsel %vm586, %v1478, 0
        %v10274 = vsel %vm586, %v1479, 0
        %v10277 = vsel %vm586, %v1480, 0
        %v10280 = vsel %vm586, %v1481, 0
        %v10283 = vsel %vm586, %v1482, 0
        %v10286 = vsel %vm586, %v1483, 0
        %v10289 = vsel %vm586, %v1484, 0
        %10291 = vmatpush.msra.mxu0 0.0
        %10292 = vmatpush.msra.mxu0 0.0
        %10293 = vmatpush.msra.mxu0 0.0
        %10294 = vmatpush.msra.mxu0 0.0
        %10295 = vmatpush.msra.mxu0 0.0
        %10296 = vmatpush.msra.mxu0 0.0
        %10297 = vmatpush.msra.mxu0 0.0
        %10298 = vmatpush.msra.mxu0 0.0
        %10299 = vmatpush.msra.mxu0 0.0
        %10300 = vmatpush.msra.mxu0 0.0
        %10301 = vmatpush.msra.mxu0 0.0
        %10302 = vmatpush.msra.mxu0 0.0
        %10303 = vmatpush.msra.mxu0 %v9981
        %10304 = vmatpush.msra.mxu0 %v9980
        %10305 = vmatpush.msra.mxu0 %v9979
        %10306 = vmatpush.msra.mxu0 %v9978
        %10307 = vmatmul.f32.gmra.mxu0 %v10196
        %v10308 = vpop.f32.mrf.mxu0
        %v10309 = vadd.f32 %v10100, %v10308
        %10310 = vmatmul.f32.gmra.mxu0 %v10199
        %v10311 = vpop.f32.mrf.mxu0
        %v10312 = vadd.f32 %v10103, %v10311
        %10313 = vmatmul.f32.gmra.mxu0 %v10202
        %v10314 = vpop.f32.mrf.mxu0
        %v10315 = vadd.f32 %v10106, %v10314
        %10316 = vmatmul.f32.gmra.mxu0 %v10205
        %v10317 = vpop.f32.mrf.mxu0
        %v10318 = vadd.f32 %v10109, %v10317
        %10319 = vmatmul.f32.gmra.mxu0 %v10208
        %v10320 = vpop.f32.mrf.mxu0
        %v10321 = vadd.f32 %v10112, %v10320
        %10322 = vmatmul.f32.gmra.mxu0 %v10211
        %v10323 = vpop.f32.mrf.mxu0
        %v10324 = vadd.f32 %v10115, %v10323
        %10325 = vmatmul.f32.gmra.mxu0 %v10214
        %v10326 = vpop.f32.mrf.mxu0
        %v10327 = vadd.f32 %v10118, %v10326
        %10328 = vmatmul.f32.gmra.mxu0 %v10217
        %v10329 = vpop.f32.mrf.mxu0
        %v10330 = vadd.f32 %v10121, %v10329
        %10331 = vmatmul.f32.gmra.mxu0 %v10220
        %v10332 = vpop.f32.mrf.mxu0
        %v10333 = vadd.f32 %v10124, %v10332
        %10334 = vmatmul.f32.gmra.mxu0 %v10223
        %v10335 = vpop.f32.mrf.mxu0
        %v10336 = vadd.f32 %v10127, %v10335
        %10337 = vmatmul.f32.gmra.mxu0 %v10226
        %v10338 = vpop.f32.mrf.mxu0
        %v10339 = vadd.f32 %v10130, %v10338
        %10340 = vmatmul.f32.gmra.mxu0 %v10229
        %v10341 = vpop.f32.mrf.mxu0
        %v10342 = vadd.f32 %v10133, %v10341
        %10343 = vmatmul.f32.gmra.mxu0 %v10232
        %v10344 = vpop.f32.mrf.mxu0
        %v10345 = vadd.f32 %v10136, %v10344
        %10346 = vmatmul.f32.gmra.mxu0 %v10235
        %v10347 = vpop.f32.mrf.mxu0
        %v10348 = vadd.f32 %v10139, %v10347
        %10349 = vmatmul.f32.gmra.mxu0 %v10238
        %v10350 = vpop.f32.mrf.mxu0
        %v10351 = vadd.f32 %v10142, %v10350
        %10352 = vmatmul.f32.gmra.mxu0 %v10241
        %v10353 = vpop.f32.mrf.mxu0
        %v10354 = vadd.f32 %v10145, %v10353
        %10355 = vmatmul.f32.gmra.mxu0 %v10244
        %v10356 = vpop.f32.mrf.mxu0
        %v10357 = vadd.f32 %v10148, %v10356
        %10358 = vmatmul.f32.gmra.mxu0 %v10247
        %v10359 = vpop.f32.mrf.mxu0
        %v10360 = vadd.f32 %v10151, %v10359
        %10361 = vmatmul.f32.gmra.mxu0 %v10250
        %v10362 = vpop.f32.mrf.mxu0
        %v10363 = vadd.f32 %v10154, %v10362
        %10364 = vmatmul.f32.gmra.mxu0 %v10253
        %v10365 = vpop.f32.mrf.mxu0
        %v10366 = vadd.f32 %v10157, %v10365
        %10367 = vmatmul.f32.gmra.mxu0 %v10256
        %v10368 = vpop.f32.mrf.mxu0
        %v10369 = vadd.f32 %v10160, %v10368
        %10370 = vmatmul.f32.gmra.mxu0 %v10259
        %v10371 = vpop.f32.mrf.mxu0
        %v10372 = vadd.f32 %v10163, %v10371
        %10373 = vmatmul.f32.gmra.mxu0 %v10262
        %v10374 = vpop.f32.mrf.mxu0
        %v10375 = vadd.f32 %v10166, %v10374
        %10376 = vmatmul.f32.gmra.mxu0 %v10265
        %v10377 = vpop.f32.mrf.mxu0
        %v10378 = vadd.f32 %v10169, %v10377
        %10379 = vmatmul.f32.gmra.mxu0 %v10268
        %v10380 = vpop.f32.mrf.mxu0
        %v10381 = vadd.f32 %v10172, %v10380
        %10382 = vmatmul.f32.gmra.mxu0 %v10271
        %v10383 = vpop.f32.mrf.mxu0
        %v10384 = vadd.f32 %v10175, %v10383
        %10385 = vmatmul.f32.gmra.mxu0 %v10274
        %v10386 = vpop.f32.mrf.mxu0
        %v10387 = vadd.f32 %v10178, %v10386
        %10388 = vmatmul.f32.gmra.mxu0 %v10277
        %v10389 = vpop.f32.mrf.mxu0
        %v10390 = vadd.f32 %v10181, %v10389
        %10391 = vmatmul.f32.gmra.mxu0 %v10280
        %v10392 = vpop.f32.mrf.mxu0
        %v10393 = vadd.f32 %v10184, %v10392
        %10394 = vmatmul.f32.gmra.mxu0 %v10283
        %v10395 = vpop.f32.mrf.mxu0
        %v10396 = vadd.f32 %v10187, %v10395
        %10397 = vmatmul.f32.gmra.mxu0 %v10286
        %v10398 = vpop.f32.mrf.mxu0
        %v10399 = vadd.f32 %v10190, %v10398
        %10400 = vmatmul.f32.gmra.mxu0 %v10289
        %v10401 = vpop.f32.mrf.mxu0
        %v10402 = vadd.f32 %v10193, %v10401
        %10403 = vdwg.mxu0
        %v10404 = vld [vmem:[%s15] sm:$0xff]
        %v10405 = vld [vmem:[%s15 + $0x8] sm:$0xff]
        %v10406 = vld [vmem:[%s15 + $0x10] sm:$0xff]
        %v10407 = vld [vmem:[%s15 + $0x18] sm:$0xff]
        %v10409 = vsel %vm586, %v9946, 0
        %v10412 = vsel %vm586, %v9947, 0
        %v10415 = vsel %vm586, %v9948, 0
        %v10418 = vsel %vm586, %v9949, 0
        %v10421 = vsel %vm586, %v9950, 0
        %v10424 = vsel %vm586, %v9951, 0
        %v10427 = vsel %vm586, %v9952, 0
        %v10430 = vsel %vm586, %v9953, 0
        %v10433 = vsel %vm586, %v9954, 0
        %v10436 = vsel %vm586, %v9955, 0
        %v10439 = vsel %vm586, %v9956, 0
        %v10442 = vsel %vm586, %v9957, 0
        %v10445 = vsel %vm586, %v9958, 0
        %v10448 = vsel %vm586, %v9959, 0
        %v10451 = vsel %vm586, %v9960, 0
        %v10454 = vsel %vm586, %v9961, 0
        %v10457 = vsel %vm586, %v9962, 0
        %v10460 = vsel %vm586, %v9963, 0
        %v10463 = vsel %vm586, %v9964, 0
        %v10466 = vsel %vm586, %v9965, 0
        %v10469 = vsel %vm586, %v9966, 0
        %v10472 = vsel %vm586, %v9967, 0
        %v10475 = vsel %vm586, %v9968, 0
        %v10478 = vsel %vm586, %v9969, 0
        %v10481 = vsel %vm586, %v9970, 0
        %v10484 = vsel %vm586, %v9971, 0
        %v10487 = vsel %vm586, %v9972, 0
        %v10490 = vsel %vm586, %v9973, 0
        %v10493 = vsel %vm586, %v9974, 0
        %v10496 = vsel %vm586, %v9975, 0
        %v10499 = vsel %vm586, %v9976, 0
        %v10502 = vsel %vm586, %v9977, 0
        %10504 = vmatpush.msra.mxu0 0.0
        %10505 = vmatpush.msra.mxu0 0.0
        %10506 = vmatpush.msra.mxu0 0.0
        %10507 = vmatpush.msra.mxu0 0.0
        %10508 = vmatpush.msra.mxu0 0.0
        %10509 = vmatpush.msra.mxu0 0.0
        %10510 = vmatpush.msra.mxu0 0.0
        %10511 = vmatpush.msra.mxu0 0.0
        %10512 = vmatpush.msra.mxu0 0.0
        %10513 = vmatpush.msra.mxu0 0.0
        %10514 = vmatpush.msra.mxu0 0.0
        %10515 = vmatpush.msra.mxu0 0.0
        %10516 = vmatpush.msra.mxu0 %v10407
        %10517 = vmatpush.msra.mxu0 %v10406
        %10518 = vmatpush.msra.mxu0 %v10405
        %10519 = vmatpush.msra.mxu0 %v10404
        %10520 = vmatmul.f32.gmra.mxu0 %v10409
        %v10521 = vpop.f32.mrf.mxu0
        %v10522 = vadd.f32 0.0, %v10521
        %10523 = vmatmul.f32.gmra.mxu0 %v10412
        %v10524 = vpop.f32.mrf.mxu0
        %v10525 = vadd.f32 0.0, %v10524
        %10526 = vmatmul.f32.gmra.mxu0 %v10415
        %v10527 = vpop.f32.mrf.mxu0
        %v10528 = vadd.f32 0.0, %v10527
        %10529 = vmatmul.f32.gmra.mxu0 %v10418
        %v10530 = vpop.f32.mrf.mxu0
        %v10531 = vadd.f32 0.0, %v10530
        %10532 = vmatmul.f32.gmra.mxu0 %v10421
        %v10533 = vpop.f32.mrf.mxu0
        %v10534 = vadd.f32 0.0, %v10533
        %10535 = vmatmul.f32.gmra.mxu0 %v10424
        %v10536 = vpop.f32.mrf.mxu0
        %v10537 = vadd.f32 0.0, %v10536
        %10538 = vmatmul.f32.gmra.mxu0 %v10427
        %v10539 = vpop.f32.mrf.mxu0
        %v10540 = vadd.f32 0.0, %v10539
        %10541 = vmatmul.f32.gmra.mxu0 %v10430
        %v10542 = vpop.f32.mrf.mxu0
        %v10543 = vadd.f32 0.0, %v10542
        %10544 = vmatmul.f32.gmra.mxu0 %v10433
        %v10545 = vpop.f32.mrf.mxu0
        %v10546 = vadd.f32 0.0, %v10545
        %10547 = vmatmul.f32.gmra.mxu0 %v10436
        %v10548 = vpop.f32.mrf.mxu0
        %v10549 = vadd.f32 0.0, %v10548
        %10550 = vmatmul.f32.gmra.mxu0 %v10439
        %v10551 = vpop.f32.mrf.mxu0
        %v10552 = vadd.f32 0.0, %v10551
        %10553 = vmatmul.f32.gmra.mxu0 %v10442
        %v10554 = vpop.f32.mrf.mxu0
        %v10555 = vadd.f32 0.0, %v10554
        %10556 = vmatmul.f32.gmra.mxu0 %v10445
        %v10557 = vpop.f32.mrf.mxu0
        %v10558 = vadd.f32 0.0, %v10557
        %10559 = vmatmul.f32.gmra.mxu0 %v10448
        %v10560 = vpop.f32.mrf.mxu0
        %v10561 = vadd.f32 0.0, %v10560
        %10562 = vmatmul.f32.gmra.mxu0 %v10451
        %v10563 = vpop.f32.mrf.mxu0
        %v10564 = vadd.f32 0.0, %v10563
        %10565 = vmatmul.f32.gmra.mxu0 %v10454
        %v10566 = vpop.f32.mrf.mxu0
        %v10567 = vadd.f32 0.0, %v10566
        %10568 = vmatmul.f32.gmra.mxu0 %v10457
        %v10569 = vpop.f32.mrf.mxu0
        %v10570 = vadd.f32 0.0, %v10569
        %10571 = vmatmul.f32.gmra.mxu0 %v10460
        %v10572 = vpop.f32.mrf.mxu0
        %v10573 = vadd.f32 0.0, %v10572
        %10574 = vmatmul.f32.gmra.mxu0 %v10463
        %v10575 = vpop.f32.mrf.mxu0
        %v10576 = vadd.f32 0.0, %v10575
        %10577 = vmatmul.f32.gmra.mxu0 %v10466
        %v10578 = vpop.f32.mrf.mxu0
        %v10579 = vadd.f32 0.0, %v10578
        %10580 = vmatmul.f32.gmra.mxu0 %v10469
        %v10581 = vpop.f32.mrf.mxu0
        %v10582 = vadd.f32 0.0, %v10581
        %10583 = vmatmul.f32.gmra.mxu0 %v10472
        %v10584 = vpop.f32.mrf.mxu0
        %v10585 = vadd.f32 0.0, %v10584
        %10586 = vmatmul.f32.gmra.mxu0 %v10475
        %v10587 = vpop.f32.mrf.mxu0
        %v10588 = vadd.f32 0.0, %v10587
        %10589 = vmatmul.f32.gmra.mxu0 %v10478
        %v10590 = vpop.f32.mrf.mxu0
        %v10591 = vadd.f32 0.0, %v10590
        %10592 = vmatmul.f32.gmra.mxu0 %v10481
        %v10593 = vpop.f32.mrf.mxu0
        %v10594 = vadd.f32 0.0, %v10593
        %10595 = vmatmul.f32.gmra.mxu0 %v10484
        %v10596 = vpop.f32.mrf.mxu0
        %v10597 = vadd.f32 0.0, %v10596
        %10598 = vmatmul.f32.gmra.mxu0 %v10487
        %v10599 = vpop.f32.mrf.mxu0
        %v10600 = vadd.f32 0.0, %v10599
        %10601 = vmatmul.f32.gmra.mxu0 %v10490
        %v10602 = vpop.f32.mrf.mxu0
        %v10603 = vadd.f32 0.0, %v10602
        %10604 = vmatmul.f32.gmra.mxu0 %v10493
        %v10605 = vpop.f32.mrf.mxu0
        %v10606 = vadd.f32 0.0, %v10605
        %10607 = vmatmul.f32.gmra.mxu0 %v10496
        %v10608 = vpop.f32.mrf.mxu0
        %v10609 = vadd.f32 0.0, %v10608
        %10610 = vmatmul.f32.gmra.mxu0 %v10499
        %v10611 = vpop.f32.mrf.mxu0
        %v10612 = vadd.f32 0.0, %v10611
        %10613 = vmatmul.f32.gmra.mxu0 %v10502
        %v10614 = vpop.f32.mrf.mxu0
        %v10615 = vadd.f32 0.0, %v10614
        %10616 = vdwg.mxu0
        %v10617 = vadd.f32 %v10309, %v10522
        %v10618 = vadd.f32 %v10312, %v10525
        %v10619 = vadd.f32 %v10315, %v10528
        %v10620 = vadd.f32 %v10318, %v10531
        %v10621 = vadd.f32 %v10321, %v10534
        %v10622 = vadd.f32 %v10324, %v10537
        %v10623 = vadd.f32 %v10327, %v10540
        %v10624 = vadd.f32 %v10330, %v10543
        %v10625 = vadd.f32 %v10333, %v10546
        %v10626 = vadd.f32 %v10336, %v10549
        %v10627 = vadd.f32 %v10339, %v10552
        %v10628 = vadd.f32 %v10342, %v10555
        %v10629 = vadd.f32 %v10345, %v10558
        %v10630 = vadd.f32 %v10348, %v10561
        %v10631 = vadd.f32 %v10351, %v10564
        %v10632 = vadd.f32 %v10354, %v10567
        %v10633 = vadd.f32 %v10357, %v10570
        %v10634 = vadd.f32 %v10360, %v10573
        %v10635 = vadd.f32 %v10363, %v10576
        %v10636 = vadd.f32 %v10366, %v10579
        %v10637 = vadd.f32 %v10369, %v10582
        %v10638 = vadd.f32 %v10372, %v10585
        %v10639 = vadd.f32 %v10375, %v10588
        %v10640 = vadd.f32 %v10378, %v10591
        %v10641 = vadd.f32 %v10381, %v10594
        %v10642 = vadd.f32 %v10384, %v10597
        %v10643 = vadd.f32 %v10387, %v10600
        %v10644 = vadd.f32 %v10390, %v10603
        %v10645 = vadd.f32 %v10393, %v10606
        %v10646 = vadd.f32 %v10396, %v10609
        %v10647 = vadd.f32 %v10399, %v10612
        %v10648 = vadd.f32 %v10402, %v10615
        %10649 = vst [vmem:[%s548] sm:$0xff] %v10617
        %10650 = vst [vmem:[%s548 + $0x8] sm:$0xff] %v10618
        %10651 = vst [vmem:[%s548 + $0x10] sm:$0xff] %v10619
        %10652 = vst [vmem:[%s548 + $0x18] sm:$0xff] %v10620
        %10653 = vst [vmem:[%s548 + $0x20] sm:$0xff] %v10621
        %10654 = vst [vmem:[%s548 + $0x28] sm:$0xff] %v10622
        %10655 = vst [vmem:[%s548 + $0x30] sm:$0xff] %v10623
        %10656 = vst [vmem:[%s548 + $0x38] sm:$0xff] %v10624
        %10657 = vst [vmem:[%s548 + $0x40] sm:$0xff] %v10625
        %10658 = vst [vmem:[%s548 + $0x48] sm:$0xff] %v10626
        %10659 = vst [vmem:[%s548 + $0x50] sm:$0xff] %v10627
        %10660 = vst [vmem:[%s548 + $0x58] sm:$0xff] %v10628
        %10661 = vst [vmem:[%s548 + $0x60] sm:$0xff] %v10629
        %10662 = vst [vmem:[%s548 + $0x68] sm:$0xff] %v10630
        %10663 = vst [vmem:[%s548 + $0x70] sm:$0xff] %v10631
        %10664 = vst [vmem:[%s548 + $0x78] sm:$0xff] %v10632
        %10665 = vst [vmem:[%s548 + $0x80] sm:$0xff] %v10633
        %10666 = vst [vmem:[%s548 + $0x88] sm:$0xff] %v10634
        %10667 = vst [vmem:[%s548 + $0x90] sm:$0xff] %v10635
        %10668 = vst [vmem:[%s548 + $0x98] sm:$0xff] %v10636
        %10669 = vst [vmem:[%s548 + $0xa0] sm:$0xff] %v10637
        %10670 = vst [vmem:[%s548 + $0xa8] sm:$0xff] %v10638
        %10671 = vst [vmem:[%s548 + $0xb0] sm:$0xff] %v10639
        %10672 = vst [vmem:[%s548 + $0xb8] sm:$0xff] %v10640
        %10673 = vst [vmem:[%s548 + $0xc0] sm:$0xff] %v10641
        %10674 = vst [vmem:[%s548 + $0xc8] sm:$0xff] %v10642
        %10675 = vst [vmem:[%s548 + $0xd0] sm:$0xff] %v10643
        %10676 = vst [vmem:[%s548 + $0xd8] sm:$0xff] %v10644
        %10677 = vst [vmem:[%s548 + $0xe0] sm:$0xff] %v10645
        %10678 = vst [vmem:[%s548 + $0xe8] sm:$0xff] %v10646
        %10679 = vst [vmem:[%s548 + $0xf0] sm:$0xff] %v10647
        %10680 = vst [vmem:[%s548 + $0xf8] sm:$0xff] %v10648
        %s10681 = sand.u32 %s381, 1
        %s10682 = scalar_lea.sflag [#allocation5], %s10681
        %s10683 = sand.u32 %s381, 1
        %s10684 = smul.addr %s10683, 256
        %s10685 = scalar_lea.vmem [#allocation8], %s10684
        // Predicated region
        $region93: #{tpu_custom_call.1} parent=83 // pred_check
          %p10686 = pneg %p391
        $region94: #{tpu_custom_call.1} parent=83 // pred_check_branch
          %10688 = sbr.rel (%p10686) target = $region96
        $region95: #{tpu_custom_call.1} parent=83 // pred_region
          %10690 = vsyncadd %s10682, 0
          %s10691 = smul.addr %s32, 32
          %s10692 = smul.addr %s10691, 8
          %s10693 = scalar_lea.hbm %s16, %s10692
          %s10694 = sshll.u32 %s10685, 4
          %s10695 = int_to_ptr.vmem [resolvable:$true] %s10694
          %s10696 = sshll.u32 %s10693, 4
          %s10697 = int_to_ptr.hbm [resolvable:$true] %s10696
          %10702 = dma.vmem_to_hbm [thread:$0]  %s10695, 4096, %s10697, %s10682, 128, 128, 8
        $region96: #{tpu_custom_call.1} parent=83 // pred_fallthru
          _
      $region84: #{tpu_custom_call.1} parent=5 // pred_fallthru
        _
      %p10703 = scmp.le.s32.totalorder 2, %s27
      // Predicated region
      $region97: #{tpu_custom_call.1} parent=5 // pred_check
        %p10704 = pneg %p10703
      $region98: #{tpu_custom_call.1} parent=5 // pred_check_branch
        %10706 = sbr.rel (%p10704) target = $region100
      $region99: #{tpu_custom_call.1} parent=5 // pred_region
        %s10707 = ssub.s32 %s27, 2
        // Predicated region
        $region101: #{tpu_custom_call.1} parent=99 // pred_check
          %p10708 = pneg %p397
        $region102: #{tpu_custom_call.1} parent=99 // pred_check_branch
          %10710 = sbr.rel (%p10708) target = $region104
        $region103: #{tpu_custom_call.1} parent=99 // pred_region
          %s10711 = sand.u32 %s382, 1
          %s10712 = scalar_lea.sflag [#allocation5], %s10711
          %s10713 = sand.u32 %s382, 1
          %s10714 = smul.addr %s10713, 256
          %s10715 = scalar_lea.vmem [#allocation8], %s10714
          %10717 = dma.done %s10712, 4096
        $region104: #{tpu_custom_call.1} parent=99 // pred_fallthru
          _
      $region100: #{tpu_custom_call.1} parent=5 // pred_fallthru
        _
    $region6: #{tpu_custom_call.1} parent=1 // loop_footer
      %s31 = sadd.s32 1, %s27
    $region7: #{tpu_custom_call.1} parent=1 // loop_footer_branch
      %26 = sbr.rel target = $region3
    $region8: #{tpu_custom_call.1} parent=1 // loop_exit
      _
    %10718 = vsyncpa [#allocation4], 1
    %s10719 = scalar_lea.sflag [#allocation4], 1
    %10720 = vsyncpa %s10719, 1
    %10721 = vsyncpa [#allocation7], 1
    %10722 = vsyncpa [#allocation5], 1
    %s10723 = scalar_lea.sflag [#allocation5], 1
    %10724 = vsyncpa %s10723, 1

</llo_original>
